<compile_context>
chip_gen: v7x
topology: tpu7x:2x2x1
jax: 0.10.0
libtpu: 0.0.40
codegen_flags: <defaults>
</compile_context>

<pallas_src>
import functools
import math

import numpy as np
import jax
import jax.numpy as jnp
from jax.experimental import pallas as pl
from jax.experimental.pallas import tpu as pltpu


# ------------------------------ Pallas kernel -------------------------------

def _fused_isab_kernel(v_ref, q0_ref, bias0_ref, bias1_ref,
                       wk0_ref, bk0_ref, wv0_ref, bv0_ref,
                       wo0_ref, bo0_ref,
                       wq1_ref, bq1_ref, wk1_ref, bk1_ref,
                       wv1_ref, bv1_ref, wo1_ref, bo1_ref,
                       wc_ref, bc_ref, o_ref, *, num_heads):
    """Fused ISAB (MAB0 -> MAB1) + classifier for BLOCK_B hyperedges.

    v_ref:      (Bt, S, Din)   mailbox block
    q0_ref:     (Bt*M, Dh)     fc_q(I), precomputed and tiled Bt times
    bias*_ref:  block-diagonal attention biases (0 inside a hyperedge's
                block, -1e30 outside) so one big matmul covers all Bt sets.
    o_ref:      (Bt*S, C_pad)  lane-dense logits (C padded to 128)
    """
    f32 = jnp.float32
    Bt, S, Din = v_ref.shape
    Dh = wk0_ref.shape[1]

    # Fold the Bt hyperedges onto matmul rows.  S == 8 (one sublane tile), so
    # this reshape is a pure layout reinterpretation.
    v_flat = v_ref[...].reshape(Bt * S, Din)                    # (Bt*S, Din)

    def linear(x, w_ref, b_ref):
        return jnp.dot(x, w_ref[...], preferred_element_type=f32) + b_ref[...]

    def mha(Qp, Kp, Vp, bias):
        """Block-diagonal multi-head attention.
        Qp: (Rq, Dh), Kp/Vp: (Rk, Dh), bias: (Rq, Rk)."""
        dh = Dh // num_heads
        scale = 1.0 / math.sqrt(Dh)                  # Set-Transformer: sqrt(dim_V)
        outs = []
        for h in range(num_heads):                   # small static unroll
            sl = slice(h * dh, (h + 1) * dh)
            Qh, Kh, Vh = Qp[:, sl], Kp[:, sl], Vp[:, sl]
            s = jax.lax.dot_general(Qh, Kh, (((1,), (1,)), ((), ())),
                                    preferred_element_type=f32) * scale + bias
            s = s - jnp.max(s, axis=-1, keepdims=True)
            e = jnp.exp(s)
            a = e * pl.reciprocal(jnp.sum(e, axis=-1, keepdims=True), approx=True)
            outs.append(Qh + jnp.dot(a, Vh, preferred_element_type=f32))
        return jnp.concatenate(outs, axis=-1)                   # (Rq, Dh)

    # ---- MAB0:  H = MAB(I, v)  (fc_q(I) precomputed outside) ---------------
    q0 = q0_ref[...]                                            # (Bt*M, Dh)
    k0 = linear(v_flat, wk0_ref, bk0_ref)                       # (Bt*S, Dh)
    u0 = linear(v_flat, wv0_ref, bv0_ref)                       # (Bt*S, Dh)
    o0 = mha(q0, k0, u0, bias0_ref[...])                        # (Bt*M, Dh)
    hfe = o0 + jax.nn.relu(linear(o0, wo0_ref, bo0_ref))        # (Bt*M, Dh)

    # ---- MAB1:  X = MAB(v, H) ----------------------------------------------
    q1 = linear(v_flat, wq1_ref, bq1_ref)                       # (Bt*S, Dh)
    k1 = linear(hfe, wk1_ref, bk1_ref)                          # (Bt*M, Dh)
    u1 = linear(hfe, wv1_ref, bv1_ref)                          # (Bt*M, Dh)
    o1 = mha(q1, k1, u1, bias1_ref[...])                        # (Bt*S, Dh)
    x = o1 + jax.nn.relu(linear(o1, wo1_ref, bo1_ref))          # (Bt*S, Dh)

    # ---- classifier: lane-dense output (class dim pre-padded to 128) --------
    o_ref[...] = linear(x, wc_ref, bc_ref).astype(o_ref.dtype)


# --------------------------------- wrapper ----------------------------------

def _blockdiag_bias(nblocks, q_per, k_per):
    """(nblocks*q_per, nblocks*k_per) additive bias: 0 on the block diagonal,
    -1e30 elsewhere.  Static (numpy) -> baked as a small constant operand."""
    r = np.arange(nblocks * q_per) // q_per
    c = np.arange(nblocks * k_per) // k_per
    return jnp.asarray(np.where(r[:, None] == c[None, :], 0.0, -1e30),
                       dtype=jnp.float32)


def whatsnet_im_forward(v, labels, I, p0, p1, wc, bc, *,
                        num_heads, block_b=16):
    """Pallas-backed equivalent of WhatsnetIM.reduce_func + output collection.

    v: (B, S, D_in) hyperedge mailbox, labels: (B, S) int.
    Returns (logits (B*S, C), labels (B*S,)).
    Keep block_b moderate (16-32): the block-diag score matrices grow as
    (block_b*M) x (block_b*S).
    """
    B, S, Din = v.shape
    M, Dh = I.shape[-2], I.shape[-1]
    C = wc.shape[1]
    c_pad = 128                                     # lane-dense classifier slab

    nb = pl.cdiv(B, block_b)
    Bp = nb * block_b
    if Bp != B:                                     # pad batch to full blocks
        v = jnp.pad(v, ((0, Bp - B), (0, 0), (0, 0)))

    # fc_q(I) of MAB0 is identical for every hyperedge: compute once, tile
    # only block_b times (constant index_map), never materialize per-B copies.
    q0_one = I.reshape(M, Dh) @ p0["wq"] + p0["bq"]             # (M, Dh)
    q0_tiled = jnp.tile(q0_one, (block_b, 1))                   # (block_b*M, Dh)

    wc_p = jnp.pad(wc, ((0, 0), (0, c_pad - C)))
    bc_p = jnp.pad(bc, ((0, 0), (0, c_pad - C)))
    bias0 = _blockdiag_bias(block_b, M, S)          # (block_b*M, block_b*S)
    bias1 = _blockdiag_bias(block_b, S, M)          # (block_b*S, block_b*M)

    kernel = functools.partial(_fused_isab_kernel, num_heads=num_heads)

    def const_spec(arr):
        n = arr.ndim
        return pl.BlockSpec(arr.shape, lambda b, n=n: (0,) * n)

    flat_out = pl.pallas_call(
        kernel,
        out_shape=jax.ShapeDtypeStruct((Bp * S, c_pad), jnp.float32),
        grid=(nb,),
        in_specs=[
            pl.BlockSpec((block_b, S, Din), lambda b: (b, 0, 0)),
            const_spec(q0_tiled), const_spec(bias0), const_spec(bias1),
            const_spec(p0["wk"]), const_spec(p0["bk"]),
            const_spec(p0["wv"]), const_spec(p0["bv"]),
            const_spec(p0["wo"]), const_spec(p0["bo"]),
            const_spec(p1["wq"]), const_spec(p1["bq"]),
            const_spec(p1["wk"]), const_spec(p1["bk"]),
            const_spec(p1["wv"]), const_spec(p1["bv"]),
            const_spec(p1["wo"]), const_spec(p1["bo"]),
            const_spec(wc_p), const_spec(bc_p),
        ],
        out_specs=pl.BlockSpec((block_b * S, c_pad), lambda b: (b, 0)),
        compiler_params=pltpu.CompilerParams(
            dimension_semantics=("parallel",),
            vmem_limit_bytes=32 * 1024 * 1024),
    )(v, q0_tiled, bias0, bias1,
      p0["wk"], p0["bk"], p0["wv"], p0["bv"], p0["wo"], p0["bo"],
      p1["wq"], p1["bq"], p1["wk"], p1["bk"],
      p1["wv"], p1["bv"], p1["wo"], p1["bo"],
      wc_p, bc_p)

    logits = flat_out[:B * S, :C]
    return logits, labels.reshape(-1)


# ---------------------------- pure-JAX reference ----------------------------

def _mab_ref(Q, K, p, num_heads):
    Qp = Q @ p["wq"] + p["bq"]
    Kp = K @ p["wk"] + p["bk"]
    Vp = K @ p["wv"] + p["bv"]
    dv = p["wq"].shape[1]
    dh = dv // num_heads
    split = lambda x: x.reshape(x.shape[0], x.shape[1], num_heads, dh)
    Qh, Kh, Vh = split(Qp), split(Kp), split(Vp)
    s = jnp.einsum("bqhd,bkhd->bhqk", Qh, Kh) / math.sqrt(dv)
    A = jax.nn.softmax(s, axis=-1)
    ctx = jnp.einsum("bhqk,bkhd->bqhd", A, Vh).reshape(Qp.shape)
    O = Qp + ctx
    return O + jax.nn.relu(O @ p["wo"] + p["bo"])


def _forward_ref(v, labels, I, p0, p1, wc, bc, num_heads):
    B = v.shape[0]
    I_rep = jnp.broadcast_to(I, (B,) + I.shape[1:])
    H = _mab_ref(I_rep, v, p0, num_heads)
    X = _mab_ref(v, H, p1, num_heads)
    logits = X @ wc + bc
    return logits.reshape(-1, wc.shape[1]), labels.reshape(-1)


# --------------------------- param initialization ---------------------------

def init_linear(key, fan_in, fan_out):
    kw, kb = jax.random.split(key)
    bound = 1.0 / math.sqrt(fan_in)
    w = jax.random.uniform(kw, (fan_in, fan_out), jnp.float32, -bound, bound)
    b = jax.random.uniform(kb, (1, fan_out), jnp.float32, -bound, bound)
    return w, b


def init_mab(key, dq, dk, dv):
    ks = jax.random.split(key, 4)
    wq, bq = init_linear(ks[0], dq, dv)
    wk, bk = init_linear(ks[1], dk, dv)
    wv, bv = init_linear(ks[2], dk, dv)
    wo, bo = init_linear(ks[3], dv, dv)
    return dict(wq=wq, bq=bq, wk=wk, bk=bk, wv=wv, bv=bv, wo=wo, bo=bo)


# ----------------------------------- main ------------------------------------

if __name__ == "__main__":
    NUM_NODES = 32   # vertices in the hypergraph
    B = 64           # hyperedges in one mailbox batch (all with S members)
    S = 8            # nodes per hyperedge (mailbox set size)
    D_IN = 16        # input_dim
    D_H = 32         # dim_hidden
    NHEADS = 4       # num_heads
    NINDS = 4        # num_inds (ISAB inducing points)
    C = 3            # num_classes
    BLOCK_B = 16     # hyperedges per grid step -> BLOCK_B*S = 128 matmul rows

    key = jax.random.PRNGKey(0)
    k_feat, k_idx, k_lab, k_I, k_m0, k_m1, k_cls = jax.random.split(key, 7)

    vfeat = jax.random.normal(k_feat, (NUM_NODES, D_IN), jnp.float32)
    edge_members = jax.random.randint(k_idx, (B, S), 0, NUM_NODES)
    edge_labels = jax.random.randint(k_lab, (B, S), 0, C).astype(jnp.int32)

    # DGL g.update_all message passing == gather node feats per hyperedge.
    # TODO(synk): the DGL graph scatter/gather itself has no Pallas equivalent
    # here; it is expressed as a plain-JAX gather building the mailbox tensor.
    v_mailbox = vfeat[edge_members]                    # (B, S, D_IN)

    # Parameters: ISAB = MAB0(dim_Q=D_H, dim_K=D_IN) + MAB1(dim_Q=D_IN, dim_K=D_H)
    I = jax.random.normal(k_I, (1, NINDS, D_H), jnp.float32) / math.sqrt(D_H)
    p_mab0 = init_mab(k_m0, D_H, D_IN, D_H)
    p_mab1 = init_mab(k_m1, D_IN, D_H, D_H)
    wc, bc = init_linear(k_cls, D_H, C)

    fwd = jax.jit(functools.partial(whatsnet_im_forward,
                                    num_heads=NHEADS, block_b=BLOCK_B))
    out, labels = fwd(v_mailbox, edge_labels, I, p_mab0, p_mab1, wc, bc)
    out = jax.block_until_ready(out)
    labels = jax.block_until_ready(labels)

    # Correctness check against a pure-JAX reference of the same math.
    out_ref, labels_ref = _forward_ref(v_mailbox, edge_labels, I, p_mab0,
                                       p_mab1, wc, bc, NHEADS)
    assert out.shape == (B * S, C) and labels.shape == (B * S,)
    # Tolerance covers the EUP approximate-reciprocal softmax normalization.
    assert jnp.allclose(out, out_ref, atol=2e-2, rtol=2e-2), \
        float(jnp.max(jnp.abs(out - out_ref)))
    assert jnp.array_equal(labels, labels_ref)

    print("KERNEL_OK")
</pallas_src>

<mosaic_0001>
module attributes {stable_mosaic.version = 11 : i64} {
  func.func @_fused_isab_kernel(%arg0: i32, %arg1: memref<16x8x16xf32, #tpu.memory_space<vmem>>, %arg2: memref<64x32xf32, #tpu.memory_space<vmem>>, %arg3: memref<64x128xf32, #tpu.memory_space<vmem>>, %arg4: memref<128x64xf32, #tpu.memory_space<vmem>>, %arg5: memref<16x32xf32, #tpu.memory_space<vmem>>, %arg6: memref<1x32xf32, #tpu.memory_space<vmem>>, %arg7: memref<16x32xf32, #tpu.memory_space<vmem>>, %arg8: memref<1x32xf32, #tpu.memory_space<vmem>>, %arg9: memref<32x32xf32, #tpu.memory_space<vmem>>, %arg10: memref<1x32xf32, #tpu.memory_space<vmem>>, %arg11: memref<16x32xf32, #tpu.memory_space<vmem>>, %arg12: memref<1x32xf32, #tpu.memory_space<vmem>>, %arg13: memref<32x32xf32, #tpu.memory_space<vmem>>, %arg14: memref<1x32xf32, #tpu.memory_space<vmem>>, %arg15: memref<32x32xf32, #tpu.memory_space<vmem>>, %arg16: memref<1x32xf32, #tpu.memory_space<vmem>>, %arg17: memref<32x32xf32, #tpu.memory_space<vmem>>, %arg18: memref<1x32xf32, #tpu.memory_space<vmem>>, %arg19: memref<32x128xf32, #tpu.memory_space<vmem>>, %arg20: memref<1x128xf32, #tpu.memory_space<vmem>>, %arg21: memref<128x128xf32, #tpu.memory_space<vmem>>) attributes {dimension_semantics = [#tpu.dimension_semantics<parallel>], iteration_bounds = array<i64: 4>, scalar_prefetch = 0 : i64, scratch_operands = 0 : i64, tpu.core_type = #tpu.core_type<tc>, window_params = [{transform_indices = @transform_0, window_bounds = array<i64: 16, 8, 16>}, {pipeline_mode = #tpu.pipeline_mode<synchronous>, transform_indices = @transform_1, window_bounds = array<i64: 64, 32>}, {pipeline_mode = #tpu.pipeline_mode<synchronous>, transform_indices = @transform_2, window_bounds = array<i64: 64, 128>}, {pipeline_mode = #tpu.pipeline_mode<synchronous>, transform_indices = @transform_3, window_bounds = array<i64: 128, 64>}, {pipeline_mode = #tpu.pipeline_mode<synchronous>, transform_indices = @transform_4, window_bounds = array<i64: 16, 32>}, {pipeline_mode = #tpu.pipeline_mode<synchronous>, transform_indices = @transform_5, window_bounds = array<i64: 1, 32>}, {pipeline_mode = #tpu.pipeline_mode<synchronous>, transform_indices = @transform_6, window_bounds = array<i64: 16, 32>}, {pipeline_mode = #tpu.pipeline_mode<synchronous>, transform_indices = @transform_7, window_bounds = array<i64: 1, 32>}, {pipeline_mode = #tpu.pipeline_mode<synchronous>, transform_indices = @transform_8, window_bounds = array<i64: 32, 32>}, {pipeline_mode = #tpu.pipeline_mode<synchronous>, transform_indices = @transform_9, window_bounds = array<i64: 1, 32>}, {pipeline_mode = #tpu.pipeline_mode<synchronous>, transform_indices = @transform_10, window_bounds = array<i64: 16, 32>}, {pipeline_mode = #tpu.pipeline_mode<synchronous>, transform_indices = @transform_11, window_bounds = array<i64: 1, 32>}, {pipeline_mode = #tpu.pipeline_mode<synchronous>, transform_indices = @transform_12, window_bounds = array<i64: 32, 32>}, {pipeline_mode = #tpu.pipeline_mode<synchronous>, transform_indices = @transform_13, window_bounds = array<i64: 1, 32>}, {pipeline_mode = #tpu.pipeline_mode<synchronous>, transform_indices = @transform_14, window_bounds = array<i64: 32, 32>}, {pipeline_mode = #tpu.pipeline_mode<synchronous>, transform_indices = @transform_15, window_bounds = array<i64: 1, 32>}, {pipeline_mode = #tpu.pipeline_mode<synchronous>, transform_indices = @transform_16, window_bounds = array<i64: 32, 32>}, {pipeline_mode = #tpu.pipeline_mode<synchronous>, transform_indices = @transform_17, window_bounds = array<i64: 1, 32>}, {pipeline_mode = #tpu.pipeline_mode<synchronous>, transform_indices = @transform_18, window_bounds = array<i64: 32, 128>}, {pipeline_mode = #tpu.pipeline_mode<synchronous>, transform_indices = @transform_19, window_bounds = array<i64: 1, 128>}, {transform_indices = @transform_20, window_bounds = array<i64: 128, 128>}]} {
    %c0 = arith.constant 0 : index
    %c0_0 = arith.constant 0 : index
    %c0_1 = arith.constant 0 : index
    %0 = vector.load %arg1[%c0, %c0_0, %c0_1] : memref<16x8x16xf32, #tpu.memory_space<vmem>>, vector<16x8x16xf32>
    %1 = vector.shape_cast %0 : vector<16x8x16xf32> to vector<128x16xf32>
    %c0_2 = arith.constant 0 : index
    %c0_3 = arith.constant 0 : index
    %2 = vector.load %arg2[%c0_2, %c0_3] : memref<64x32xf32, #tpu.memory_space<vmem>>, vector<64x32xf32>
    %c0_4 = arith.constant 0 : index
    %c0_5 = arith.constant 0 : index
    %3 = vector.load %arg5[%c0_4, %c0_5] : memref<16x32xf32, #tpu.memory_space<vmem>>, vector<16x32xf32>
    %cst = arith.constant dense<0.000000e+00> : vector<128x32xf32>
    %4 = tpu.matmul %1, %3, %cst {dimension_numbers = #tpu.dot_dimension_numbers<[1], [0], [0], [1], [0, 0, 1, 1], [], []>} : vector<128x16xf32>, vector<16x32xf32>, vector<128x32xf32> -> vector<128x32xf32>
    %c0_6 = arith.constant 0 : index
    %c0_7 = arith.constant 0 : index
    %5 = vector.load %arg6[%c0_6, %c0_7] : memref<1x32xf32, #tpu.memory_space<vmem>>, vector<1x32xf32>
    %6 = vector.broadcast %5 : vector<1x32xf32> to vector<128x32xf32>
    %7 = arith.addf %4, %6 : vector<128x32xf32>
    %c0_8 = arith.constant 0 : index
    %c0_9 = arith.constant 0 : index
    %8 = vector.load %arg7[%c0_8, %c0_9] : memref<16x32xf32, #tpu.memory_space<vmem>>, vector<16x32xf32>
    %cst_10 = arith.constant dense<0.000000e+00> : vector<128x32xf32>
    %9 = tpu.matmul %1, %8, %cst_10 {dimension_numbers = #tpu.dot_dimension_numbers<[1], [0], [0], [1], [0, 0, 1, 1], [], []>} : vector<128x16xf32>, vector<16x32xf32>, vector<128x32xf32> -> vector<128x32xf32>
    %c0_11 = arith.constant 0 : index
    %c0_12 = arith.constant 0 : index
    %10 = vector.load %arg8[%c0_11, %c0_12] : memref<1x32xf32, #tpu.memory_space<vmem>>, vector<1x32xf32>
    %11 = vector.broadcast %10 : vector<1x32xf32> to vector<128x32xf32>
    %12 = arith.addf %9, %11 : vector<128x32xf32>
    %c0_13 = arith.constant 0 : index
    %c0_14 = arith.constant 0 : index
    %13 = vector.load %arg3[%c0_13, %c0_14] : memref<64x128xf32, #tpu.memory_space<vmem>>, vector<64x128xf32>
    %14 = vector.extract_strided_slice %2 {offsets = [0, 0], sizes = [64, 8], strides = [1, 1]} : vector<64x32xf32> to vector<64x8xf32>
    %15 = vector.extract_strided_slice %7 {offsets = [0, 0], sizes = [128, 8], strides = [1, 1]} : vector<128x32xf32> to vector<128x8xf32>
    %16 = vector.extract_strided_slice %12 {offsets = [0, 0], sizes = [128, 8], strides = [1, 1]} : vector<128x32xf32> to vector<128x8xf32>
    %cst_15 = arith.constant dense<0.000000e+00> : vector<64x128xf32>
    %17 = tpu.matmul %14, %15, %cst_15 {dimension_numbers = #tpu.dot_dimension_numbers<[1], [1], [0], [0], [0, 0, 1, 0], [], []>} : vector<64x8xf32>, vector<128x8xf32>, vector<64x128xf32> -> vector<64x128xf32>
    %cst_16 = arith.constant 0.176776692 : f32
    %18 = vector.broadcast %cst_16 : f32 to vector<64x128xf32>
    %19 = arith.mulf %17, %18 : vector<64x128xf32>
    %20 = arith.addf %19, %13 : vector<64x128xf32>
    %cst_17 = arith.constant dense<0xFF800000> : vector<64xf32>
    %21 = vector.multi_reduction <maximumf>, %20, %cst_17 [1] : vector<64x128xf32> to vector<64xf32>
    %22 = vector.shape_cast %21 : vector<64xf32> to vector<64x1xf32>
    %23 = vector.broadcast %22 : vector<64x1xf32> to vector<64x128xf32>
    %24 = arith.subf %20, %23 : vector<64x128xf32>
    %25 = math.exp %24 : vector<64x128xf32>
    %cst_18 = arith.constant dense<0.000000e+00> : vector<64xf32>
    %26 = vector.multi_reduction <add>, %25, %cst_18 [1] : vector<64x128xf32> to vector<64xf32>
    %27 = vector.shape_cast %26 : vector<64xf32> to vector<64x1xf32>
    %28 = tpu.reciprocal %27 {approx = true} : vector<64x1xf32> -> vector<64x1xf32>
    %29 = vector.broadcast %28 : vector<64x1xf32> to vector<64x128xf32>
    %30 = arith.mulf %25, %29 : vector<64x128xf32>
    %cst_19 = arith.constant dense<0.000000e+00> : vector<64x8xf32>
    %31 = tpu.matmul %30, %16, %cst_19 {dimension_numbers = #tpu.dot_dimension_numbers<[1], [0], [0], [1], [0, 0, 1, 1], [], []>} : vector<64x128xf32>, vector<128x8xf32>, vector<64x8xf32> -> vector<64x8xf32>
    %32 = arith.addf %14, %31 : vector<64x8xf32>
    %33 = vector.extract_strided_slice %2 {offsets = [0, 8], sizes = [64, 8], strides = [1, 1]} : vector<64x32xf32> to vector<64x8xf32>
    %34 = vector.extract_strided_slice %7 {offsets = [0, 8], sizes = [128, 8], strides = [1, 1]} : vector<128x32xf32> to vector<128x8xf32>
    %35 = vector.extract_strided_slice %12 {offsets = [0, 8], sizes = [128, 8], strides = [1, 1]} : vector<128x32xf32> to vector<128x8xf32>
    %cst_20 = arith.constant dense<0.000000e+00> : vector<64x128xf32>
    %36 = tpu.matmul %33, %34, %cst_20 {dimension_numbers = #tpu.dot_dimension_numbers<[1], [1], [0], [0], [0, 0, 1, 0], [], []>} : vector<64x8xf32>, vector<128x8xf32>, vector<64x128xf32> -> vector<64x128xf32>
    %cst_21 = arith.constant 0.176776692 : f32
    %37 = vector.broadcast %cst_21 : f32 to vector<64x128xf32>
    %38 = arith.mulf %36, %37 : vector<64x128xf32>
    %39 = arith.addf %38, %13 : vector<64x128xf32>
    %cst_22 = arith.constant dense<0xFF800000> : vector<64xf32>
    %40 = vector.multi_reduction <maximumf>, %39, %cst_22 [1] : vector<64x128xf32> to vector<64xf32>
    %41 = vector.shape_cast %40 : vector<64xf32> to vector<64x1xf32>
    %42 = vector.broadcast %41 : vector<64x1xf32> to vector<64x128xf32>
    %43 = arith.subf %39, %42 : vector<64x128xf32>
    %44 = math.exp %43 : vector<64x128xf32>
    %cst_23 = arith.constant dense<0.000000e+00> : vector<64xf32>
    %45 = vector.multi_reduction <add>, %44, %cst_23 [1] : vector<64x128xf32> to vector<64xf32>
    %46 = vector.shape_cast %45 : vector<64xf32> to vector<64x1xf32>
    %47 = tpu.reciprocal %46 {approx = true} : vector<64x1xf32> -> vector<64x1xf32>
    %48 = vector.broadcast %47 : vector<64x1xf32> to vector<64x128xf32>
    %49 = arith.mulf %44, %48 : vector<64x128xf32>
    %cst_24 = arith.constant dense<0.000000e+00> : vector<64x8xf32>
    %50 = tpu.matmul %49, %35, %cst_24 {dimension_numbers = #tpu.dot_dimension_numbers<[1], [0], [0], [1], [0, 0, 1, 1], [], []>} : vector<64x128xf32>, vector<128x8xf32>, vector<64x8xf32> -> vector<64x8xf32>
    %51 = arith.addf %33, %50 : vector<64x8xf32>
    %52 = vector.extract_strided_slice %2 {offsets = [0, 16], sizes = [64, 8], strides = [1, 1]} : vector<64x32xf32> to vector<64x8xf32>
    %53 = vector.extract_strided_slice %7 {offsets = [0, 16], sizes = [128, 8], strides = [1, 1]} : vector<128x32xf32> to vector<128x8xf32>
    %54 = vector.extract_strided_slice %12 {offsets = [0, 16], sizes = [128, 8], strides = [1, 1]} : vector<128x32xf32> to vector<128x8xf32>
    %cst_25 = arith.constant dense<0.000000e+00> : vector<64x128xf32>
    %55 = tpu.matmul %52, %53, %cst_25 {dimension_numbers = #tpu.dot_dimension_numbers<[1], [1], [0], [0], [0, 0, 1, 0], [], []>} : vector<64x8xf32>, vector<128x8xf32>, vector<64x128xf32> -> vector<64x128xf32>
    %cst_26 = arith.constant 0.176776692 : f32
    %56 = vector.broadcast %cst_26 : f32 to vector<64x128xf32>
    %57 = arith.mulf %55, %56 : vector<64x128xf32>
    %58 = arith.addf %57, %13 : vector<64x128xf32>
    %cst_27 = arith.constant dense<0xFF800000> : vector<64xf32>
    %59 = vector.multi_reduction <maximumf>, %58, %cst_27 [1] : vector<64x128xf32> to vector<64xf32>
    %60 = vector.shape_cast %59 : vector<64xf32> to vector<64x1xf32>
    %61 = vector.broadcast %60 : vector<64x1xf32> to vector<64x128xf32>
    %62 = arith.subf %58, %61 : vector<64x128xf32>
    %63 = math.exp %62 : vector<64x128xf32>
    %cst_28 = arith.constant dense<0.000000e+00> : vector<64xf32>
    %64 = vector.multi_reduction <add>, %63, %cst_28 [1] : vector<64x128xf32> to vector<64xf32>
    %65 = vector.shape_cast %64 : vector<64xf32> to vector<64x1xf32>
    %66 = tpu.reciprocal %65 {approx = true} : vector<64x1xf32> -> vector<64x1xf32>
    %67 = vector.broadcast %66 : vector<64x1xf32> to vector<64x128xf32>
    %68 = arith.mulf %63, %67 : vector<64x128xf32>
    %cst_29 = arith.constant dense<0.000000e+00> : vector<64x8xf32>
    %69 = tpu.matmul %68, %54, %cst_29 {dimension_numbers = #tpu.dot_dimension_numbers<[1], [0], [0], [1], [0, 0, 1, 1], [], []>} : vector<64x128xf32>, vector<128x8xf32>, vector<64x8xf32> -> vector<64x8xf32>
    %70 = arith.addf %52, %69 : vector<64x8xf32>
    %71 = vector.extract_strided_slice %2 {offsets = [0, 24], sizes = [64, 8], strides = [1, 1]} : vector<64x32xf32> to vector<64x8xf32>
    %72 = vector.extract_strided_slice %7 {offsets = [0, 24], sizes = [128, 8], strides = [1, 1]} : vector<128x32xf32> to vector<128x8xf32>
    %73 = vector.extract_strided_slice %12 {offsets = [0, 24], sizes = [128, 8], strides = [1, 1]} : vector<128x32xf32> to vector<128x8xf32>
    %cst_30 = arith.constant dense<0.000000e+00> : vector<64x128xf32>
    %74 = tpu.matmul %71, %72, %cst_30 {dimension_numbers = #tpu.dot_dimension_numbers<[1], [1], [0], [0], [0, 0, 1, 0], [], []>} : vector<64x8xf32>, vector<128x8xf32>, vector<64x128xf32> -> vector<64x128xf32>
    %cst_31 = arith.constant 0.176776692 : f32
    %75 = vector.broadcast %cst_31 : f32 to vector<64x128xf32>
    %76 = arith.mulf %74, %75 : vector<64x128xf32>
    %77 = arith.addf %76, %13 : vector<64x128xf32>
    %cst_32 = arith.constant dense<0xFF800000> : vector<64xf32>
    %78 = vector.multi_reduction <maximumf>, %77, %cst_32 [1] : vector<64x128xf32> to vector<64xf32>
    %79 = vector.shape_cast %78 : vector<64xf32> to vector<64x1xf32>
    %80 = vector.broadcast %79 : vector<64x1xf32> to vector<64x128xf32>
    %81 = arith.subf %77, %80 : vector<64x128xf32>
    %82 = math.exp %81 : vector<64x128xf32>
    %cst_33 = arith.constant dense<0.000000e+00> : vector<64xf32>
    %83 = vector.multi_reduction <add>, %82, %cst_33 [1] : vector<64x128xf32> to vector<64xf32>
    %84 = vector.shape_cast %83 : vector<64xf32> to vector<64x1xf32>
    %85 = tpu.reciprocal %84 {approx = true} : vector<64x1xf32> -> vector<64x1xf32>
    %86 = vector.broadcast %85 : vector<64x1xf32> to vector<64x128xf32>
    %87 = arith.mulf %82, %86 : vector<64x128xf32>
    %cst_34 = arith.constant dense<0.000000e+00> : vector<64x8xf32>
    %88 = tpu.matmul %87, %73, %cst_34 {dimension_numbers = #tpu.dot_dimension_numbers<[1], [0], [0], [1], [0, 0, 1, 1], [], []>} : vector<64x128xf32>, vector<128x8xf32>, vector<64x8xf32> -> vector<64x8xf32>
    %89 = arith.addf %71, %88 : vector<64x8xf32>
    %90 = tpu.concatenate %32, %51, %70, %89 in 1 : vector<64x8xf32>, vector<64x8xf32>, vector<64x8xf32>, vector<64x8xf32> -> vector<64x32xf32>
    %c0_35 = arith.constant 0 : index
    %c0_36 = arith.constant 0 : index
    %91 = vector.load %arg9[%c0_35, %c0_36] : memref<32x32xf32, #tpu.memory_space<vmem>>, vector<32x32xf32>
    %cst_37 = arith.constant dense<0.000000e+00> : vector<64x32xf32>
    %92 = tpu.matmul %90, %91, %cst_37 {dimension_numbers = #tpu.dot_dimension_numbers<[1], [0], [0], [1], [0, 0, 1, 1], [], []>} : vector<64x32xf32>, vector<32x32xf32>, vector<64x32xf32> -> vector<64x32xf32>
    %c0_38 = arith.constant 0 : index
    %c0_39 = arith.constant 0 : index
    %93 = vector.load %arg10[%c0_38, %c0_39] : memref<1x32xf32, #tpu.memory_space<vmem>>, vector<1x32xf32>
    %94 = vector.broadcast %93 : vector<1x32xf32> to vector<64x32xf32>
    %95 = arith.addf %92, %94 : vector<64x32xf32>
    %cst_40 = arith.constant 0.000000e+00 : f32
    %96 = vector.broadcast %cst_40 : f32 to vector<64x32xf32>
    %97 = arith.maximumf %95, %96 : vector<64x32xf32>
    %98 = arith.addf %90, %97 : vector<64x32xf32>
    %c0_41 = arith.constant 0 : index
    %c0_42 = arith.constant 0 : index
    %99 = vector.load %arg11[%c0_41, %c0_42] : memref<16x32xf32, #tpu.memory_space<vmem>>, vector<16x32xf32>
    %cst_43 = arith.constant dense<0.000000e+00> : vector<128x32xf32>
    %100 = tpu.matmul %1, %99, %cst_43 {dimension_numbers = #tpu.dot_dimension_numbers<[1], [0], [0], [1], [0, 0, 1, 1], [], []>} : vector<128x16xf32>, vector<16x32xf32>, vector<128x32xf32> -> vector<128x32xf32>
    %c0_44 = arith.constant 0 : index
    %c0_45 = arith.constant 0 : index
    %101 = vector.load %arg12[%c0_44, %c0_45] : memref<1x32xf32, #tpu.memory_space<vmem>>, vector<1x32xf32>
    %102 = vector.broadcast %101 : vector<1x32xf32> to vector<128x32xf32>
    %103 = arith.addf %100, %102 : vector<128x32xf32>
    %c0_46 = arith.constant 0 : index
    %c0_47 = arith.constant 0 : index
    %104 = vector.load %arg13[%c0_46, %c0_47] : memref<32x32xf32, #tpu.memory_space<vmem>>, vector<32x32xf32>
    %cst_48 = arith.constant dense<0.000000e+00> : vector<64x32xf32>
    %105 = tpu.matmul %98, %104, %cst_48 {dimension_numbers = #tpu.dot_dimension_numbers<[1], [0], [0], [1], [0, 0, 1, 1], [], []>} : vector<64x32xf32>, vector<32x32xf32>, vector<64x32xf32> -> vector<64x32xf32>
    %c0_49 = arith.constant 0 : index
    %c0_50 = arith.constant 0 : index
    %106 = vector.load %arg14[%c0_49, %c0_50] : memref<1x32xf32, #tpu.memory_space<vmem>>, vector<1x32xf32>
    %107 = vector.broadcast %106 : vector<1x32xf32> to vector<64x32xf32>
    %108 = arith.addf %105, %107 : vector<64x32xf32>
    %c0_51 = arith.constant 0 : index
    %c0_52 = arith.constant 0 : index
    %109 = vector.load %arg15[%c0_51, %c0_52] : memref<32x32xf32, #tpu.memory_space<vmem>>, vector<32x32xf32>
    %cst_53 = arith.constant dense<0.000000e+00> : vector<64x32xf32>
    %110 = tpu.matmul %98, %109, %cst_53 {dimension_numbers = #tpu.dot_dimension_numbers<[1], [0], [0], [1], [0, 0, 1, 1], [], []>} : vector<64x32xf32>, vector<32x32xf32>, vector<64x32xf32> -> vector<64x32xf32>
    %c0_54 = arith.constant 0 : index
    %c0_55 = arith.constant 0 : index
    %111 = vector.load %arg16[%c0_54, %c0_55] : memref<1x32xf32, #tpu.memory_space<vmem>>, vector<1x32xf32>
    %112 = vector.broadcast %111 : vector<1x32xf32> to vector<64x32xf32>
    %113 = arith.addf %110, %112 : vector<64x32xf32>
    %c0_56 = arith.constant 0 : index
    %c0_57 = arith.constant 0 : index
    %114 = vector.load %arg4[%c0_56, %c0_57] : memref<128x64xf32, #tpu.memory_space<vmem>>, vector<128x64xf32>
    %115 = vector.extract_strided_slice %103 {offsets = [0, 0], sizes = [128, 8], strides = [1, 1]} : vector<128x32xf32> to vector<128x8xf32>
    %116 = vector.extract_strided_slice %108 {offsets = [0, 0], sizes = [64, 8], strides = [1, 1]} : vector<64x32xf32> to vector<64x8xf32>
    %117 = vector.extract_strided_slice %113 {offsets = [0, 0], sizes = [64, 8], strides = [1, 1]} : vector<64x32xf32> to vector<64x8xf32>
    %cst_58 = arith.constant dense<0.000000e+00> : vector<128x64xf32>
    %118 = tpu.matmul %115, %116, %cst_58 {dimension_numbers = #tpu.dot_dimension_numbers<[1], [1], [0], [0], [0, 0, 1, 0], [], []>} : vector<128x8xf32>, vector<64x8xf32>, vector<128x64xf32> -> vector<128x64xf32>
    %cst_59 = arith.constant 0.176776692 : f32
    %119 = vector.broadcast %cst_59 : f32 to vector<128x64xf32>
    %120 = arith.mulf %118, %119 : vector<128x64xf32>
    %121 = arith.addf %120, %114 : vector<128x64xf32>
    %cst_60 = arith.constant dense<0xFF800000> : vector<128xf32>
    %122 = vector.multi_reduction <maximumf>, %121, %cst_60 [1] : vector<128x64xf32> to vector<128xf32>
    %123 = vector.shape_cast %122 : vector<128xf32> to vector<128x1xf32>
    %124 = vector.broadcast %123 : vector<128x1xf32> to vector<128x64xf32>
    %125 = arith.subf %121, %124 : vector<128x64xf32>
    %126 = math.exp %125 : vector<128x64xf32>
    %cst_61 = arith.constant dense<0.000000e+00> : vector<128xf32>
    %127 = vector.multi_reduction <add>, %126, %cst_61 [1] : vector<128x64xf32> to vector<128xf32>
    %128 = vector.shape_cast %127 : vector<128xf32> to vector<128x1xf32>
    %129 = tpu.reciprocal %128 {approx = true} : vector<128x1xf32> -> vector<128x1xf32>
    %130 = vector.broadcast %129 : vector<128x1xf32> to vector<128x64xf32>
    %131 = arith.mulf %126, %130 : vector<128x64xf32>
    %cst_62 = arith.constant dense<0.000000e+00> : vector<128x8xf32>
    %132 = tpu.matmul %131, %117, %cst_62 {dimension_numbers = #tpu.dot_dimension_numbers<[1], [0], [0], [1], [0, 0, 1, 1], [], []>} : vector<128x64xf32>, vector<64x8xf32>, vector<128x8xf32> -> vector<128x8xf32>
    %133 = arith.addf %115, %132 : vector<128x8xf32>
    %134 = vector.extract_strided_slice %103 {offsets = [0, 8], sizes = [128, 8], strides = [1, 1]} : vector<128x32xf32> to vector<128x8xf32>
    %135 = vector.extract_strided_slice %108 {offsets = [0, 8], sizes = [64, 8], strides = [1, 1]} : vector<64x32xf32> to vector<64x8xf32>
    %136 = vector.extract_strided_slice %113 {offsets = [0, 8], sizes = [64, 8], strides = [1, 1]} : vector<64x32xf32> to vector<64x8xf32>
    %cst_63 = arith.constant dense<0.000000e+00> : vector<128x64xf32>
    %137 = tpu.matmul %134, %135, %cst_63 {dimension_numbers = #tpu.dot_dimension_numbers<[1], [1], [0], [0], [0, 0, 1, 0], [], []>} : vector<128x8xf32>, vector<64x8xf32>, vector<128x64xf32> -> vector<128x64xf32>
    %cst_64 = arith.constant 0.176776692 : f32
    %138 = vector.broadcast %cst_64 : f32 to vector<128x64xf32>
    %139 = arith.mulf %137, %138 : vector<128x64xf32>
    %140 = arith.addf %139, %114 : vector<128x64xf32>
    %cst_65 = arith.constant dense<0xFF800000> : vector<128xf32>
    %141 = vector.multi_reduction <maximumf>, %140, %cst_65 [1] : vector<128x64xf32> to vector<128xf32>
    %142 = vector.shape_cast %141 : vector<128xf32> to vector<128x1xf32>
    %143 = vector.broadcast %142 : vector<128x1xf32> to vector<128x64xf32>
    %144 = arith.subf %140, %143 : vector<128x64xf32>
    %145 = math.exp %144 : vector<128x64xf32>
    %cst_66 = arith.constant dense<0.000000e+00> : vector<128xf32>
    %146 = vector.multi_reduction <add>, %145, %cst_66 [1] : vector<128x64xf32> to vector<128xf32>
    %147 = vector.shape_cast %146 : vector<128xf32> to vector<128x1xf32>
    %148 = tpu.reciprocal %147 {approx = true} : vector<128x1xf32> -> vector<128x1xf32>
    %149 = vector.broadcast %148 : vector<128x1xf32> to vector<128x64xf32>
    %150 = arith.mulf %145, %149 : vector<128x64xf32>
    %cst_67 = arith.constant dense<0.000000e+00> : vector<128x8xf32>
    %151 = tpu.matmul %150, %136, %cst_67 {dimension_numbers = #tpu.dot_dimension_numbers<[1], [0], [0], [1], [0, 0, 1, 1], [], []>} : vector<128x64xf32>, vector<64x8xf32>, vector<128x8xf32> -> vector<128x8xf32>
    %152 = arith.addf %134, %151 : vector<128x8xf32>
    %153 = vector.extract_strided_slice %103 {offsets = [0, 16], sizes = [128, 8], strides = [1, 1]} : vector<128x32xf32> to vector<128x8xf32>
    %154 = vector.extract_strided_slice %108 {offsets = [0, 16], sizes = [64, 8], strides = [1, 1]} : vector<64x32xf32> to vector<64x8xf32>
    %155 = vector.extract_strided_slice %113 {offsets = [0, 16], sizes = [64, 8], strides = [1, 1]} : vector<64x32xf32> to vector<64x8xf32>
    %cst_68 = arith.constant dense<0.000000e+00> : vector<128x64xf32>
    %156 = tpu.matmul %153, %154, %cst_68 {dimension_numbers = #tpu.dot_dimension_numbers<[1], [1], [0], [0], [0, 0, 1, 0], [], []>} : vector<128x8xf32>, vector<64x8xf32>, vector<128x64xf32> -> vector<128x64xf32>
    %cst_69 = arith.constant 0.176776692 : f32
    %157 = vector.broadcast %cst_69 : f32 to vector<128x64xf32>
    %158 = arith.mulf %156, %157 : vector<128x64xf32>
    %159 = arith.addf %158, %114 : vector<128x64xf32>
    %cst_70 = arith.constant dense<0xFF800000> : vector<128xf32>
    %160 = vector.multi_reduction <maximumf>, %159, %cst_70 [1] : vector<128x64xf32> to vector<128xf32>
    %161 = vector.shape_cast %160 : vector<128xf32> to vector<128x1xf32>
    %162 = vector.broadcast %161 : vector<128x1xf32> to vector<128x64xf32>
    %163 = arith.subf %159, %162 : vector<128x64xf32>
    %164 = math.exp %163 : vector<128x64xf32>
    %cst_71 = arith.constant dense<0.000000e+00> : vector<128xf32>
    %165 = vector.multi_reduction <add>, %164, %cst_71 [1] : vector<128x64xf32> to vector<128xf32>
    %166 = vector.shape_cast %165 : vector<128xf32> to vector<128x1xf32>
    %167 = tpu.reciprocal %166 {approx = true} : vector<128x1xf32> -> vector<128x1xf32>
    %168 = vector.broadcast %167 : vector<128x1xf32> to vector<128x64xf32>
    %169 = arith.mulf %164, %168 : vector<128x64xf32>
    %cst_72 = arith.constant dense<0.000000e+00> : vector<128x8xf32>
    %170 = tpu.matmul %169, %155, %cst_72 {dimension_numbers = #tpu.dot_dimension_numbers<[1], [0], [0], [1], [0, 0, 1, 1], [], []>} : vector<128x64xf32>, vector<64x8xf32>, vector<128x8xf32> -> vector<128x8xf32>
    %171 = arith.addf %153, %170 : vector<128x8xf32>
    %172 = vector.extract_strided_slice %103 {offsets = [0, 24], sizes = [128, 8], strides = [1, 1]} : vector<128x32xf32> to vector<128x8xf32>
    %173 = vector.extract_strided_slice %108 {offsets = [0, 24], sizes = [64, 8], strides = [1, 1]} : vector<64x32xf32> to vector<64x8xf32>
    %174 = vector.extract_strided_slice %113 {offsets = [0, 24], sizes = [64, 8], strides = [1, 1]} : vector<64x32xf32> to vector<64x8xf32>
    %cst_73 = arith.constant dense<0.000000e+00> : vector<128x64xf32>
    %175 = tpu.matmul %172, %173, %cst_73 {dimension_numbers = #tpu.dot_dimension_numbers<[1], [1], [0], [0], [0, 0, 1, 0], [], []>} : vector<128x8xf32>, vector<64x8xf32>, vector<128x64xf32> -> vector<128x64xf32>
    %cst_74 = arith.constant 0.176776692 : f32
    %176 = vector.broadcast %cst_74 : f32 to vector<128x64xf32>
    %177 = arith.mulf %175, %176 : vector<128x64xf32>
    %178 = arith.addf %177, %114 : vector<128x64xf32>
    %cst_75 = arith.constant dense<0xFF800000> : vector<128xf32>
    %179 = vector.multi_reduction <maximumf>, %178, %cst_75 [1] : vector<128x64xf32> to vector<128xf32>
    %180 = vector.shape_cast %179 : vector<128xf32> to vector<128x1xf32>
    %181 = vector.broadcast %180 : vector<128x1xf32> to vector<128x64xf32>
    %182 = arith.subf %178, %181 : vector<128x64xf32>
    %183 = math.exp %182 : vector<128x64xf32>
    %cst_76 = arith.constant dense<0.000000e+00> : vector<128xf32>
    %184 = vector.multi_reduction <add>, %183, %cst_76 [1] : vector<128x64xf32> to vector<128xf32>
    %185 = vector.shape_cast %184 : vector<128xf32> to vector<128x1xf32>
    %186 = tpu.reciprocal %185 {approx = true} : vector<128x1xf32> -> vector<128x1xf32>
    %187 = vector.broadcast %186 : vector<128x1xf32> to vector<128x64xf32>
    %188 = arith.mulf %183, %187 : vector<128x64xf32>
    %cst_77 = arith.constant dense<0.000000e+00> : vector<128x8xf32>
    %189 = tpu.matmul %188, %174, %cst_77 {dimension_numbers = #tpu.dot_dimension_numbers<[1], [0], [0], [1], [0, 0, 1, 1], [], []>} : vector<128x64xf32>, vector<64x8xf32>, vector<128x8xf32> -> vector<128x8xf32>
    %190 = arith.addf %172, %189 : vector<128x8xf32>
    %191 = tpu.concatenate %133, %152, %171, %190 in 1 : vector<128x8xf32>, vector<128x8xf32>, vector<128x8xf32>, vector<128x8xf32> -> vector<128x32xf32>
    %c0_78 = arith.constant 0 : index
    %c0_79 = arith.constant 0 : index
    %192 = vector.load %arg17[%c0_78, %c0_79] : memref<32x32xf32, #tpu.memory_space<vmem>>, vector<32x32xf32>
    %cst_80 = arith.constant dense<0.000000e+00> : vector<128x32xf32>
    %193 = tpu.matmul %191, %192, %cst_80 {dimension_numbers = #tpu.dot_dimension_numbers<[1], [0], [0], [1], [0, 0, 1, 1], [], []>} : vector<128x32xf32>, vector<32x32xf32>, vector<128x32xf32> -> vector<128x32xf32>
    %c0_81 = arith.constant 0 : index
    %c0_82 = arith.constant 0 : index
    %194 = vector.load %arg18[%c0_81, %c0_82] : memref<1x32xf32, #tpu.memory_space<vmem>>, vector<1x32xf32>
    %195 = vector.broadcast %194 : vector<1x32xf32> to vector<128x32xf32>
    %196 = arith.addf %193, %195 : vector<128x32xf32>
    %cst_83 = arith.constant 0.000000e+00 : f32
    %197 = vector.broadcast %cst_83 : f32 to vector<128x32xf32>
    %198 = arith.maximumf %196, %197 : vector<128x32xf32>
    %199 = arith.addf %191, %198 : vector<128x32xf32>
    %c0_84 = arith.constant 0 : index
    %c0_85 = arith.constant 0 : index
    %200 = vector.load %arg19[%c0_84, %c0_85] : memref<32x128xf32, #tpu.memory_space<vmem>>, vector<32x128xf32>
    %cst_86 = arith.constant dense<0.000000e+00> : vector<128x128xf32>
    %201 = tpu.matmul %199, %200, %cst_86 {dimension_numbers = #tpu.dot_dimension_numbers<[1], [0], [0], [1], [0, 0, 1, 1], [], []>} : vector<128x32xf32>, vector<32x128xf32>, vector<128x128xf32> -> vector<128x128xf32>
    %c0_87 = arith.constant 0 : index
    %c0_88 = arith.constant 0 : index
    %202 = vector.load %arg20[%c0_87, %c0_88] : memref<1x128xf32, #tpu.memory_space<vmem>>, vector<1x128xf32>
    %203 = vector.broadcast %202 : vector<1x128xf32> to vector<128x128xf32>
    %204 = arith.addf %201, %203 : vector<128x128xf32>
    %c0_89 = arith.constant 0 : index
    %c0_90 = arith.constant 0 : index
    %205 = vector.load %arg21[%c0_89, %c0_90] : memref<128x128xf32, #tpu.memory_space<vmem>>, vector<128x128xf32>
    tpu.vector_store %arg21[%c0_89, %c0_90], %204 {strides = array<i32>} : memref<128x128xf32, #tpu.memory_space<vmem>>, vector<128x128xf32>,
    return
  }
  func.func @transform_0(%arg0: i32) -> (i32, i32, i32) {
    %c0_i32 = arith.constant 0 : i32
    %c0_i32_0 = arith.constant 0 : i32
    %c0_i32_1 = arith.constant 0 : i32
    return %arg0, %c0_i32, %c0_i32_0 : i32, i32, i32
  }
  func.func @transform_1(%arg0: i32) -> (i32, i32) {
    %c0_i32 = arith.constant 0 : i32
    %c0_i32_0 = arith.constant 0 : i32
    %c0_i32_1 = arith.constant 0 : i32
    return %c0_i32, %c0_i32_0 : i32, i32
  }
  func.func @transform_2(%arg0: i32) -> (i32, i32) {
    %c0_i32 = arith.constant 0 : i32
    %c0_i32_0 = arith.constant 0 : i32
    %c0_i32_1 = arith.constant 0 : i32
    return %c0_i32, %c0_i32_0 : i32, i32
  }
  func.func @transform_3(%arg0: i32) -> (i32, i32) {
    %c0_i32 = arith.constant 0 : i32
    %c0_i32_0 = arith.constant 0 : i32
    %c0_i32_1 = arith.constant 0 : i32
    return %c0_i32, %c0_i32_0 : i32, i32
  }
  func.func @transform_4(%arg0: i32) -> (i32, i32) {
    %c0_i32 = arith.constant 0 : i32
    %c0_i32_0 = arith.constant 0 : i32
    %c0_i32_1 = arith.constant 0 : i32
    return %c0_i32, %c0_i32_0 : i32, i32
  }
  func.func @transform_5(%arg0: i32) -> (i32, i32) {
    %c0_i32 = arith.constant 0 : i32
    %c0_i32_0 = arith.constant 0 : i32
    %c0_i32_1 = arith.constant 0 : i32
    return %c0_i32, %c0_i32_0 : i32, i32
  }
  func.func @transform_6(%arg0: i32) -> (i32, i32) {
    %c0_i32 = arith.constant 0 : i32
    %c0_i32_0 = arith.constant 0 : i32
    %c0_i32_1 = arith.constant 0 : i32
    return %c0_i32, %c0_i32_0 : i32, i32
  }
  func.func @transform_7(%arg0: i32) -> (i32, i32) {
    %c0_i32 = arith.constant 0 : i32
    %c0_i32_0 = arith.constant 0 : i32
    %c0_i32_1 = arith.constant 0 : i32
    return %c0_i32, %c0_i32_0 : i32, i32
  }
  func.func @transform_8(%arg0: i32) -> (i32, i32) {
    %c0_i32 = arith.constant 0 : i32
    %c0_i32_0 = arith.constant 0 : i32
    %c0_i32_1 = arith.constant 0 : i32
    return %c0_i32, %c0_i32_0 : i32, i32
  }
  func.func @transform_9(%arg0: i32) -> (i32, i32) {
    %c0_i32 = arith.constant 0 : i32
    %c0_i32_0 = arith.constant 0 : i32
    %c0_i32_1 = arith.constant 0 : i32
    return %c0_i32, %c0_i32_0 : i32, i32
  }
  func.func @transform_10(%arg0: i32) -> (i32, i32) {
    %c0_i32 = arith.constant 0 : i32
    %c0_i32_0 = arith.constant 0 : i32
    %c0_i32_1 = arith.constant 0 : i32
    return %c0_i32, %c0_i32_0 : i32, i32
  }
  func.func @transform_11(%arg0: i32) -> (i32, i32) {
    %c0_i32 = arith.constant 0 : i32
    %c0_i32_0 = arith.constant 0 : i32
    %c0_i32_1 = arith.constant 0 : i32
    return %c0_i32, %c0_i32_0 : i32, i32
  }
  func.func @transform_12(%arg0: i32) -> (i32, i32) {
    %c0_i32 = arith.constant 0 : i32
    %c0_i32_0 = arith.constant 0 : i32
    %c0_i32_1 = arith.constant 0 : i32
    return %c0_i32, %c0_i32_0 : i32, i32
  }
  func.func @transform_13(%arg0: i32) -> (i32, i32) {
    %c0_i32 = arith.constant 0 : i32
    %c0_i32_0 = arith.constant 0 : i32
    %c0_i32_1 = arith.constant 0 : i32
    return %c0_i32, %c0_i32_0 : i32, i32
  }
  func.func @transform_14(%arg0: i32) -> (i32, i32) {
    %c0_i32 = arith.constant 0 : i32
    %c0_i32_0 = arith.constant 0 : i32
    %c0_i32_1 = arith.constant 0 : i32
    return %c0_i32, %c0_i32_0 : i32, i32
  }
  func.func @transform_15(%arg0: i32) -> (i32, i32) {
    %c0_i32 = arith.constant 0 : i32
    %c0_i32_0 = arith.constant 0 : i32
    %c0_i32_1 = arith.constant 0 : i32
    return %c0_i32, %c0_i32_0 : i32, i32
  }
  func.func @transform_16(%arg0: i32) -> (i32, i32) {
    %c0_i32 = arith.constant 0 : i32
    %c0_i32_0 = arith.constant 0 : i32
    %c0_i32_1 = arith.constant 0 : i32
    return %c0_i32, %c0_i32_0 : i32, i32
  }
  func.func @transform_17(%arg0: i32) -> (i32, i32) {
    %c0_i32 = arith.constant 0 : i32
    %c0_i32_0 = arith.constant 0 : i32
    %c0_i32_1 = arith.constant 0 : i32
    return %c0_i32, %c0_i32_0 : i32, i32
  }
  func.func @transform_18(%arg0: i32) -> (i32, i32) {
    %c0_i32 = arith.constant 0 : i32
    %c0_i32_0 = arith.constant 0 : i32
    %c0_i32_1 = arith.constant 0 : i32
    return %c0_i32, %c0_i32_0 : i32, i32
  }
  func.func @transform_19(%arg0: i32) -> (i32, i32) {
    %c0_i32 = arith.constant 0 : i32
    %c0_i32_0 = arith.constant 0 : i32
    %c0_i32_1 = arith.constant 0 : i32
    return %c0_i32, %c0_i32_0 : i32, i32
  }
  func.func @transform_20(%arg0: i32) -> (i32, i32) {
    %c0_i32 = arith.constant 0 : i32
    %c0_i32_0 = arith.constant 0 : i32
    return %arg0, %c0_i32 : i32, i32
  }
}

</mosaic_0001>

<llo_original>
// kernel: whatsnet_im_forward.1
$region0: #{whatsnet_im_forward.1}
  #allocation0 [shape = 'u32[]', space=smem, size = 0x4, offset = 0x4, fixed_abs, tag = 'smem constant byte address 0x4 - core index']
  #allocation1 [shape = 'u32[144,128]{1,0:T(1,128)}', space=vmem, size = 0x12000, scoped, tag = 'internal scratch']
  %s0 = inlined_call_operand.vmem [shape: f32[64,8,16], index: 0, kind: input, shape index: {}]
  %s1 = inlined_call_operand.vmem [shape: f32[64,32], index: 1, kind: input, shape index: {}]
  %s2 = inlined_call_operand.vmem [shape: f32[64,128], index: 2, kind: input, shape index: {}]
  %s3 = inlined_call_operand.vmem [shape: f32[128,64], index: 3, kind: input, shape index: {}]
  %s4 = inlined_call_operand.vmem [shape: f32[16,32], index: 4, kind: input, shape index: {}]
  %s5 = inlined_call_operand.vmem [shape: f32[1,32], index: 5, kind: input, shape index: {}]
  %s6 = inlined_call_operand.vmem [shape: f32[16,32], index: 6, kind: input, shape index: {}]
  %s7 = inlined_call_operand.vmem [shape: f32[1,32], index: 7, kind: input, shape index: {}]
  %s8 = inlined_call_operand.vmem [shape: f32[32,32], index: 8, kind: input, shape index: {}]
  %s9 = inlined_call_operand.vmem [shape: f32[1,32], index: 9, kind: input, shape index: {}]
  %s10 = inlined_call_operand.vmem [shape: f32[16,32], index: 10, kind: input, shape index: {}]
  %s11 = inlined_call_operand.vmem [shape: f32[1,32], index: 11, kind: input, shape index: {}]
  %s12 = inlined_call_operand.vmem [shape: f32[32,32], index: 12, kind: input, shape index: {}]
  %s13 = inlined_call_operand.vmem [shape: f32[1,32], index: 13, kind: input, shape index: {}]
  %s14 = inlined_call_operand.vmem [shape: f32[32,32], index: 14, kind: input, shape index: {}]
  %s15 = inlined_call_operand.vmem [shape: f32[1,32], index: 15, kind: input, shape index: {}]
  %s16 = inlined_call_operand.vmem [shape: f32[32,32], index: 16, kind: input, shape index: {}]
  %s17 = inlined_call_operand.vmem [shape: f32[1,32], index: 17, kind: input, shape index: {}]
  %s18 = inlined_call_operand.vmem [shape: f32[32,128], index: 18, kind: input, shape index: {}]
  %s19 = inlined_call_operand.vmem [shape: f32[1,128], index: 19, kind: input, shape index: {}]
  %s20 = inlined_call_operand.vmem [shape: f32[512,128], index: 20, kind: output, shape index: {}]
  %s21 = sld [smem:[#allocation0]]
  $region113: #{whatsnet_im_forward.1} parent=0
    _
  %s23 = ssub.s32 1, %s21
  %s24 = scalar_select 0, %s23, %s21
  loop: start=0, step=1, limit=6
  $region2: #{whatsnet_im_forward.1} parent=0 // loop_pre_header
    _
  $region3: #{whatsnet_im_forward.1} parent=0 // loop_header
    %s26 = sphi 0, %s30
    %p27 = scmp.ge.s32.totalorder %s26, 6
    %s36 = sphi 0, %s38
    %s39 = sphi 0, %s36
    %s40 = sphi 0, %s39
    %s56 = sphi 0, %s40
    %s60 = sphi 0, %s60
    %s62 = sphi 0, %s60
    %s63 = sphi 0, %s62
    %s77 = sphi 0, %s63
    %s81 = sphi 0, %s81
    %s83 = sphi 0, %s81
    %s84 = sphi 0, %s83
    %s98 = sphi 0, %s84
    %s102 = sphi 0, %s102
    %s104 = sphi 0, %s102
    %s105 = sphi 0, %s104
    %s119 = sphi 0, %s105
    %s123 = sphi 0, %s123
    %s125 = sphi 0, %s123
    %s126 = sphi 0, %s125
    %s140 = sphi 0, %s126
    %s144 = sphi 0, %s144
    %s146 = sphi 0, %s144
    %s147 = sphi 0, %s146
    %s161 = sphi 0, %s147
    %s165 = sphi 0, %s165
    %s167 = sphi 0, %s165
    %s168 = sphi 0, %s167
    %s182 = sphi 0, %s168
    %s186 = sphi 0, %s186
    %s188 = sphi 0, %s186
    %s189 = sphi 0, %s188
    %s203 = sphi 0, %s189
    %s207 = sphi 0, %s207
    %s209 = sphi 0, %s207
    %s210 = sphi 0, %s209
    %s224 = sphi 0, %s210
    %s228 = sphi 0, %s228
    %s230 = sphi 0, %s228
    %s231 = sphi 0, %s230
    %s245 = sphi 0, %s231
    %s249 = sphi 0, %s249
    %s251 = sphi 0, %s249
    %s252 = sphi 0, %s251
    %s266 = sphi 0, %s252
    %s270 = sphi 0, %s270
    %s272 = sphi 0, %s270
    %s273 = sphi 0, %s272
    %s287 = sphi 0, %s273
    %s291 = sphi 0, %s291
    %s293 = sphi 0, %s291
    %s294 = sphi 0, %s293
    %s308 = sphi 0, %s294
    %s312 = sphi 0, %s312
    %s314 = sphi 0, %s312
    %s315 = sphi 0, %s314
    %s329 = sphi 0, %s315
    %s333 = sphi 0, %s333
    %s335 = sphi 0, %s333
    %s336 = sphi 0, %s335
    %s350 = sphi 0, %s336
    %s354 = sphi 0, %s354
    %s356 = sphi 0, %s354
    %s357 = sphi 0, %s356
    %s371 = sphi 0, %s357
    %s375 = sphi 0, %s375
    %s377 = sphi 0, %s375
    %s378 = sphi 0, %s377
    %s392 = sphi 0, %s378
    %s396 = sphi 0, %s396
    %s398 = sphi 0, %s396
    %s399 = sphi 0, %s398
    %s413 = sphi 0, %s399
    %s417 = sphi 0, %s417
    %s419 = sphi 0, %s417
    %s420 = sphi 0, %s419
    %s434 = sphi 0, %s420
    %s438 = sphi 0, %s438
    %s440 = sphi 0, %s438
    %s441 = sphi 0, %s440
    %s455 = sphi 0, %s441
    %s461 = sphi 0, %s463
    %s464 = sphi 0, %s461
    %s465 = sphi 0, %s464
    %s481 = sphi 0, %s465
  $region4: #{whatsnet_im_forward.1} parent=0 // loop_header_branch
    %29 = sbr.rel (%p27) target = $region8
  $region5: #{whatsnet_im_forward.1} parent=0 // loop_body
    %s31 = ssub.s32 %s26, 1
    %s32 = ssub.s32 %s26, 2
    %s33 = sadd.s32 %s26, 1
    %s34 = ssub.s32 %s26, %s33
    %p35 = scmp.eq.s32.totalorder %s34, 0
    %s37 = sadd.s32 %s36, 1
    %s38 = scalar_select %p35, %s36, %s37
    %p41 = pneg %p35
    %p42 = scmp.eq.s32.totalorder %s26, 3
    %p43 = por %p41, %p42
    %p44 = scmp.ne.s32.totalorder %s36, %s39
    %p45 = scmp.eq.s32.totalorder %s26, 0
    %p46 = por %p44, %p45
    %p47 = scmp.ne.s32.totalorder %s36, %s39
    %p48 = scmp.eq.s32.totalorder %s31, 3
    %p49 = por %p47, %p48
    %p50 = scmp.ne.s32.totalorder %s39, %s40
    %p51 = scmp.eq.s32.totalorder %s31, 0
    %p52 = por %p50, %p51
    %p53 = scmp.ne.s32.totalorder %s39, %s40
    %p54 = scmp.eq.s32.totalorder %s32, 3
    %p55 = por %p53, %p54
    %p57 = scmp.ne.s32.totalorder %s40, %s56
    %p58 = scmp.eq.s32.totalorder %s32, 0
    %p59 = por %p57, %p58
    %s61 = sadd.s32 %s60, 1
    %p64 = scmp.eq.s32.totalorder %s26, 3
    %p65 = scmp.ne.s32.totalorder %s60, %s62
    %p66 = scmp.eq.s32.totalorder %s26, 0
    %p67 = por %p65, %p66
    %p68 = scmp.ne.s32.totalorder %s60, %s62
    %p69 = scmp.eq.s32.totalorder %s31, 3
    %p70 = por %p68, %p69
    %p71 = scmp.ne.s32.totalorder %s62, %s63
    %p72 = scmp.eq.s32.totalorder %s31, 0
    %p73 = por %p71, %p72
    %p74 = scmp.ne.s32.totalorder %s62, %s63
    %p75 = scmp.eq.s32.totalorder %s32, 3
    %p76 = por %p74, %p75
    %p78 = scmp.ne.s32.totalorder %s63, %s77
    %p79 = scmp.eq.s32.totalorder %s32, 0
    %p80 = por %p78, %p79
    %s82 = sadd.s32 %s81, 1
    %p85 = scmp.eq.s32.totalorder %s26, 3
    %p86 = scmp.ne.s32.totalorder %s81, %s83
    %p87 = scmp.eq.s32.totalorder %s26, 0
    %p88 = por %p86, %p87
    %p89 = scmp.ne.s32.totalorder %s81, %s83
    %p90 = scmp.eq.s32.totalorder %s31, 3
    %p91 = por %p89, %p90
    %p92 = scmp.ne.s32.totalorder %s83, %s84
    %p93 = scmp.eq.s32.totalorder %s31, 0
    %p94 = por %p92, %p93
    %p95 = scmp.ne.s32.totalorder %s83, %s84
    %p96 = scmp.eq.s32.totalorder %s32, 3
    %p97 = por %p95, %p96
    %p99 = scmp.ne.s32.totalorder %s84, %s98
    %p100 = scmp.eq.s32.totalorder %s32, 0
    %p101 = por %p99, %p100
    %s103 = sadd.s32 %s102, 1
    %p106 = scmp.eq.s32.totalorder %s26, 3
    %p107 = scmp.ne.s32.totalorder %s102, %s104
    %p108 = scmp.eq.s32.totalorder %s26, 0
    %p109 = por %p107, %p108
    %p110 = scmp.ne.s32.totalorder %s102, %s104
    %p111 = scmp.eq.s32.totalorder %s31, 3
    %p112 = por %p110, %p111
    %p113 = scmp.ne.s32.totalorder %s104, %s105
    %p114 = scmp.eq.s32.totalorder %s31, 0
    %p115 = por %p113, %p114
    %p116 = scmp.ne.s32.totalorder %s104, %s105
    %p117 = scmp.eq.s32.totalorder %s32, 3
    %p118 = por %p116, %p117
    %p120 = scmp.ne.s32.totalorder %s105, %s119
    %p121 = scmp.eq.s32.totalorder %s32, 0
    %p122 = por %p120, %p121
    %s124 = sadd.s32 %s123, 1
    %p127 = scmp.eq.s32.totalorder %s26, 3
    %p128 = scmp.ne.s32.totalorder %s123, %s125
    %p129 = scmp.eq.s32.totalorder %s26, 0
    %p130 = por %p128, %p129
    %p131 = scmp.ne.s32.totalorder %s123, %s125
    %p132 = scmp.eq.s32.totalorder %s31, 3
    %p133 = por %p131, %p132
    %p134 = scmp.ne.s32.totalorder %s125, %s126
    %p135 = scmp.eq.s32.totalorder %s31, 0
    %p136 = por %p134, %p135
    %p137 = scmp.ne.s32.totalorder %s125, %s126
    %p138 = scmp.eq.s32.totalorder %s32, 3
    %p139 = por %p137, %p138
    %p141 = scmp.ne.s32.totalorder %s126, %s140
    %p142 = scmp.eq.s32.totalorder %s32, 0
    %p143 = por %p141, %p142
    %s145 = sadd.s32 %s144, 1
    %p148 = scmp.eq.s32.totalorder %s26, 3
    %p149 = scmp.ne.s32.totalorder %s144, %s146
    %p150 = scmp.eq.s32.totalorder %s26, 0
    %p151 = por %p149, %p150
    %p152 = scmp.ne.s32.totalorder %s144, %s146
    %p153 = scmp.eq.s32.totalorder %s31, 3
    %p154 = por %p152, %p153
    %p155 = scmp.ne.s32.totalorder %s146, %s147
    %p156 = scmp.eq.s32.totalorder %s31, 0
    %p157 = por %p155, %p156
    %p158 = scmp.ne.s32.totalorder %s146, %s147
    %p159 = scmp.eq.s32.totalorder %s32, 3
    %p160 = por %p158, %p159
    %p162 = scmp.ne.s32.totalorder %s147, %s161
    %p163 = scmp.eq.s32.totalorder %s32, 0
    %p164 = por %p162, %p163
    %s166 = sadd.s32 %s165, 1
    %p169 = scmp.eq.s32.totalorder %s26, 3
    %p170 = scmp.ne.s32.totalorder %s165, %s167
    %p171 = scmp.eq.s32.totalorder %s26, 0
    %p172 = por %p170, %p171
    %p173 = scmp.ne.s32.totalorder %s165, %s167
    %p174 = scmp.eq.s32.totalorder %s31, 3
    %p175 = por %p173, %p174
    %p176 = scmp.ne.s32.totalorder %s167, %s168
    %p177 = scmp.eq.s32.totalorder %s31, 0
    %p178 = por %p176, %p177
    %p179 = scmp.ne.s32.totalorder %s167, %s168
    %p180 = scmp.eq.s32.totalorder %s32, 3
    %p181 = por %p179, %p180
    %p183 = scmp.ne.s32.totalorder %s168, %s182
    %p184 = scmp.eq.s32.totalorder %s32, 0
    %p185 = por %p183, %p184
    %s187 = sadd.s32 %s186, 1
    %p190 = scmp.eq.s32.totalorder %s26, 3
    %p191 = scmp.ne.s32.totalorder %s186, %s188
    %p192 = scmp.eq.s32.totalorder %s26, 0
    %p193 = por %p191, %p192
    %p194 = scmp.ne.s32.totalorder %s186, %s188
    %p195 = scmp.eq.s32.totalorder %s31, 3
    %p196 = por %p194, %p195
    %p197 = scmp.ne.s32.totalorder %s188, %s189
    %p198 = scmp.eq.s32.totalorder %s31, 0
    %p199 = por %p197, %p198
    %p200 = scmp.ne.s32.totalorder %s188, %s189
    %p201 = scmp.eq.s32.totalorder %s32, 3
    %p202 = por %p200, %p201
    %p204 = scmp.ne.s32.totalorder %s189, %s203
    %p205 = scmp.eq.s32.totalorder %s32, 0
    %p206 = por %p204, %p205
    %s208 = sadd.s32 %s207, 1
    %p211 = scmp.eq.s32.totalorder %s26, 3
    %p212 = scmp.ne.s32.totalorder %s207, %s209
    %p213 = scmp.eq.s32.totalorder %s26, 0
    %p214 = por %p212, %p213
    %p215 = scmp.ne.s32.totalorder %s207, %s209
    %p216 = scmp.eq.s32.totalorder %s31, 3
    %p217 = por %p215, %p216
    %p218 = scmp.ne.s32.totalorder %s209, %s210
    %p219 = scmp.eq.s32.totalorder %s31, 0
    %p220 = por %p218, %p219
    %p221 = scmp.ne.s32.totalorder %s209, %s210
    %p222 = scmp.eq.s32.totalorder %s32, 3
    %p223 = por %p221, %p222
    %p225 = scmp.ne.s32.totalorder %s210, %s224
    %p226 = scmp.eq.s32.totalorder %s32, 0
    %p227 = por %p225, %p226
    %s229 = sadd.s32 %s228, 1
    %p232 = scmp.eq.s32.totalorder %s26, 3
    %p233 = scmp.ne.s32.totalorder %s228, %s230
    %p234 = scmp.eq.s32.totalorder %s26, 0
    %p235 = por %p233, %p234
    %p236 = scmp.ne.s32.totalorder %s228, %s230
    %p237 = scmp.eq.s32.totalorder %s31, 3
    %p238 = por %p236, %p237
    %p239 = scmp.ne.s32.totalorder %s230, %s231
    %p240 = scmp.eq.s32.totalorder %s31, 0
    %p241 = por %p239, %p240
    %p242 = scmp.ne.s32.totalorder %s230, %s231
    %p243 = scmp.eq.s32.totalorder %s32, 3
    %p244 = por %p242, %p243
    %p246 = scmp.ne.s32.totalorder %s231, %s245
    %p247 = scmp.eq.s32.totalorder %s32, 0
    %p248 = por %p246, %p247
    %s250 = sadd.s32 %s249, 1
    %p253 = scmp.eq.s32.totalorder %s26, 3
    %p254 = scmp.ne.s32.totalorder %s249, %s251
    %p255 = scmp.eq.s32.totalorder %s26, 0
    %p256 = por %p254, %p255
    %p257 = scmp.ne.s32.totalorder %s249, %s251
    %p258 = scmp.eq.s32.totalorder %s31, 3
    %p259 = por %p257, %p258
    %p260 = scmp.ne.s32.totalorder %s251, %s252
    %p261 = scmp.eq.s32.totalorder %s31, 0
    %p262 = por %p260, %p261
    %p263 = scmp.ne.s32.totalorder %s251, %s252
    %p264 = scmp.eq.s32.totalorder %s32, 3
    %p265 = por %p263, %p264
    %p267 = scmp.ne.s32.totalorder %s252, %s266
    %p268 = scmp.eq.s32.totalorder %s32, 0
    %p269 = por %p267, %p268
    %s271 = sadd.s32 %s270, 1
    %p274 = scmp.eq.s32.totalorder %s26, 3
    %p275 = scmp.ne.s32.totalorder %s270, %s272
    %p276 = scmp.eq.s32.totalorder %s26, 0
    %p277 = por %p275, %p276
    %p278 = scmp.ne.s32.totalorder %s270, %s272
    %p279 = scmp.eq.s32.totalorder %s31, 3
    %p280 = por %p278, %p279
    %p281 = scmp.ne.s32.totalorder %s272, %s273
    %p282 = scmp.eq.s32.totalorder %s31, 0
    %p283 = por %p281, %p282
    %p284 = scmp.ne.s32.totalorder %s272, %s273
    %p285 = scmp.eq.s32.totalorder %s32, 3
    %p286 = por %p284, %p285
    %p288 = scmp.ne.s32.totalorder %s273, %s287
    %p289 = scmp.eq.s32.totalorder %s32, 0
    %p290 = por %p288, %p289
    %s292 = sadd.s32 %s291, 1
    %p295 = scmp.eq.s32.totalorder %s26, 3
    %p296 = scmp.ne.s32.totalorder %s291, %s293
    %p297 = scmp.eq.s32.totalorder %s26, 0
    %p298 = por %p296, %p297
    %p299 = scmp.ne.s32.totalorder %s291, %s293
    %p300 = scmp.eq.s32.totalorder %s31, 3
    %p301 = por %p299, %p300
    %p302 = scmp.ne.s32.totalorder %s293, %s294
    %p303 = scmp.eq.s32.totalorder %s31, 0
    %p304 = por %p302, %p303
    %p305 = scmp.ne.s32.totalorder %s293, %s294
    %p306 = scmp.eq.s32.totalorder %s32, 3
    %p307 = por %p305, %p306
    %p309 = scmp.ne.s32.totalorder %s294, %s308
    %p310 = scmp.eq.s32.totalorder %s32, 0
    %p311 = por %p309, %p310
    %s313 = sadd.s32 %s312, 1
    %p316 = scmp.eq.s32.totalorder %s26, 3
    %p317 = scmp.ne.s32.totalorder %s312, %s314
    %p318 = scmp.eq.s32.totalorder %s26, 0
    %p319 = por %p317, %p318
    %p320 = scmp.ne.s32.totalorder %s312, %s314
    %p321 = scmp.eq.s32.totalorder %s31, 3
    %p322 = por %p320, %p321
    %p323 = scmp.ne.s32.totalorder %s314, %s315
    %p324 = scmp.eq.s32.totalorder %s31, 0
    %p325 = por %p323, %p324
    %p326 = scmp.ne.s32.totalorder %s314, %s315
    %p327 = scmp.eq.s32.totalorder %s32, 3
    %p328 = por %p326, %p327
    %p330 = scmp.ne.s32.totalorder %s315, %s329
    %p331 = scmp.eq.s32.totalorder %s32, 0
    %p332 = por %p330, %p331
    %s334 = sadd.s32 %s333, 1
    %p337 = scmp.eq.s32.totalorder %s26, 3
    %p338 = scmp.ne.s32.totalorder %s333, %s335
    %p339 = scmp.eq.s32.totalorder %s26, 0
    %p340 = por %p338, %p339
    %p341 = scmp.ne.s32.totalorder %s333, %s335
    %p342 = scmp.eq.s32.totalorder %s31, 3
    %p343 = por %p341, %p342
    %p344 = scmp.ne.s32.totalorder %s335, %s336
    %p345 = scmp.eq.s32.totalorder %s31, 0
    %p346 = por %p344, %p345
    %p347 = scmp.ne.s32.totalorder %s335, %s336
    %p348 = scmp.eq.s32.totalorder %s32, 3
    %p349 = por %p347, %p348
    %p351 = scmp.ne.s32.totalorder %s336, %s350
    %p352 = scmp.eq.s32.totalorder %s32, 0
    %p353 = por %p351, %p352
    %s355 = sadd.s32 %s354, 1
    %p358 = scmp.eq.s32.totalorder %s26, 3
    %p359 = scmp.ne.s32.totalorder %s354, %s356
    %p360 = scmp.eq.s32.totalorder %s26, 0
    %p361 = por %p359, %p360
    %p362 = scmp.ne.s32.totalorder %s354, %s356
    %p363 = scmp.eq.s32.totalorder %s31, 3
    %p364 = por %p362, %p363
    %p365 = scmp.ne.s32.totalorder %s356, %s357
    %p366 = scmp.eq.s32.totalorder %s31, 0
    %p367 = por %p365, %p366
    %p368 = scmp.ne.s32.totalorder %s356, %s357
    %p369 = scmp.eq.s32.totalorder %s32, 3
    %p370 = por %p368, %p369
    %p372 = scmp.ne.s32.totalorder %s357, %s371
    %p373 = scmp.eq.s32.totalorder %s32, 0
    %p374 = por %p372, %p373
    %s376 = sadd.s32 %s375, 1
    %p379 = scmp.eq.s32.totalorder %s26, 3
    %p380 = scmp.ne.s32.totalorder %s375, %s377
    %p381 = scmp.eq.s32.totalorder %s26, 0
    %p382 = por %p380, %p381
    %p383 = scmp.ne.s32.totalorder %s375, %s377
    %p384 = scmp.eq.s32.totalorder %s31, 3
    %p385 = por %p383, %p384
    %p386 = scmp.ne.s32.totalorder %s377, %s378
    %p387 = scmp.eq.s32.totalorder %s31, 0
    %p388 = por %p386, %p387
    %p389 = scmp.ne.s32.totalorder %s377, %s378
    %p390 = scmp.eq.s32.totalorder %s32, 3
    %p391 = por %p389, %p390
    %p393 = scmp.ne.s32.totalorder %s378, %s392
    %p394 = scmp.eq.s32.totalorder %s32, 0
    %p395 = por %p393, %p394
    %s397 = sadd.s32 %s396, 1
    %p400 = scmp.eq.s32.totalorder %s26, 3
    %p401 = scmp.ne.s32.totalorder %s396, %s398
    %p402 = scmp.eq.s32.totalorder %s26, 0
    %p403 = por %p401, %p402
    %p404 = scmp.ne.s32.totalorder %s396, %s398
    %p405 = scmp.eq.s32.totalorder %s31, 3
    %p406 = por %p404, %p405
    %p407 = scmp.ne.s32.totalorder %s398, %s399
    %p408 = scmp.eq.s32.totalorder %s31, 0
    %p409 = por %p407, %p408
    %p410 = scmp.ne.s32.totalorder %s398, %s399
    %p411 = scmp.eq.s32.totalorder %s32, 3
    %p412 = por %p410, %p411
    %p414 = scmp.ne.s32.totalorder %s399, %s413
    %p415 = scmp.eq.s32.totalorder %s32, 0
    %p416 = por %p414, %p415
    %s418 = sadd.s32 %s417, 1
    %p421 = scmp.eq.s32.totalorder %s26, 3
    %p422 = scmp.ne.s32.totalorder %s417, %s419
    %p423 = scmp.eq.s32.totalorder %s26, 0
    %p424 = por %p422, %p423
    %p425 = scmp.ne.s32.totalorder %s417, %s419
    %p426 = scmp.eq.s32.totalorder %s31, 3
    %p427 = por %p425, %p426
    %p428 = scmp.ne.s32.totalorder %s419, %s420
    %p429 = scmp.eq.s32.totalorder %s31, 0
    %p430 = por %p428, %p429
    %p431 = scmp.ne.s32.totalorder %s419, %s420
    %p432 = scmp.eq.s32.totalorder %s32, 3
    %p433 = por %p431, %p432
    %p435 = scmp.ne.s32.totalorder %s420, %s434
    %p436 = scmp.eq.s32.totalorder %s32, 0
    %p437 = por %p435, %p436
    %s439 = sadd.s32 %s438, 1
    %p442 = scmp.eq.s32.totalorder %s26, 3
    %p443 = scmp.ne.s32.totalorder %s438, %s440
    %p444 = scmp.eq.s32.totalorder %s26, 0
    %p445 = por %p443, %p444
    %p446 = scmp.ne.s32.totalorder %s438, %s440
    %p447 = scmp.eq.s32.totalorder %s31, 3
    %p448 = por %p446, %p447
    %p449 = scmp.ne.s32.totalorder %s440, %s441
    %p450 = scmp.eq.s32.totalorder %s31, 0
    %p451 = por %p449, %p450
    %p452 = scmp.ne.s32.totalorder %s440, %s441
    %p453 = scmp.eq.s32.totalorder %s32, 3
    %p454 = por %p452, %p453
    %p456 = scmp.ne.s32.totalorder %s441, %s455
    %p457 = scmp.eq.s32.totalorder %s32, 0
    %p458 = por %p456, %p457
    %s459 = ssub.s32 %s26, %s33
    %p460 = scmp.eq.s32.totalorder %s459, 0
    %s462 = sadd.s32 %s461, 1
    %s463 = scalar_select %p460, %s461, %s462
    %p466 = pneg %p460
    %p467 = scmp.eq.s32.totalorder %s26, 3
    %p468 = por %p466, %p467
    %p469 = scmp.ne.s32.totalorder %s461, %s464
    %p470 = scmp.eq.s32.totalorder %s26, 0
    %p471 = por %p469, %p470
    %p472 = scmp.ne.s32.totalorder %s461, %s464
    %p473 = scmp.eq.s32.totalorder %s31, 3
    %p474 = por %p472, %p473
    %p475 = scmp.ne.s32.totalorder %s464, %s465
    %p476 = scmp.eq.s32.totalorder %s31, 0
    %p477 = por %p475, %p476
    %p478 = scmp.ne.s32.totalorder %s464, %s465
    %p479 = scmp.eq.s32.totalorder %s32, 3
    %p480 = por %p478, %p479
    %p482 = scmp.ne.s32.totalorder %s465, %s481
    %p483 = scmp.eq.s32.totalorder %s32, 0
    %p484 = por %p482, %p483
    %p485 = scmp.le.s32.totalorder 1, %s26
    %p486 = scmp.lt.s32.totalorder %s26, 5
    %p487 = pnand %p485, %p486
    %p488 = pneg %p487
    // Predicated region
    $region9: #{whatsnet_im_forward.1} parent=5 // pred_check
      _
    $region10: #{whatsnet_im_forward.1} parent=5 // pred_check_branch
      %490 = sbr.rel (%p487) target = $region12
    $region11: #{whatsnet_im_forward.1} parent=5 // pred_region
      %s491 = ssub.s32 %s26, 1
      // Predicated region
      $region13: #{whatsnet_im_forward.1} parent=11 // pred_check
        %p492 = pneg %p73
      $region14: #{whatsnet_im_forward.1} parent=11 // pred_check_branch
        %494 = sbr.rel (%p492) target = $region16
      $region15: #{whatsnet_im_forward.1} parent=11 // pred_region
        _
      $region16: #{whatsnet_im_forward.1} parent=11 // pred_fallthru
        _
      // Predicated region
      $region17: #{whatsnet_im_forward.1} parent=11 // pred_check
        %p495 = pneg %p94
      $region18: #{whatsnet_im_forward.1} parent=11 // pred_check_branch
        %497 = sbr.rel (%p495) target = $region20
      $region19: #{whatsnet_im_forward.1} parent=11 // pred_region
        _
      $region20: #{whatsnet_im_forward.1} parent=11 // pred_fallthru
        _
      // Predicated region
      $region21: #{whatsnet_im_forward.1} parent=11 // pred_check
        %p498 = pneg %p115
      $region22: #{whatsnet_im_forward.1} parent=11 // pred_check_branch
        %500 = sbr.rel (%p498) target = $region24
      $region23: #{whatsnet_im_forward.1} parent=11 // pred_region
        _
      $region24: #{whatsnet_im_forward.1} parent=11 // pred_fallthru
        _
      // Predicated region
      $region25: #{whatsnet_im_forward.1} parent=11 // pred_check
        %p501 = pneg %p136
      $region26: #{whatsnet_im_forward.1} parent=11 // pred_check_branch
        %503 = sbr.rel (%p501) target = $region28
      $region27: #{whatsnet_im_forward.1} parent=11 // pred_region
        _
      $region28: #{whatsnet_im_forward.1} parent=11 // pred_fallthru
        _
      // Predicated region
      $region29: #{whatsnet_im_forward.1} parent=11 // pred_check
        %p504 = pneg %p157
      $region30: #{whatsnet_im_forward.1} parent=11 // pred_check_branch
        %506 = sbr.rel (%p504) target = $region32
      $region31: #{whatsnet_im_forward.1} parent=11 // pred_region
        _
      $region32: #{whatsnet_im_forward.1} parent=11 // pred_fallthru
        _
      // Predicated region
      $region33: #{whatsnet_im_forward.1} parent=11 // pred_check
        %p507 = pneg %p178
      $region34: #{whatsnet_im_forward.1} parent=11 // pred_check_branch
        %509 = sbr.rel (%p507) target = $region36
      $region35: #{whatsnet_im_forward.1} parent=11 // pred_region
        _
      $region36: #{whatsnet_im_forward.1} parent=11 // pred_fallthru
        _
      // Predicated region
      $region37: #{whatsnet_im_forward.1} parent=11 // pred_check
        %p510 = pneg %p199
      $region38: #{whatsnet_im_forward.1} parent=11 // pred_check_branch
        %512 = sbr.rel (%p510) target = $region40
      $region39: #{whatsnet_im_forward.1} parent=11 // pred_region
        _
      $region40: #{whatsnet_im_forward.1} parent=11 // pred_fallthru
        _
      // Predicated region
      $region41: #{whatsnet_im_forward.1} parent=11 // pred_check
        %p513 = pneg %p220
      $region42: #{whatsnet_im_forward.1} parent=11 // pred_check_branch
        %515 = sbr.rel (%p513) target = $region44
      $region43: #{whatsnet_im_forward.1} parent=11 // pred_region
        _
      $region44: #{whatsnet_im_forward.1} parent=11 // pred_fallthru
        _
      // Predicated region
      $region45: #{whatsnet_im_forward.1} parent=11 // pred_check
        %p516 = pneg %p241
      $region46: #{whatsnet_im_forward.1} parent=11 // pred_check_branch
        %518 = sbr.rel (%p516) target = $region48
      $region47: #{whatsnet_im_forward.1} parent=11 // pred_region
        _
      $region48: #{whatsnet_im_forward.1} parent=11 // pred_fallthru
        _
      // Predicated region
      $region49: #{whatsnet_im_forward.1} parent=11 // pred_check
        %p519 = pneg %p262
      $region50: #{whatsnet_im_forward.1} parent=11 // pred_check_branch
        %521 = sbr.rel (%p519) target = $region52
      $region51: #{whatsnet_im_forward.1} parent=11 // pred_region
        _
      $region52: #{whatsnet_im_forward.1} parent=11 // pred_fallthru
        _
      // Predicated region
      $region53: #{whatsnet_im_forward.1} parent=11 // pred_check
        %p522 = pneg %p283
      $region54: #{whatsnet_im_forward.1} parent=11 // pred_check_branch
        %524 = sbr.rel (%p522) target = $region56
      $region55: #{whatsnet_im_forward.1} parent=11 // pred_region
        _
      $region56: #{whatsnet_im_forward.1} parent=11 // pred_fallthru
        _
      // Predicated region
      $region57: #{whatsnet_im_forward.1} parent=11 // pred_check
        %p525 = pneg %p304
      $region58: #{whatsnet_im_forward.1} parent=11 // pred_check_branch
        %527 = sbr.rel (%p525) target = $region60
      $region59: #{whatsnet_im_forward.1} parent=11 // pred_region
        _
      $region60: #{whatsnet_im_forward.1} parent=11 // pred_fallthru
        _
      // Predicated region
      $region61: #{whatsnet_im_forward.1} parent=11 // pred_check
        %p528 = pneg %p325
      $region62: #{whatsnet_im_forward.1} parent=11 // pred_check_branch
        %530 = sbr.rel (%p528) target = $region64
      $region63: #{whatsnet_im_forward.1} parent=11 // pred_region
        _
      $region64: #{whatsnet_im_forward.1} parent=11 // pred_fallthru
        _
      // Predicated region
      $region65: #{whatsnet_im_forward.1} parent=11 // pred_check
        %p531 = pneg %p346
      $region66: #{whatsnet_im_forward.1} parent=11 // pred_check_branch
        %533 = sbr.rel (%p531) target = $region68
      $region67: #{whatsnet_im_forward.1} parent=11 // pred_region
        _
      $region68: #{whatsnet_im_forward.1} parent=11 // pred_fallthru
        _
      // Predicated region
      $region69: #{whatsnet_im_forward.1} parent=11 // pred_check
        %p534 = pneg %p367
      $region70: #{whatsnet_im_forward.1} parent=11 // pred_check_branch
        %536 = sbr.rel (%p534) target = $region72
      $region71: #{whatsnet_im_forward.1} parent=11 // pred_region
        _
      $region72: #{whatsnet_im_forward.1} parent=11 // pred_fallthru
        _
      // Predicated region
      $region73: #{whatsnet_im_forward.1} parent=11 // pred_check
        %p537 = pneg %p388
      $region74: #{whatsnet_im_forward.1} parent=11 // pred_check_branch
        %539 = sbr.rel (%p537) target = $region76
      $region75: #{whatsnet_im_forward.1} parent=11 // pred_region
        _
      $region76: #{whatsnet_im_forward.1} parent=11 // pred_fallthru
        _
      // Predicated region
      $region77: #{whatsnet_im_forward.1} parent=11 // pred_check
        %p540 = pneg %p409
      $region78: #{whatsnet_im_forward.1} parent=11 // pred_check_branch
        %542 = sbr.rel (%p540) target = $region80
      $region79: #{whatsnet_im_forward.1} parent=11 // pred_region
        _
      $region80: #{whatsnet_im_forward.1} parent=11 // pred_fallthru
        _
      // Predicated region
      $region81: #{whatsnet_im_forward.1} parent=11 // pred_check
        %p543 = pneg %p430
      $region82: #{whatsnet_im_forward.1} parent=11 // pred_check_branch
        %545 = sbr.rel (%p543) target = $region84
      $region83: #{whatsnet_im_forward.1} parent=11 // pred_region
        _
      $region84: #{whatsnet_im_forward.1} parent=11 // pred_fallthru
        _
      // Predicated region
      $region85: #{whatsnet_im_forward.1} parent=11 // pred_check
        %p546 = pneg %p451
      $region86: #{whatsnet_im_forward.1} parent=11 // pred_check_branch
        %548 = sbr.rel (%p546) target = $region88
      $region87: #{whatsnet_im_forward.1} parent=11 // pred_region
        _
      $region88: #{whatsnet_im_forward.1} parent=11 // pred_fallthru
        _
    $region12: #{whatsnet_im_forward.1} parent=5 // pred_fallthru
      _
    %p549 = scmp.lt.s32.totalorder %s26, 4
    // Predicated region
    $region89: #{whatsnet_im_forward.1} parent=5 // pred_check
      %p550 = pneg %p549
    $region90: #{whatsnet_im_forward.1} parent=5 // pred_check_branch
      %552 = sbr.rel (%p550) target = $region92
    $region91: #{whatsnet_im_forward.1} parent=5 // pred_region
      // Predicated region
      $region93: #{whatsnet_im_forward.1} parent=91 // pred_check
        %p553 = pneg %p46
      $region94: #{whatsnet_im_forward.1} parent=91 // pred_check_branch
        %555 = sbr.rel (%p553) target = $region96
      $region95: #{whatsnet_im_forward.1} parent=91 // pred_region
        %s556 = smul.u32 16, %s26
        %p557 = scmp.lt.s32.totalorder %s556, 63
        %s558 = scalar_select %p557, %s556, 63
        %s559 = smul.addr %s558, 8
        %s560 = scalar_lea.vmem %s0, %s559
        %s561 = smul.u32 16, %s26
      $region96: #{whatsnet_im_forward.1} parent=91 // pred_fallthru
        _
    $region92: #{whatsnet_im_forward.1} parent=5 // pred_fallthru
      _
    %p562 = scmp.le.s32.totalorder 1, %s26
    %p563 = scmp.lt.s32.totalorder %s26, 5
    %p564 = pnand %p562, %p563
    %p565 = pneg %p564
    // Predicated region
    $region97: #{whatsnet_im_forward.1} parent=5 // pred_check
      _
    $region98: #{whatsnet_im_forward.1} parent=5 // pred_check_branch
      %567 = sbr.rel (%p564) target = $region100
    $region99: #{whatsnet_im_forward.1} parent=5 // pred_region
      %s568 = ssub.s32 %s26, 1
      %s569 = smul.u32 16, %s31
      %p570 = scmp.lt.s32.totalorder %s569, 63
      %s571 = scalar_select %p570, %s569, 63
      %s572 = smul.addr %s571, 8
      %s573 = scalar_lea.vmem %s0, %s572
      %p574 = pneg %p52
      %p575 = pneg %p49
      %p576 = pneg %p73
      %p577 = pneg %p70
      %p578 = pneg %p94
      %p579 = pneg %p91
      %p580 = pneg %p115
      %p581 = pneg %p112
      %p582 = pneg %p136
      %p583 = pneg %p133
      %p584 = pneg %p157
      %p585 = pneg %p154
      %p586 = pneg %p178
      %p587 = pneg %p175
      %p588 = pneg %p199
      %p589 = pneg %p196
      %p590 = pneg %p220
      %p591 = pneg %p217
      %p592 = pneg %p241
      %p593 = pneg %p238
      %p594 = pneg %p262
      %p595 = pneg %p259
      %p596 = pneg %p283
      %p597 = pneg %p280
      %p598 = pneg %p304
      %p599 = pneg %p301
      %p600 = pneg %p325
      %p601 = pneg %p322
      %p602 = pneg %p346
      %p603 = pneg %p343
      %p604 = pneg %p367
      %p605 = pneg %p364
      %p606 = pneg %p388
      %p607 = pneg %p385
      %p608 = pneg %p409
      %p609 = pneg %p406
      %p610 = pneg %p430
      %p611 = pneg %p427
      %p612 = pneg %p451
      %p613 = pneg %p448
      %p614 = pneg %p477
      %p615 = pneg %p474
      %s616 = smul.u32 16, %s31
      %p617 = scmp.lt.s32.totalorder %s616, 63
      %s618 = scalar_select %p617, %s616, 63
      %s619 = smul.addr %s618, 8
      %s620 = scalar_lea.vmem %s20, %s619
      %s621 = smul.u32 16, %s31
      %p622 = scmp.lt.s32.totalorder %s621, 63
      %s623 = scalar_select %p622, %s621, 63
      %s624 = smul.addr %s623, 8
      %s625 = scalar_lea.vmem %s0, %s624
      %s626 = smul.u32 16, %s31
      %s627 = smul.u32 16, %s31
      %p628 = scmp.lt.s32.totalorder %s627, 63
      %s629 = scalar_select %p628, %s627, 63
      %s630 = smul.addr %s629, 8
      %s631 = scalar_lea.vmem %s20, %s630
      %s632 = smul.u32 16, %s31
      %v633 = vld [vmem:[%s625] sm:$0xff]
      %v634 = vld [vmem:[%s625 + $0x8] sm:$0xff]
      %v635 = vld [vmem:[%s625 + $0x10] sm:$0xff]
      %v636 = vld [vmem:[%s625 + $0x18] sm:$0xff]
      %v637 = vld [vmem:[%s625 + $0x20] sm:$0xff]
      %v638 = vld [vmem:[%s625 + $0x28] sm:$0xff]
      %v639 = vld [vmem:[%s625 + $0x30] sm:$0xff]
      %v640 = vld [vmem:[%s625 + $0x38] sm:$0xff]
      %v641 = vld [vmem:[%s625 + $0x40] sm:$0xff]
      %v642 = vld [vmem:[%s625 + $0x48] sm:$0xff]
      %v643 = vld [vmem:[%s625 + $0x50] sm:$0xff]
      %v644 = vld [vmem:[%s625 + $0x58] sm:$0xff]
      %v645 = vld [vmem:[%s625 + $0x60] sm:$0xff]
      %v646 = vld [vmem:[%s625 + $0x68] sm:$0xff]
      %v647 = vld [vmem:[%s625 + $0x70] sm:$0xff]
      %v648 = vld [vmem:[%s625 + $0x78] sm:$0xff]
      %v649 = vld [vmem:[%s1] sm:$0xff]
      %v650 = vld [vmem:[%s1 + $0x8] sm:$0xff]
      %v651 = vld [vmem:[%s1 + $0x10] sm:$0xff]
      %v652 = vld [vmem:[%s1 + $0x18] sm:$0xff]
      %v653 = vld [vmem:[%s1 + $0x20] sm:$0xff]
      %v654 = vld [vmem:[%s1 + $0x28] sm:$0xff]
      %v655 = vld [vmem:[%s1 + $0x30] sm:$0xff]
      %v656 = vld [vmem:[%s1 + $0x38] sm:$0xff]
      %v657 = vld [vmem:[%s4] sm:$0xff]
      %v658 = vld [vmem:[%s4 + $0x8] sm:$0xff]
      %v659 = vld [vmem:[%s5] sm:$0x1]
      %v661 = vlaneseq
      %v662 = vshrl.u32 %v661, 7
      %v663 = vsub.s32 0, %v662
      %v664 = vrot.slane %v659, %v663
      %vm666 = vcmask 130048
      %v668 = vsel %vm666, %v633, 0
      %v671 = vsel %vm666, %v634, 0
      %v674 = vsel %vm666, %v635, 0
      %v677 = vsel %vm666, %v636, 0
      %v680 = vsel %vm666, %v637, 0
      %v683 = vsel %vm666, %v638, 0
      %v686 = vsel %vm666, %v639, 0
      %v689 = vsel %vm666, %v640, 0
      %v692 = vsel %vm666, %v641, 0
      %v695 = vsel %vm666, %v642, 0
      %v698 = vsel %vm666, %v643, 0
      %v701 = vsel %vm666, %v644, 0
      %v704 = vsel %vm666, %v645, 0
      %v707 = vsel %vm666, %v646, 0
      %v710 = vsel %vm666, %v647, 0
      %v713 = vsel %vm666, %v648, 0
      %715 = vmatprep.subr.mxu0 0.0
      %716 = vmatpush1.msra.mxu0 %v657
      %717 = vmatprep.subr.mxu0 0.0
      %718 = vmatpush1.msra.mxu0 %v658
      %719 = vmatprep.subr.mxu0 0.0
      %720 = vmatpush1.msra.mxu0 0.0
      %721 = vmatprep.subr.mxu0 0.0
      %722 = vmatpush1.msra.mxu0 0.0
      %723 = vmatprep.subr.mxu0 0.0
      %724 = vmatpush1.msra.mxu0 0.0
      %725 = vmatprep.subr.mxu0 0.0
      %726 = vmatpush1.msra.mxu0 0.0
      %727 = vmatprep.subr.mxu0 0.0
      %728 = vmatpush1.msra.mxu0 0.0
      %729 = vmatprep.subr.mxu0 0.0
      %730 = vmatpush1.msra.mxu0 0.0
      %731 = vmatprep.subr.mxu0 0.0
      %732 = vmatpush1.msra.mxu0 0.0
      %733 = vmatprep.subr.mxu0 0.0
      %734 = vmatpush1.msra.mxu0 0.0
      %735 = vmatprep.subr.mxu0 0.0
      %736 = vmatpush1.msra.mxu0 0.0
      %737 = vmatprep.subr.mxu0 0.0
      %738 = vmatpush1.msra.mxu0 0.0
      %739 = vmatprep.subr.mxu0 0.0
      %740 = vmatpush1.msra.mxu0 0.0
      %741 = vmatprep.subr.mxu0 0.0
      %742 = vmatpush1.msra.mxu0 0.0
      %743 = vmatprep.subr.mxu0 0.0
      %744 = vmatpush1.msra.mxu0 0.0
      %745 = vmatprep.subr.mxu0 0.0
      %746 = vmatpush1.msra.mxu0 0.0
      %747 = vmatprep.subr.mxu0 0.0
      %748 = vmatpush1.msra.mxu0 0.0
      %749 = vmatprep.subr.mxu0 0.0
      %750 = vmatpush1.msra.mxu0 0.0
      %751 = vmatprep.subr.mxu0 0.0
      %752 = vmatpush1.msra.mxu0 0.0
      %753 = vmatprep.subr.mxu0 0.0
      %754 = vmatpush1.msra.mxu0 0.0
      %755 = vmatprep.subr.mxu0 0.0
      %756 = vmatpush1.msra.mxu0 0.0
      %757 = vmatprep.subr.mxu0 0.0
      %758 = vmatpush1.msra.mxu0 0.0
      %759 = vmatprep.subr.mxu0 0.0
      %760 = vmatpush1.msra.mxu0 0.0
      %761 = vmatprep.subr.mxu0 0.0
      %762 = vmatpush1.msra.mxu0 0.0
      %763 = vmatprep.subr.mxu0 0.0
      %764 = vmatpush1.msra.mxu0 0.0
      %765 = vmatprep.subr.mxu0 0.0
      %766 = vmatpush1.msra.mxu0 0.0
      %767 = vmatprep.subr.mxu0 0.0
      %768 = vmatpush1.msra.mxu0 0.0
      %769 = vmatprep.subr.mxu0 0.0
      %770 = vmatpush1.msra.mxu0 0.0
      %771 = vmatprep.subr.mxu0 0.0
      %772 = vmatpush1.msra.mxu0 0.0
      %773 = vmatprep.subr.mxu0 0.0
      %774 = vmatpush1.msra.mxu0 0.0
      %775 = vmatprep.subr.mxu0 0.0
      %776 = vmatpush1.msra.mxu0 0.0
      %777 = vmatprep.subr.mxu0 0.0
      %778 = vmatpush1.msra.mxu0 0.0
      %779 = vmatprep.mubr.f32.mxu0 0.0
      %780 = vmatmul.mubr.f32.gmra.mrb[0].mxu0 %v668
      %v781 = vpop.f32.mrb[0].mxu0
      %v782 = vadd.f32 %v664, %v781
      %v783 = vpop.f32.mrb[0].mxu0
      %784 = vmatprep.mubr.f32.mxu0 0.0
      %785 = vmatmul.mubr.f32.gmra.mrb[0].mxu0 %v671
      %v786 = vpop.f32.mrb[0].mxu0
      %v787 = vadd.f32 %v664, %v786
      %v788 = vpop.f32.mrb[0].mxu0
      %789 = vmatprep.mubr.f32.mxu0 0.0
      %790 = vmatmul.mubr.f32.gmra.mrb[0].mxu0 %v674
      %v791 = vpop.f32.mrb[0].mxu0
      %v792 = vadd.f32 %v664, %v791
      %v793 = vpop.f32.mrb[0].mxu0
      %794 = vmatprep.mubr.f32.mxu0 0.0
      %795 = vmatmul.mubr.f32.gmra.mrb[0].mxu0 %v677
      %v796 = vpop.f32.mrb[0].mxu0
      %v797 = vadd.f32 %v664, %v796
      %v798 = vpop.f32.mrb[0].mxu0
      %799 = vmatprep.mubr.f32.mxu0 0.0
      %800 = vmatmul.mubr.f32.gmra.mrb[0].mxu0 %v680
      %v801 = vpop.f32.mrb[0].mxu0
      %v802 = vadd.f32 %v664, %v801
      %v803 = vpop.f32.mrb[0].mxu0
      %804 = vmatprep.mubr.f32.mxu0 0.0
      %805 = vmatmul.mubr.f32.gmra.mrb[0].mxu0 %v683
      %v806 = vpop.f32.mrb[0].mxu0
      %v807 = vadd.f32 %v664, %v806
      %v808 = vpop.f32.mrb[0].mxu0
      %809 = vmatprep.mubr.f32.mxu0 0.0
      %810 = vmatmul.mubr.f32.gmra.mrb[0].mxu0 %v686
      %v811 = vpop.f32.mrb[0].mxu0
      %v812 = vadd.f32 %v664, %v811
      %v813 = vpop.f32.mrb[0].mxu0
      %814 = vmatprep.mubr.f32.mxu0 0.0
      %815 = vmatmul.mubr.f32.gmra.mrb[0].mxu0 %v689
      %v816 = vpop.f32.mrb[0].mxu0
      %v817 = vadd.f32 %v664, %v816
      %v818 = vpop.f32.mrb[0].mxu0
      %819 = vmatprep.mubr.f32.mxu0 0.0
      %820 = vmatmul.mubr.f32.gmra.mrb[0].mxu0 %v692
      %v821 = vpop.f32.mrb[0].mxu0
      %v822 = vadd.f32 %v664, %v821
      %v823 = vpop.f32.mrb[0].mxu0
      %824 = vmatprep.mubr.f32.mxu0 0.0
      %825 = vmatmul.mubr.f32.gmra.mrb[0].mxu0 %v695
      %v826 = vpop.f32.mrb[0].mxu0
      %v827 = vadd.f32 %v664, %v826
      %v828 = vpop.f32.mrb[0].mxu0
      %829 = vmatprep.mubr.f32.mxu0 0.0
      %830 = vmatmul.mubr.f32.gmra.mrb[0].mxu0 %v698
      %v831 = vpop.f32.mrb[0].mxu0
      %v832 = vadd.f32 %v664, %v831
      %v833 = vpop.f32.mrb[0].mxu0
      %834 = vmatprep.mubr.f32.mxu0 0.0
      %835 = vmatmul.mubr.f32.gmra.mrb[0].mxu0 %v701
      %v836 = vpop.f32.mrb[0].mxu0
      %v837 = vadd.f32 %v664, %v836
      %v838 = vpop.f32.mrb[0].mxu0
      %839 = vmatprep.mubr.f32.mxu0 0.0
      %840 = vmatmul.mubr.f32.gmra.mrb[0].mxu0 %v704
      %v841 = vpop.f32.mrb[0].mxu0
      %v842 = vadd.f32 %v664, %v841
      %v843 = vpop.f32.mrb[0].mxu0
      %844 = vmatprep.mubr.f32.mxu0 0.0
      %845 = vmatmul.mubr.f32.gmra.mrb[0].mxu0 %v707
      %v846 = vpop.f32.mrb[0].mxu0
      %v847 = vadd.f32 %v664, %v846
      %v848 = vpop.f32.mrb[0].mxu0
      %849 = vmatprep.mubr.f32.mxu0 0.0
      %850 = vmatmul.mubr.f32.gmra.mrb[0].mxu0 %v710
      %v851 = vpop.f32.mrb[0].mxu0
      %v852 = vadd.f32 %v664, %v851
      %v853 = vpop.f32.mrb[0].mxu0
      %854 = vmatprep.mubr.f32.mxu0 0.0
      %855 = vmatmul.mubr.f32.gmra.mrb[0].mxu0 %v713
      %v856 = vpop.f32.mrb[0].mxu0
      %v857 = vadd.f32 %v664, %v856
      %v858 = vpop.f32.mrb[0].mxu0
      %859 = vdwg.mxu0
      %v860 = vld [vmem:[%s6] sm:$0xff]
      %v861 = vld [vmem:[%s6 + $0x8] sm:$0xff]
      %v862 = vld [vmem:[%s7] sm:$0x1]
      %v864 = vlaneseq
      %v865 = vshrl.u32 %v864, 7
      %v866 = vsub.s32 0, %v865
      %v867 = vrot.slane %v862, %v866
      %869 = vmatprep.subr.mxu0 0.0
      %870 = vmatpush1.msra.mxu0 %v860
      %871 = vmatprep.subr.mxu0 0.0
      %872 = vmatpush1.msra.mxu0 %v861
      %873 = vmatprep.subr.mxu0 0.0
      %874 = vmatpush1.msra.mxu0 0.0
      %875 = vmatprep.subr.mxu0 0.0
      %876 = vmatpush1.msra.mxu0 0.0
      %877 = vmatprep.subr.mxu0 0.0
      %878 = vmatpush1.msra.mxu0 0.0
      %879 = vmatprep.subr.mxu0 0.0
      %880 = vmatpush1.msra.mxu0 0.0
      %881 = vmatprep.subr.mxu0 0.0
      %882 = vmatpush1.msra.mxu0 0.0
      %883 = vmatprep.subr.mxu0 0.0
      %884 = vmatpush1.msra.mxu0 0.0
      %885 = vmatprep.subr.mxu0 0.0
      %886 = vmatpush1.msra.mxu0 0.0
      %887 = vmatprep.subr.mxu0 0.0
      %888 = vmatpush1.msra.mxu0 0.0
      %889 = vmatprep.subr.mxu0 0.0
      %890 = vmatpush1.msra.mxu0 0.0
      %891 = vmatprep.subr.mxu0 0.0
      %892 = vmatpush1.msra.mxu0 0.0
      %893 = vmatprep.subr.mxu0 0.0
      %894 = vmatpush1.msra.mxu0 0.0
      %895 = vmatprep.subr.mxu0 0.0
      %896 = vmatpush1.msra.mxu0 0.0
      %897 = vmatprep.subr.mxu0 0.0
      %898 = vmatpush1.msra.mxu0 0.0
      %899 = vmatprep.subr.mxu0 0.0
      %900 = vmatpush1.msra.mxu0 0.0
      %901 = vmatprep.subr.mxu0 0.0
      %902 = vmatpush1.msra.mxu0 0.0
      %903 = vmatprep.subr.mxu0 0.0
      %904 = vmatpush1.msra.mxu0 0.0
      %905 = vmatprep.subr.mxu0 0.0
      %906 = vmatpush1.msra.mxu0 0.0
      %907 = vmatprep.subr.mxu0 0.0
      %908 = vmatpush1.msra.mxu0 0.0
      %909 = vmatprep.subr.mxu0 0.0
      %910 = vmatpush1.msra.mxu0 0.0
      %911 = vmatprep.subr.mxu0 0.0
      %912 = vmatpush1.msra.mxu0 0.0
      %913 = vmatprep.subr.mxu0 0.0
      %914 = vmatpush1.msra.mxu0 0.0
      %915 = vmatprep.subr.mxu0 0.0
      %916 = vmatpush1.msra.mxu0 0.0
      %917 = vmatprep.subr.mxu0 0.0
      %918 = vmatpush1.msra.mxu0 0.0
      %919 = vmatprep.subr.mxu0 0.0
      %920 = vmatpush1.msra.mxu0 0.0
      %921 = vmatprep.subr.mxu0 0.0
      %922 = vmatpush1.msra.mxu0 0.0
      %923 = vmatprep.subr.mxu0 0.0
      %924 = vmatpush1.msra.mxu0 0.0
      %925 = vmatprep.subr.mxu0 0.0
      %926 = vmatpush1.msra.mxu0 0.0
      %927 = vmatprep.subr.mxu0 0.0
      %928 = vmatpush1.msra.mxu0 0.0
      %929 = vmatprep.subr.mxu0 0.0
      %930 = vmatpush1.msra.mxu0 0.0
      %931 = vmatprep.subr.mxu0 0.0
      %932 = vmatpush1.msra.mxu0 0.0
      %933 = vmatprep.mubr.f32.mxu0 0.0
      %934 = vmatmul.mubr.f32.gmra.mrb[0].mxu0 %v668
      %v935 = vpop.f32.mrb[0].mxu0
      %v936 = vadd.f32 %v867, %v935
      %v937 = vpop.f32.mrb[0].mxu0
      %938 = vmatprep.mubr.f32.mxu0 0.0
      %939 = vmatmul.mubr.f32.gmra.mrb[0].mxu0 %v671
      %v940 = vpop.f32.mrb[0].mxu0
      %v941 = vadd.f32 %v867, %v940
      %v942 = vpop.f32.mrb[0].mxu0
      %943 = vmatprep.mubr.f32.mxu0 0.0
      %944 = vmatmul.mubr.f32.gmra.mrb[0].mxu0 %v674
      %v945 = vpop.f32.mrb[0].mxu0
      %v946 = vadd.f32 %v867, %v945
      %v947 = vpop.f32.mrb[0].mxu0
      %948 = vmatprep.mubr.f32.mxu0 0.0
      %949 = vmatmul.mubr.f32.gmra.mrb[0].mxu0 %v677
      %v950 = vpop.f32.mrb[0].mxu0
      %v951 = vadd.f32 %v867, %v950
      %v952 = vpop.f32.mrb[0].mxu0
      %953 = vmatprep.mubr.f32.mxu0 0.0
      %954 = vmatmul.mubr.f32.gmra.mrb[0].mxu0 %v680
      %v955 = vpop.f32.mrb[0].mxu0
      %v956 = vadd.f32 %v867, %v955
      %v957 = vpop.f32.mrb[0].mxu0
      %958 = vmatprep.mubr.f32.mxu0 0.0
      %959 = vmatmul.mubr.f32.gmra.mrb[0].mxu0 %v683
      %v960 = vpop.f32.mrb[0].mxu0
      %v961 = vadd.f32 %v867, %v960
      %v962 = vpop.f32.mrb[0].mxu0
      %963 = vmatprep.mubr.f32.mxu0 0.0
      %964 = vmatmul.mubr.f32.gmra.mrb[0].mxu0 %v686
      %v965 = vpop.f32.mrb[0].mxu0
      %v966 = vadd.f32 %v867, %v965
      %v967 = vpop.f32.mrb[0].mxu0
      %968 = vmatprep.mubr.f32.mxu0 0.0
      %969 = vmatmul.mubr.f32.gmra.mrb[0].mxu0 %v689
      %v970 = vpop.f32.mrb[0].mxu0
      %v971 = vadd.f32 %v867, %v970
      %v972 = vpop.f32.mrb[0].mxu0
      %973 = vmatprep.mubr.f32.mxu0 0.0
      %974 = vmatmul.mubr.f32.gmra.mrb[0].mxu0 %v692
      %v975 = vpop.f32.mrb[0].mxu0
      %v976 = vadd.f32 %v867, %v975
      %v977 = vpop.f32.mrb[0].mxu0
      %978 = vmatprep.mubr.f32.mxu0 0.0
      %979 = vmatmul.mubr.f32.gmra.mrb[0].mxu0 %v695
      %v980 = vpop.f32.mrb[0].mxu0
      %v981 = vadd.f32 %v867, %v980
      %v982 = vpop.f32.mrb[0].mxu0
      %983 = vmatprep.mubr.f32.mxu0 0.0
      %984 = vmatmul.mubr.f32.gmra.mrb[0].mxu0 %v698
      %v985 = vpop.f32.mrb[0].mxu0
      %v986 = vadd.f32 %v867, %v985
      %v987 = vpop.f32.mrb[0].mxu0
      %988 = vmatprep.mubr.f32.mxu0 0.0
      %989 = vmatmul.mubr.f32.gmra.mrb[0].mxu0 %v701
      %v990 = vpop.f32.mrb[0].mxu0
      %v991 = vadd.f32 %v867, %v990
      %v992 = vpop.f32.mrb[0].mxu0
      %993 = vmatprep.mubr.f32.mxu0 0.0
      %994 = vmatmul.mubr.f32.gmra.mrb[0].mxu0 %v704
      %v995 = vpop.f32.mrb[0].mxu0
      %v996 = vadd.f32 %v867, %v995
      %v997 = vpop.f32.mrb[0].mxu0
      %998 = vmatprep.mubr.f32.mxu0 0.0
      %999 = vmatmul.mubr.f32.gmra.mrb[0].mxu0 %v707
      %v1000 = vpop.f32.mrb[0].mxu0
      %v1001 = vadd.f32 %v867, %v1000
      %v1002 = vpop.f32.mrb[0].mxu0
      %1003 = vmatprep.mubr.f32.mxu0 0.0
      %1004 = vmatmul.mubr.f32.gmra.mrb[0].mxu0 %v710
      %v1005 = vpop.f32.mrb[0].mxu0
      %v1006 = vadd.f32 %v867, %v1005
      %v1007 = vpop.f32.mrb[0].mxu0
      %1008 = vmatprep.mubr.f32.mxu0 0.0
      %1009 = vmatmul.mubr.f32.gmra.mrb[0].mxu0 %v713
      %v1010 = vpop.f32.mrb[0].mxu0
      %v1011 = vadd.f32 %v867, %v1010
      %v1012 = vpop.f32.mrb[0].mxu0
      %1013 = vdwg.mxu0
      %v1014 = vld [vmem:[%s2] sm:$0xff]
      %v1015 = vld [vmem:[%s2 + $0x8] sm:$0xff]
      %v1016 = vld [vmem:[%s2 + $0x10] sm:$0xff]
      %v1017 = vld [vmem:[%s2 + $0x18] sm:$0xff]
      %v1018 = vld [vmem:[%s2 + $0x20] sm:$0xff]
      %v1019 = vld [vmem:[%s2 + $0x28] sm:$0xff]
      %v1020 = vld [vmem:[%s2 + $0x30] sm:$0xff]
      %v1021 = vld [vmem:[%s2 + $0x38] sm:$0xff]
      %vm1022 = vcmask 64512
      %v1024 = vsel %vm1022, %v649, 0
      %v1027 = vsel %vm1022, %v650, 0
      %v1030 = vsel %vm1022, %v651, 0
      %v1033 = vsel %vm1022, %v652, 0
      %v1036 = vsel %vm1022, %v653, 0
      %v1039 = vsel %vm1022, %v654, 0
      %v1042 = vsel %vm1022, %v655, 0
      %v1045 = vsel %vm1022, %v656, 0
      %v1048 = vsel %vm1022, %v782, 0
      %v1051 = vsel %vm1022, %v787, 0
      %v1054 = vsel %vm1022, %v792, 0
      %v1057 = vsel %vm1022, %v797, 0
      %v1060 = vsel %vm1022, %v802, 0
      %v1063 = vsel %vm1022, %v807, 0
      %v1066 = vsel %vm1022, %v812, 0
      %v1069 = vsel %vm1022, %v817, 0
      %v1072 = vsel %vm1022, %v822, 0
      %v1075 = vsel %vm1022, %v827, 0
      %v1078 = vsel %vm1022, %v832, 0
      %v1081 = vsel %vm1022, %v837, 0
      %v1084 = vsel %vm1022, %v842, 0
      %v1087 = vsel %vm1022, %v847, 0
      %v1090 = vsel %vm1022, %v852, 0
      %v1093 = vsel %vm1022, %v857, 0
      %1095 = vmatprep.subr.mxu0 0.0
      %1096 = vmatpush1.xpose.msra.mxu0 %v1048
      %1097 = vmatprep.subr.mxu0 0.0
      %1098 = vmatpush1.xpose.msra.mxu0 %v1051
      %1099 = vmatprep.subr.mxu0 0.0
      %1100 = vmatpush1.xpose.msra.mxu0 %v1054
      %1101 = vmatprep.subr.mxu0 0.0
      %1102 = vmatpush1.xpose.msra.mxu0 %v1057
      %1103 = vmatprep.subr.mxu0 0.0
      %1104 = vmatpush1.xpose.msra.mxu0 %v1060
      %1105 = vmatprep.subr.mxu0 0.0
      %1106 = vmatpush1.xpose.msra.mxu0 %v1063
      %1107 = vmatprep.subr.mxu0 0.0
      %1108 = vmatpush1.xpose.msra.mxu0 %v1066
      %1109 = vmatprep.subr.mxu0 0.0
      %1110 = vmatpush1.xpose.msra.mxu0 %v1069
      %1111 = vmatprep.subr.mxu0 0.0
      %1112 = vmatpush1.xpose.msra.mxu0 %v1072
      %1113 = vmatprep.subr.mxu0 0.0
      %1114 = vmatpush1.xpose.msra.mxu0 %v1075
      %1115 = vmatprep.subr.mxu0 0.0
      %1116 = vmatpush1.xpose.msra.mxu0 %v1078
      %1117 = vmatprep.subr.mxu0 0.0
      %1118 = vmatpush1.xpose.msra.mxu0 %v1081
      %1119 = vmatprep.subr.mxu0 0.0
      %1120 = vmatpush1.xpose.msra.mxu0 %v1084
      %1121 = vmatprep.subr.mxu0 0.0
      %1122 = vmatpush1.xpose.msra.mxu0 %v1087
      %1123 = vmatprep.subr.mxu0 0.0
      %1124 = vmatpush1.xpose.msra.mxu0 %v1090
      %1125 = vmatprep.subr.mxu0 0.0
      %1126 = vmatpush1.xpose.msra.mxu0 %v1093
      %1127 = vmatprep.subr.mxu0 0.0
      %1128 = vmatpush1.xpose.msra.mxu0 0.0
      %1129 = vmatprep.subr.mxu0 0.0
      %1130 = vmatpush1.xpose.msra.mxu0 0.0
      %1131 = vmatprep.subr.mxu0 0.0
      %1132 = vmatpush1.xpose.msra.mxu0 0.0
      %1133 = vmatprep.subr.mxu0 0.0
      %1134 = vmatpush1.xpose.msra.mxu0 0.0
      %1135 = vmatprep.subr.mxu0 0.0
      %1136 = vmatpush1.xpose.msra.mxu0 0.0
      %1137 = vmatprep.subr.mxu0 0.0
      %1138 = vmatpush1.xpose.msra.mxu0 0.0
      %1139 = vmatprep.subr.mxu0 0.0
      %1140 = vmatpush1.xpose.msra.mxu0 0.0
      %1141 = vmatprep.subr.mxu0 0.0
      %1142 = vmatpush1.xpose.msra.mxu0 0.0
      %1143 = vmatprep.subr.mxu0 0.0
      %1144 = vmatpush1.xpose.msra.mxu0 0.0
      %1145 = vmatprep.subr.mxu0 0.0
      %1146 = vmatpush1.xpose.msra.mxu0 0.0
      %1147 = vmatprep.subr.mxu0 0.0
      %1148 = vmatpush1.xpose.msra.mxu0 0.0
      %1149 = vmatprep.subr.mxu0 0.0
      %1150 = vmatpush1.xpose.msra.mxu0 0.0
      %1151 = vmatprep.subr.mxu0 0.0
      %1152 = vmatpush1.xpose.msra.mxu0 0.0
      %1153 = vmatprep.subr.mxu0 0.0
      %1154 = vmatpush1.xpose.msra.mxu0 0.0
      %1155 = vmatprep.subr.mxu0 0.0
      %1156 = vmatpush1.xpose.msra.mxu0 0.0
      %1157 = vmatprep.subr.mxu0 0.0
      %1158 = vmatpush1.xpose.msra.mxu0 0.0
      %1159 = vmatprep.mubr.f32.mxu0 0.0
      %1160 = vmatmul.mubr.f32.gmra.mrb[0].mxu0 %v1024
      %v1161 = vpop.f32.mrb[0].mxu0
      %v1162 = vadd.f32 0.0, %v1161
      %v1163 = vpop.f32.mrb[0].mxu0
      %1164 = vmatprep.mubr.f32.mxu0 0.0
      %1165 = vmatmul.mubr.f32.gmra.mrb[0].mxu0 %v1027
      %v1166 = vpop.f32.mrb[0].mxu0
      %v1167 = vadd.f32 0.0, %v1166
      %v1168 = vpop.f32.mrb[0].mxu0
      %1169 = vmatprep.mubr.f32.mxu0 0.0
      %1170 = vmatmul.mubr.f32.gmra.mrb[0].mxu0 %v1030
      %v1171 = vpop.f32.mrb[0].mxu0
      %v1172 = vadd.f32 0.0, %v1171
      %v1173 = vpop.f32.mrb[0].mxu0
      %1174 = vmatprep.mubr.f32.mxu0 0.0
      %1175 = vmatmul.mubr.f32.gmra.mrb[0].mxu0 %v1033
      %v1176 = vpop.f32.mrb[0].mxu0
      %v1177 = vadd.f32 0.0, %v1176
      %v1178 = vpop.f32.mrb[0].mxu0
      %1179 = vmatprep.mubr.f32.mxu0 0.0
      %1180 = vmatmul.mubr.f32.gmra.mrb[0].mxu0 %v1036
      %v1181 = vpop.f32.mrb[0].mxu0
      %v1182 = vadd.f32 0.0, %v1181
      %v1183 = vpop.f32.mrb[0].mxu0
      %1184 = vmatprep.mubr.f32.mxu0 0.0
      %1185 = vmatmul.mubr.f32.gmra.mrb[0].mxu0 %v1039
      %v1186 = vpop.f32.mrb[0].mxu0
      %v1187 = vadd.f32 0.0, %v1186
      %v1188 = vpop.f32.mrb[0].mxu0
      %1189 = vmatprep.mubr.f32.mxu0 0.0
      %1190 = vmatmul.mubr.f32.gmra.mrb[0].mxu0 %v1042
      %v1191 = vpop.f32.mrb[0].mxu0
      %v1192 = vadd.f32 0.0, %v1191
      %v1193 = vpop.f32.mrb[0].mxu0
      %1194 = vmatprep.mubr.f32.mxu0 0.0
      %1195 = vmatmul.mubr.f32.gmra.mrb[0].mxu0 %v1045
      %v1196 = vpop.f32.mrb[0].mxu0
      %v1197 = vadd.f32 0.0, %v1196
      %v1198 = vpop.f32.mrb[0].mxu0
      %1199 = vdwg.mxu0
      %v1200 = vmul.f32 %v1162, 0.17677669
      %v1201 = vmul.f32 %v1167, 0.17677669
      %v1202 = vmul.f32 %v1172, 0.17677669
      %v1203 = vmul.f32 %v1177, 0.17677669
      %v1204 = vmul.f32 %v1182, 0.17677669
      %v1205 = vmul.f32 %v1187, 0.17677669
      %v1206 = vmul.f32 %v1192, 0.17677669
      %v1207 = vmul.f32 %v1197, 0.17677669
      %v1208 = vadd.f32 %v1200, %v1014
      %v1209 = vadd.f32 %v1201, %v1015
      %v1210 = vadd.f32 %v1202, %v1016
      %v1211 = vadd.f32 %v1203, %v1017
      %v1212 = vadd.f32 %v1204, %v1018
      %v1213 = vadd.f32 %v1205, %v1019
      %v1214 = vadd.f32 %v1206, %v1020
      %v1215 = vadd.f32 %v1207, %v1021
      %1216 = vmax.xlane.f32.xlu0 %v1208
      %v1217 = vpop.xlane.xlu0 %1216
      %1218 = vmax.xlane.f32.xlu0 %v1209
      %v1219 = vpop.xlane.xlu0 %1218
      %1220 = vmax.xlane.f32.xlu0 %v1210
      %v1221 = vpop.xlane.xlu0 %1220
      %1222 = vmax.xlane.f32.xlu0 %v1211
      %v1223 = vpop.xlane.xlu0 %1222
      %1224 = vmax.xlane.f32.xlu0 %v1212
      %v1225 = vpop.xlane.xlu0 %1224
      %1226 = vmax.xlane.f32.xlu0 %v1213
      %v1227 = vpop.xlane.xlu0 %1226
      %1228 = vmax.xlane.f32.xlu0 %v1214
      %v1229 = vpop.xlane.xlu0 %1228
      %1230 = vmax.xlane.f32.xlu0 %v1215
      %v1231 = vpop.xlane.xlu0 %1230
      %v1232 = vsub.f32 %v1208, %v1217
      %v1233 = vsub.f32 %v1209, %v1219
      %v1234 = vsub.f32 %v1210, %v1221
      %v1235 = vsub.f32 %v1211, %v1223
      %v1236 = vsub.f32 %v1212, %v1225
      %v1237 = vsub.f32 %v1213, %v1227
      %v1238 = vsub.f32 %v1214, %v1229
      %v1239 = vsub.f32 %v1215, %v1231
      %v1240 = vmul.f32 %v1232, 1.442695
      %v1241 = vpow.pop %v1240
      %v1242 = vmul.f32 %v1233, 1.442695
      %v1243 = vpow.pop %v1242
      %v1244 = vmul.f32 %v1234, 1.442695
      %v1245 = vpow.pop %v1244
      %v1246 = vmul.f32 %v1235, 1.442695
      %v1247 = vpow.pop %v1246
      %v1248 = vmul.f32 %v1236, 1.442695
      %v1249 = vpow.pop %v1248
      %v1250 = vmul.f32 %v1237, 1.442695
      %v1251 = vpow.pop %v1250
      %v1252 = vmul.f32 %v1238, 1.442695
      %v1253 = vpow.pop %v1252
      %v1254 = vmul.f32 %v1239, 1.442695
      %v1255 = vpow.pop %v1254
      %1256 = vadd.xlane.f32.xlu0 %v1241
      %v1257 = vpop.xlane.xlu0 %1256
      %1258 = vadd.xlane.f32.xlu0 %v1243
      %v1259 = vpop.xlane.xlu0 %1258
      %1260 = vadd.xlane.f32.xlu0 %v1245
      %v1261 = vpop.xlane.xlu0 %1260
      %1262 = vadd.xlane.f32.xlu0 %v1247
      %v1263 = vpop.xlane.xlu0 %1262
      %1264 = vadd.xlane.f32.xlu0 %v1249
      %v1265 = vpop.xlane.xlu0 %1264
      %1266 = vadd.xlane.f32.xlu0 %v1251
      %v1267 = vpop.xlane.xlu0 %1266
      %1268 = vadd.xlane.f32.xlu0 %v1253
      %v1269 = vpop.xlane.xlu0 %1268
      %1270 = vadd.xlane.f32.xlu0 %v1255
      %v1271 = vpop.xlane.xlu0 %1270
      %v1272 = vrcp.pop %v1257
      %v1273 = vrcp.pop %v1259
      %v1274 = vrcp.pop %v1261
      %v1275 = vrcp.pop %v1263
      %v1276 = vrcp.pop %v1265
      %v1277 = vrcp.pop %v1267
      %v1278 = vrcp.pop %v1269
      %v1279 = vrcp.pop %v1271
      %v1280 = vmul.f32 %v1241, %v1272
      %v1281 = vmul.f32 %v1243, %v1273
      %v1282 = vmul.f32 %v1245, %v1274
      %v1283 = vmul.f32 %v1247, %v1275
      %v1284 = vmul.f32 %v1249, %v1276
      %v1285 = vmul.f32 %v1251, %v1277
      %v1286 = vmul.f32 %v1253, %v1278
      %v1287 = vmul.f32 %v1255, %v1279
      %1288 = vmatprep.subr.mxu0 0.0
      %1289 = vmatpush1.msra.mxu0 %v936
      %1290 = vmatprep.subr.mxu0 0.0
      %1291 = vmatpush1.msra.mxu0 %v941
      %1292 = vmatprep.subr.mxu0 0.0
      %1293 = vmatpush1.msra.mxu0 %v946
      %1294 = vmatprep.subr.mxu0 0.0
      %1295 = vmatpush1.msra.mxu0 %v951
      %1296 = vmatprep.subr.mxu0 0.0
      %1297 = vmatpush1.msra.mxu0 %v956
      %1298 = vmatprep.subr.mxu0 0.0
      %1299 = vmatpush1.msra.mxu0 %v961
      %1300 = vmatprep.subr.mxu0 0.0
      %1301 = vmatpush1.msra.mxu0 %v966
      %1302 = vmatprep.subr.mxu0 0.0
      %1303 = vmatpush1.msra.mxu0 %v971
      %1304 = vmatprep.subr.mxu0 0.0
      %1305 = vmatpush1.msra.mxu0 %v976
      %1306 = vmatprep.subr.mxu0 0.0
      %1307 = vmatpush1.msra.mxu0 %v981
      %1308 = vmatprep.subr.mxu0 0.0
      %1309 = vmatpush1.msra.mxu0 %v986
      %1310 = vmatprep.subr.mxu0 0.0
      %1311 = vmatpush1.msra.mxu0 %v991
      %1312 = vmatprep.subr.mxu0 0.0
      %1313 = vmatpush1.msra.mxu0 %v996
      %1314 = vmatprep.subr.mxu0 0.0
      %1315 = vmatpush1.msra.mxu0 %v1001
      %1316 = vmatprep.subr.mxu0 0.0
      %1317 = vmatpush1.msra.mxu0 %v1006
      %1318 = vmatprep.subr.mxu0 0.0
      %1319 = vmatpush1.msra.mxu0 %v1011
      %1320 = vmatprep.subr.mxu0 0.0
      %1321 = vmatpush1.msra.mxu0 0.0
      %1322 = vmatprep.subr.mxu0 0.0
      %1323 = vmatpush1.msra.mxu0 0.0
      %1324 = vmatprep.subr.mxu0 0.0
      %1325 = vmatpush1.msra.mxu0 0.0
      %1326 = vmatprep.subr.mxu0 0.0
      %1327 = vmatpush1.msra.mxu0 0.0
      %1328 = vmatprep.subr.mxu0 0.0
      %1329 = vmatpush1.msra.mxu0 0.0
      %1330 = vmatprep.subr.mxu0 0.0
      %1331 = vmatpush1.msra.mxu0 0.0
      %1332 = vmatprep.subr.mxu0 0.0
      %1333 = vmatpush1.msra.mxu0 0.0
      %1334 = vmatprep.subr.mxu0 0.0
      %1335 = vmatpush1.msra.mxu0 0.0
      %1336 = vmatprep.subr.mxu0 0.0
      %1337 = vmatpush1.msra.mxu0 0.0
      %1338 = vmatprep.subr.mxu0 0.0
      %1339 = vmatpush1.msra.mxu0 0.0
      %1340 = vmatprep.subr.mxu0 0.0
      %1341 = vmatpush1.msra.mxu0 0.0
      %1342 = vmatprep.subr.mxu0 0.0
      %1343 = vmatpush1.msra.mxu0 0.0
      %1344 = vmatprep.subr.mxu0 0.0
      %1345 = vmatpush1.msra.mxu0 0.0
      %1346 = vmatprep.subr.mxu0 0.0
      %1347 = vmatpush1.msra.mxu0 0.0
      %1348 = vmatprep.subr.mxu0 0.0
      %1349 = vmatpush1.msra.mxu0 0.0
      %1350 = vmatprep.subr.mxu0 0.0
      %1351 = vmatpush1.msra.mxu0 0.0
      %1352 = vmatprep.mubr.f32.mxu0 0.0
      %1353 = vmatmul.mubr.f32.gmra.mrb[0].mxu0 %v1280
      %v1354 = vpop.f32.mrb[0].mxu0
      %v1355 = vadd.f32 0.0, %v1354
      %v1356 = vpop.f32.mrb[0].mxu0
      %1357 = vmatprep.mubr.f32.mxu0 0.0
      %1358 = vmatmul.mubr.f32.gmra.mrb[0].mxu0 %v1281
      %v1359 = vpop.f32.mrb[0].mxu0
      %v1360 = vadd.f32 0.0, %v1359
      %v1361 = vpop.f32.mrb[0].mxu0
      %1362 = vmatprep.mubr.f32.mxu0 0.0
      %1363 = vmatmul.mubr.f32.gmra.mrb[0].mxu0 %v1282
      %v1364 = vpop.f32.mrb[0].mxu0
      %v1365 = vadd.f32 0.0, %v1364
      %v1366 = vpop.f32.mrb[0].mxu0
      %1367 = vmatprep.mubr.f32.mxu0 0.0
      %1368 = vmatmul.mubr.f32.gmra.mrb[0].mxu0 %v1283
      %v1369 = vpop.f32.mrb[0].mxu0
      %v1370 = vadd.f32 0.0, %v1369
      %v1371 = vpop.f32.mrb[0].mxu0
      %1372 = vmatprep.mubr.f32.mxu0 0.0
      %1373 = vmatmul.mubr.f32.gmra.mrb[0].mxu0 %v1284
      %v1374 = vpop.f32.mrb[0].mxu0
      %v1375 = vadd.f32 0.0, %v1374
      %v1376 = vpop.f32.mrb[0].mxu0
      %1377 = vmatprep.mubr.f32.mxu0 0.0
      %1378 = vmatmul.mubr.f32.gmra.mrb[0].mxu0 %v1285
      %v1379 = vpop.f32.mrb[0].mxu0
      %v1380 = vadd.f32 0.0, %v1379
      %v1381 = vpop.f32.mrb[0].mxu0
      %1382 = vmatprep.mubr.f32.mxu0 0.0
      %1383 = vmatmul.mubr.f32.gmra.mrb[0].mxu0 %v1286
      %v1384 = vpop.f32.mrb[0].mxu0
      %v1385 = vadd.f32 0.0, %v1384
      %v1386 = vpop.f32.mrb[0].mxu0
      %1387 = vmatprep.mubr.f32.mxu0 0.0
      %1388 = vmatmul.mubr.f32.gmra.mrb[0].mxu0 %v1287
      %v1389 = vpop.f32.mrb[0].mxu0
      %v1390 = vadd.f32 0.0, %v1389
      %v1391 = vpop.f32.mrb[0].mxu0
      %1392 = vdwg.mxu0
      %v1393 = vadd.f32 %v649, %v1355
      %v1394 = vadd.f32 %v650, %v1360
      %v1395 = vadd.f32 %v651, %v1365
      %v1396 = vadd.f32 %v652, %v1370
      %v1397 = vadd.f32 %v653, %v1375
      %v1398 = vadd.f32 %v654, %v1380
      %v1399 = vadd.f32 %v655, %v1385
      %v1400 = vadd.f32 %v656, %v1390
      %1401 = vrot.lane.b32.xlu0 %v649, 120
      %v1402 = vpop.permute.xlu0 %1401
      %1403 = vrot.lane.b32.xlu0 %v650, 120
      %v1404 = vpop.permute.xlu0 %1403
      %1405 = vrot.lane.b32.xlu0 %v651, 120
      %v1406 = vpop.permute.xlu0 %1405
      %1407 = vrot.lane.b32.xlu0 %v652, 120
      %v1408 = vpop.permute.xlu0 %1407
      %1409 = vrot.lane.b32.xlu0 %v653, 120
      %v1410 = vpop.permute.xlu0 %1409
      %1411 = vrot.lane.b32.xlu0 %v654, 120
      %v1412 = vpop.permute.xlu0 %1411
      %1413 = vrot.lane.b32.xlu0 %v655, 120
      %v1414 = vpop.permute.xlu0 %1413
      %1415 = vrot.lane.b32.xlu0 %v656, 120
      %v1416 = vpop.permute.xlu0 %1415
      %1417 = vrot.lane.b32.xlu0 %v782, 120
      %v1418 = vpop.permute.xlu0 %1417
      %1419 = vrot.lane.b32.xlu0 %v787, 120
      %v1420 = vpop.permute.xlu0 %1419
      %1421 = vrot.lane.b32.xlu0 %v792, 120
      %v1422 = vpop.permute.xlu0 %1421
      %1423 = vrot.lane.b32.xlu0 %v797, 120
      %v1424 = vpop.permute.xlu0 %1423
      %1425 = vrot.lane.b32.xlu0 %v802, 120
      %v1426 = vpop.permute.xlu0 %1425
      %1427 = vrot.lane.b32.xlu0 %v807, 120
      %v1428 = vpop.permute.xlu0 %1427
      %1429 = vrot.lane.b32.xlu0 %v812, 120
      %v1430 = vpop.permute.xlu0 %1429
      %1431 = vrot.lane.b32.xlu0 %v817, 120
      %v1432 = vpop.permute.xlu0 %1431
      %1433 = vrot.lane.b32.xlu0 %v822, 120
      %v1434 = vpop.permute.xlu0 %1433
      %1435 = vrot.lane.b32.xlu0 %v827, 120
      %v1436 = vpop.permute.xlu0 %1435
      %1437 = vrot.lane.b32.xlu0 %v832, 120
      %v1438 = vpop.permute.xlu0 %1437
      %1439 = vrot.lane.b32.xlu0 %v837, 120
      %v1440 = vpop.permute.xlu0 %1439
      %1441 = vrot.lane.b32.xlu0 %v842, 120
      %v1442 = vpop.permute.xlu0 %1441
      %1443 = vrot.lane.b32.xlu0 %v847, 120
      %v1444 = vpop.permute.xlu0 %1443
      %1445 = vrot.lane.b32.xlu0 %v852, 120
      %v1446 = vpop.permute.xlu0 %1445
      %1447 = vrot.lane.b32.xlu0 %v857, 120
      %v1448 = vpop.permute.xlu0 %1447
      %v1449 = vsel %vm1022, %v1402, 0
      %v1451 = vsel %vm1022, %v1404, 0
      %v1453 = vsel %vm1022, %v1406, 0
      %v1455 = vsel %vm1022, %v1408, 0
      %v1457 = vsel %vm1022, %v1410, 0
      %v1459 = vsel %vm1022, %v1412, 0
      %v1461 = vsel %vm1022, %v1414, 0
      %v1463 = vsel %vm1022, %v1416, 0
      %v1465 = vsel %vm1022, %v1418, 0
      %v1467 = vsel %vm1022, %v1420, 0
      %v1469 = vsel %vm1022, %v1422, 0
      %v1471 = vsel %vm1022, %v1424, 0
      %v1473 = vsel %vm1022, %v1426, 0
      %v1475 = vsel %vm1022, %v1428, 0
      %v1477 = vsel %vm1022, %v1430, 0
      %v1479 = vsel %vm1022, %v1432, 0
      %v1481 = vsel %vm1022, %v1434, 0
      %v1483 = vsel %vm1022, %v1436, 0
      %v1485 = vsel %vm1022, %v1438, 0
      %v1487 = vsel %vm1022, %v1440, 0
      %v1489 = vsel %vm1022, %v1442, 0
      %v1491 = vsel %vm1022, %v1444, 0
      %v1493 = vsel %vm1022, %v1446, 0
      %v1495 = vsel %vm1022, %v1448, 0
      %1497 = vmatprep.subr.mxu0 0.0
      %1498 = vmatpush1.xpose.msra.mxu0 %v1465
      %1499 = vmatprep.subr.mxu0 0.0
      %1500 = vmatpush1.xpose.msra.mxu0 %v1467
      %1501 = vmatprep.subr.mxu0 0.0
      %1502 = vmatpush1.xpose.msra.mxu0 %v1469
      %1503 = vmatprep.subr.mxu0 0.0
      %1504 = vmatpush1.xpose.msra.mxu0 %v1471
      %1505 = vmatprep.subr.mxu0 0.0
      %1506 = vmatpush1.xpose.msra.mxu0 %v1473
      %1507 = vmatprep.subr.mxu0 0.0
      %1508 = vmatpush1.xpose.msra.mxu0 %v1475
      %1509 = vmatprep.subr.mxu0 0.0
      %1510 = vmatpush1.xpose.msra.mxu0 %v1477
      %1511 = vmatprep.subr.mxu0 0.0
      %1512 = vmatpush1.xpose.msra.mxu0 %v1479
      %1513 = vmatprep.subr.mxu0 0.0
      %1514 = vmatpush1.xpose.msra.mxu0 %v1481
      %1515 = vmatprep.subr.mxu0 0.0
      %1516 = vmatpush1.xpose.msra.mxu0 %v1483
      %1517 = vmatprep.subr.mxu0 0.0
      %1518 = vmatpush1.xpose.msra.mxu0 %v1485
      %1519 = vmatprep.subr.mxu0 0.0
      %1520 = vmatpush1.xpose.msra.mxu0 %v1487
      %1521 = vmatprep.subr.mxu0 0.0
      %1522 = vmatpush1.xpose.msra.mxu0 %v1489
      %1523 = vmatprep.subr.mxu0 0.0
      %1524 = vmatpush1.xpose.msra.mxu0 %v1491
      %1525 = vmatprep.subr.mxu0 0.0
      %1526 = vmatpush1.xpose.msra.mxu0 %v1493
      %1527 = vmatprep.subr.mxu0 0.0
      %1528 = vmatpush1.xpose.msra.mxu0 %v1495
      %1529 = vmatprep.subr.mxu0 0.0
      %1530 = vmatpush1.xpose.msra.mxu0 0.0
      %1531 = vmatprep.subr.mxu0 0.0
      %1532 = vmatpush1.xpose.msra.mxu0 0.0
      %1533 = vmatprep.subr.mxu0 0.0
      %1534 = vmatpush1.xpose.msra.mxu0 0.0
      %1535 = vmatprep.subr.mxu0 0.0
      %1536 = vmatpush1.xpose.msra.mxu0 0.0
      %1537 = vmatprep.subr.mxu0 0.0
      %1538 = vmatpush1.xpose.msra.mxu0 0.0
      %1539 = vmatprep.subr.mxu0 0.0
      %1540 = vmatpush1.xpose.msra.mxu0 0.0
      %1541 = vmatprep.subr.mxu0 0.0
      %1542 = vmatpush1.xpose.msra.mxu0 0.0
      %1543 = vmatprep.subr.mxu0 0.0
      %1544 = vmatpush1.xpose.msra.mxu0 0.0
      %1545 = vmatprep.subr.mxu0 0.0
      %1546 = vmatpush1.xpose.msra.mxu0 0.0
      %1547 = vmatprep.subr.mxu0 0.0
      %1548 = vmatpush1.xpose.msra.mxu0 0.0
      %1549 = vmatprep.subr.mxu0 0.0
      %1550 = vmatpush1.xpose.msra.mxu0 0.0
      %1551 = vmatprep.subr.mxu0 0.0
      %1552 = vmatpush1.xpose.msra.mxu0 0.0
      %1553 = vmatprep.subr.mxu0 0.0
      %1554 = vmatpush1.xpose.msra.mxu0 0.0
      %1555 = vmatprep.subr.mxu0 0.0
      %1556 = vmatpush1.xpose.msra.mxu0 0.0
      %1557 = vmatprep.subr.mxu0 0.0
      %1558 = vmatpush1.xpose.msra.mxu0 0.0
      %1559 = vmatprep.subr.mxu0 0.0
      %1560 = vmatpush1.xpose.msra.mxu0 0.0
      %1561 = vmatprep.mubr.f32.mxu0 0.0
      %1562 = vmatmul.mubr.f32.gmra.mrb[0].mxu0 %v1449
      %v1563 = vpop.f32.mrb[0].mxu0
      %v1564 = vadd.f32 0.0, %v1563
      %v1565 = vpop.f32.mrb[0].mxu0
      %1566 = vmatprep.mubr.f32.mxu0 0.0
      %1567 = vmatmul.mubr.f32.gmra.mrb[0].mxu0 %v1451
      %v1568 = vpop.f32.mrb[0].mxu0
      %v1569 = vadd.f32 0.0, %v1568
      %v1570 = vpop.f32.mrb[0].mxu0
      %1571 = vmatprep.mubr.f32.mxu0 0.0
      %1572 = vmatmul.mubr.f32.gmra.mrb[0].mxu0 %v1453
      %v1573 = vpop.f32.mrb[0].mxu0
      %v1574 = vadd.f32 0.0, %v1573
      %v1575 = vpop.f32.mrb[0].mxu0
      %1576 = vmatprep.mubr.f32.mxu0 0.0
      %1577 = vmatmul.mubr.f32.gmra.mrb[0].mxu0 %v1455
      %v1578 = vpop.f32.mrb[0].mxu0
      %v1579 = vadd.f32 0.0, %v1578
      %v1580 = vpop.f32.mrb[0].mxu0
      %1581 = vmatprep.mubr.f32.mxu0 0.0
      %1582 = vmatmul.mubr.f32.gmra.mrb[0].mxu0 %v1457
      %v1583 = vpop.f32.mrb[0].mxu0
      %v1584 = vadd.f32 0.0, %v1583
      %v1585 = vpop.f32.mrb[0].mxu0
      %1586 = vmatprep.mubr.f32.mxu0 0.0
      %1587 = vmatmul.mubr.f32.gmra.mrb[0].mxu0 %v1459
      %v1588 = vpop.f32.mrb[0].mxu0
      %v1589 = vadd.f32 0.0, %v1588
      %v1590 = vpop.f32.mrb[0].mxu0
      %1591 = vmatprep.mubr.f32.mxu0 0.0
      %1592 = vmatmul.mubr.f32.gmra.mrb[0].mxu0 %v1461
      %v1593 = vpop.f32.mrb[0].mxu0
      %v1594 = vadd.f32 0.0, %v1593
      %v1595 = vpop.f32.mrb[0].mxu0
      %1596 = vmatprep.mubr.f32.mxu0 0.0
      %1597 = vmatmul.mubr.f32.gmra.mrb[0].mxu0 %v1463
      %v1598 = vpop.f32.mrb[0].mxu0
      %v1599 = vadd.f32 0.0, %v1598
      %v1600 = vpop.f32.mrb[0].mxu0
      %1601 = vdwg.mxu0
      %v1602 = vmul.f32 %v1564, 0.17677669
      %v1603 = vmul.f32 %v1569, 0.17677669
      %v1604 = vmul.f32 %v1574, 0.17677669
      %v1605 = vmul.f32 %v1579, 0.17677669
      %v1606 = vmul.f32 %v1584, 0.17677669
      %v1607 = vmul.f32 %v1589, 0.17677669
      %v1608 = vmul.f32 %v1594, 0.17677669
      %v1609 = vmul.f32 %v1599, 0.17677669
      %v1610 = vadd.f32 %v1602, %v1014
      %v1611 = vadd.f32 %v1603, %v1015
      %v1612 = vadd.f32 %v1604, %v1016
      %v1613 = vadd.f32 %v1605, %v1017
      %v1614 = vadd.f32 %v1606, %v1018
      %v1615 = vadd.f32 %v1607, %v1019
      %v1616 = vadd.f32 %v1608, %v1020
      %v1617 = vadd.f32 %v1609, %v1021
      %1618 = vmax.xlane.f32.xlu0 %v1610
      %v1619 = vpop.xlane.xlu0 %1618
      %1620 = vmax.xlane.f32.xlu0 %v1611
      %v1621 = vpop.xlane.xlu0 %1620
      %1622 = vmax.xlane.f32.xlu0 %v1612
      %v1623 = vpop.xlane.xlu0 %1622
      %1624 = vmax.xlane.f32.xlu0 %v1613
      %v1625 = vpop.xlane.xlu0 %1624
      %1626 = vmax.xlane.f32.xlu0 %v1614
      %v1627 = vpop.xlane.xlu0 %1626
      %1628 = vmax.xlane.f32.xlu0 %v1615
      %v1629 = vpop.xlane.xlu0 %1628
      %1630 = vmax.xlane.f32.xlu0 %v1616
      %v1631 = vpop.xlane.xlu0 %1630
      %1632 = vmax.xlane.f32.xlu0 %v1617
      %v1633 = vpop.xlane.xlu0 %1632
      %v1634 = vsub.f32 %v1610, %v1619
      %v1635 = vsub.f32 %v1611, %v1621
      %v1636 = vsub.f32 %v1612, %v1623
      %v1637 = vsub.f32 %v1613, %v1625
      %v1638 = vsub.f32 %v1614, %v1627
      %v1639 = vsub.f32 %v1615, %v1629
      %v1640 = vsub.f32 %v1616, %v1631
      %v1641 = vsub.f32 %v1617, %v1633
      %v1642 = vmul.f32 %v1634, 1.442695
      %v1643 = vpow.pop %v1642
      %v1644 = vmul.f32 %v1635, 1.442695
      %v1645 = vpow.pop %v1644
      %v1646 = vmul.f32 %v1636, 1.442695
      %v1647 = vpow.pop %v1646
      %v1648 = vmul.f32 %v1637, 1.442695
      %v1649 = vpow.pop %v1648
      %v1650 = vmul.f32 %v1638, 1.442695
      %v1651 = vpow.pop %v1650
      %v1652 = vmul.f32 %v1639, 1.442695
      %v1653 = vpow.pop %v1652
      %v1654 = vmul.f32 %v1640, 1.442695
      %v1655 = vpow.pop %v1654
      %v1656 = vmul.f32 %v1641, 1.442695
      %v1657 = vpow.pop %v1656
      %1658 = vadd.xlane.f32.xlu0 %v1643
      %v1659 = vpop.xlane.xlu0 %1658
      %1660 = vadd.xlane.f32.xlu0 %v1645
      %v1661 = vpop.xlane.xlu0 %1660
      %1662 = vadd.xlane.f32.xlu0 %v1647
      %v1663 = vpop.xlane.xlu0 %1662
      %1664 = vadd.xlane.f32.xlu0 %v1649
      %v1665 = vpop.xlane.xlu0 %1664
      %1666 = vadd.xlane.f32.xlu0 %v1651
      %v1667 = vpop.xlane.xlu0 %1666
      %1668 = vadd.xlane.f32.xlu0 %v1653
      %v1669 = vpop.xlane.xlu0 %1668
      %1670 = vadd.xlane.f32.xlu0 %v1655
      %v1671 = vpop.xlane.xlu0 %1670
      %1672 = vadd.xlane.f32.xlu0 %v1657
      %v1673 = vpop.xlane.xlu0 %1672
      %v1674 = vrcp.pop %v1659
      %v1675 = vrcp.pop %v1661
      %v1676 = vrcp.pop %v1663
      %v1677 = vrcp.pop %v1665
      %v1678 = vrcp.pop %v1667
      %v1679 = vrcp.pop %v1669
      %v1680 = vrcp.pop %v1671
      %v1681 = vrcp.pop %v1673
      %v1682 = vmul.f32 %v1643, %v1674
      %v1683 = vmul.f32 %v1645, %v1675
      %v1684 = vmul.f32 %v1647, %v1676
      %v1685 = vmul.f32 %v1649, %v1677
      %v1686 = vmul.f32 %v1651, %v1678
      %v1687 = vmul.f32 %v1653, %v1679
      %v1688 = vmul.f32 %v1655, %v1680
      %v1689 = vmul.f32 %v1657, %v1681
      %1706 = vrot.lane.b32.xlu0 %v936, 120
      %v1707 = vpop.permute.xlu0 %1706
      %1708 = vrot.lane.b32.xlu0 %v941, 120
      %v1709 = vpop.permute.xlu0 %1708
      %1710 = vrot.lane.b32.xlu0 %v946, 120
      %v1711 = vpop.permute.xlu0 %1710
      %1712 = vrot.lane.b32.xlu0 %v951, 120
      %v1713 = vpop.permute.xlu0 %1712
      %1714 = vrot.lane.b32.xlu0 %v956, 120
      %v1715 = vpop.permute.xlu0 %1714
      %1716 = vrot.lane.b32.xlu0 %v961, 120
      %v1717 = vpop.permute.xlu0 %1716
      %1718 = vrot.lane.b32.xlu0 %v966, 120
      %v1719 = vpop.permute.xlu0 %1718
      %1720 = vrot.lane.b32.xlu0 %v971, 120
      %v1721 = vpop.permute.xlu0 %1720
      %1722 = vrot.lane.b32.xlu0 %v976, 120
      %v1723 = vpop.permute.xlu0 %1722
      %1724 = vrot.lane.b32.xlu0 %v981, 120
      %v1725 = vpop.permute.xlu0 %1724
      %1726 = vrot.lane.b32.xlu0 %v986, 120
      %v1727 = vpop.permute.xlu0 %1726
      %1728 = vrot.lane.b32.xlu0 %v991, 120
      %v1729 = vpop.permute.xlu0 %1728
      %1730 = vrot.lane.b32.xlu0 %v996, 120
      %v1731 = vpop.permute.xlu0 %1730
      %1732 = vrot.lane.b32.xlu0 %v1001, 120
      %v1733 = vpop.permute.xlu0 %1732
      %1734 = vrot.lane.b32.xlu0 %v1006, 120
      %v1735 = vpop.permute.xlu0 %1734
      %1736 = vrot.lane.b32.xlu0 %v1011, 120
      %v1737 = vpop.permute.xlu0 %1736
      %1754 = vmatprep.subr.mxu0 0.0
      %1755 = vmatpush1.msra.mxu0 %v1707
      %1756 = vmatprep.subr.mxu0 0.0
      %1757 = vmatpush1.msra.mxu0 %v1709
      %1758 = vmatprep.subr.mxu0 0.0
      %1759 = vmatpush1.msra.mxu0 %v1711
      %1760 = vmatprep.subr.mxu0 0.0
      %1761 = vmatpush1.msra.mxu0 %v1713
      %1762 = vmatprep.subr.mxu0 0.0
      %1763 = vmatpush1.msra.mxu0 %v1715
      %1764 = vmatprep.subr.mxu0 0.0
      %1765 = vmatpush1.msra.mxu0 %v1717
      %1766 = vmatprep.subr.mxu0 0.0
      %1767 = vmatpush1.msra.mxu0 %v1719
      %1768 = vmatprep.subr.mxu0 0.0
      %1769 = vmatpush1.msra.mxu0 %v1721
      %1770 = vmatprep.subr.mxu0 0.0
      %1771 = vmatpush1.msra.mxu0 %v1723
      %1772 = vmatprep.subr.mxu0 0.0
      %1773 = vmatpush1.msra.mxu0 %v1725
      %1774 = vmatprep.subr.mxu0 0.0
      %1775 = vmatpush1.msra.mxu0 %v1727
      %1776 = vmatprep.subr.mxu0 0.0
      %1777 = vmatpush1.msra.mxu0 %v1729
      %1778 = vmatprep.subr.mxu0 0.0
      %1779 = vmatpush1.msra.mxu0 %v1731
      %1780 = vmatprep.subr.mxu0 0.0
      %1781 = vmatpush1.msra.mxu0 %v1733
      %1782 = vmatprep.subr.mxu0 0.0
      %1783 = vmatpush1.msra.mxu0 %v1735
      %1784 = vmatprep.subr.mxu0 0.0
      %1785 = vmatpush1.msra.mxu0 %v1737
      %1786 = vmatprep.subr.mxu0 0.0
      %1787 = vmatpush1.msra.mxu0 0.0
      %1788 = vmatprep.subr.mxu0 0.0
      %1789 = vmatpush1.msra.mxu0 0.0
      %1790 = vmatprep.subr.mxu0 0.0
      %1791 = vmatpush1.msra.mxu0 0.0
      %1792 = vmatprep.subr.mxu0 0.0
      %1793 = vmatpush1.msra.mxu0 0.0
      %1794 = vmatprep.subr.mxu0 0.0
      %1795 = vmatpush1.msra.mxu0 0.0
      %1796 = vmatprep.subr.mxu0 0.0
      %1797 = vmatpush1.msra.mxu0 0.0
      %1798 = vmatprep.subr.mxu0 0.0
      %1799 = vmatpush1.msra.mxu0 0.0
      %1800 = vmatprep.subr.mxu0 0.0
      %1801 = vmatpush1.msra.mxu0 0.0
      %1802 = vmatprep.subr.mxu0 0.0
      %1803 = vmatpush1.msra.mxu0 0.0
      %1804 = vmatprep.subr.mxu0 0.0
      %1805 = vmatpush1.msra.mxu0 0.0
      %1806 = vmatprep.subr.mxu0 0.0
      %1807 = vmatpush1.msra.mxu0 0.0
      %1808 = vmatprep.subr.mxu0 0.0
      %1809 = vmatpush1.msra.mxu0 0.0
      %1810 = vmatprep.subr.mxu0 0.0
      %1811 = vmatpush1.msra.mxu0 0.0
      %1812 = vmatprep.subr.mxu0 0.0
      %1813 = vmatpush1.msra.mxu0 0.0
      %1814 = vmatprep.subr.mxu0 0.0
      %1815 = vmatpush1.msra.mxu0 0.0
      %1816 = vmatprep.subr.mxu0 0.0
      %1817 = vmatpush1.msra.mxu0 0.0
      %1818 = vmatprep.mubr.f32.mxu0 0.0
      %1819 = vmatmul.mubr.f32.gmra.mrb[0].mxu0 %v1682
      %v1820 = vpop.f32.mrb[0].mxu0
      %v1821 = vadd.f32 0.0, %v1820
      %v1822 = vpop.f32.mrb[0].mxu0
      %1823 = vmatprep.mubr.f32.mxu0 0.0
      %1824 = vmatmul.mubr.f32.gmra.mrb[0].mxu0 %v1683
      %v1825 = vpop.f32.mrb[0].mxu0
      %v1826 = vadd.f32 0.0, %v1825
      %v1827 = vpop.f32.mrb[0].mxu0
      %1828 = vmatprep.mubr.f32.mxu0 0.0
      %1829 = vmatmul.mubr.f32.gmra.mrb[0].mxu0 %v1684
      %v1830 = vpop.f32.mrb[0].mxu0
      %v1831 = vadd.f32 0.0, %v1830
      %v1832 = vpop.f32.mrb[0].mxu0
      %1833 = vmatprep.mubr.f32.mxu0 0.0
      %1834 = vmatmul.mubr.f32.gmra.mrb[0].mxu0 %v1685
      %v1835 = vpop.f32.mrb[0].mxu0
      %v1836 = vadd.f32 0.0, %v1835
      %v1837 = vpop.f32.mrb[0].mxu0
      %1838 = vmatprep.mubr.f32.mxu0 0.0
      %1839 = vmatmul.mubr.f32.gmra.mrb[0].mxu0 %v1686
      %v1840 = vpop.f32.mrb[0].mxu0
      %v1841 = vadd.f32 0.0, %v1840
      %v1842 = vpop.f32.mrb[0].mxu0
      %1843 = vmatprep.mubr.f32.mxu0 0.0
      %1844 = vmatmul.mubr.f32.gmra.mrb[0].mxu0 %v1687
      %v1845 = vpop.f32.mrb[0].mxu0
      %v1846 = vadd.f32 0.0, %v1845
      %v1847 = vpop.f32.mrb[0].mxu0
      %1848 = vmatprep.mubr.f32.mxu0 0.0
      %1849 = vmatmul.mubr.f32.gmra.mrb[0].mxu0 %v1688
      %v1850 = vpop.f32.mrb[0].mxu0
      %v1851 = vadd.f32 0.0, %v1850
      %v1852 = vpop.f32.mrb[0].mxu0
      %1853 = vmatprep.mubr.f32.mxu0 0.0
      %1854 = vmatmul.mubr.f32.gmra.mrb[0].mxu0 %v1689
      %v1855 = vpop.f32.mrb[0].mxu0
      %v1856 = vadd.f32 0.0, %v1855
      %v1857 = vpop.f32.mrb[0].mxu0
      %1858 = vdwg.mxu0
      %1867 = vrot.lane.b32.xlu0 %v1821, 8
      %v1868 = vpop.permute.xlu0 %1867
      %1869 = vrot.lane.b32.xlu0 %v1826, 8
      %v1870 = vpop.permute.xlu0 %1869
      %1871 = vrot.lane.b32.xlu0 %v1831, 8
      %v1872 = vpop.permute.xlu0 %1871
      %1873 = vrot.lane.b32.xlu0 %v1836, 8
      %v1874 = vpop.permute.xlu0 %1873
      %1875 = vrot.lane.b32.xlu0 %v1841, 8
      %v1876 = vpop.permute.xlu0 %1875
      %1877 = vrot.lane.b32.xlu0 %v1846, 8
      %v1878 = vpop.permute.xlu0 %1877
      %1879 = vrot.lane.b32.xlu0 %v1851, 8
      %v1880 = vpop.permute.xlu0 %1879
      %1881 = vrot.lane.b32.xlu0 %v1856, 8
      %v1882 = vpop.permute.xlu0 %1881
      %v1891 = vadd.f32 %v649, %v1868
      %v1892 = vadd.f32 %v650, %v1870
      %v1893 = vadd.f32 %v651, %v1872
      %v1894 = vadd.f32 %v652, %v1874
      %v1895 = vadd.f32 %v653, %v1876
      %v1896 = vadd.f32 %v654, %v1878
      %v1897 = vadd.f32 %v655, %v1880
      %v1898 = vadd.f32 %v656, %v1882
      %1899 = vrot.lane.b32.xlu0 %v649, 112
      %v1900 = vpop.permute.xlu0 %1899
      %1901 = vrot.lane.b32.xlu0 %v650, 112
      %v1902 = vpop.permute.xlu0 %1901
      %1903 = vrot.lane.b32.xlu0 %v651, 112
      %v1904 = vpop.permute.xlu0 %1903
      %1905 = vrot.lane.b32.xlu0 %v652, 112
      %v1906 = vpop.permute.xlu0 %1905
      %1907 = vrot.lane.b32.xlu0 %v653, 112
      %v1908 = vpop.permute.xlu0 %1907
      %1909 = vrot.lane.b32.xlu0 %v654, 112
      %v1910 = vpop.permute.xlu0 %1909
      %1911 = vrot.lane.b32.xlu0 %v655, 112
      %v1912 = vpop.permute.xlu0 %1911
      %1913 = vrot.lane.b32.xlu0 %v656, 112
      %v1914 = vpop.permute.xlu0 %1913
      %1915 = vrot.lane.b32.xlu0 %v782, 112
      %v1916 = vpop.permute.xlu0 %1915
      %1917 = vrot.lane.b32.xlu0 %v787, 112
      %v1918 = vpop.permute.xlu0 %1917
      %1919 = vrot.lane.b32.xlu0 %v792, 112
      %v1920 = vpop.permute.xlu0 %1919
      %1921 = vrot.lane.b32.xlu0 %v797, 112
      %v1922 = vpop.permute.xlu0 %1921
      %1923 = vrot.lane.b32.xlu0 %v802, 112
      %v1924 = vpop.permute.xlu0 %1923
      %1925 = vrot.lane.b32.xlu0 %v807, 112
      %v1926 = vpop.permute.xlu0 %1925
      %1927 = vrot.lane.b32.xlu0 %v812, 112
      %v1928 = vpop.permute.xlu0 %1927
      %1929 = vrot.lane.b32.xlu0 %v817, 112
      %v1930 = vpop.permute.xlu0 %1929
      %1931 = vrot.lane.b32.xlu0 %v822, 112
      %v1932 = vpop.permute.xlu0 %1931
      %1933 = vrot.lane.b32.xlu0 %v827, 112
      %v1934 = vpop.permute.xlu0 %1933
      %1935 = vrot.lane.b32.xlu0 %v832, 112
      %v1936 = vpop.permute.xlu0 %1935
      %1937 = vrot.lane.b32.xlu0 %v837, 112
      %v1938 = vpop.permute.xlu0 %1937
      %1939 = vrot.lane.b32.xlu0 %v842, 112
      %v1940 = vpop.permute.xlu0 %1939
      %1941 = vrot.lane.b32.xlu0 %v847, 112
      %v1942 = vpop.permute.xlu0 %1941
      %1943 = vrot.lane.b32.xlu0 %v852, 112
      %v1944 = vpop.permute.xlu0 %1943
      %1945 = vrot.lane.b32.xlu0 %v857, 112
      %v1946 = vpop.permute.xlu0 %1945
      %v1947 = vsel %vm1022, %v1900, 0
      %v1949 = vsel %vm1022, %v1902, 0
      %v1951 = vsel %vm1022, %v1904, 0
      %v1953 = vsel %vm1022, %v1906, 0
      %v1955 = vsel %vm1022, %v1908, 0
      %v1957 = vsel %vm1022, %v1910, 0
      %v1959 = vsel %vm1022, %v1912, 0
      %v1961 = vsel %vm1022, %v1914, 0
      %v1963 = vsel %vm1022, %v1916, 0
      %v1965 = vsel %vm1022, %v1918, 0
      %v1967 = vsel %vm1022, %v1920, 0
      %v1969 = vsel %vm1022, %v1922, 0
      %v1971 = vsel %vm1022, %v1924, 0
      %v1973 = vsel %vm1022, %v1926, 0
      %v1975 = vsel %vm1022, %v1928, 0
      %v1977 = vsel %vm1022, %v1930, 0
      %v1979 = vsel %vm1022, %v1932, 0
      %v1981 = vsel %vm1022, %v1934, 0
      %v1983 = vsel %vm1022, %v1936, 0
      %v1985 = vsel %vm1022, %v1938, 0
      %v1987 = vsel %vm1022, %v1940, 0
      %v1989 = vsel %vm1022, %v1942, 0
      %v1991 = vsel %vm1022, %v1944, 0
      %v1993 = vsel %vm1022, %v1946, 0
      %1995 = vmatprep.subr.mxu0 0.0
      %1996 = vmatpush1.xpose.msra.mxu0 %v1963
      %1997 = vmatprep.subr.mxu0 0.0
      %1998 = vmatpush1.xpose.msra.mxu0 %v1965
      %1999 = vmatprep.subr.mxu0 0.0
      %2000 = vmatpush1.xpose.msra.mxu0 %v1967
      %2001 = vmatprep.subr.mxu0 0.0
      %2002 = vmatpush1.xpose.msra.mxu0 %v1969
      %2003 = vmatprep.subr.mxu0 0.0
      %2004 = vmatpush1.xpose.msra.mxu0 %v1971
      %2005 = vmatprep.subr.mxu0 0.0
      %2006 = vmatpush1.xpose.msra.mxu0 %v1973
      %2007 = vmatprep.subr.mxu0 0.0
      %2008 = vmatpush1.xpose.msra.mxu0 %v1975
      %2009 = vmatprep.subr.mxu0 0.0
      %2010 = vmatpush1.xpose.msra.mxu0 %v1977
      %2011 = vmatprep.subr.mxu0 0.0
      %2012 = vmatpush1.xpose.msra.mxu0 %v1979
      %2013 = vmatprep.subr.mxu0 0.0
      %2014 = vmatpush1.xpose.msra.mxu0 %v1981
      %2015 = vmatprep.subr.mxu0 0.0
      %2016 = vmatpush1.xpose.msra.mxu0 %v1983
      %2017 = vmatprep.subr.mxu0 0.0
      %2018 = vmatpush1.xpose.msra.mxu0 %v1985
      %2019 = vmatprep.subr.mxu0 0.0
      %2020 = vmatpush1.xpose.msra.mxu0 %v1987
      %2021 = vmatprep.subr.mxu0 0.0
      %2022 = vmatpush1.xpose.msra.mxu0 %v1989
      %2023 = vmatprep.subr.mxu0 0.0
      %2024 = vmatpush1.xpose.msra.mxu0 %v1991
      %2025 = vmatprep.subr.mxu0 0.0
      %2026 = vmatpush1.xpose.msra.mxu0 %v1993
      %2027 = vmatprep.subr.mxu0 0.0
      %2028 = vmatpush1.xpose.msra.mxu0 0.0
      %2029 = vmatprep.subr.mxu0 0.0
      %2030 = vmatpush1.xpose.msra.mxu0 0.0
      %2031 = vmatprep.subr.mxu0 0.0
      %2032 = vmatpush1.xpose.msra.mxu0 0.0
      %2033 = vmatprep.subr.mxu0 0.0
      %2034 = vmatpush1.xpose.msra.mxu0 0.0
      %2035 = vmatprep.subr.mxu0 0.0
      %2036 = vmatpush1.xpose.msra.mxu0 0.0
      %2037 = vmatprep.subr.mxu0 0.0
      %2038 = vmatpush1.xpose.msra.mxu0 0.0
      %2039 = vmatprep.subr.mxu0 0.0
      %2040 = vmatpush1.xpose.msra.mxu0 0.0
      %2041 = vmatprep.subr.mxu0 0.0
      %2042 = vmatpush1.xpose.msra.mxu0 0.0
      %2043 = vmatprep.subr.mxu0 0.0
      %2044 = vmatpush1.xpose.msra.mxu0 0.0
      %2045 = vmatprep.subr.mxu0 0.0
      %2046 = vmatpush1.xpose.msra.mxu0 0.0
      %2047 = vmatprep.subr.mxu0 0.0
      %2048 = vmatpush1.xpose.msra.mxu0 0.0
      %2049 = vmatprep.subr.mxu0 0.0
      %2050 = vmatpush1.xpose.msra.mxu0 0.0
      %2051 = vmatprep.subr.mxu0 0.0
      %2052 = vmatpush1.xpose.msra.mxu0 0.0
      %2053 = vmatprep.subr.mxu0 0.0
      %2054 = vmatpush1.xpose.msra.mxu0 0.0
      %2055 = vmatprep.subr.mxu0 0.0
      %2056 = vmatpush1.xpose.msra.mxu0 0.0
      %2057 = vmatprep.subr.mxu0 0.0
      %2058 = vmatpush1.xpose.msra.mxu0 0.0
      %2059 = vmatprep.mubr.f32.mxu0 0.0
      %2060 = vmatmul.mubr.f32.gmra.mrb[0].mxu0 %v1947
      %v2061 = vpop.f32.mrb[0].mxu0
      %v2062 = vadd.f32 0.0, %v2061
      %v2063 = vpop.f32.mrb[0].mxu0
      %2064 = vmatprep.mubr.f32.mxu0 0.0
      %2065 = vmatmul.mubr.f32.gmra.mrb[0].mxu0 %v1949
      %v2066 = vpop.f32.mrb[0].mxu0
      %v2067 = vadd.f32 0.0, %v2066
      %v2068 = vpop.f32.mrb[0].mxu0
      %2069 = vmatprep.mubr.f32.mxu0 0.0
      %2070 = vmatmul.mubr.f32.gmra.mrb[0].mxu0 %v1951
      %v2071 = vpop.f32.mrb[0].mxu0
      %v2072 = vadd.f32 0.0, %v2071
      %v2073 = vpop.f32.mrb[0].mxu0
      %2074 = vmatprep.mubr.f32.mxu0 0.0
      %2075 = vmatmul.mubr.f32.gmra.mrb[0].mxu0 %v1953
      %v2076 = vpop.f32.mrb[0].mxu0
      %v2077 = vadd.f32 0.0, %v2076
      %v2078 = vpop.f32.mrb[0].mxu0
      %2079 = vmatprep.mubr.f32.mxu0 0.0
      %2080 = vmatmul.mubr.f32.gmra.mrb[0].mxu0 %v1955
      %v2081 = vpop.f32.mrb[0].mxu0
      %v2082 = vadd.f32 0.0, %v2081
      %v2083 = vpop.f32.mrb[0].mxu0
      %2084 = vmatprep.mubr.f32.mxu0 0.0
      %2085 = vmatmul.mubr.f32.gmra.mrb[0].mxu0 %v1957
      %v2086 = vpop.f32.mrb[0].mxu0
      %v2087 = vadd.f32 0.0, %v2086
      %v2088 = vpop.f32.mrb[0].mxu0
      %2089 = vmatprep.mubr.f32.mxu0 0.0
      %2090 = vmatmul.mubr.f32.gmra.mrb[0].mxu0 %v1959
      %v2091 = vpop.f32.mrb[0].mxu0
      %v2092 = vadd.f32 0.0, %v2091
      %v2093 = vpop.f32.mrb[0].mxu0
      %2094 = vmatprep.mubr.f32.mxu0 0.0
      %2095 = vmatmul.mubr.f32.gmra.mrb[0].mxu0 %v1961
      %v2096 = vpop.f32.mrb[0].mxu0
      %v2097 = vadd.f32 0.0, %v2096
      %v2098 = vpop.f32.mrb[0].mxu0
      %2099 = vdwg.mxu0
      %v2100 = vmul.f32 %v2062, 0.17677669
      %v2101 = vmul.f32 %v2067, 0.17677669
      %v2102 = vmul.f32 %v2072, 0.17677669
      %v2103 = vmul.f32 %v2077, 0.17677669
      %v2104 = vmul.f32 %v2082, 0.17677669
      %v2105 = vmul.f32 %v2087, 0.17677669
      %v2106 = vmul.f32 %v2092, 0.17677669
      %v2107 = vmul.f32 %v2097, 0.17677669
      %v2108 = vadd.f32 %v2100, %v1014
      %v2109 = vadd.f32 %v2101, %v1015
      %v2110 = vadd.f32 %v2102, %v1016
      %v2111 = vadd.f32 %v2103, %v1017
      %v2112 = vadd.f32 %v2104, %v1018
      %v2113 = vadd.f32 %v2105, %v1019
      %v2114 = vadd.f32 %v2106, %v1020
      %v2115 = vadd.f32 %v2107, %v1021
      %2116 = vmax.xlane.f32.xlu0 %v2108
      %v2117 = vpop.xlane.xlu0 %2116
      %2118 = vmax.xlane.f32.xlu0 %v2109
      %v2119 = vpop.xlane.xlu0 %2118
      %2120 = vmax.xlane.f32.xlu0 %v2110
      %v2121 = vpop.xlane.xlu0 %2120
      %2122 = vmax.xlane.f32.xlu0 %v2111
      %v2123 = vpop.xlane.xlu0 %2122
      %2124 = vmax.xlane.f32.xlu0 %v2112
      %v2125 = vpop.xlane.xlu0 %2124
      %2126 = vmax.xlane.f32.xlu0 %v2113
      %v2127 = vpop.xlane.xlu0 %2126
      %2128 = vmax.xlane.f32.xlu0 %v2114
      %v2129 = vpop.xlane.xlu0 %2128
      %2130 = vmax.xlane.f32.xlu0 %v2115
      %v2131 = vpop.xlane.xlu0 %2130
      %v2132 = vsub.f32 %v2108, %v2117
      %v2133 = vsub.f32 %v2109, %v2119
      %v2134 = vsub.f32 %v2110, %v2121
      %v2135 = vsub.f32 %v2111, %v2123
      %v2136 = vsub.f32 %v2112, %v2125
      %v2137 = vsub.f32 %v2113, %v2127
      %v2138 = vsub.f32 %v2114, %v2129
      %v2139 = vsub.f32 %v2115, %v2131
      %v2140 = vmul.f32 %v2132, 1.442695
      %v2141 = vpow.pop %v2140
      %v2142 = vmul.f32 %v2133, 1.442695
      %v2143 = vpow.pop %v2142
      %v2144 = vmul.f32 %v2134, 1.442695
      %v2145 = vpow.pop %v2144
      %v2146 = vmul.f32 %v2135, 1.442695
      %v2147 = vpow.pop %v2146
      %v2148 = vmul.f32 %v2136, 1.442695
      %v2149 = vpow.pop %v2148
      %v2150 = vmul.f32 %v2137, 1.442695
      %v2151 = vpow.pop %v2150
      %v2152 = vmul.f32 %v2138, 1.442695
      %v2153 = vpow.pop %v2152
      %v2154 = vmul.f32 %v2139, 1.442695
      %v2155 = vpow.pop %v2154
      %2156 = vadd.xlane.f32.xlu0 %v2141
      %v2157 = vpop.xlane.xlu0 %2156
      %2158 = vadd.xlane.f32.xlu0 %v2143
      %v2159 = vpop.xlane.xlu0 %2158
      %2160 = vadd.xlane.f32.xlu0 %v2145
      %v2161 = vpop.xlane.xlu0 %2160
      %2162 = vadd.xlane.f32.xlu0 %v2147
      %v2163 = vpop.xlane.xlu0 %2162
      %2164 = vadd.xlane.f32.xlu0 %v2149
      %v2165 = vpop.xlane.xlu0 %2164
      %2166 = vadd.xlane.f32.xlu0 %v2151
      %v2167 = vpop.xlane.xlu0 %2166
      %2168 = vadd.xlane.f32.xlu0 %v2153
      %v2169 = vpop.xlane.xlu0 %2168
      %2170 = vadd.xlane.f32.xlu0 %v2155
      %v2171 = vpop.xlane.xlu0 %2170
      %v2172 = vrcp.pop %v2157
      %v2173 = vrcp.pop %v2159
      %v2174 = vrcp.pop %v2161
      %v2175 = vrcp.pop %v2163
      %v2176 = vrcp.pop %v2165
      %v2177 = vrcp.pop %v2167
      %v2178 = vrcp.pop %v2169
      %v2179 = vrcp.pop %v2171
      %v2180 = vmul.f32 %v2141, %v2172
      %v2181 = vmul.f32 %v2143, %v2173
      %v2182 = vmul.f32 %v2145, %v2174
      %v2183 = vmul.f32 %v2147, %v2175
      %v2184 = vmul.f32 %v2149, %v2176
      %v2185 = vmul.f32 %v2151, %v2177
      %v2186 = vmul.f32 %v2153, %v2178
      %v2187 = vmul.f32 %v2155, %v2179
      %2188 = vrot.lane.b32.xlu0 %v936, 112
      %v2189 = vpop.permute.xlu0 %2188
      %2190 = vrot.lane.b32.xlu0 %v941, 112
      %v2191 = vpop.permute.xlu0 %2190
      %2192 = vrot.lane.b32.xlu0 %v946, 112
      %v2193 = vpop.permute.xlu0 %2192
      %2194 = vrot.lane.b32.xlu0 %v951, 112
      %v2195 = vpop.permute.xlu0 %2194
      %2196 = vrot.lane.b32.xlu0 %v956, 112
      %v2197 = vpop.permute.xlu0 %2196
      %2198 = vrot.lane.b32.xlu0 %v961, 112
      %v2199 = vpop.permute.xlu0 %2198
      %2200 = vrot.lane.b32.xlu0 %v966, 112
      %v2201 = vpop.permute.xlu0 %2200
      %2202 = vrot.lane.b32.xlu0 %v971, 112
      %v2203 = vpop.permute.xlu0 %2202
      %2204 = vrot.lane.b32.xlu0 %v976, 112
      %v2205 = vpop.permute.xlu0 %2204
      %2206 = vrot.lane.b32.xlu0 %v981, 112
      %v2207 = vpop.permute.xlu0 %2206
      %2208 = vrot.lane.b32.xlu0 %v986, 112
      %v2209 = vpop.permute.xlu0 %2208
      %2210 = vrot.lane.b32.xlu0 %v991, 112
      %v2211 = vpop.permute.xlu0 %2210
      %2212 = vrot.lane.b32.xlu0 %v996, 112
      %v2213 = vpop.permute.xlu0 %2212
      %2214 = vrot.lane.b32.xlu0 %v1001, 112
      %v2215 = vpop.permute.xlu0 %2214
      %2216 = vrot.lane.b32.xlu0 %v1006, 112
      %v2217 = vpop.permute.xlu0 %2216
      %2218 = vrot.lane.b32.xlu0 %v1011, 112
      %v2219 = vpop.permute.xlu0 %2218
      %2236 = vmatprep.subr.mxu0 0.0
      %2237 = vmatpush1.msra.mxu0 %v2189
      %2238 = vmatprep.subr.mxu0 0.0
      %2239 = vmatpush1.msra.mxu0 %v2191
      %2240 = vmatprep.subr.mxu0 0.0
      %2241 = vmatpush1.msra.mxu0 %v2193
      %2242 = vmatprep.subr.mxu0 0.0
      %2243 = vmatpush1.msra.mxu0 %v2195
      %2244 = vmatprep.subr.mxu0 0.0
      %2245 = vmatpush1.msra.mxu0 %v2197
      %2246 = vmatprep.subr.mxu0 0.0
      %2247 = vmatpush1.msra.mxu0 %v2199
      %2248 = vmatprep.subr.mxu0 0.0
      %2249 = vmatpush1.msra.mxu0 %v2201
      %2250 = vmatprep.subr.mxu0 0.0
      %2251 = vmatpush1.msra.mxu0 %v2203
      %2252 = vmatprep.subr.mxu0 0.0
      %2253 = vmatpush1.msra.mxu0 %v2205
      %2254 = vmatprep.subr.mxu0 0.0
      %2255 = vmatpush1.msra.mxu0 %v2207
      %2256 = vmatprep.subr.mxu0 0.0
      %2257 = vmatpush1.msra.mxu0 %v2209
      %2258 = vmatprep.subr.mxu0 0.0
      %2259 = vmatpush1.msra.mxu0 %v2211
      %2260 = vmatprep.subr.mxu0 0.0
      %2261 = vmatpush1.msra.mxu0 %v2213
      %2262 = vmatprep.subr.mxu0 0.0
      %2263 = vmatpush1.msra.mxu0 %v2215
      %2264 = vmatprep.subr.mxu0 0.0
      %2265 = vmatpush1.msra.mxu0 %v2217
      %2266 = vmatprep.subr.mxu0 0.0
      %2267 = vmatpush1.msra.mxu0 %v2219
      %2268 = vmatprep.subr.mxu0 0.0
      %2269 = vmatpush1.msra.mxu0 0.0
      %2270 = vmatprep.subr.mxu0 0.0
      %2271 = vmatpush1.msra.mxu0 0.0
      %2272 = vmatprep.subr.mxu0 0.0
      %2273 = vmatpush1.msra.mxu0 0.0
      %2274 = vmatprep.subr.mxu0 0.0
      %2275 = vmatpush1.msra.mxu0 0.0
      %2276 = vmatprep.subr.mxu0 0.0
      %2277 = vmatpush1.msra.mxu0 0.0
      %2278 = vmatprep.subr.mxu0 0.0
      %2279 = vmatpush1.msra.mxu0 0.0
      %2280 = vmatprep.subr.mxu0 0.0
      %2281 = vmatpush1.msra.mxu0 0.0
      %2282 = vmatprep.subr.mxu0 0.0
      %2283 = vmatpush1.msra.mxu0 0.0
      %2284 = vmatprep.subr.mxu0 0.0
      %2285 = vmatpush1.msra.mxu0 0.0
      %2286 = vmatprep.subr.mxu0 0.0
      %2287 = vmatpush1.msra.mxu0 0.0
      %2288 = vmatprep.subr.mxu0 0.0
      %2289 = vmatpush1.msra.mxu0 0.0
      %2290 = vmatprep.subr.mxu0 0.0
      %2291 = vmatpush1.msra.mxu0 0.0
      %2292 = vmatprep.subr.mxu0 0.0
      %2293 = vmatpush1.msra.mxu0 0.0
      %2294 = vmatprep.subr.mxu0 0.0
      %2295 = vmatpush1.msra.mxu0 0.0
      %2296 = vmatprep.subr.mxu0 0.0
      %2297 = vmatpush1.msra.mxu0 0.0
      %2298 = vmatprep.subr.mxu0 0.0
      %2299 = vmatpush1.msra.mxu0 0.0
      %2300 = vmatprep.mubr.f32.mxu0 0.0
      %2301 = vmatmul.mubr.f32.gmra.mrb[0].mxu0 %v2180
      %v2302 = vpop.f32.mrb[0].mxu0
      %v2303 = vadd.f32 0.0, %v2302
      %v2304 = vpop.f32.mrb[0].mxu0
      %2305 = vmatprep.mubr.f32.mxu0 0.0
      %2306 = vmatmul.mubr.f32.gmra.mrb[0].mxu0 %v2181
      %v2307 = vpop.f32.mrb[0].mxu0
      %v2308 = vadd.f32 0.0, %v2307
      %v2309 = vpop.f32.mrb[0].mxu0
      %2310 = vmatprep.mubr.f32.mxu0 0.0
      %2311 = vmatmul.mubr.f32.gmra.mrb[0].mxu0 %v2182
      %v2312 = vpop.f32.mrb[0].mxu0
      %v2313 = vadd.f32 0.0, %v2312
      %v2314 = vpop.f32.mrb[0].mxu0
      %2315 = vmatprep.mubr.f32.mxu0 0.0
      %2316 = vmatmul.mubr.f32.gmra.mrb[0].mxu0 %v2183
      %v2317 = vpop.f32.mrb[0].mxu0
      %v2318 = vadd.f32 0.0, %v2317
      %v2319 = vpop.f32.mrb[0].mxu0
      %2320 = vmatprep.mubr.f32.mxu0 0.0
      %2321 = vmatmul.mubr.f32.gmra.mrb[0].mxu0 %v2184
      %v2322 = vpop.f32.mrb[0].mxu0
      %v2323 = vadd.f32 0.0, %v2322
      %v2324 = vpop.f32.mrb[0].mxu0
      %2325 = vmatprep.mubr.f32.mxu0 0.0
      %2326 = vmatmul.mubr.f32.gmra.mrb[0].mxu0 %v2185
      %v2327 = vpop.f32.mrb[0].mxu0
      %v2328 = vadd.f32 0.0, %v2327
      %v2329 = vpop.f32.mrb[0].mxu0
      %2330 = vmatprep.mubr.f32.mxu0 0.0
      %2331 = vmatmul.mubr.f32.gmra.mrb[0].mxu0 %v2186
      %v2332 = vpop.f32.mrb[0].mxu0
      %v2333 = vadd.f32 0.0, %v2332
      %v2334 = vpop.f32.mrb[0].mxu0
      %2335 = vmatprep.mubr.f32.mxu0 0.0
      %2336 = vmatmul.mubr.f32.gmra.mrb[0].mxu0 %v2187
      %v2337 = vpop.f32.mrb[0].mxu0
      %v2338 = vadd.f32 0.0, %v2337
      %v2339 = vpop.f32.mrb[0].mxu0
      %2340 = vdwg.mxu0
      %2349 = vrot.lane.b32.xlu0 %v2303, 16
      %v2350 = vpop.permute.xlu0 %2349
      %2351 = vrot.lane.b32.xlu0 %v2308, 16
      %v2352 = vpop.permute.xlu0 %2351
      %2353 = vrot.lane.b32.xlu0 %v2313, 16
      %v2354 = vpop.permute.xlu0 %2353
      %2355 = vrot.lane.b32.xlu0 %v2318, 16
      %v2356 = vpop.permute.xlu0 %2355
      %2357 = vrot.lane.b32.xlu0 %v2323, 16
      %v2358 = vpop.permute.xlu0 %2357
      %2359 = vrot.lane.b32.xlu0 %v2328, 16
      %v2360 = vpop.permute.xlu0 %2359
      %2361 = vrot.lane.b32.xlu0 %v2333, 16
      %v2362 = vpop.permute.xlu0 %2361
      %2363 = vrot.lane.b32.xlu0 %v2338, 16
      %v2364 = vpop.permute.xlu0 %2363
      %v2373 = vadd.f32 %v649, %v2350
      %v2374 = vadd.f32 %v650, %v2352
      %v2375 = vadd.f32 %v651, %v2354
      %v2376 = vadd.f32 %v652, %v2356
      %v2377 = vadd.f32 %v653, %v2358
      %v2378 = vadd.f32 %v654, %v2360
      %v2379 = vadd.f32 %v655, %v2362
      %v2380 = vadd.f32 %v656, %v2364
      %2381 = vrot.lane.b32.xlu0 %v649, 104
      %v2382 = vpop.permute.xlu0 %2381
      %2383 = vrot.lane.b32.xlu0 %v650, 104
      %v2384 = vpop.permute.xlu0 %2383
      %2385 = vrot.lane.b32.xlu0 %v651, 104
      %v2386 = vpop.permute.xlu0 %2385
      %2387 = vrot.lane.b32.xlu0 %v652, 104
      %v2388 = vpop.permute.xlu0 %2387
      %2389 = vrot.lane.b32.xlu0 %v653, 104
      %v2390 = vpop.permute.xlu0 %2389
      %2391 = vrot.lane.b32.xlu0 %v654, 104
      %v2392 = vpop.permute.xlu0 %2391
      %2393 = vrot.lane.b32.xlu0 %v655, 104
      %v2394 = vpop.permute.xlu0 %2393
      %2395 = vrot.lane.b32.xlu0 %v656, 104
      %v2396 = vpop.permute.xlu0 %2395
      %2397 = vrot.lane.b32.xlu0 %v782, 104
      %v2398 = vpop.permute.xlu0 %2397
      %2399 = vrot.lane.b32.xlu0 %v787, 104
      %v2400 = vpop.permute.xlu0 %2399
      %2401 = vrot.lane.b32.xlu0 %v792, 104
      %v2402 = vpop.permute.xlu0 %2401
      %2403 = vrot.lane.b32.xlu0 %v797, 104
      %v2404 = vpop.permute.xlu0 %2403
      %2405 = vrot.lane.b32.xlu0 %v802, 104
      %v2406 = vpop.permute.xlu0 %2405
      %2407 = vrot.lane.b32.xlu0 %v807, 104
      %v2408 = vpop.permute.xlu0 %2407
      %2409 = vrot.lane.b32.xlu0 %v812, 104
      %v2410 = vpop.permute.xlu0 %2409
      %2411 = vrot.lane.b32.xlu0 %v817, 104
      %v2412 = vpop.permute.xlu0 %2411
      %2413 = vrot.lane.b32.xlu0 %v822, 104
      %v2414 = vpop.permute.xlu0 %2413
      %2415 = vrot.lane.b32.xlu0 %v827, 104
      %v2416 = vpop.permute.xlu0 %2415
      %2417 = vrot.lane.b32.xlu0 %v832, 104
      %v2418 = vpop.permute.xlu0 %2417
      %2419 = vrot.lane.b32.xlu0 %v837, 104
      %v2420 = vpop.permute.xlu0 %2419
      %2421 = vrot.lane.b32.xlu0 %v842, 104
      %v2422 = vpop.permute.xlu0 %2421
      %2423 = vrot.lane.b32.xlu0 %v847, 104
      %v2424 = vpop.permute.xlu0 %2423
      %2425 = vrot.lane.b32.xlu0 %v852, 104
      %v2426 = vpop.permute.xlu0 %2425
      %2427 = vrot.lane.b32.xlu0 %v857, 104
      %v2428 = vpop.permute.xlu0 %2427
      %v2429 = vsel %vm1022, %v2382, 0
      %v2431 = vsel %vm1022, %v2384, 0
      %v2433 = vsel %vm1022, %v2386, 0
      %v2435 = vsel %vm1022, %v2388, 0
      %v2437 = vsel %vm1022, %v2390, 0
      %v2439 = vsel %vm1022, %v2392, 0
      %v2441 = vsel %vm1022, %v2394, 0
      %v2443 = vsel %vm1022, %v2396, 0
      %v2445 = vsel %vm1022, %v2398, 0
      %v2447 = vsel %vm1022, %v2400, 0
      %v2449 = vsel %vm1022, %v2402, 0
      %v2451 = vsel %vm1022, %v2404, 0
      %v2453 = vsel %vm1022, %v2406, 0
      %v2455 = vsel %vm1022, %v2408, 0
      %v2457 = vsel %vm1022, %v2410, 0
      %v2459 = vsel %vm1022, %v2412, 0
      %v2461 = vsel %vm1022, %v2414, 0
      %v2463 = vsel %vm1022, %v2416, 0
      %v2465 = vsel %vm1022, %v2418, 0
      %v2467 = vsel %vm1022, %v2420, 0
      %v2469 = vsel %vm1022, %v2422, 0
      %v2471 = vsel %vm1022, %v2424, 0
      %v2473 = vsel %vm1022, %v2426, 0
      %v2475 = vsel %vm1022, %v2428, 0
      %2477 = vmatprep.subr.mxu0 0.0
      %2478 = vmatpush1.xpose.msra.mxu0 %v2445
      %2479 = vmatprep.subr.mxu0 0.0
      %2480 = vmatpush1.xpose.msra.mxu0 %v2447
      %2481 = vmatprep.subr.mxu0 0.0
      %2482 = vmatpush1.xpose.msra.mxu0 %v2449
      %2483 = vmatprep.subr.mxu0 0.0
      %2484 = vmatpush1.xpose.msra.mxu0 %v2451
      %2485 = vmatprep.subr.mxu0 0.0
      %2486 = vmatpush1.xpose.msra.mxu0 %v2453
      %2487 = vmatprep.subr.mxu0 0.0
      %2488 = vmatpush1.xpose.msra.mxu0 %v2455
      %2489 = vmatprep.subr.mxu0 0.0
      %2490 = vmatpush1.xpose.msra.mxu0 %v2457
      %2491 = vmatprep.subr.mxu0 0.0
      %2492 = vmatpush1.xpose.msra.mxu0 %v2459
      %2493 = vmatprep.subr.mxu0 0.0
      %2494 = vmatpush1.xpose.msra.mxu0 %v2461
      %2495 = vmatprep.subr.mxu0 0.0
      %2496 = vmatpush1.xpose.msra.mxu0 %v2463
      %2497 = vmatprep.subr.mxu0 0.0
      %2498 = vmatpush1.xpose.msra.mxu0 %v2465
      %2499 = vmatprep.subr.mxu0 0.0
      %2500 = vmatpush1.xpose.msra.mxu0 %v2467
      %2501 = vmatprep.subr.mxu0 0.0
      %2502 = vmatpush1.xpose.msra.mxu0 %v2469
      %2503 = vmatprep.subr.mxu0 0.0
      %2504 = vmatpush1.xpose.msra.mxu0 %v2471
      %2505 = vmatprep.subr.mxu0 0.0
      %2506 = vmatpush1.xpose.msra.mxu0 %v2473
      %2507 = vmatprep.subr.mxu0 0.0
      %2508 = vmatpush1.xpose.msra.mxu0 %v2475
      %2509 = vmatprep.subr.mxu0 0.0
      %2510 = vmatpush1.xpose.msra.mxu0 0.0
      %2511 = vmatprep.subr.mxu0 0.0
      %2512 = vmatpush1.xpose.msra.mxu0 0.0
      %2513 = vmatprep.subr.mxu0 0.0
      %2514 = vmatpush1.xpose.msra.mxu0 0.0
      %2515 = vmatprep.subr.mxu0 0.0
      %2516 = vmatpush1.xpose.msra.mxu0 0.0
      %2517 = vmatprep.subr.mxu0 0.0
      %2518 = vmatpush1.xpose.msra.mxu0 0.0
      %2519 = vmatprep.subr.mxu0 0.0
      %2520 = vmatpush1.xpose.msra.mxu0 0.0
      %2521 = vmatprep.subr.mxu0 0.0
      %2522 = vmatpush1.xpose.msra.mxu0 0.0
      %2523 = vmatprep.subr.mxu0 0.0
      %2524 = vmatpush1.xpose.msra.mxu0 0.0
      %2525 = vmatprep.subr.mxu0 0.0
      %2526 = vmatpush1.xpose.msra.mxu0 0.0
      %2527 = vmatprep.subr.mxu0 0.0
      %2528 = vmatpush1.xpose.msra.mxu0 0.0
      %2529 = vmatprep.subr.mxu0 0.0
      %2530 = vmatpush1.xpose.msra.mxu0 0.0
      %2531 = vmatprep.subr.mxu0 0.0
      %2532 = vmatpush1.xpose.msra.mxu0 0.0
      %2533 = vmatprep.subr.mxu0 0.0
      %2534 = vmatpush1.xpose.msra.mxu0 0.0
      %2535 = vmatprep.subr.mxu0 0.0
      %2536 = vmatpush1.xpose.msra.mxu0 0.0
      %2537 = vmatprep.subr.mxu0 0.0
      %2538 = vmatpush1.xpose.msra.mxu0 0.0
      %2539 = vmatprep.subr.mxu0 0.0
      %2540 = vmatpush1.xpose.msra.mxu0 0.0
      %2541 = vmatprep.mubr.f32.mxu0 0.0
      %2542 = vmatmul.mubr.f32.gmra.mrb[0].mxu0 %v2429
      %v2543 = vpop.f32.mrb[0].mxu0
      %v2544 = vadd.f32 0.0, %v2543
      %v2545 = vpop.f32.mrb[0].mxu0
      %2546 = vmatprep.mubr.f32.mxu0 0.0
      %2547 = vmatmul.mubr.f32.gmra.mrb[0].mxu0 %v2431
      %v2548 = vpop.f32.mrb[0].mxu0
      %v2549 = vadd.f32 0.0, %v2548
      %v2550 = vpop.f32.mrb[0].mxu0
      %2551 = vmatprep.mubr.f32.mxu0 0.0
      %2552 = vmatmul.mubr.f32.gmra.mrb[0].mxu0 %v2433
      %v2553 = vpop.f32.mrb[0].mxu0
      %v2554 = vadd.f32 0.0, %v2553
      %v2555 = vpop.f32.mrb[0].mxu0
      %2556 = vmatprep.mubr.f32.mxu0 0.0
      %2557 = vmatmul.mubr.f32.gmra.mrb[0].mxu0 %v2435
      %v2558 = vpop.f32.mrb[0].mxu0
      %v2559 = vadd.f32 0.0, %v2558
      %v2560 = vpop.f32.mrb[0].mxu0
      %2561 = vmatprep.mubr.f32.mxu0 0.0
      %2562 = vmatmul.mubr.f32.gmra.mrb[0].mxu0 %v2437
      %v2563 = vpop.f32.mrb[0].mxu0
      %v2564 = vadd.f32 0.0, %v2563
      %v2565 = vpop.f32.mrb[0].mxu0
      %2566 = vmatprep.mubr.f32.mxu0 0.0
      %2567 = vmatmul.mubr.f32.gmra.mrb[0].mxu0 %v2439
      %v2568 = vpop.f32.mrb[0].mxu0
      %v2569 = vadd.f32 0.0, %v2568
      %v2570 = vpop.f32.mrb[0].mxu0
      %2571 = vmatprep.mubr.f32.mxu0 0.0
      %2572 = vmatmul.mubr.f32.gmra.mrb[0].mxu0 %v2441
      %v2573 = vpop.f32.mrb[0].mxu0
      %v2574 = vadd.f32 0.0, %v2573
      %v2575 = vpop.f32.mrb[0].mxu0
      %2576 = vmatprep.mubr.f32.mxu0 0.0
      %2577 = vmatmul.mubr.f32.gmra.mrb[0].mxu0 %v2443
      %v2578 = vpop.f32.mrb[0].mxu0
      %v2579 = vadd.f32 0.0, %v2578
      %v2580 = vpop.f32.mrb[0].mxu0
      %2581 = vdwg.mxu0
      %v2582 = vmul.f32 %v2544, 0.17677669
      %v2583 = vmul.f32 %v2549, 0.17677669
      %v2584 = vmul.f32 %v2554, 0.17677669
      %v2585 = vmul.f32 %v2559, 0.17677669
      %v2586 = vmul.f32 %v2564, 0.17677669
      %v2587 = vmul.f32 %v2569, 0.17677669
      %v2588 = vmul.f32 %v2574, 0.17677669
      %v2589 = vmul.f32 %v2579, 0.17677669
      %v2590 = vadd.f32 %v2582, %v1014
      %v2591 = vadd.f32 %v2583, %v1015
      %v2592 = vadd.f32 %v2584, %v1016
      %v2593 = vadd.f32 %v2585, %v1017
      %v2594 = vadd.f32 %v2586, %v1018
      %v2595 = vadd.f32 %v2587, %v1019
      %v2596 = vadd.f32 %v2588, %v1020
      %v2597 = vadd.f32 %v2589, %v1021
      %2598 = vmax.xlane.f32.xlu0 %v2590
      %v2599 = vpop.xlane.xlu0 %2598
      %2600 = vmax.xlane.f32.xlu0 %v2591
      %v2601 = vpop.xlane.xlu0 %2600
      %2602 = vmax.xlane.f32.xlu0 %v2592
      %v2603 = vpop.xlane.xlu0 %2602
      %2604 = vmax.xlane.f32.xlu0 %v2593
      %v2605 = vpop.xlane.xlu0 %2604
      %2606 = vmax.xlane.f32.xlu0 %v2594
      %v2607 = vpop.xlane.xlu0 %2606
      %2608 = vmax.xlane.f32.xlu0 %v2595
      %v2609 = vpop.xlane.xlu0 %2608
      %2610 = vmax.xlane.f32.xlu0 %v2596
      %v2611 = vpop.xlane.xlu0 %2610
      %2612 = vmax.xlane.f32.xlu0 %v2597
      %v2613 = vpop.xlane.xlu0 %2612
      %v2614 = vsub.f32 %v2590, %v2599
      %v2615 = vsub.f32 %v2591, %v2601
      %v2616 = vsub.f32 %v2592, %v2603
      %v2617 = vsub.f32 %v2593, %v2605
      %v2618 = vsub.f32 %v2594, %v2607
      %v2619 = vsub.f32 %v2595, %v2609
      %v2620 = vsub.f32 %v2596, %v2611
      %v2621 = vsub.f32 %v2597, %v2613
      %v2622 = vmul.f32 %v2614, 1.442695
      %v2623 = vpow.pop %v2622
      %v2624 = vmul.f32 %v2615, 1.442695
      %v2625 = vpow.pop %v2624
      %v2626 = vmul.f32 %v2616, 1.442695
      %v2627 = vpow.pop %v2626
      %v2628 = vmul.f32 %v2617, 1.442695
      %v2629 = vpow.pop %v2628
      %v2630 = vmul.f32 %v2618, 1.442695
      %v2631 = vpow.pop %v2630
      %v2632 = vmul.f32 %v2619, 1.442695
      %v2633 = vpow.pop %v2632
      %v2634 = vmul.f32 %v2620, 1.442695
      %v2635 = vpow.pop %v2634
      %v2636 = vmul.f32 %v2621, 1.442695
      %v2637 = vpow.pop %v2636
      %2638 = vadd.xlane.f32.xlu0 %v2623
      %v2639 = vpop.xlane.xlu0 %2638
      %2640 = vadd.xlane.f32.xlu0 %v2625
      %v2641 = vpop.xlane.xlu0 %2640
      %2642 = vadd.xlane.f32.xlu0 %v2627
      %v2643 = vpop.xlane.xlu0 %2642
      %2644 = vadd.xlane.f32.xlu0 %v2629
      %v2645 = vpop.xlane.xlu0 %2644
      %2646 = vadd.xlane.f32.xlu0 %v2631
      %v2647 = vpop.xlane.xlu0 %2646
      %2648 = vadd.xlane.f32.xlu0 %v2633
      %v2649 = vpop.xlane.xlu0 %2648
      %2650 = vadd.xlane.f32.xlu0 %v2635
      %v2651 = vpop.xlane.xlu0 %2650
      %2652 = vadd.xlane.f32.xlu0 %v2637
      %v2653 = vpop.xlane.xlu0 %2652
      %v2654 = vrcp.pop %v2639
      %v2655 = vrcp.pop %v2641
      %v2656 = vrcp.pop %v2643
      %v2657 = vrcp.pop %v2645
      %v2658 = vrcp.pop %v2647
      %v2659 = vrcp.pop %v2649
      %v2660 = vrcp.pop %v2651
      %v2661 = vrcp.pop %v2653
      %v2662 = vmul.f32 %v2623, %v2654
      %v2663 = vmul.f32 %v2625, %v2655
      %v2664 = vmul.f32 %v2627, %v2656
      %v2665 = vmul.f32 %v2629, %v2657
      %v2666 = vmul.f32 %v2631, %v2658
      %v2667 = vmul.f32 %v2633, %v2659
      %v2668 = vmul.f32 %v2635, %v2660
      %v2669 = vmul.f32 %v2637, %v2661
      %2670 = vrot.lane.b32.xlu0 %v936, 104
      %v2671 = vpop.permute.xlu0 %2670
      %2672 = vrot.lane.b32.xlu0 %v941, 104
      %v2673 = vpop.permute.xlu0 %2672
      %2674 = vrot.lane.b32.xlu0 %v946, 104
      %v2675 = vpop.permute.xlu0 %2674
      %2676 = vrot.lane.b32.xlu0 %v951, 104
      %v2677 = vpop.permute.xlu0 %2676
      %2678 = vrot.lane.b32.xlu0 %v956, 104
      %v2679 = vpop.permute.xlu0 %2678
      %2680 = vrot.lane.b32.xlu0 %v961, 104
      %v2681 = vpop.permute.xlu0 %2680
      %2682 = vrot.lane.b32.xlu0 %v966, 104
      %v2683 = vpop.permute.xlu0 %2682
      %2684 = vrot.lane.b32.xlu0 %v971, 104
      %v2685 = vpop.permute.xlu0 %2684
      %2686 = vrot.lane.b32.xlu0 %v976, 104
      %v2687 = vpop.permute.xlu0 %2686
      %2688 = vrot.lane.b32.xlu0 %v981, 104
      %v2689 = vpop.permute.xlu0 %2688
      %2690 = vrot.lane.b32.xlu0 %v986, 104
      %v2691 = vpop.permute.xlu0 %2690
      %2692 = vrot.lane.b32.xlu0 %v991, 104
      %v2693 = vpop.permute.xlu0 %2692
      %2694 = vrot.lane.b32.xlu0 %v996, 104
      %v2695 = vpop.permute.xlu0 %2694
      %2696 = vrot.lane.b32.xlu0 %v1001, 104
      %v2697 = vpop.permute.xlu0 %2696
      %2698 = vrot.lane.b32.xlu0 %v1006, 104
      %v2699 = vpop.permute.xlu0 %2698
      %2700 = vrot.lane.b32.xlu0 %v1011, 104
      %v2701 = vpop.permute.xlu0 %2700
      %2718 = vmatprep.subr.mxu0 0.0
      %2719 = vmatpush1.msra.mxu0 %v2671
      %2720 = vmatprep.subr.mxu0 0.0
      %2721 = vmatpush1.msra.mxu0 %v2673
      %2722 = vmatprep.subr.mxu0 0.0
      %2723 = vmatpush1.msra.mxu0 %v2675
      %2724 = vmatprep.subr.mxu0 0.0
      %2725 = vmatpush1.msra.mxu0 %v2677
      %2726 = vmatprep.subr.mxu0 0.0
      %2727 = vmatpush1.msra.mxu0 %v2679
      %2728 = vmatprep.subr.mxu0 0.0
      %2729 = vmatpush1.msra.mxu0 %v2681
      %2730 = vmatprep.subr.mxu0 0.0
      %2731 = vmatpush1.msra.mxu0 %v2683
      %2732 = vmatprep.subr.mxu0 0.0
      %2733 = vmatpush1.msra.mxu0 %v2685
      %2734 = vmatprep.subr.mxu0 0.0
      %2735 = vmatpush1.msra.mxu0 %v2687
      %2736 = vmatprep.subr.mxu0 0.0
      %2737 = vmatpush1.msra.mxu0 %v2689
      %2738 = vmatprep.subr.mxu0 0.0
      %2739 = vmatpush1.msra.mxu0 %v2691
      %2740 = vmatprep.subr.mxu0 0.0
      %2741 = vmatpush1.msra.mxu0 %v2693
      %2742 = vmatprep.subr.mxu0 0.0
      %2743 = vmatpush1.msra.mxu0 %v2695
      %2744 = vmatprep.subr.mxu0 0.0
      %2745 = vmatpush1.msra.mxu0 %v2697
      %2746 = vmatprep.subr.mxu0 0.0
      %2747 = vmatpush1.msra.mxu0 %v2699
      %2748 = vmatprep.subr.mxu0 0.0
      %2749 = vmatpush1.msra.mxu0 %v2701
      %2750 = vmatprep.subr.mxu0 0.0
      %2751 = vmatpush1.msra.mxu0 0.0
      %2752 = vmatprep.subr.mxu0 0.0
      %2753 = vmatpush1.msra.mxu0 0.0
      %2754 = vmatprep.subr.mxu0 0.0
      %2755 = vmatpush1.msra.mxu0 0.0
      %2756 = vmatprep.subr.mxu0 0.0
      %2757 = vmatpush1.msra.mxu0 0.0
      %2758 = vmatprep.subr.mxu0 0.0
      %2759 = vmatpush1.msra.mxu0 0.0
      %2760 = vmatprep.subr.mxu0 0.0
      %2761 = vmatpush1.msra.mxu0 0.0
      %2762 = vmatprep.subr.mxu0 0.0
      %2763 = vmatpush1.msra.mxu0 0.0
      %2764 = vmatprep.subr.mxu0 0.0
      %2765 = vmatpush1.msra.mxu0 0.0
      %2766 = vmatprep.subr.mxu0 0.0
      %2767 = vmatpush1.msra.mxu0 0.0
      %2768 = vmatprep.subr.mxu0 0.0
      %2769 = vmatpush1.msra.mxu0 0.0
      %2770 = vmatprep.subr.mxu0 0.0
      %2771 = vmatpush1.msra.mxu0 0.0
      %2772 = vmatprep.subr.mxu0 0.0
      %2773 = vmatpush1.msra.mxu0 0.0
      %2774 = vmatprep.subr.mxu0 0.0
      %2775 = vmatpush1.msra.mxu0 0.0
      %2776 = vmatprep.subr.mxu0 0.0
      %2777 = vmatpush1.msra.mxu0 0.0
      %2778 = vmatprep.subr.mxu0 0.0
      %2779 = vmatpush1.msra.mxu0 0.0
      %2780 = vmatprep.subr.mxu0 0.0
      %2781 = vmatpush1.msra.mxu0 0.0
      %2782 = vmatprep.mubr.f32.mxu0 0.0
      %2783 = vmatmul.mubr.f32.gmra.mrb[0].mxu0 %v2662
      %v2784 = vpop.f32.mrb[0].mxu0
      %v2785 = vadd.f32 0.0, %v2784
      %v2786 = vpop.f32.mrb[0].mxu0
      %2787 = vmatprep.mubr.f32.mxu0 0.0
      %2788 = vmatmul.mubr.f32.gmra.mrb[0].mxu0 %v2663
      %v2789 = vpop.f32.mrb[0].mxu0
      %v2790 = vadd.f32 0.0, %v2789
      %v2791 = vpop.f32.mrb[0].mxu0
      %2792 = vmatprep.mubr.f32.mxu0 0.0
      %2793 = vmatmul.mubr.f32.gmra.mrb[0].mxu0 %v2664
      %v2794 = vpop.f32.mrb[0].mxu0
      %v2795 = vadd.f32 0.0, %v2794
      %v2796 = vpop.f32.mrb[0].mxu0
      %2797 = vmatprep.mubr.f32.mxu0 0.0
      %2798 = vmatmul.mubr.f32.gmra.mrb[0].mxu0 %v2665
      %v2799 = vpop.f32.mrb[0].mxu0
      %v2800 = vadd.f32 0.0, %v2799
      %v2801 = vpop.f32.mrb[0].mxu0
      %2802 = vmatprep.mubr.f32.mxu0 0.0
      %2803 = vmatmul.mubr.f32.gmra.mrb[0].mxu0 %v2666
      %v2804 = vpop.f32.mrb[0].mxu0
      %v2805 = vadd.f32 0.0, %v2804
      %v2806 = vpop.f32.mrb[0].mxu0
      %2807 = vmatprep.mubr.f32.mxu0 0.0
      %2808 = vmatmul.mubr.f32.gmra.mrb[0].mxu0 %v2667
      %v2809 = vpop.f32.mrb[0].mxu0
      %v2810 = vadd.f32 0.0, %v2809
      %v2811 = vpop.f32.mrb[0].mxu0
      %2812 = vmatprep.mubr.f32.mxu0 0.0
      %2813 = vmatmul.mubr.f32.gmra.mrb[0].mxu0 %v2668
      %v2814 = vpop.f32.mrb[0].mxu0
      %v2815 = vadd.f32 0.0, %v2814
      %v2816 = vpop.f32.mrb[0].mxu0
      %2817 = vmatprep.mubr.f32.mxu0 0.0
      %2818 = vmatmul.mubr.f32.gmra.mrb[0].mxu0 %v2669
      %v2819 = vpop.f32.mrb[0].mxu0
      %v2820 = vadd.f32 0.0, %v2819
      %v2821 = vpop.f32.mrb[0].mxu0
      %2822 = vdwg.mxu0
      %2831 = vrot.lane.b32.xlu0 %v2785, 24
      %v2832 = vpop.permute.xlu0 %2831
      %2833 = vrot.lane.b32.xlu0 %v2790, 24
      %v2834 = vpop.permute.xlu0 %2833
      %2835 = vrot.lane.b32.xlu0 %v2795, 24
      %v2836 = vpop.permute.xlu0 %2835
      %2837 = vrot.lane.b32.xlu0 %v2800, 24
      %v2838 = vpop.permute.xlu0 %2837
      %2839 = vrot.lane.b32.xlu0 %v2805, 24
      %v2840 = vpop.permute.xlu0 %2839
      %2841 = vrot.lane.b32.xlu0 %v2810, 24
      %v2842 = vpop.permute.xlu0 %2841
      %2843 = vrot.lane.b32.xlu0 %v2815, 24
      %v2844 = vpop.permute.xlu0 %2843
      %2845 = vrot.lane.b32.xlu0 %v2820, 24
      %v2846 = vpop.permute.xlu0 %2845
      %v2855 = vadd.f32 %v649, %v2832
      %v2856 = vadd.f32 %v650, %v2834
      %v2857 = vadd.f32 %v651, %v2836
      %v2858 = vadd.f32 %v652, %v2838
      %v2859 = vadd.f32 %v653, %v2840
      %v2860 = vadd.f32 %v654, %v2842
      %v2861 = vadd.f32 %v655, %v2844
      %v2862 = vadd.f32 %v656, %v2846
      %v2863 = vsel %vm1022, %v1393, %v1891
      %v2864 = vsel %vm1022, %v1394, %v1892
      %v2865 = vsel %vm1022, %v1395, %v1893
      %v2866 = vsel %vm1022, %v1396, %v1894
      %v2867 = vsel %vm1022, %v1397, %v1895
      %v2868 = vsel %vm1022, %v1398, %v1896
      %v2869 = vsel %vm1022, %v1399, %v1897
      %v2870 = vsel %vm1022, %v1400, %v1898
      %v2871 = vsel %vm666, %v2863, %v2373
      %v2872 = vsel %vm666, %v2864, %v2374
      %v2873 = vsel %vm666, %v2865, %v2375
      %v2874 = vsel %vm666, %v2866, %v2376
      %v2875 = vsel %vm666, %v2867, %v2377
      %v2876 = vsel %vm666, %v2868, %v2378
      %v2877 = vsel %vm666, %v2869, %v2379
      %v2878 = vsel %vm666, %v2870, %v2380
      %vm2879 = vcmask 195584
      %v2880 = vsel %vm2879, %v2871, %v2855
      %v2881 = vsel %vm2879, %v2872, %v2856
      %v2882 = vsel %vm2879, %v2873, %v2857
      %v2883 = vsel %vm2879, %v2874, %v2858
      %v2884 = vsel %vm2879, %v2875, %v2859
      %v2885 = vsel %vm2879, %v2876, %v2860
      %v2886 = vsel %vm2879, %v2877, %v2861
      %v2887 = vsel %vm2879, %v2878, %v2862
      %v2888 = vld [vmem:[%s8] sm:$0xff]
      %v2889 = vld [vmem:[%s8 + $0x8] sm:$0xff]
      %v2890 = vld [vmem:[%s8 + $0x10] sm:$0xff]
      %v2891 = vld [vmem:[%s8 + $0x18] sm:$0xff]
      %v2892 = vld [vmem:[%s9] sm:$0x1]
      %v2894 = vlaneseq
      %v2895 = vshrl.u32 %v2894, 7
      %v2896 = vsub.s32 0, %v2895
      %v2897 = vrot.slane %v2892, %v2896
      %vm2899 = vcmask 261120
      %v2901 = vsel %vm2899, %v2880, 0
      %v2904 = vsel %vm2899, %v2881, 0
      %v2907 = vsel %vm2899, %v2882, 0
      %v2910 = vsel %vm2899, %v2883, 0
      %v2913 = vsel %vm2899, %v2884, 0
      %v2916 = vsel %vm2899, %v2885, 0
      %v2919 = vsel %vm2899, %v2886, 0
      %v2922 = vsel %vm2899, %v2887, 0
      %2924 = vmatprep.subr.mxu0 0.0
      %2925 = vmatpush1.msra.mxu0 %v2888
      %2926 = vmatprep.subr.mxu0 0.0
      %2927 = vmatpush1.msra.mxu0 %v2889
      %2928 = vmatprep.subr.mxu0 0.0
      %2929 = vmatpush1.msra.mxu0 %v2890
      %2930 = vmatprep.subr.mxu0 0.0
      %2931 = vmatpush1.msra.mxu0 %v2891
      %2932 = vmatprep.subr.mxu0 0.0
      %2933 = vmatpush1.msra.mxu0 0.0
      %2934 = vmatprep.subr.mxu0 0.0
      %2935 = vmatpush1.msra.mxu0 0.0
      %2936 = vmatprep.subr.mxu0 0.0
      %2937 = vmatpush1.msra.mxu0 0.0
      %2938 = vmatprep.subr.mxu0 0.0
      %2939 = vmatpush1.msra.mxu0 0.0
      %2940 = vmatprep.subr.mxu0 0.0
      %2941 = vmatpush1.msra.mxu0 0.0
      %2942 = vmatprep.subr.mxu0 0.0
      %2943 = vmatpush1.msra.mxu0 0.0
      %2944 = vmatprep.subr.mxu0 0.0
      %2945 = vmatpush1.msra.mxu0 0.0
      %2946 = vmatprep.subr.mxu0 0.0
      %2947 = vmatpush1.msra.mxu0 0.0
      %2948 = vmatprep.subr.mxu0 0.0
      %2949 = vmatpush1.msra.mxu0 0.0
      %2950 = vmatprep.subr.mxu0 0.0
      %2951 = vmatpush1.msra.mxu0 0.0
      %2952 = vmatprep.subr.mxu0 0.0
      %2953 = vmatpush1.msra.mxu0 0.0
      %2954 = vmatprep.subr.mxu0 0.0
      %2955 = vmatpush1.msra.mxu0 0.0
      %2956 = vmatprep.subr.mxu0 0.0
      %2957 = vmatpush1.msra.mxu0 0.0
      %2958 = vmatprep.subr.mxu0 0.0
      %2959 = vmatpush1.msra.mxu0 0.0
      %2960 = vmatprep.subr.mxu0 0.0
      %2961 = vmatpush1.msra.mxu0 0.0
      %2962 = vmatprep.subr.mxu0 0.0
      %2963 = vmatpush1.msra.mxu0 0.0
      %2964 = vmatprep.subr.mxu0 0.0
      %2965 = vmatpush1.msra.mxu0 0.0
      %2966 = vmatprep.subr.mxu0 0.0
      %2967 = vmatpush1.msra.mxu0 0.0
      %2968 = vmatprep.subr.mxu0 0.0
      %2969 = vmatpush1.msra.mxu0 0.0
      %2970 = vmatprep.subr.mxu0 0.0
      %2971 = vmatpush1.msra.mxu0 0.0
      %2972 = vmatprep.subr.mxu0 0.0
      %2973 = vmatpush1.msra.mxu0 0.0
      %2974 = vmatprep.subr.mxu0 0.0
      %2975 = vmatpush1.msra.mxu0 0.0
      %2976 = vmatprep.subr.mxu0 0.0
      %2977 = vmatpush1.msra.mxu0 0.0
      %2978 = vmatprep.subr.mxu0 0.0
      %2979 = vmatpush1.msra.mxu0 0.0
      %2980 = vmatprep.subr.mxu0 0.0
      %2981 = vmatpush1.msra.mxu0 0.0
      %2982 = vmatprep.subr.mxu0 0.0
      %2983 = vmatpush1.msra.mxu0 0.0
      %2984 = vmatprep.subr.mxu0 0.0
      %2985 = vmatpush1.msra.mxu0 0.0
      %2986 = vmatprep.subr.mxu0 0.0
      %2987 = vmatpush1.msra.mxu0 0.0
      %2988 = vmatprep.mubr.f32.mxu0 0.0
      %2989 = vmatmul.mubr.f32.gmra.mrb[0].mxu0 %v2901
      %v2990 = vpop.f32.mrb[0].mxu0
      %v2991 = vadd.f32 %v2897, %v2990
      %v2992 = vpop.f32.mrb[0].mxu0
      %2993 = vmatprep.mubr.f32.mxu0 0.0
      %2994 = vmatmul.mubr.f32.gmra.mrb[0].mxu0 %v2904
      %v2995 = vpop.f32.mrb[0].mxu0
      %v2996 = vadd.f32 %v2897, %v2995
      %v2997 = vpop.f32.mrb[0].mxu0
      %2998 = vmatprep.mubr.f32.mxu0 0.0
      %2999 = vmatmul.mubr.f32.gmra.mrb[0].mxu0 %v2907
      %v3000 = vpop.f32.mrb[0].mxu0
      %v3001 = vadd.f32 %v2897, %v3000
      %v3002 = vpop.f32.mrb[0].mxu0
      %3003 = vmatprep.mubr.f32.mxu0 0.0
      %3004 = vmatmul.mubr.f32.gmra.mrb[0].mxu0 %v2910
      %v3005 = vpop.f32.mrb[0].mxu0
      %v3006 = vadd.f32 %v2897, %v3005
      %v3007 = vpop.f32.mrb[0].mxu0
      %3008 = vmatprep.mubr.f32.mxu0 0.0
      %3009 = vmatmul.mubr.f32.gmra.mrb[0].mxu0 %v2913
      %v3010 = vpop.f32.mrb[0].mxu0
      %v3011 = vadd.f32 %v2897, %v3010
      %v3012 = vpop.f32.mrb[0].mxu0
      %3013 = vmatprep.mubr.f32.mxu0 0.0
      %3014 = vmatmul.mubr.f32.gmra.mrb[0].mxu0 %v2916
      %v3015 = vpop.f32.mrb[0].mxu0
      %v3016 = vadd.f32 %v2897, %v3015
      %v3017 = vpop.f32.mrb[0].mxu0
      %3018 = vmatprep.mubr.f32.mxu0 0.0
      %3019 = vmatmul.mubr.f32.gmra.mrb[0].mxu0 %v2919
      %v3020 = vpop.f32.mrb[0].mxu0
      %v3021 = vadd.f32 %v2897, %v3020
      %v3022 = vpop.f32.mrb[0].mxu0
      %3023 = vmatprep.mubr.f32.mxu0 0.0
      %3024 = vmatmul.mubr.f32.gmra.mrb[0].mxu0 %v2922
      %v3025 = vpop.f32.mrb[0].mxu0
      %v3026 = vadd.f32 %v2897, %v3025
      %v3027 = vpop.f32.mrb[0].mxu0
      %3028 = vdwg.mxu0
      %v3029 = vmax.f32 %v2991, 0.0
      %v3030 = vmax.f32 %v2996, 0.0
      %v3031 = vmax.f32 %v3001, 0.0
      %v3032 = vmax.f32 %v3006, 0.0
      %v3033 = vmax.f32 %v3011, 0.0
      %v3034 = vmax.f32 %v3016, 0.0
      %v3035 = vmax.f32 %v3021, 0.0
      %v3036 = vmax.f32 %v3026, 0.0
      %v3037 = vadd.f32 %v2880, %v3029
      %v3038 = vadd.f32 %v2881, %v3030
      %v3039 = vadd.f32 %v2882, %v3031
      %v3040 = vadd.f32 %v2883, %v3032
      %v3041 = vadd.f32 %v2884, %v3033
      %v3042 = vadd.f32 %v2885, %v3034
      %v3043 = vadd.f32 %v2886, %v3035
      %v3044 = vadd.f32 %v2887, %v3036
      %v3045 = vld [vmem:[%s10] sm:$0xff]
      %v3046 = vld [vmem:[%s10 + $0x8] sm:$0xff]
      %v3047 = vld [vmem:[%s11] sm:$0x1]
      %v3049 = vlaneseq
      %v3050 = vshrl.u32 %v3049, 7
      %v3051 = vsub.s32 0, %v3050
      %v3052 = vrot.slane %v3047, %v3051
      %3054 = vmatprep.subr.mxu0 0.0
      %3055 = vmatpush1.msra.mxu0 %v3045
      %3056 = vmatprep.subr.mxu0 0.0
      %3057 = vmatpush1.msra.mxu0 %v3046
      %3058 = vmatprep.subr.mxu0 0.0
      %3059 = vmatpush1.msra.mxu0 0.0
      %3060 = vmatprep.subr.mxu0 0.0
      %3061 = vmatpush1.msra.mxu0 0.0
      %3062 = vmatprep.subr.mxu0 0.0
      %3063 = vmatpush1.msra.mxu0 0.0
      %3064 = vmatprep.subr.mxu0 0.0
      %3065 = vmatpush1.msra.mxu0 0.0
      %3066 = vmatprep.subr.mxu0 0.0
      %3067 = vmatpush1.msra.mxu0 0.0
      %3068 = vmatprep.subr.mxu0 0.0
      %3069 = vmatpush1.msra.mxu0 0.0
      %3070 = vmatprep.subr.mxu0 0.0
      %3071 = vmatpush1.msra.mxu0 0.0
      %3072 = vmatprep.subr.mxu0 0.0
      %3073 = vmatpush1.msra.mxu0 0.0
      %3074 = vmatprep.subr.mxu0 0.0
      %3075 = vmatpush1.msra.mxu0 0.0
      %3076 = vmatprep.subr.mxu0 0.0
      %3077 = vmatpush1.msra.mxu0 0.0
      %3078 = vmatprep.subr.mxu0 0.0
      %3079 = vmatpush1.msra.mxu0 0.0
      %3080 = vmatprep.subr.mxu0 0.0
      %3081 = vmatpush1.msra.mxu0 0.0
      %3082 = vmatprep.subr.mxu0 0.0
      %3083 = vmatpush1.msra.mxu0 0.0
      %3084 = vmatprep.subr.mxu0 0.0
      %3085 = vmatpush1.msra.mxu0 0.0
      %3086 = vmatprep.subr.mxu0 0.0
      %3087 = vmatpush1.msra.mxu0 0.0
      %3088 = vmatprep.subr.mxu0 0.0
      %3089 = vmatpush1.msra.mxu0 0.0
      %3090 = vmatprep.subr.mxu0 0.0
      %3091 = vmatpush1.msra.mxu0 0.0
      %3092 = vmatprep.subr.mxu0 0.0
      %3093 = vmatpush1.msra.mxu0 0.0
      %3094 = vmatprep.subr.mxu0 0.0
      %3095 = vmatpush1.msra.mxu0 0.0
      %3096 = vmatprep.subr.mxu0 0.0
      %3097 = vmatpush1.msra.mxu0 0.0
      %3098 = vmatprep.subr.mxu0 0.0
      %3099 = vmatpush1.msra.mxu0 0.0
      %3100 = vmatprep.subr.mxu0 0.0
      %3101 = vmatpush1.msra.mxu0 0.0
      %3102 = vmatprep.subr.mxu0 0.0
      %3103 = vmatpush1.msra.mxu0 0.0
      %3104 = vmatprep.subr.mxu0 0.0
      %3105 = vmatpush1.msra.mxu0 0.0
      %3106 = vmatprep.subr.mxu0 0.0
      %3107 = vmatpush1.msra.mxu0 0.0
      %3108 = vmatprep.subr.mxu0 0.0
      %3109 = vmatpush1.msra.mxu0 0.0
      %3110 = vmatprep.subr.mxu0 0.0
      %3111 = vmatpush1.msra.mxu0 0.0
      %3112 = vmatprep.subr.mxu0 0.0
      %3113 = vmatpush1.msra.mxu0 0.0
      %3114 = vmatprep.subr.mxu0 0.0
      %3115 = vmatpush1.msra.mxu0 0.0
      %3116 = vmatprep.subr.mxu0 0.0
      %3117 = vmatpush1.msra.mxu0 0.0
      %3118 = vmatprep.mubr.f32.mxu0 0.0
      %3119 = vmatmul.mubr.f32.gmra.mrb[0].mxu0 %v668
      %v3120 = vpop.f32.mrb[0].mxu0
      %v3121 = vadd.f32 %v3052, %v3120
      %v3122 = vpop.f32.mrb[0].mxu0
      %3123 = vmatprep.mubr.f32.mxu0 0.0
      %3124 = vmatmul.mubr.f32.gmra.mrb[0].mxu0 %v671
      %v3125 = vpop.f32.mrb[0].mxu0
      %v3126 = vadd.f32 %v3052, %v3125
      %v3127 = vpop.f32.mrb[0].mxu0
      %3128 = vmatprep.mubr.f32.mxu0 0.0
      %3129 = vmatmul.mubr.f32.gmra.mrb[0].mxu0 %v674
      %v3130 = vpop.f32.mrb[0].mxu0
      %v3131 = vadd.f32 %v3052, %v3130
      %v3132 = vpop.f32.mrb[0].mxu0
      %3133 = vmatprep.mubr.f32.mxu0 0.0
      %3134 = vmatmul.mubr.f32.gmra.mrb[0].mxu0 %v677
      %v3135 = vpop.f32.mrb[0].mxu0
      %v3136 = vadd.f32 %v3052, %v3135
      %v3137 = vpop.f32.mrb[0].mxu0
      %3138 = vmatprep.mubr.f32.mxu0 0.0
      %3139 = vmatmul.mubr.f32.gmra.mrb[0].mxu0 %v680
      %v3140 = vpop.f32.mrb[0].mxu0
      %v3141 = vadd.f32 %v3052, %v3140
      %v3142 = vpop.f32.mrb[0].mxu0
      %3143 = vmatprep.mubr.f32.mxu0 0.0
      %3144 = vmatmul.mubr.f32.gmra.mrb[0].mxu0 %v683
      %v3145 = vpop.f32.mrb[0].mxu0
      %v3146 = vadd.f32 %v3052, %v3145
      %v3147 = vpop.f32.mrb[0].mxu0
      %3148 = vmatprep.mubr.f32.mxu0 0.0
      %3149 = vmatmul.mubr.f32.gmra.mrb[0].mxu0 %v686
      %v3150 = vpop.f32.mrb[0].mxu0
      %v3151 = vadd.f32 %v3052, %v3150
      %v3152 = vpop.f32.mrb[0].mxu0
      %3153 = vmatprep.mubr.f32.mxu0 0.0
      %3154 = vmatmul.mubr.f32.gmra.mrb[0].mxu0 %v689
      %v3155 = vpop.f32.mrb[0].mxu0
      %v3156 = vadd.f32 %v3052, %v3155
      %v3157 = vpop.f32.mrb[0].mxu0
      %3158 = vmatprep.mubr.f32.mxu0 0.0
      %3159 = vmatmul.mubr.f32.gmra.mrb[0].mxu0 %v692
      %v3160 = vpop.f32.mrb[0].mxu0
      %v3161 = vadd.f32 %v3052, %v3160
      %v3162 = vpop.f32.mrb[0].mxu0
      %3163 = vmatprep.mubr.f32.mxu0 0.0
      %3164 = vmatmul.mubr.f32.gmra.mrb[0].mxu0 %v695
      %v3165 = vpop.f32.mrb[0].mxu0
      %v3166 = vadd.f32 %v3052, %v3165
      %v3167 = vpop.f32.mrb[0].mxu0
      %3168 = vmatprep.mubr.f32.mxu0 0.0
      %3169 = vmatmul.mubr.f32.gmra.mrb[0].mxu0 %v698
      %v3170 = vpop.f32.mrb[0].mxu0
      %v3171 = vadd.f32 %v3052, %v3170
      %v3172 = vpop.f32.mrb[0].mxu0
      %3173 = vmatprep.mubr.f32.mxu0 0.0
      %3174 = vmatmul.mubr.f32.gmra.mrb[0].mxu0 %v701
      %v3175 = vpop.f32.mrb[0].mxu0
      %v3176 = vadd.f32 %v3052, %v3175
      %v3177 = vpop.f32.mrb[0].mxu0
      %3178 = vmatprep.mubr.f32.mxu0 0.0
      %3179 = vmatmul.mubr.f32.gmra.mrb[0].mxu0 %v704
      %v3180 = vpop.f32.mrb[0].mxu0
      %v3181 = vadd.f32 %v3052, %v3180
      %v3182 = vpop.f32.mrb[0].mxu0
      %3183 = vmatprep.mubr.f32.mxu0 0.0
      %3184 = vmatmul.mubr.f32.gmra.mrb[0].mxu0 %v707
      %v3185 = vpop.f32.mrb[0].mxu0
      %v3186 = vadd.f32 %v3052, %v3185
      %v3187 = vpop.f32.mrb[0].mxu0
      %3188 = vmatprep.mubr.f32.mxu0 0.0
      %3189 = vmatmul.mubr.f32.gmra.mrb[0].mxu0 %v710
      %v3190 = vpop.f32.mrb[0].mxu0
      %v3191 = vadd.f32 %v3052, %v3190
      %v3192 = vpop.f32.mrb[0].mxu0
      %3193 = vmatprep.mubr.f32.mxu0 0.0
      %3194 = vmatmul.mubr.f32.gmra.mrb[0].mxu0 %v713
      %v3195 = vpop.f32.mrb[0].mxu0
      %v3196 = vadd.f32 %v3052, %v3195
      %v3197 = vpop.f32.mrb[0].mxu0
      %3198 = vdwg.mxu0
      %v3199 = vld [vmem:[%s12] sm:$0xff]
      %v3200 = vld [vmem:[%s12 + $0x8] sm:$0xff]
      %v3201 = vld [vmem:[%s12 + $0x10] sm:$0xff]
      %v3202 = vld [vmem:[%s12 + $0x18] sm:$0xff]
      %v3203 = vld [vmem:[%s13] sm:$0x1]
      %v3205 = vlaneseq
      %v3206 = vshrl.u32 %v3205, 7
      %v3207 = vsub.s32 0, %v3206
      %v3208 = vrot.slane %v3203, %v3207
      %v3211 = vsel %vm2899, %v3037, 0
      %v3214 = vsel %vm2899, %v3038, 0
      %v3217 = vsel %vm2899, %v3039, 0
      %v3220 = vsel %vm2899, %v3040, 0
      %v3223 = vsel %vm2899, %v3041, 0
      %v3226 = vsel %vm2899, %v3042, 0
      %v3229 = vsel %vm2899, %v3043, 0
      %v3232 = vsel %vm2899, %v3044, 0
      %3234 = vmatprep.subr.mxu0 0.0
      %3235 = vmatpush1.msra.mxu0 %v3199
      %3236 = vmatprep.subr.mxu0 0.0
      %3237 = vmatpush1.msra.mxu0 %v3200
      %3238 = vmatprep.subr.mxu0 0.0
      %3239 = vmatpush1.msra.mxu0 %v3201
      %3240 = vmatprep.subr.mxu0 0.0
      %3241 = vmatpush1.msra.mxu0 %v3202
      %3242 = vmatprep.subr.mxu0 0.0
      %3243 = vmatpush1.msra.mxu0 0.0
      %3244 = vmatprep.subr.mxu0 0.0
      %3245 = vmatpush1.msra.mxu0 0.0
      %3246 = vmatprep.subr.mxu0 0.0
      %3247 = vmatpush1.msra.mxu0 0.0
      %3248 = vmatprep.subr.mxu0 0.0
      %3249 = vmatpush1.msra.mxu0 0.0
      %3250 = vmatprep.subr.mxu0 0.0
      %3251 = vmatpush1.msra.mxu0 0.0
      %3252 = vmatprep.subr.mxu0 0.0
      %3253 = vmatpush1.msra.mxu0 0.0
      %3254 = vmatprep.subr.mxu0 0.0
      %3255 = vmatpush1.msra.mxu0 0.0
      %3256 = vmatprep.subr.mxu0 0.0
      %3257 = vmatpush1.msra.mxu0 0.0
      %3258 = vmatprep.subr.mxu0 0.0
      %3259 = vmatpush1.msra.mxu0 0.0
      %3260 = vmatprep.subr.mxu0 0.0
      %3261 = vmatpush1.msra.mxu0 0.0
      %3262 = vmatprep.subr.mxu0 0.0
      %3263 = vmatpush1.msra.mxu0 0.0
      %3264 = vmatprep.subr.mxu0 0.0
      %3265 = vmatpush1.msra.mxu0 0.0
      %3266 = vmatprep.subr.mxu0 0.0
      %3267 = vmatpush1.msra.mxu0 0.0
      %3268 = vmatprep.subr.mxu0 0.0
      %3269 = vmatpush1.msra.mxu0 0.0
      %3270 = vmatprep.subr.mxu0 0.0
      %3271 = vmatpush1.msra.mxu0 0.0
      %3272 = vmatprep.subr.mxu0 0.0
      %3273 = vmatpush1.msra.mxu0 0.0
      %3274 = vmatprep.subr.mxu0 0.0
      %3275 = vmatpush1.msra.mxu0 0.0
      %3276 = vmatprep.subr.mxu0 0.0
      %3277 = vmatpush1.msra.mxu0 0.0
      %3278 = vmatprep.subr.mxu0 0.0
      %3279 = vmatpush1.msra.mxu0 0.0
      %3280 = vmatprep.subr.mxu0 0.0
      %3281 = vmatpush1.msra.mxu0 0.0
      %3282 = vmatprep.subr.mxu0 0.0
      %3283 = vmatpush1.msra.mxu0 0.0
      %3284 = vmatprep.subr.mxu0 0.0
      %3285 = vmatpush1.msra.mxu0 0.0
      %3286 = vmatprep.subr.mxu0 0.0
      %3287 = vmatpush1.msra.mxu0 0.0
      %3288 = vmatprep.subr.mxu0 0.0
      %3289 = vmatpush1.msra.mxu0 0.0
      %3290 = vmatprep.subr.mxu0 0.0
      %3291 = vmatpush1.msra.mxu0 0.0
      %3292 = vmatprep.subr.mxu0 0.0
      %3293 = vmatpush1.msra.mxu0 0.0
      %3294 = vmatprep.subr.mxu0 0.0
      %3295 = vmatpush1.msra.mxu0 0.0
      %3296 = vmatprep.subr.mxu0 0.0
      %3297 = vmatpush1.msra.mxu0 0.0
      %3298 = vmatprep.mubr.f32.mxu0 0.0
      %3299 = vmatmul.mubr.f32.gmra.mrb[0].mxu0 %v3211
      %v3300 = vpop.f32.mrb[0].mxu0
      %v3301 = vadd.f32 %v3208, %v3300
      %v3302 = vpop.f32.mrb[0].mxu0
      %3303 = vmatprep.mubr.f32.mxu0 0.0
      %3304 = vmatmul.mubr.f32.gmra.mrb[0].mxu0 %v3214
      %v3305 = vpop.f32.mrb[0].mxu0
      %v3306 = vadd.f32 %v3208, %v3305
      %v3307 = vpop.f32.mrb[0].mxu0
      %3308 = vmatprep.mubr.f32.mxu0 0.0
      %3309 = vmatmul.mubr.f32.gmra.mrb[0].mxu0 %v3217
      %v3310 = vpop.f32.mrb[0].mxu0
      %v3311 = vadd.f32 %v3208, %v3310
      %v3312 = vpop.f32.mrb[0].mxu0
      %3313 = vmatprep.mubr.f32.mxu0 0.0
      %3314 = vmatmul.mubr.f32.gmra.mrb[0].mxu0 %v3220
      %v3315 = vpop.f32.mrb[0].mxu0
      %v3316 = vadd.f32 %v3208, %v3315
      %v3317 = vpop.f32.mrb[0].mxu0
      %3318 = vmatprep.mubr.f32.mxu0 0.0
      %3319 = vmatmul.mubr.f32.gmra.mrb[0].mxu0 %v3223
      %v3320 = vpop.f32.mrb[0].mxu0
      %v3321 = vadd.f32 %v3208, %v3320
      %v3322 = vpop.f32.mrb[0].mxu0
      %3323 = vmatprep.mubr.f32.mxu0 0.0
      %3324 = vmatmul.mubr.f32.gmra.mrb[0].mxu0 %v3226
      %v3325 = vpop.f32.mrb[0].mxu0
      %v3326 = vadd.f32 %v3208, %v3325
      %v3327 = vpop.f32.mrb[0].mxu0
      %3328 = vmatprep.mubr.f32.mxu0 0.0
      %3329 = vmatmul.mubr.f32.gmra.mrb[0].mxu0 %v3229
      %v3330 = vpop.f32.mrb[0].mxu0
      %v3331 = vadd.f32 %v3208, %v3330
      %v3332 = vpop.f32.mrb[0].mxu0
      %3333 = vmatprep.mubr.f32.mxu0 0.0
      %3334 = vmatmul.mubr.f32.gmra.mrb[0].mxu0 %v3232
      %v3335 = vpop.f32.mrb[0].mxu0
      %v3336 = vadd.f32 %v3208, %v3335
      %v3337 = vpop.f32.mrb[0].mxu0
      %3338 = vdwg.mxu0
      %v3339 = vld [vmem:[%s14] sm:$0xff]
      %v3340 = vld [vmem:[%s14 + $0x8] sm:$0xff]
      %v3341 = vld [vmem:[%s14 + $0x10] sm:$0xff]
      %v3342 = vld [vmem:[%s14 + $0x18] sm:$0xff]
      %v3343 = vld [vmem:[%s15] sm:$0x1]
      %v3345 = vlaneseq
      %v3346 = vshrl.u32 %v3345, 7
      %v3347 = vsub.s32 0, %v3346
      %v3348 = vrot.slane %v3343, %v3347
      %3350 = vmatprep.subr.mxu0 0.0
      %3351 = vmatpush1.msra.mxu0 %v3339
      %3352 = vmatprep.subr.mxu0 0.0
      %3353 = vmatpush1.msra.mxu0 %v3340
      %3354 = vmatprep.subr.mxu0 0.0
      %3355 = vmatpush1.msra.mxu0 %v3341
      %3356 = vmatprep.subr.mxu0 0.0
      %3357 = vmatpush1.msra.mxu0 %v3342
      %3358 = vmatprep.subr.mxu0 0.0
      %3359 = vmatpush1.msra.mxu0 0.0
      %3360 = vmatprep.subr.mxu0 0.0
      %3361 = vmatpush1.msra.mxu0 0.0
      %3362 = vmatprep.subr.mxu0 0.0
      %3363 = vmatpush1.msra.mxu0 0.0
      %3364 = vmatprep.subr.mxu0 0.0
      %3365 = vmatpush1.msra.mxu0 0.0
      %3366 = vmatprep.subr.mxu0 0.0
      %3367 = vmatpush1.msra.mxu0 0.0
      %3368 = vmatprep.subr.mxu0 0.0
      %3369 = vmatpush1.msra.mxu0 0.0
      %3370 = vmatprep.subr.mxu0 0.0
      %3371 = vmatpush1.msra.mxu0 0.0
      %3372 = vmatprep.subr.mxu0 0.0
      %3373 = vmatpush1.msra.mxu0 0.0
      %3374 = vmatprep.subr.mxu0 0.0
      %3375 = vmatpush1.msra.mxu0 0.0
      %3376 = vmatprep.subr.mxu0 0.0
      %3377 = vmatpush1.msra.mxu0 0.0
      %3378 = vmatprep.subr.mxu0 0.0
      %3379 = vmatpush1.msra.mxu0 0.0
      %3380 = vmatprep.subr.mxu0 0.0
      %3381 = vmatpush1.msra.mxu0 0.0
      %3382 = vmatprep.subr.mxu0 0.0
      %3383 = vmatpush1.msra.mxu0 0.0
      %3384 = vmatprep.subr.mxu0 0.0
      %3385 = vmatpush1.msra.mxu0 0.0
      %3386 = vmatprep.subr.mxu0 0.0
      %3387 = vmatpush1.msra.mxu0 0.0
      %3388 = vmatprep.subr.mxu0 0.0
      %3389 = vmatpush1.msra.mxu0 0.0
      %3390 = vmatprep.subr.mxu0 0.0
      %3391 = vmatpush1.msra.mxu0 0.0
      %3392 = vmatprep.subr.mxu0 0.0
      %3393 = vmatpush1.msra.mxu0 0.0
      %3394 = vmatprep.subr.mxu0 0.0
      %3395 = vmatpush1.msra.mxu0 0.0
      %3396 = vmatprep.subr.mxu0 0.0
      %3397 = vmatpush1.msra.mxu0 0.0
      %3398 = vmatprep.subr.mxu0 0.0
      %3399 = vmatpush1.msra.mxu0 0.0
      %3400 = vmatprep.subr.mxu0 0.0
      %3401 = vmatpush1.msra.mxu0 0.0
      %3402 = vmatprep.subr.mxu0 0.0
      %3403 = vmatpush1.msra.mxu0 0.0
      %3404 = vmatprep.subr.mxu0 0.0
      %3405 = vmatpush1.msra.mxu0 0.0
      %3406 = vmatprep.subr.mxu0 0.0
      %3407 = vmatpush1.msra.mxu0 0.0
      %3408 = vmatprep.subr.mxu0 0.0
      %3409 = vmatpush1.msra.mxu0 0.0
      %3410 = vmatprep.subr.mxu0 0.0
      %3411 = vmatpush1.msra.mxu0 0.0
      %3412 = vmatprep.subr.mxu0 0.0
      %3413 = vmatpush1.msra.mxu0 0.0
      %3414 = vmatprep.mubr.f32.mxu0 0.0
      %3415 = vmatmul.mubr.f32.gmra.mrb[0].mxu0 %v3211
      %v3416 = vpop.f32.mrb[0].mxu0
      %v3417 = vadd.f32 %v3348, %v3416
      %v3418 = vpop.f32.mrb[0].mxu0
      %3419 = vmatprep.mubr.f32.mxu0 0.0
      %3420 = vmatmul.mubr.f32.gmra.mrb[0].mxu0 %v3214
      %v3421 = vpop.f32.mrb[0].mxu0
      %v3422 = vadd.f32 %v3348, %v3421
      %v3423 = vpop.f32.mrb[0].mxu0
      %3424 = vmatprep.mubr.f32.mxu0 0.0
      %3425 = vmatmul.mubr.f32.gmra.mrb[0].mxu0 %v3217
      %v3426 = vpop.f32.mrb[0].mxu0
      %v3427 = vadd.f32 %v3348, %v3426
      %v3428 = vpop.f32.mrb[0].mxu0
      %3429 = vmatprep.mubr.f32.mxu0 0.0
      %3430 = vmatmul.mubr.f32.gmra.mrb[0].mxu0 %v3220
      %v3431 = vpop.f32.mrb[0].mxu0
      %v3432 = vadd.f32 %v3348, %v3431
      %v3433 = vpop.f32.mrb[0].mxu0
      %3434 = vmatprep.mubr.f32.mxu0 0.0
      %3435 = vmatmul.mubr.f32.gmra.mrb[0].mxu0 %v3223
      %v3436 = vpop.f32.mrb[0].mxu0
      %v3437 = vadd.f32 %v3348, %v3436
      %v3438 = vpop.f32.mrb[0].mxu0
      %3439 = vmatprep.mubr.f32.mxu0 0.0
      %3440 = vmatmul.mubr.f32.gmra.mrb[0].mxu0 %v3226
      %v3441 = vpop.f32.mrb[0].mxu0
      %v3442 = vadd.f32 %v3348, %v3441
      %v3443 = vpop.f32.mrb[0].mxu0
      %3444 = vmatprep.mubr.f32.mxu0 0.0
      %3445 = vmatmul.mubr.f32.gmra.mrb[0].mxu0 %v3229
      %v3446 = vpop.f32.mrb[0].mxu0
      %v3447 = vadd.f32 %v3348, %v3446
      %v3448 = vpop.f32.mrb[0].mxu0
      %3449 = vmatprep.mubr.f32.mxu0 0.0
      %3450 = vmatmul.mubr.f32.gmra.mrb[0].mxu0 %v3232
      %v3451 = vpop.f32.mrb[0].mxu0
      %v3452 = vadd.f32 %v3348, %v3451
      %v3453 = vpop.f32.mrb[0].mxu0
      %3454 = vdwg.mxu0
      %v3455 = vld [vmem:[%s3] sm:$0xff]
      %v3456 = vld [vmem:[%s3 + $0x8] sm:$0xff]
      %v3457 = vld [vmem:[%s3 + $0x10] sm:$0xff]
      %v3458 = vld [vmem:[%s3 + $0x18] sm:$0xff]
      %v3459 = vld [vmem:[%s3 + $0x20] sm:$0xff]
      %v3460 = vld [vmem:[%s3 + $0x28] sm:$0xff]
      %v3461 = vld [vmem:[%s3 + $0x30] sm:$0xff]
      %v3462 = vld [vmem:[%s3 + $0x38] sm:$0xff]
      %v3463 = vld [vmem:[%s3 + $0x40] sm:$0xff]
      %v3464 = vld [vmem:[%s3 + $0x48] sm:$0xff]
      %v3465 = vld [vmem:[%s3 + $0x50] sm:$0xff]
      %v3466 = vld [vmem:[%s3 + $0x58] sm:$0xff]
      %v3467 = vld [vmem:[%s3 + $0x60] sm:$0xff]
      %v3468 = vld [vmem:[%s3 + $0x68] sm:$0xff]
      %v3469 = vld [vmem:[%s3 + $0x70] sm:$0xff]
      %v3470 = vld [vmem:[%s3 + $0x78] sm:$0xff]
      %v3472 = vsel %vm1022, %v3121, 0
      %v3475 = vsel %vm1022, %v3126, 0
      %v3478 = vsel %vm1022, %v3131, 0
      %v3481 = vsel %vm1022, %v3136, 0
      %v3484 = vsel %vm1022, %v3141, 0
      %v3487 = vsel %vm1022, %v3146, 0
      %v3490 = vsel %vm1022, %v3151, 0
      %v3493 = vsel %vm1022, %v3156, 0
      %v3496 = vsel %vm1022, %v3161, 0
      %v3499 = vsel %vm1022, %v3166, 0
      %v3502 = vsel %vm1022, %v3171, 0
      %v3505 = vsel %vm1022, %v3176, 0
      %v3508 = vsel %vm1022, %v3181, 0
      %v3511 = vsel %vm1022, %v3186, 0
      %v3514 = vsel %vm1022, %v3191, 0
      %v3517 = vsel %vm1022, %v3196, 0
      %v3520 = vsel %vm1022, %v3301, 0
      %v3523 = vsel %vm1022, %v3306, 0
      %v3526 = vsel %vm1022, %v3311, 0
      %v3529 = vsel %vm1022, %v3316, 0
      %v3532 = vsel %vm1022, %v3321, 0
      %v3535 = vsel %vm1022, %v3326, 0
      %v3538 = vsel %vm1022, %v3331, 0
      %v3541 = vsel %vm1022, %v3336, 0
      %3543 = vmatprep.subr.mxu0 0.0
      %3544 = vmatpush1.xpose.msra.mxu0 %v3520
      %3545 = vmatprep.subr.mxu0 0.0
      %3546 = vmatpush1.xpose.msra.mxu0 %v3523
      %3547 = vmatprep.subr.mxu0 0.0
      %3548 = vmatpush1.xpose.msra.mxu0 %v3526
      %3549 = vmatprep.subr.mxu0 0.0
      %3550 = vmatpush1.xpose.msra.mxu0 %v3529
      %3551 = vmatprep.subr.mxu0 0.0
      %3552 = vmatpush1.xpose.msra.mxu0 %v3532
      %3553 = vmatprep.subr.mxu0 0.0
      %3554 = vmatpush1.xpose.msra.mxu0 %v3535
      %3555 = vmatprep.subr.mxu0 0.0
      %3556 = vmatpush1.xpose.msra.mxu0 %v3538
      %3557 = vmatprep.subr.mxu0 0.0
      %3558 = vmatpush1.xpose.msra.mxu0 %v3541
      %3559 = vmatprep.subr.mxu0 0.0
      %3560 = vmatpush1.xpose.msra.mxu0 0.0
      %3561 = vmatprep.subr.mxu0 0.0
      %3562 = vmatpush1.xpose.msra.mxu0 0.0
      %3563 = vmatprep.subr.mxu0 0.0
      %3564 = vmatpush1.xpose.msra.mxu0 0.0
      %3565 = vmatprep.subr.mxu0 0.0
      %3566 = vmatpush1.xpose.msra.mxu0 0.0
      %3567 = vmatprep.subr.mxu0 0.0
      %3568 = vmatpush1.xpose.msra.mxu0 0.0
      %3569 = vmatprep.subr.mxu0 0.0
      %3570 = vmatpush1.xpose.msra.mxu0 0.0
      %3571 = vmatprep.subr.mxu0 0.0
      %3572 = vmatpush1.xpose.msra.mxu0 0.0
      %3573 = vmatprep.subr.mxu0 0.0
      %3574 = vmatpush1.xpose.msra.mxu0 0.0
      %3575 = vmatprep.subr.mxu0 0.0
      %3576 = vmatpush1.xpose.msra.mxu0 0.0
      %3577 = vmatprep.subr.mxu0 0.0
      %3578 = vmatpush1.xpose.msra.mxu0 0.0
      %3579 = vmatprep.subr.mxu0 0.0
      %3580 = vmatpush1.xpose.msra.mxu0 0.0
      %3581 = vmatprep.subr.mxu0 0.0
      %3582 = vmatpush1.xpose.msra.mxu0 0.0
      %3583 = vmatprep.subr.mxu0 0.0
      %3584 = vmatpush1.xpose.msra.mxu0 0.0
      %3585 = vmatprep.subr.mxu0 0.0
      %3586 = vmatpush1.xpose.msra.mxu0 0.0
      %3587 = vmatprep.subr.mxu0 0.0
      %3588 = vmatpush1.xpose.msra.mxu0 0.0
      %3589 = vmatprep.subr.mxu0 0.0
      %3590 = vmatpush1.xpose.msra.mxu0 0.0
      %3591 = vmatprep.subr.mxu0 0.0
      %3592 = vmatpush1.xpose.msra.mxu0 0.0
      %3593 = vmatprep.subr.mxu0 0.0
      %3594 = vmatpush1.xpose.msra.mxu0 0.0
      %3595 = vmatprep.subr.mxu0 0.0
      %3596 = vmatpush1.xpose.msra.mxu0 0.0
      %3597 = vmatprep.subr.mxu0 0.0
      %3598 = vmatpush1.xpose.msra.mxu0 0.0
      %3599 = vmatprep.subr.mxu0 0.0
      %3600 = vmatpush1.xpose.msra.mxu0 0.0
      %3601 = vmatprep.subr.mxu0 0.0
      %3602 = vmatpush1.xpose.msra.mxu0 0.0
      %3603 = vmatprep.subr.mxu0 0.0
      %3604 = vmatpush1.xpose.msra.mxu0 0.0
      %3605 = vmatprep.subr.mxu0 0.0
      %3606 = vmatpush1.xpose.msra.mxu0 0.0
      %3607 = vmatprep.mubr.f32.mxu0 0.0
      %3608 = vmatmul.mubr.f32.gmra.mrb[0].mxu0 %v3472
      %v3609 = vpop.f32.mrb[0].mxu0
      %v3610 = vadd.f32 0.0, %v3609
      %v3611 = vpop.f32.mrb[0].mxu0
      %3612 = vmatprep.mubr.f32.mxu0 0.0
      %3613 = vmatmul.mubr.f32.gmra.mrb[0].mxu0 %v3475
      %v3614 = vpop.f32.mrb[0].mxu0
      %v3615 = vadd.f32 0.0, %v3614
      %v3616 = vpop.f32.mrb[0].mxu0
      %3617 = vmatprep.mubr.f32.mxu0 0.0
      %3618 = vmatmul.mubr.f32.gmra.mrb[0].mxu0 %v3478
      %v3619 = vpop.f32.mrb[0].mxu0
      %v3620 = vadd.f32 0.0, %v3619
      %v3621 = vpop.f32.mrb[0].mxu0
      %3622 = vmatprep.mubr.f32.mxu0 0.0
      %3623 = vmatmul.mubr.f32.gmra.mrb[0].mxu0 %v3481
      %v3624 = vpop.f32.mrb[0].mxu0
      %v3625 = vadd.f32 0.0, %v3624
      %v3626 = vpop.f32.mrb[0].mxu0
      %3627 = vmatprep.mubr.f32.mxu0 0.0
      %3628 = vmatmul.mubr.f32.gmra.mrb[0].mxu0 %v3484
      %v3629 = vpop.f32.mrb[0].mxu0
      %v3630 = vadd.f32 0.0, %v3629
      %v3631 = vpop.f32.mrb[0].mxu0
      %3632 = vmatprep.mubr.f32.mxu0 0.0
      %3633 = vmatmul.mubr.f32.gmra.mrb[0].mxu0 %v3487
      %v3634 = vpop.f32.mrb[0].mxu0
      %v3635 = vadd.f32 0.0, %v3634
      %v3636 = vpop.f32.mrb[0].mxu0
      %3637 = vmatprep.mubr.f32.mxu0 0.0
      %3638 = vmatmul.mubr.f32.gmra.mrb[0].mxu0 %v3490
      %v3639 = vpop.f32.mrb[0].mxu0
      %v3640 = vadd.f32 0.0, %v3639
      %v3641 = vpop.f32.mrb[0].mxu0
      %3642 = vmatprep.mubr.f32.mxu0 0.0
      %3643 = vmatmul.mubr.f32.gmra.mrb[0].mxu0 %v3493
      %v3644 = vpop.f32.mrb[0].mxu0
      %v3645 = vadd.f32 0.0, %v3644
      %v3646 = vpop.f32.mrb[0].mxu0
      %3647 = vmatprep.mubr.f32.mxu0 0.0
      %3648 = vmatmul.mubr.f32.gmra.mrb[0].mxu0 %v3496
      %v3649 = vpop.f32.mrb[0].mxu0
      %v3650 = vadd.f32 0.0, %v3649
      %v3651 = vpop.f32.mrb[0].mxu0
      %3652 = vmatprep.mubr.f32.mxu0 0.0
      %3653 = vmatmul.mubr.f32.gmra.mrb[0].mxu0 %v3499
      %v3654 = vpop.f32.mrb[0].mxu0
      %v3655 = vadd.f32 0.0, %v3654
      %v3656 = vpop.f32.mrb[0].mxu0
      %3657 = vmatprep.mubr.f32.mxu0 0.0
      %3658 = vmatmul.mubr.f32.gmra.mrb[0].mxu0 %v3502
      %v3659 = vpop.f32.mrb[0].mxu0
      %v3660 = vadd.f32 0.0, %v3659
      %v3661 = vpop.f32.mrb[0].mxu0
      %3662 = vmatprep.mubr.f32.mxu0 0.0
      %3663 = vmatmul.mubr.f32.gmra.mrb[0].mxu0 %v3505
      %v3664 = vpop.f32.mrb[0].mxu0
      %v3665 = vadd.f32 0.0, %v3664
      %v3666 = vpop.f32.mrb[0].mxu0
      %3667 = vmatprep.mubr.f32.mxu0 0.0
      %3668 = vmatmul.mubr.f32.gmra.mrb[0].mxu0 %v3508
      %v3669 = vpop.f32.mrb[0].mxu0
      %v3670 = vadd.f32 0.0, %v3669
      %v3671 = vpop.f32.mrb[0].mxu0
      %3672 = vmatprep.mubr.f32.mxu0 0.0
      %3673 = vmatmul.mubr.f32.gmra.mrb[0].mxu0 %v3511
      %v3674 = vpop.f32.mrb[0].mxu0
      %v3675 = vadd.f32 0.0, %v3674
      %v3676 = vpop.f32.mrb[0].mxu0
      %3677 = vmatprep.mubr.f32.mxu0 0.0
      %3678 = vmatmul.mubr.f32.gmra.mrb[0].mxu0 %v3514
      %v3679 = vpop.f32.mrb[0].mxu0
      %v3680 = vadd.f32 0.0, %v3679
      %v3681 = vpop.f32.mrb[0].mxu0
      %3682 = vmatprep.mubr.f32.mxu0 0.0
      %3683 = vmatmul.mubr.f32.gmra.mrb[0].mxu0 %v3517
      %v3684 = vpop.f32.mrb[0].mxu0
      %v3685 = vadd.f32 0.0, %v3684
      %v3686 = vpop.f32.mrb[0].mxu0
      %3687 = vdwg.mxu0
      %v3688 = vmul.f32 %v3610, 0.17677669
      %v3689 = vmul.f32 %v3615, 0.17677669
      %v3690 = vmul.f32 %v3620, 0.17677669
      %v3691 = vmul.f32 %v3625, 0.17677669
      %v3692 = vmul.f32 %v3630, 0.17677669
      %v3693 = vmul.f32 %v3635, 0.17677669
      %v3694 = vmul.f32 %v3640, 0.17677669
      %v3695 = vmul.f32 %v3645, 0.17677669
      %v3696 = vmul.f32 %v3650, 0.17677669
      %v3697 = vmul.f32 %v3655, 0.17677669
      %v3698 = vmul.f32 %v3660, 0.17677669
      %v3699 = vmul.f32 %v3665, 0.17677669
      %v3700 = vmul.f32 %v3670, 0.17677669
      %v3701 = vmul.f32 %v3675, 0.17677669
      %v3702 = vmul.f32 %v3680, 0.17677669
      %v3703 = vmul.f32 %v3685, 0.17677669
      %v3704 = vadd.f32 %v3688, %v3455
      %v3705 = vadd.f32 %v3689, %v3456
      %v3706 = vadd.f32 %v3690, %v3457
      %v3707 = vadd.f32 %v3691, %v3458
      %v3708 = vadd.f32 %v3692, %v3459
      %v3709 = vadd.f32 %v3693, %v3460
      %v3710 = vadd.f32 %v3694, %v3461
      %v3711 = vadd.f32 %v3695, %v3462
      %v3712 = vadd.f32 %v3696, %v3463
      %v3713 = vadd.f32 %v3697, %v3464
      %v3714 = vadd.f32 %v3698, %v3465
      %v3715 = vadd.f32 %v3699, %v3466
      %v3716 = vadd.f32 %v3700, %v3467
      %v3717 = vadd.f32 %v3701, %v3468
      %v3718 = vadd.f32 %v3702, %v3469
      %v3719 = vadd.f32 %v3703, %v3470
      %vm3720 = vcmask 523264
      %v3721 = vsel %vm3720, %v3704, -inf
      %3722 = vmax.xlane.f32.xlu0 %v3721
      %v3723 = vpop.xlane.xlu0 %3722
      %v3724 = vsel %vm3720, %v3705, -inf
      %3725 = vmax.xlane.f32.xlu0 %v3724
      %v3726 = vpop.xlane.xlu0 %3725
      %v3727 = vsel %vm3720, %v3706, -inf
      %3728 = vmax.xlane.f32.xlu0 %v3727
      %v3729 = vpop.xlane.xlu0 %3728
      %v3730 = vsel %vm3720, %v3707, -inf
      %3731 = vmax.xlane.f32.xlu0 %v3730
      %v3732 = vpop.xlane.xlu0 %3731
      %v3733 = vsel %vm3720, %v3708, -inf
      %3734 = vmax.xlane.f32.xlu0 %v3733
      %v3735 = vpop.xlane.xlu0 %3734
      %v3736 = vsel %vm3720, %v3709, -inf
      %3737 = vmax.xlane.f32.xlu0 %v3736
      %v3738 = vpop.xlane.xlu0 %3737
      %v3739 = vsel %vm3720, %v3710, -inf
      %3740 = vmax.xlane.f32.xlu0 %v3739
      %v3741 = vpop.xlane.xlu0 %3740
      %v3742 = vsel %vm3720, %v3711, -inf
      %3743 = vmax.xlane.f32.xlu0 %v3742
      %v3744 = vpop.xlane.xlu0 %3743
      %v3745 = vsel %vm3720, %v3712, -inf
      %3746 = vmax.xlane.f32.xlu0 %v3745
      %v3747 = vpop.xlane.xlu0 %3746
      %v3748 = vsel %vm3720, %v3713, -inf
      %3749 = vmax.xlane.f32.xlu0 %v3748
      %v3750 = vpop.xlane.xlu0 %3749
      %v3751 = vsel %vm3720, %v3714, -inf
      %3752 = vmax.xlane.f32.xlu0 %v3751
      %v3753 = vpop.xlane.xlu0 %3752
      %v3754 = vsel %vm3720, %v3715, -inf
      %3755 = vmax.xlane.f32.xlu0 %v3754
      %v3756 = vpop.xlane.xlu0 %3755
      %v3757 = vsel %vm3720, %v3716, -inf
      %3758 = vmax.xlane.f32.xlu0 %v3757
      %v3759 = vpop.xlane.xlu0 %3758
      %v3760 = vsel %vm3720, %v3717, -inf
      %3761 = vmax.xlane.f32.xlu0 %v3760
      %v3762 = vpop.xlane.xlu0 %3761
      %v3763 = vsel %vm3720, %v3718, -inf
      %3764 = vmax.xlane.f32.xlu0 %v3763
      %v3765 = vpop.xlane.xlu0 %3764
      %v3766 = vsel %vm3720, %v3719, -inf
      %3767 = vmax.xlane.f32.xlu0 %v3766
      %v3768 = vpop.xlane.xlu0 %3767
      %v3769 = vsub.f32 %v3704, %v3723
      %v3770 = vsub.f32 %v3705, %v3726
      %v3771 = vsub.f32 %v3706, %v3729
      %v3772 = vsub.f32 %v3707, %v3732
      %v3773 = vsub.f32 %v3708, %v3735
      %v3774 = vsub.f32 %v3709, %v3738
      %v3775 = vsub.f32 %v3710, %v3741
      %v3776 = vsub.f32 %v3711, %v3744
      %v3777 = vsub.f32 %v3712, %v3747
      %v3778 = vsub.f32 %v3713, %v3750
      %v3779 = vsub.f32 %v3714, %v3753
      %v3780 = vsub.f32 %v3715, %v3756
      %v3781 = vsub.f32 %v3716, %v3759
      %v3782 = vsub.f32 %v3717, %v3762
      %v3783 = vsub.f32 %v3718, %v3765
      %v3784 = vsub.f32 %v3719, %v3768
      %v3785 = vmul.f32 %v3769, 1.442695
      %v3786 = vpow.pop %v3785
      %v3787 = vmul.f32 %v3770, 1.442695
      %v3788 = vpow.pop %v3787
      %v3789 = vmul.f32 %v3771, 1.442695
      %v3790 = vpow.pop %v3789
      %v3791 = vmul.f32 %v3772, 1.442695
      %v3792 = vpow.pop %v3791
      %v3793 = vmul.f32 %v3773, 1.442695
      %v3794 = vpow.pop %v3793
      %v3795 = vmul.f32 %v3774, 1.442695
      %v3796 = vpow.pop %v3795
      %v3797 = vmul.f32 %v3775, 1.442695
      %v3798 = vpow.pop %v3797
      %v3799 = vmul.f32 %v3776, 1.442695
      %v3800 = vpow.pop %v3799
      %v3801 = vmul.f32 %v3777, 1.442695
      %v3802 = vpow.pop %v3801
      %v3803 = vmul.f32 %v3778, 1.442695
      %v3804 = vpow.pop %v3803
      %v3805 = vmul.f32 %v3779, 1.442695
      %v3806 = vpow.pop %v3805
      %v3807 = vmul.f32 %v3780, 1.442695
      %v3808 = vpow.pop %v3807
      %v3809 = vmul.f32 %v3781, 1.442695
      %v3810 = vpow.pop %v3809
      %v3811 = vmul.f32 %v3782, 1.442695
      %v3812 = vpow.pop %v3811
      %v3813 = vmul.f32 %v3783, 1.442695
      %v3814 = vpow.pop %v3813
      %v3815 = vmul.f32 %v3784, 1.442695
      %v3816 = vpow.pop %v3815
      %v3817 = vsel %vm3720, %v3786, 0.0
      %3818 = vadd.xlane.f32.xlu0 %v3817
      %v3819 = vpop.xlane.xlu0 %3818
      %v3820 = vsel %vm3720, %v3788, 0.0
      %3821 = vadd.xlane.f32.xlu0 %v3820
      %v3822 = vpop.xlane.xlu0 %3821
      %v3823 = vsel %vm3720, %v3790, 0.0
      %3824 = vadd.xlane.f32.xlu0 %v3823
      %v3825 = vpop.xlane.xlu0 %3824
      %v3826 = vsel %vm3720, %v3792, 0.0
      %3827 = vadd.xlane.f32.xlu0 %v3826
      %v3828 = vpop.xlane.xlu0 %3827
      %v3829 = vsel %vm3720, %v3794, 0.0
      %3830 = vadd.xlane.f32.xlu0 %v3829
      %v3831 = vpop.xlane.xlu0 %3830
      %v3832 = vsel %vm3720, %v3796, 0.0
      %3833 = vadd.xlane.f32.xlu0 %v3832
      %v3834 = vpop.xlane.xlu0 %3833
      %v3835 = vsel %vm3720, %v3798, 0.0
      %3836 = vadd.xlane.f32.xlu0 %v3835
      %v3837 = vpop.xlane.xlu0 %3836
      %v3838 = vsel %vm3720, %v3800, 0.0
      %3839 = vadd.xlane.f32.xlu0 %v3838
      %v3840 = vpop.xlane.xlu0 %3839
      %v3841 = vsel %vm3720, %v3802, 0.0
      %3842 = vadd.xlane.f32.xlu0 %v3841
      %v3843 = vpop.xlane.xlu0 %3842
      %v3844 = vsel %vm3720, %v3804, 0.0
      %3845 = vadd.xlane.f32.xlu0 %v3844
      %v3846 = vpop.xlane.xlu0 %3845
      %v3847 = vsel %vm3720, %v3806, 0.0
      %3848 = vadd.xlane.f32.xlu0 %v3847
      %v3849 = vpop.xlane.xlu0 %3848
      %v3850 = vsel %vm3720, %v3808, 0.0
      %3851 = vadd.xlane.f32.xlu0 %v3850
      %v3852 = vpop.xlane.xlu0 %3851
      %v3853 = vsel %vm3720, %v3810, 0.0
      %3854 = vadd.xlane.f32.xlu0 %v3853
      %v3855 = vpop.xlane.xlu0 %3854
      %v3856 = vsel %vm3720, %v3812, 0.0
      %3857 = vadd.xlane.f32.xlu0 %v3856
      %v3858 = vpop.xlane.xlu0 %3857
      %v3859 = vsel %vm3720, %v3814, 0.0
      %3860 = vadd.xlane.f32.xlu0 %v3859
      %v3861 = vpop.xlane.xlu0 %3860
      %v3862 = vsel %vm3720, %v3816, 0.0
      %3863 = vadd.xlane.f32.xlu0 %v3862
      %v3864 = vpop.xlane.xlu0 %3863
      %v3865 = vrcp.pop %v3819
      %v3866 = vrcp.pop %v3822
      %v3867 = vrcp.pop %v3825
      %v3868 = vrcp.pop %v3828
      %v3869 = vrcp.pop %v3831
      %v3870 = vrcp.pop %v3834
      %v3871 = vrcp.pop %v3837
      %v3872 = vrcp.pop %v3840
      %v3873 = vrcp.pop %v3843
      %v3874 = vrcp.pop %v3846
      %v3875 = vrcp.pop %v3849
      %v3876 = vrcp.pop %v3852
      %v3877 = vrcp.pop %v3855
      %v3878 = vrcp.pop %v3858
      %v3879 = vrcp.pop %v3861
      %v3880 = vrcp.pop %v3864
      %v3881 = vmul.f32 %v3786, %v3865
      %v3882 = vmul.f32 %v3788, %v3866
      %v3883 = vmul.f32 %v3790, %v3867
      %v3884 = vmul.f32 %v3792, %v3868
      %v3885 = vmul.f32 %v3794, %v3869
      %v3886 = vmul.f32 %v3796, %v3870
      %v3887 = vmul.f32 %v3798, %v3871
      %v3888 = vmul.f32 %v3800, %v3872
      %v3889 = vmul.f32 %v3802, %v3873
      %v3890 = vmul.f32 %v3804, %v3874
      %v3891 = vmul.f32 %v3806, %v3875
      %v3892 = vmul.f32 %v3808, %v3876
      %v3893 = vmul.f32 %v3810, %v3877
      %v3894 = vmul.f32 %v3812, %v3878
      %v3895 = vmul.f32 %v3814, %v3879
      %v3896 = vmul.f32 %v3816, %v3880
      %v3898 = vsel %vm3720, %v3881, 0
      %v3901 = vsel %vm3720, %v3882, 0
      %v3904 = vsel %vm3720, %v3883, 0
      %v3907 = vsel %vm3720, %v3884, 0
      %v3910 = vsel %vm3720, %v3885, 0
      %v3913 = vsel %vm3720, %v3886, 0
      %v3916 = vsel %vm3720, %v3887, 0
      %v3919 = vsel %vm3720, %v3888, 0
      %v3922 = vsel %vm3720, %v3889, 0
      %v3925 = vsel %vm3720, %v3890, 0
      %v3928 = vsel %vm3720, %v3891, 0
      %v3931 = vsel %vm3720, %v3892, 0
      %v3934 = vsel %vm3720, %v3893, 0
      %v3937 = vsel %vm3720, %v3894, 0
      %v3940 = vsel %vm3720, %v3895, 0
      %v3943 = vsel %vm3720, %v3896, 0
      %3945 = vmatprep.subr.mxu0 0.0
      %3946 = vmatpush1.msra.mxu0 %v3417
      %3947 = vmatprep.subr.mxu0 0.0
      %3948 = vmatpush1.msra.mxu0 %v3422
      %3949 = vmatprep.subr.mxu0 0.0
      %3950 = vmatpush1.msra.mxu0 %v3427
      %3951 = vmatprep.subr.mxu0 0.0
      %3952 = vmatpush1.msra.mxu0 %v3432
      %3953 = vmatprep.subr.mxu0 0.0
      %3954 = vmatpush1.msra.mxu0 %v3437
      %3955 = vmatprep.subr.mxu0 0.0
      %3956 = vmatpush1.msra.mxu0 %v3442
      %3957 = vmatprep.subr.mxu0 0.0
      %3958 = vmatpush1.msra.mxu0 %v3447
      %3959 = vmatprep.subr.mxu0 0.0
      %3960 = vmatpush1.msra.mxu0 %v3452
      %3961 = vmatprep.subr.mxu0 0.0
      %3962 = vmatpush1.msra.mxu0 0.0
      %3963 = vmatprep.subr.mxu0 0.0
      %3964 = vmatpush1.msra.mxu0 0.0
      %3965 = vmatprep.subr.mxu0 0.0
      %3966 = vmatpush1.msra.mxu0 0.0
      %3967 = vmatprep.subr.mxu0 0.0
      %3968 = vmatpush1.msra.mxu0 0.0
      %3969 = vmatprep.subr.mxu0 0.0
      %3970 = vmatpush1.msra.mxu0 0.0
      %3971 = vmatprep.subr.mxu0 0.0
      %3972 = vmatpush1.msra.mxu0 0.0
      %3973 = vmatprep.subr.mxu0 0.0
      %3974 = vmatpush1.msra.mxu0 0.0
      %3975 = vmatprep.subr.mxu0 0.0
      %3976 = vmatpush1.msra.mxu0 0.0
      %3977 = vmatprep.subr.mxu0 0.0
      %3978 = vmatpush1.msra.mxu0 0.0
      %3979 = vmatprep.subr.mxu0 0.0
      %3980 = vmatpush1.msra.mxu0 0.0
      %3981 = vmatprep.subr.mxu0 0.0
      %3982 = vmatpush1.msra.mxu0 0.0
      %3983 = vmatprep.subr.mxu0 0.0
      %3984 = vmatpush1.msra.mxu0 0.0
      %3985 = vmatprep.subr.mxu0 0.0
      %3986 = vmatpush1.msra.mxu0 0.0
      %3987 = vmatprep.subr.mxu0 0.0
      %3988 = vmatpush1.msra.mxu0 0.0
      %3989 = vmatprep.subr.mxu0 0.0
      %3990 = vmatpush1.msra.mxu0 0.0
      %3991 = vmatprep.subr.mxu0 0.0
      %3992 = vmatpush1.msra.mxu0 0.0
      %3993 = vmatprep.subr.mxu0 0.0
      %3994 = vmatpush1.msra.mxu0 0.0
      %3995 = vmatprep.subr.mxu0 0.0
      %3996 = vmatpush1.msra.mxu0 0.0
      %3997 = vmatprep.subr.mxu0 0.0
      %3998 = vmatpush1.msra.mxu0 0.0
      %3999 = vmatprep.subr.mxu0 0.0
      %4000 = vmatpush1.msra.mxu0 0.0
      %4001 = vmatprep.subr.mxu0 0.0
      %4002 = vmatpush1.msra.mxu0 0.0
      %4003 = vmatprep.subr.mxu0 0.0
      %4004 = vmatpush1.msra.mxu0 0.0
      %4005 = vmatprep.subr.mxu0 0.0
      %4006 = vmatpush1.msra.mxu0 0.0
      %4007 = vmatprep.subr.mxu0 0.0
      %4008 = vmatpush1.msra.mxu0 0.0
      %4009 = vmatprep.mubr.f32.mxu0 0.0
      %4010 = vmatmul.mubr.f32.gmra.mrb[0].mxu0 %v3898
      %v4011 = vpop.f32.mrb[0].mxu0
      %v4012 = vadd.f32 0.0, %v4011
      %v4013 = vpop.f32.mrb[0].mxu0
      %4014 = vmatprep.mubr.f32.mxu0 0.0
      %4015 = vmatmul.mubr.f32.gmra.mrb[0].mxu0 %v3901
      %v4016 = vpop.f32.mrb[0].mxu0
      %v4017 = vadd.f32 0.0, %v4016
      %v4018 = vpop.f32.mrb[0].mxu0
      %4019 = vmatprep.mubr.f32.mxu0 0.0
      %4020 = vmatmul.mubr.f32.gmra.mrb[0].mxu0 %v3904
      %v4021 = vpop.f32.mrb[0].mxu0
      %v4022 = vadd.f32 0.0, %v4021
      %v4023 = vpop.f32.mrb[0].mxu0
      %4024 = vmatprep.mubr.f32.mxu0 0.0
      %4025 = vmatmul.mubr.f32.gmra.mrb[0].mxu0 %v3907
      %v4026 = vpop.f32.mrb[0].mxu0
      %v4027 = vadd.f32 0.0, %v4026
      %v4028 = vpop.f32.mrb[0].mxu0
      %4029 = vmatprep.mubr.f32.mxu0 0.0
      %4030 = vmatmul.mubr.f32.gmra.mrb[0].mxu0 %v3910
      %v4031 = vpop.f32.mrb[0].mxu0
      %v4032 = vadd.f32 0.0, %v4031
      %v4033 = vpop.f32.mrb[0].mxu0
      %4034 = vmatprep.mubr.f32.mxu0 0.0
      %4035 = vmatmul.mubr.f32.gmra.mrb[0].mxu0 %v3913
      %v4036 = vpop.f32.mrb[0].mxu0
      %v4037 = vadd.f32 0.0, %v4036
      %v4038 = vpop.f32.mrb[0].mxu0
      %4039 = vmatprep.mubr.f32.mxu0 0.0
      %4040 = vmatmul.mubr.f32.gmra.mrb[0].mxu0 %v3916
      %v4041 = vpop.f32.mrb[0].mxu0
      %v4042 = vadd.f32 0.0, %v4041
      %v4043 = vpop.f32.mrb[0].mxu0
      %4044 = vmatprep.mubr.f32.mxu0 0.0
      %4045 = vmatmul.mubr.f32.gmra.mrb[0].mxu0 %v3919
      %v4046 = vpop.f32.mrb[0].mxu0
      %v4047 = vadd.f32 0.0, %v4046
      %v4048 = vpop.f32.mrb[0].mxu0
      %4049 = vmatprep.mubr.f32.mxu0 0.0
      %4050 = vmatmul.mubr.f32.gmra.mrb[0].mxu0 %v3922
      %v4051 = vpop.f32.mrb[0].mxu0
      %v4052 = vadd.f32 0.0, %v4051
      %v4053 = vpop.f32.mrb[0].mxu0
      %4054 = vmatprep.mubr.f32.mxu0 0.0
      %4055 = vmatmul.mubr.f32.gmra.mrb[0].mxu0 %v3925
      %v4056 = vpop.f32.mrb[0].mxu0
      %v4057 = vadd.f32 0.0, %v4056
      %v4058 = vpop.f32.mrb[0].mxu0
      %4059 = vmatprep.mubr.f32.mxu0 0.0
      %4060 = vmatmul.mubr.f32.gmra.mrb[0].mxu0 %v3928
      %v4061 = vpop.f32.mrb[0].mxu0
      %v4062 = vadd.f32 0.0, %v4061
      %v4063 = vpop.f32.mrb[0].mxu0
      %4064 = vmatprep.mubr.f32.mxu0 0.0
      %4065 = vmatmul.mubr.f32.gmra.mrb[0].mxu0 %v3931
      %v4066 = vpop.f32.mrb[0].mxu0
      %v4067 = vadd.f32 0.0, %v4066
      %v4068 = vpop.f32.mrb[0].mxu0
      %4069 = vmatprep.mubr.f32.mxu0 0.0
      %4070 = vmatmul.mubr.f32.gmra.mrb[0].mxu0 %v3934
      %v4071 = vpop.f32.mrb[0].mxu0
      %v4072 = vadd.f32 0.0, %v4071
      %v4073 = vpop.f32.mrb[0].mxu0
      %4074 = vmatprep.mubr.f32.mxu0 0.0
      %4075 = vmatmul.mubr.f32.gmra.mrb[0].mxu0 %v3937
      %v4076 = vpop.f32.mrb[0].mxu0
      %v4077 = vadd.f32 0.0, %v4076
      %v4078 = vpop.f32.mrb[0].mxu0
      %4079 = vmatprep.mubr.f32.mxu0 0.0
      %4080 = vmatmul.mubr.f32.gmra.mrb[0].mxu0 %v3940
      %v4081 = vpop.f32.mrb[0].mxu0
      %v4082 = vadd.f32 0.0, %v4081
      %v4083 = vpop.f32.mrb[0].mxu0
      %4084 = vmatprep.mubr.f32.mxu0 0.0
      %4085 = vmatmul.mubr.f32.gmra.mrb[0].mxu0 %v3943
      %v4086 = vpop.f32.mrb[0].mxu0
      %v4087 = vadd.f32 0.0, %v4086
      %v4088 = vpop.f32.mrb[0].mxu0
      %4089 = vdwg.mxu0
      %v4090 = vadd.f32 %v3121, %v4012
      %v4091 = vadd.f32 %v3126, %v4017
      %v4092 = vadd.f32 %v3131, %v4022
      %v4093 = vadd.f32 %v3136, %v4027
      %v4094 = vadd.f32 %v3141, %v4032
      %v4095 = vadd.f32 %v3146, %v4037
      %v4096 = vadd.f32 %v3151, %v4042
      %v4097 = vadd.f32 %v3156, %v4047
      %v4098 = vadd.f32 %v3161, %v4052
      %v4099 = vadd.f32 %v3166, %v4057
      %v4100 = vadd.f32 %v3171, %v4062
      %v4101 = vadd.f32 %v3176, %v4067
      %v4102 = vadd.f32 %v3181, %v4072
      %v4103 = vadd.f32 %v3186, %v4077
      %v4104 = vadd.f32 %v3191, %v4082
      %v4105 = vadd.f32 %v3196, %v4087
      %4106 = vrot.lane.b32.xlu0 %v3121, 120
      %v4107 = vpop.permute.xlu0 %4106
      %4108 = vrot.lane.b32.xlu0 %v3126, 120
      %v4109 = vpop.permute.xlu0 %4108
      %4110 = vrot.lane.b32.xlu0 %v3131, 120
      %v4111 = vpop.permute.xlu0 %4110
      %4112 = vrot.lane.b32.xlu0 %v3136, 120
      %v4113 = vpop.permute.xlu0 %4112
      %4114 = vrot.lane.b32.xlu0 %v3141, 120
      %v4115 = vpop.permute.xlu0 %4114
      %4116 = vrot.lane.b32.xlu0 %v3146, 120
      %v4117 = vpop.permute.xlu0 %4116
      %4118 = vrot.lane.b32.xlu0 %v3151, 120
      %v4119 = vpop.permute.xlu0 %4118
      %4120 = vrot.lane.b32.xlu0 %v3156, 120
      %v4121 = vpop.permute.xlu0 %4120
      %4122 = vrot.lane.b32.xlu0 %v3161, 120
      %v4123 = vpop.permute.xlu0 %4122
      %4124 = vrot.lane.b32.xlu0 %v3166, 120
      %v4125 = vpop.permute.xlu0 %4124
      %4126 = vrot.lane.b32.xlu0 %v3171, 120
      %v4127 = vpop.permute.xlu0 %4126
      %4128 = vrot.lane.b32.xlu0 %v3176, 120
      %v4129 = vpop.permute.xlu0 %4128
      %4130 = vrot.lane.b32.xlu0 %v3181, 120
      %v4131 = vpop.permute.xlu0 %4130
      %4132 = vrot.lane.b32.xlu0 %v3186, 120
      %v4133 = vpop.permute.xlu0 %4132
      %4134 = vrot.lane.b32.xlu0 %v3191, 120
      %v4135 = vpop.permute.xlu0 %4134
      %4136 = vrot.lane.b32.xlu0 %v3196, 120
      %v4137 = vpop.permute.xlu0 %4136
      %4138 = vrot.lane.b32.xlu0 %v3301, 120
      %v4139 = vpop.permute.xlu0 %4138
      %4140 = vrot.lane.b32.xlu0 %v3306, 120
      %v4141 = vpop.permute.xlu0 %4140
      %4142 = vrot.lane.b32.xlu0 %v3311, 120
      %v4143 = vpop.permute.xlu0 %4142
      %4144 = vrot.lane.b32.xlu0 %v3316, 120
      %v4145 = vpop.permute.xlu0 %4144
      %4146 = vrot.lane.b32.xlu0 %v3321, 120
      %v4147 = vpop.permute.xlu0 %4146
      %4148 = vrot.lane.b32.xlu0 %v3326, 120
      %v4149 = vpop.permute.xlu0 %4148
      %4150 = vrot.lane.b32.xlu0 %v3331, 120
      %v4151 = vpop.permute.xlu0 %4150
      %4152 = vrot.lane.b32.xlu0 %v3336, 120
      %v4153 = vpop.permute.xlu0 %4152
      %v4154 = vsel %vm1022, %v4107, 0
      %v4156 = vsel %vm1022, %v4109, 0
      %v4158 = vsel %vm1022, %v4111, 0
      %v4160 = vsel %vm1022, %v4113, 0
      %v4162 = vsel %vm1022, %v4115, 0
      %v4164 = vsel %vm1022, %v4117, 0
      %v4166 = vsel %vm1022, %v4119, 0
      %v4168 = vsel %vm1022, %v4121, 0
      %v4170 = vsel %vm1022, %v4123, 0
      %v4172 = vsel %vm1022, %v4125, 0
      %v4174 = vsel %vm1022, %v4127, 0
      %v4176 = vsel %vm1022, %v4129, 0
      %v4178 = vsel %vm1022, %v4131, 0
      %v4180 = vsel %vm1022, %v4133, 0
      %v4182 = vsel %vm1022, %v4135, 0
      %v4184 = vsel %vm1022, %v4137, 0
      %v4186 = vsel %vm1022, %v4139, 0
      %v4188 = vsel %vm1022, %v4141, 0
      %v4190 = vsel %vm1022, %v4143, 0
      %v4192 = vsel %vm1022, %v4145, 0
      %v4194 = vsel %vm1022, %v4147, 0
      %v4196 = vsel %vm1022, %v4149, 0
      %v4198 = vsel %vm1022, %v4151, 0
      %v4200 = vsel %vm1022, %v4153, 0
      %4202 = vmatprep.subr.mxu0 0.0
      %4203 = vmatpush1.xpose.msra.mxu0 %v4186
      %4204 = vmatprep.subr.mxu0 0.0
      %4205 = vmatpush1.xpose.msra.mxu0 %v4188
      %4206 = vmatprep.subr.mxu0 0.0
      %4207 = vmatpush1.xpose.msra.mxu0 %v4190
      %4208 = vmatprep.subr.mxu0 0.0
      %4209 = vmatpush1.xpose.msra.mxu0 %v4192
      %4210 = vmatprep.subr.mxu0 0.0
      %4211 = vmatpush1.xpose.msra.mxu0 %v4194
      %4212 = vmatprep.subr.mxu0 0.0
      %4213 = vmatpush1.xpose.msra.mxu0 %v4196
      %4214 = vmatprep.subr.mxu0 0.0
      %4215 = vmatpush1.xpose.msra.mxu0 %v4198
      %4216 = vmatprep.subr.mxu0 0.0
      %4217 = vmatpush1.xpose.msra.mxu0 %v4200
      %4218 = vmatprep.subr.mxu0 0.0
      %4219 = vmatpush1.xpose.msra.mxu0 0.0
      %4220 = vmatprep.subr.mxu0 0.0
      %4221 = vmatpush1.xpose.msra.mxu0 0.0
      %4222 = vmatprep.subr.mxu0 0.0
      %4223 = vmatpush1.xpose.msra.mxu0 0.0
      %4224 = vmatprep.subr.mxu0 0.0
      %4225 = vmatpush1.xpose.msra.mxu0 0.0
      %4226 = vmatprep.subr.mxu0 0.0
      %4227 = vmatpush1.xpose.msra.mxu0 0.0
      %4228 = vmatprep.subr.mxu0 0.0
      %4229 = vmatpush1.xpose.msra.mxu0 0.0
      %4230 = vmatprep.subr.mxu0 0.0
      %4231 = vmatpush1.xpose.msra.mxu0 0.0
      %4232 = vmatprep.subr.mxu0 0.0
      %4233 = vmatpush1.xpose.msra.mxu0 0.0
      %4234 = vmatprep.subr.mxu0 0.0
      %4235 = vmatpush1.xpose.msra.mxu0 0.0
      %4236 = vmatprep.subr.mxu0 0.0
      %4237 = vmatpush1.xpose.msra.mxu0 0.0
      %4238 = vmatprep.subr.mxu0 0.0
      %4239 = vmatpush1.xpose.msra.mxu0 0.0
      %4240 = vmatprep.subr.mxu0 0.0
      %4241 = vmatpush1.xpose.msra.mxu0 0.0
      %4242 = vmatprep.subr.mxu0 0.0
      %4243 = vmatpush1.xpose.msra.mxu0 0.0
      %4244 = vmatprep.subr.mxu0 0.0
      %4245 = vmatpush1.xpose.msra.mxu0 0.0
      %4246 = vmatprep.subr.mxu0 0.0
      %4247 = vmatpush1.xpose.msra.mxu0 0.0
      %4248 = vmatprep.subr.mxu0 0.0
      %4249 = vmatpush1.xpose.msra.mxu0 0.0
      %4250 = vmatprep.subr.mxu0 0.0
      %4251 = vmatpush1.xpose.msra.mxu0 0.0
      %4252 = vmatprep.subr.mxu0 0.0
      %4253 = vmatpush1.xpose.msra.mxu0 0.0
      %4254 = vmatprep.subr.mxu0 0.0
      %4255 = vmatpush1.xpose.msra.mxu0 0.0
      %4256 = vmatprep.subr.mxu0 0.0
      %4257 = vmatpush1.xpose.msra.mxu0 0.0
      %4258 = vmatprep.subr.mxu0 0.0
      %4259 = vmatpush1.xpose.msra.mxu0 0.0
      %4260 = vmatprep.subr.mxu0 0.0
      %4261 = vmatpush1.xpose.msra.mxu0 0.0
      %4262 = vmatprep.subr.mxu0 0.0
      %4263 = vmatpush1.xpose.msra.mxu0 0.0
      %4264 = vmatprep.subr.mxu0 0.0
      %4265 = vmatpush1.xpose.msra.mxu0 0.0
      %4266 = vmatprep.mubr.f32.mxu0 0.0
      %4267 = vmatmul.mubr.f32.gmra.mrb[0].mxu0 %v4154
      %v4268 = vpop.f32.mrb[0].mxu0
      %v4269 = vadd.f32 0.0, %v4268
      %v4270 = vpop.f32.mrb[0].mxu0
      %4271 = vmatprep.mubr.f32.mxu0 0.0
      %4272 = vmatmul.mubr.f32.gmra.mrb[0].mxu0 %v4156
      %v4273 = vpop.f32.mrb[0].mxu0
      %v4274 = vadd.f32 0.0, %v4273
      %v4275 = vpop.f32.mrb[0].mxu0
      %4276 = vmatprep.mubr.f32.mxu0 0.0
      %4277 = vmatmul.mubr.f32.gmra.mrb[0].mxu0 %v4158
      %v4278 = vpop.f32.mrb[0].mxu0
      %v4279 = vadd.f32 0.0, %v4278
      %v4280 = vpop.f32.mrb[0].mxu0
      %4281 = vmatprep.mubr.f32.mxu0 0.0
      %4282 = vmatmul.mubr.f32.gmra.mrb[0].mxu0 %v4160
      %v4283 = vpop.f32.mrb[0].mxu0
      %v4284 = vadd.f32 0.0, %v4283
      %v4285 = vpop.f32.mrb[0].mxu0
      %4286 = vmatprep.mubr.f32.mxu0 0.0
      %4287 = vmatmul.mubr.f32.gmra.mrb[0].mxu0 %v4162
      %v4288 = vpop.f32.mrb[0].mxu0
      %v4289 = vadd.f32 0.0, %v4288
      %v4290 = vpop.f32.mrb[0].mxu0
      %4291 = vmatprep.mubr.f32.mxu0 0.0
      %4292 = vmatmul.mubr.f32.gmra.mrb[0].mxu0 %v4164
      %v4293 = vpop.f32.mrb[0].mxu0
      %v4294 = vadd.f32 0.0, %v4293
      %v4295 = vpop.f32.mrb[0].mxu0
      %4296 = vmatprep.mubr.f32.mxu0 0.0
      %4297 = vmatmul.mubr.f32.gmra.mrb[0].mxu0 %v4166
      %v4298 = vpop.f32.mrb[0].mxu0
      %v4299 = vadd.f32 0.0, %v4298
      %v4300 = vpop.f32.mrb[0].mxu0
      %4301 = vmatprep.mubr.f32.mxu0 0.0
      %4302 = vmatmul.mubr.f32.gmra.mrb[0].mxu0 %v4168
      %v4303 = vpop.f32.mrb[0].mxu0
      %v4304 = vadd.f32 0.0, %v4303
      %v4305 = vpop.f32.mrb[0].mxu0
      %4306 = vmatprep.mubr.f32.mxu0 0.0
      %4307 = vmatmul.mubr.f32.gmra.mrb[0].mxu0 %v4170
      %v4308 = vpop.f32.mrb[0].mxu0
      %v4309 = vadd.f32 0.0, %v4308
      %v4310 = vpop.f32.mrb[0].mxu0
      %4311 = vmatprep.mubr.f32.mxu0 0.0
      %4312 = vmatmul.mubr.f32.gmra.mrb[0].mxu0 %v4172
      %v4313 = vpop.f32.mrb[0].mxu0
      %v4314 = vadd.f32 0.0, %v4313
      %v4315 = vpop.f32.mrb[0].mxu0
      %4316 = vmatprep.mubr.f32.mxu0 0.0
      %4317 = vmatmul.mubr.f32.gmra.mrb[0].mxu0 %v4174
      %v4318 = vpop.f32.mrb[0].mxu0
      %v4319 = vadd.f32 0.0, %v4318
      %v4320 = vpop.f32.mrb[0].mxu0
      %4321 = vmatprep.mubr.f32.mxu0 0.0
      %4322 = vmatmul.mubr.f32.gmra.mrb[0].mxu0 %v4176
      %v4323 = vpop.f32.mrb[0].mxu0
      %v4324 = vadd.f32 0.0, %v4323
      %v4325 = vpop.f32.mrb[0].mxu0
      %4326 = vmatprep.mubr.f32.mxu0 0.0
      %4327 = vmatmul.mubr.f32.gmra.mrb[0].mxu0 %v4178
      %v4328 = vpop.f32.mrb[0].mxu0
      %v4329 = vadd.f32 0.0, %v4328
      %v4330 = vpop.f32.mrb[0].mxu0
      %4331 = vmatprep.mubr.f32.mxu0 0.0
      %4332 = vmatmul.mubr.f32.gmra.mrb[0].mxu0 %v4180
      %v4333 = vpop.f32.mrb[0].mxu0
      %v4334 = vadd.f32 0.0, %v4333
      %v4335 = vpop.f32.mrb[0].mxu0
      %4336 = vmatprep.mubr.f32.mxu0 0.0
      %4337 = vmatmul.mubr.f32.gmra.mrb[0].mxu0 %v4182
      %v4338 = vpop.f32.mrb[0].mxu0
      %v4339 = vadd.f32 0.0, %v4338
      %v4340 = vpop.f32.mrb[0].mxu0
      %4341 = vmatprep.mubr.f32.mxu0 0.0
      %4342 = vmatmul.mubr.f32.gmra.mrb[0].mxu0 %v4184
      %v4343 = vpop.f32.mrb[0].mxu0
      %v4344 = vadd.f32 0.0, %v4343
      %v4345 = vpop.f32.mrb[0].mxu0
      %4346 = vdwg.mxu0
      %v4347 = vmul.f32 %v4269, 0.17677669
      %v4348 = vmul.f32 %v4274, 0.17677669
      %v4349 = vmul.f32 %v4279, 0.17677669
      %v4350 = vmul.f32 %v4284, 0.17677669
      %v4351 = vmul.f32 %v4289, 0.17677669
      %v4352 = vmul.f32 %v4294, 0.17677669
      %v4353 = vmul.f32 %v4299, 0.17677669
      %v4354 = vmul.f32 %v4304, 0.17677669
      %v4355 = vmul.f32 %v4309, 0.17677669
      %v4356 = vmul.f32 %v4314, 0.17677669
      %v4357 = vmul.f32 %v4319, 0.17677669
      %v4358 = vmul.f32 %v4324, 0.17677669
      %v4359 = vmul.f32 %v4329, 0.17677669
      %v4360 = vmul.f32 %v4334, 0.17677669
      %v4361 = vmul.f32 %v4339, 0.17677669
      %v4362 = vmul.f32 %v4344, 0.17677669
      %v4363 = vadd.f32 %v4347, %v3455
      %v4364 = vadd.f32 %v4348, %v3456
      %v4365 = vadd.f32 %v4349, %v3457
      %v4366 = vadd.f32 %v4350, %v3458
      %v4367 = vadd.f32 %v4351, %v3459
      %v4368 = vadd.f32 %v4352, %v3460
      %v4369 = vadd.f32 %v4353, %v3461
      %v4370 = vadd.f32 %v4354, %v3462
      %v4371 = vadd.f32 %v4355, %v3463
      %v4372 = vadd.f32 %v4356, %v3464
      %v4373 = vadd.f32 %v4357, %v3465
      %v4374 = vadd.f32 %v4358, %v3466
      %v4375 = vadd.f32 %v4359, %v3467
      %v4376 = vadd.f32 %v4360, %v3468
      %v4377 = vadd.f32 %v4361, %v3469
      %v4378 = vadd.f32 %v4362, %v3470
      %v4379 = vsel %vm3720, %v4363, -inf
      %4380 = vmax.xlane.f32.xlu0 %v4379
      %v4381 = vpop.xlane.xlu0 %4380
      %v4382 = vsel %vm3720, %v4364, -inf
      %4383 = vmax.xlane.f32.xlu0 %v4382
      %v4384 = vpop.xlane.xlu0 %4383
      %v4385 = vsel %vm3720, %v4365, -inf
      %4386 = vmax.xlane.f32.xlu0 %v4385
      %v4387 = vpop.xlane.xlu0 %4386
      %v4388 = vsel %vm3720, %v4366, -inf
      %4389 = vmax.xlane.f32.xlu0 %v4388
      %v4390 = vpop.xlane.xlu0 %4389
      %v4391 = vsel %vm3720, %v4367, -inf
      %4392 = vmax.xlane.f32.xlu0 %v4391
      %v4393 = vpop.xlane.xlu0 %4392
      %v4394 = vsel %vm3720, %v4368, -inf
      %4395 = vmax.xlane.f32.xlu0 %v4394
      %v4396 = vpop.xlane.xlu0 %4395
      %v4397 = vsel %vm3720, %v4369, -inf
      %4398 = vmax.xlane.f32.xlu0 %v4397
      %v4399 = vpop.xlane.xlu0 %4398
      %v4400 = vsel %vm3720, %v4370, -inf
      %4401 = vmax.xlane.f32.xlu0 %v4400
      %v4402 = vpop.xlane.xlu0 %4401
      %v4403 = vsel %vm3720, %v4371, -inf
      %4404 = vmax.xlane.f32.xlu0 %v4403
      %v4405 = vpop.xlane.xlu0 %4404
      %v4406 = vsel %vm3720, %v4372, -inf
      %4407 = vmax.xlane.f32.xlu0 %v4406
      %v4408 = vpop.xlane.xlu0 %4407
      %v4409 = vsel %vm3720, %v4373, -inf
      %4410 = vmax.xlane.f32.xlu0 %v4409
      %v4411 = vpop.xlane.xlu0 %4410
      %v4412 = vsel %vm3720, %v4374, -inf
      %4413 = vmax.xlane.f32.xlu0 %v4412
      %v4414 = vpop.xlane.xlu0 %4413
      %v4415 = vsel %vm3720, %v4375, -inf
      %4416 = vmax.xlane.f32.xlu0 %v4415
      %v4417 = vpop.xlane.xlu0 %4416
      %v4418 = vsel %vm3720, %v4376, -inf
      %4419 = vmax.xlane.f32.xlu0 %v4418
      %v4420 = vpop.xlane.xlu0 %4419
      %v4421 = vsel %vm3720, %v4377, -inf
      %4422 = vmax.xlane.f32.xlu0 %v4421
      %v4423 = vpop.xlane.xlu0 %4422
      %v4424 = vsel %vm3720, %v4378, -inf
      %4425 = vmax.xlane.f32.xlu0 %v4424
      %v4426 = vpop.xlane.xlu0 %4425
      %v4427 = vsub.f32 %v4363, %v4381
      %v4428 = vsub.f32 %v4364, %v4384
      %v4429 = vsub.f32 %v4365, %v4387
      %v4430 = vsub.f32 %v4366, %v4390
      %v4431 = vsub.f32 %v4367, %v4393
      %v4432 = vsub.f32 %v4368, %v4396
      %v4433 = vsub.f32 %v4369, %v4399
      %v4434 = vsub.f32 %v4370, %v4402
      %v4435 = vsub.f32 %v4371, %v4405
      %v4436 = vsub.f32 %v4372, %v4408
      %v4437 = vsub.f32 %v4373, %v4411
      %v4438 = vsub.f32 %v4374, %v4414
      %v4439 = vsub.f32 %v4375, %v4417
      %v4440 = vsub.f32 %v4376, %v4420
      %v4441 = vsub.f32 %v4377, %v4423
      %v4442 = vsub.f32 %v4378, %v4426
      %v4443 = vmul.f32 %v4427, 1.442695
      %v4444 = vpow.pop %v4443
      %v4445 = vmul.f32 %v4428, 1.442695
      %v4446 = vpow.pop %v4445
      %v4447 = vmul.f32 %v4429, 1.442695
      %v4448 = vpow.pop %v4447
      %v4449 = vmul.f32 %v4430, 1.442695
      %v4450 = vpow.pop %v4449
      %v4451 = vmul.f32 %v4431, 1.442695
      %v4452 = vpow.pop %v4451
      %v4453 = vmul.f32 %v4432, 1.442695
      %v4454 = vpow.pop %v4453
      %v4455 = vmul.f32 %v4433, 1.442695
      %v4456 = vpow.pop %v4455
      %v4457 = vmul.f32 %v4434, 1.442695
      %v4458 = vpow.pop %v4457
      %v4459 = vmul.f32 %v4435, 1.442695
      %v4460 = vpow.pop %v4459
      %v4461 = vmul.f32 %v4436, 1.442695
      %v4462 = vpow.pop %v4461
      %v4463 = vmul.f32 %v4437, 1.442695
      %v4464 = vpow.pop %v4463
      %v4465 = vmul.f32 %v4438, 1.442695
      %v4466 = vpow.pop %v4465
      %v4467 = vmul.f32 %v4439, 1.442695
      %v4468 = vpow.pop %v4467
      %v4469 = vmul.f32 %v4440, 1.442695
      %v4470 = vpow.pop %v4469
      %v4471 = vmul.f32 %v4441, 1.442695
      %v4472 = vpow.pop %v4471
      %v4473 = vmul.f32 %v4442, 1.442695
      %v4474 = vpow.pop %v4473
      %v4475 = vsel %vm3720, %v4444, 0.0
      %4476 = vadd.xlane.f32.xlu0 %v4475
      %v4477 = vpop.xlane.xlu0 %4476
      %v4478 = vsel %vm3720, %v4446, 0.0
      %4479 = vadd.xlane.f32.xlu0 %v4478
      %v4480 = vpop.xlane.xlu0 %4479
      %v4481 = vsel %vm3720, %v4448, 0.0
      %4482 = vadd.xlane.f32.xlu0 %v4481
      %v4483 = vpop.xlane.xlu0 %4482
      %v4484 = vsel %vm3720, %v4450, 0.0
      %4485 = vadd.xlane.f32.xlu0 %v4484
      %v4486 = vpop.xlane.xlu0 %4485
      %v4487 = vsel %vm3720, %v4452, 0.0
      %4488 = vadd.xlane.f32.xlu0 %v4487
      %v4489 = vpop.xlane.xlu0 %4488
      %v4490 = vsel %vm3720, %v4454, 0.0
      %4491 = vadd.xlane.f32.xlu0 %v4490
      %v4492 = vpop.xlane.xlu0 %4491
      %v4493 = vsel %vm3720, %v4456, 0.0
      %4494 = vadd.xlane.f32.xlu0 %v4493
      %v4495 = vpop.xlane.xlu0 %4494
      %v4496 = vsel %vm3720, %v4458, 0.0
      %4497 = vadd.xlane.f32.xlu0 %v4496
      %v4498 = vpop.xlane.xlu0 %4497
      %v4499 = vsel %vm3720, %v4460, 0.0
      %4500 = vadd.xlane.f32.xlu0 %v4499
      %v4501 = vpop.xlane.xlu0 %4500
      %v4502 = vsel %vm3720, %v4462, 0.0
      %4503 = vadd.xlane.f32.xlu0 %v4502
      %v4504 = vpop.xlane.xlu0 %4503
      %v4505 = vsel %vm3720, %v4464, 0.0
      %4506 = vadd.xlane.f32.xlu0 %v4505
      %v4507 = vpop.xlane.xlu0 %4506
      %v4508 = vsel %vm3720, %v4466, 0.0
      %4509 = vadd.xlane.f32.xlu0 %v4508
      %v4510 = vpop.xlane.xlu0 %4509
      %v4511 = vsel %vm3720, %v4468, 0.0
      %4512 = vadd.xlane.f32.xlu0 %v4511
      %v4513 = vpop.xlane.xlu0 %4512
      %v4514 = vsel %vm3720, %v4470, 0.0
      %4515 = vadd.xlane.f32.xlu0 %v4514
      %v4516 = vpop.xlane.xlu0 %4515
      %v4517 = vsel %vm3720, %v4472, 0.0
      %4518 = vadd.xlane.f32.xlu0 %v4517
      %v4519 = vpop.xlane.xlu0 %4518
      %v4520 = vsel %vm3720, %v4474, 0.0
      %4521 = vadd.xlane.f32.xlu0 %v4520
      %v4522 = vpop.xlane.xlu0 %4521
      %v4523 = vrcp.pop %v4477
      %v4524 = vrcp.pop %v4480
      %v4525 = vrcp.pop %v4483
      %v4526 = vrcp.pop %v4486
      %v4527 = vrcp.pop %v4489
      %v4528 = vrcp.pop %v4492
      %v4529 = vrcp.pop %v4495
      %v4530 = vrcp.pop %v4498
      %v4531 = vrcp.pop %v4501
      %v4532 = vrcp.pop %v4504
      %v4533 = vrcp.pop %v4507
      %v4534 = vrcp.pop %v4510
      %v4535 = vrcp.pop %v4513
      %v4536 = vrcp.pop %v4516
      %v4537 = vrcp.pop %v4519
      %v4538 = vrcp.pop %v4522
      %v4539 = vmul.f32 %v4444, %v4523
      %v4540 = vmul.f32 %v4446, %v4524
      %v4541 = vmul.f32 %v4448, %v4525
      %v4542 = vmul.f32 %v4450, %v4526
      %v4543 = vmul.f32 %v4452, %v4527
      %v4544 = vmul.f32 %v4454, %v4528
      %v4545 = vmul.f32 %v4456, %v4529
      %v4546 = vmul.f32 %v4458, %v4530
      %v4547 = vmul.f32 %v4460, %v4531
      %v4548 = vmul.f32 %v4462, %v4532
      %v4549 = vmul.f32 %v4464, %v4533
      %v4550 = vmul.f32 %v4466, %v4534
      %v4551 = vmul.f32 %v4468, %v4535
      %v4552 = vmul.f32 %v4470, %v4536
      %v4553 = vmul.f32 %v4472, %v4537
      %v4554 = vmul.f32 %v4474, %v4538
      %4563 = vrot.lane.b32.xlu0 %v3417, 120
      %v4564 = vpop.permute.xlu0 %4563
      %4565 = vrot.lane.b32.xlu0 %v3422, 120
      %v4566 = vpop.permute.xlu0 %4565
      %4567 = vrot.lane.b32.xlu0 %v3427, 120
      %v4568 = vpop.permute.xlu0 %4567
      %4569 = vrot.lane.b32.xlu0 %v3432, 120
      %v4570 = vpop.permute.xlu0 %4569
      %4571 = vrot.lane.b32.xlu0 %v3437, 120
      %v4572 = vpop.permute.xlu0 %4571
      %4573 = vrot.lane.b32.xlu0 %v3442, 120
      %v4574 = vpop.permute.xlu0 %4573
      %4575 = vrot.lane.b32.xlu0 %v3447, 120
      %v4576 = vpop.permute.xlu0 %4575
      %4577 = vrot.lane.b32.xlu0 %v3452, 120
      %v4578 = vpop.permute.xlu0 %4577
      %v4588 = vsel %vm3720, %v4539, 0
      %v4591 = vsel %vm3720, %v4540, 0
      %v4594 = vsel %vm3720, %v4541, 0
      %v4597 = vsel %vm3720, %v4542, 0
      %v4600 = vsel %vm3720, %v4543, 0
      %v4603 = vsel %vm3720, %v4544, 0
      %v4606 = vsel %vm3720, %v4545, 0
      %v4609 = vsel %vm3720, %v4546, 0
      %v4612 = vsel %vm3720, %v4547, 0
      %v4615 = vsel %vm3720, %v4548, 0
      %v4618 = vsel %vm3720, %v4549, 0
      %v4621 = vsel %vm3720, %v4550, 0
      %v4624 = vsel %vm3720, %v4551, 0
      %v4627 = vsel %vm3720, %v4552, 0
      %v4630 = vsel %vm3720, %v4553, 0
      %v4633 = vsel %vm3720, %v4554, 0
      %4635 = vmatprep.subr.mxu0 0.0
      %4636 = vmatpush1.msra.mxu0 %v4564
      %4637 = vmatprep.subr.mxu0 0.0
      %4638 = vmatpush1.msra.mxu0 %v4566
      %4639 = vmatprep.subr.mxu0 0.0
      %4640 = vmatpush1.msra.mxu0 %v4568
      %4641 = vmatprep.subr.mxu0 0.0
      %4642 = vmatpush1.msra.mxu0 %v4570
      %4643 = vmatprep.subr.mxu0 0.0
      %4644 = vmatpush1.msra.mxu0 %v4572
      %4645 = vmatprep.subr.mxu0 0.0
      %4646 = vmatpush1.msra.mxu0 %v4574
      %4647 = vmatprep.subr.mxu0 0.0
      %4648 = vmatpush1.msra.mxu0 %v4576
      %4649 = vmatprep.subr.mxu0 0.0
      %4650 = vmatpush1.msra.mxu0 %v4578
      %4651 = vmatprep.subr.mxu0 0.0
      %4652 = vmatpush1.msra.mxu0 0.0
      %4653 = vmatprep.subr.mxu0 0.0
      %4654 = vmatpush1.msra.mxu0 0.0
      %4655 = vmatprep.subr.mxu0 0.0
      %4656 = vmatpush1.msra.mxu0 0.0
      %4657 = vmatprep.subr.mxu0 0.0
      %4658 = vmatpush1.msra.mxu0 0.0
      %4659 = vmatprep.subr.mxu0 0.0
      %4660 = vmatpush1.msra.mxu0 0.0
      %4661 = vmatprep.subr.mxu0 0.0
      %4662 = vmatpush1.msra.mxu0 0.0
      %4663 = vmatprep.subr.mxu0 0.0
      %4664 = vmatpush1.msra.mxu0 0.0
      %4665 = vmatprep.subr.mxu0 0.0
      %4666 = vmatpush1.msra.mxu0 0.0
      %4667 = vmatprep.subr.mxu0 0.0
      %4668 = vmatpush1.msra.mxu0 0.0
      %4669 = vmatprep.subr.mxu0 0.0
      %4670 = vmatpush1.msra.mxu0 0.0
      %4671 = vmatprep.subr.mxu0 0.0
      %4672 = vmatpush1.msra.mxu0 0.0
      %4673 = vmatprep.subr.mxu0 0.0
      %4674 = vmatpush1.msra.mxu0 0.0
      %4675 = vmatprep.subr.mxu0 0.0
      %4676 = vmatpush1.msra.mxu0 0.0
      %4677 = vmatprep.subr.mxu0 0.0
      %4678 = vmatpush1.msra.mxu0 0.0
      %4679 = vmatprep.subr.mxu0 0.0
      %4680 = vmatpush1.msra.mxu0 0.0
      %4681 = vmatprep.subr.mxu0 0.0
      %4682 = vmatpush1.msra.mxu0 0.0
      %4683 = vmatprep.subr.mxu0 0.0
      %4684 = vmatpush1.msra.mxu0 0.0
      %4685 = vmatprep.subr.mxu0 0.0
      %4686 = vmatpush1.msra.mxu0 0.0
      %4687 = vmatprep.subr.mxu0 0.0
      %4688 = vmatpush1.msra.mxu0 0.0
      %4689 = vmatprep.subr.mxu0 0.0
      %4690 = vmatpush1.msra.mxu0 0.0
      %4691 = vmatprep.subr.mxu0 0.0
      %4692 = vmatpush1.msra.mxu0 0.0
      %4693 = vmatprep.subr.mxu0 0.0
      %4694 = vmatpush1.msra.mxu0 0.0
      %4695 = vmatprep.subr.mxu0 0.0
      %4696 = vmatpush1.msra.mxu0 0.0
      %4697 = vmatprep.subr.mxu0 0.0
      %4698 = vmatpush1.msra.mxu0 0.0
      %4699 = vmatprep.mubr.f32.mxu0 0.0
      %4700 = vmatmul.mubr.f32.gmra.mrb[0].mxu0 %v4588
      %v4701 = vpop.f32.mrb[0].mxu0
      %v4702 = vadd.f32 0.0, %v4701
      %v4703 = vpop.f32.mrb[0].mxu0
      %4704 = vmatprep.mubr.f32.mxu0 0.0
      %4705 = vmatmul.mubr.f32.gmra.mrb[0].mxu0 %v4591
      %v4706 = vpop.f32.mrb[0].mxu0
      %v4707 = vadd.f32 0.0, %v4706
      %v4708 = vpop.f32.mrb[0].mxu0
      %4709 = vmatprep.mubr.f32.mxu0 0.0
      %4710 = vmatmul.mubr.f32.gmra.mrb[0].mxu0 %v4594
      %v4711 = vpop.f32.mrb[0].mxu0
      %v4712 = vadd.f32 0.0, %v4711
      %v4713 = vpop.f32.mrb[0].mxu0
      %4714 = vmatprep.mubr.f32.mxu0 0.0
      %4715 = vmatmul.mubr.f32.gmra.mrb[0].mxu0 %v4597
      %v4716 = vpop.f32.mrb[0].mxu0
      %v4717 = vadd.f32 0.0, %v4716
      %v4718 = vpop.f32.mrb[0].mxu0
      %4719 = vmatprep.mubr.f32.mxu0 0.0
      %4720 = vmatmul.mubr.f32.gmra.mrb[0].mxu0 %v4600
      %v4721 = vpop.f32.mrb[0].mxu0
      %v4722 = vadd.f32 0.0, %v4721
      %v4723 = vpop.f32.mrb[0].mxu0
      %4724 = vmatprep.mubr.f32.mxu0 0.0
      %4725 = vmatmul.mubr.f32.gmra.mrb[0].mxu0 %v4603
      %v4726 = vpop.f32.mrb[0].mxu0
      %v4727 = vadd.f32 0.0, %v4726
      %v4728 = vpop.f32.mrb[0].mxu0
      %4729 = vmatprep.mubr.f32.mxu0 0.0
      %4730 = vmatmul.mubr.f32.gmra.mrb[0].mxu0 %v4606
      %v4731 = vpop.f32.mrb[0].mxu0
      %v4732 = vadd.f32 0.0, %v4731
      %v4733 = vpop.f32.mrb[0].mxu0
      %4734 = vmatprep.mubr.f32.mxu0 0.0
      %4735 = vmatmul.mubr.f32.gmra.mrb[0].mxu0 %v4609
      %v4736 = vpop.f32.mrb[0].mxu0
      %v4737 = vadd.f32 0.0, %v4736
      %v4738 = vpop.f32.mrb[0].mxu0
      %4739 = vmatprep.mubr.f32.mxu0 0.0
      %4740 = vmatmul.mubr.f32.gmra.mrb[0].mxu0 %v4612
      %v4741 = vpop.f32.mrb[0].mxu0
      %v4742 = vadd.f32 0.0, %v4741
      %v4743 = vpop.f32.mrb[0].mxu0
      %4744 = vmatprep.mubr.f32.mxu0 0.0
      %4745 = vmatmul.mubr.f32.gmra.mrb[0].mxu0 %v4615
      %v4746 = vpop.f32.mrb[0].mxu0
      %v4747 = vadd.f32 0.0, %v4746
      %v4748 = vpop.f32.mrb[0].mxu0
      %4749 = vmatprep.mubr.f32.mxu0 0.0
      %4750 = vmatmul.mubr.f32.gmra.mrb[0].mxu0 %v4618
      %v4751 = vpop.f32.mrb[0].mxu0
      %v4752 = vadd.f32 0.0, %v4751
      %v4753 = vpop.f32.mrb[0].mxu0
      %4754 = vmatprep.mubr.f32.mxu0 0.0
      %4755 = vmatmul.mubr.f32.gmra.mrb[0].mxu0 %v4621
      %v4756 = vpop.f32.mrb[0].mxu0
      %v4757 = vadd.f32 0.0, %v4756
      %v4758 = vpop.f32.mrb[0].mxu0
      %4759 = vmatprep.mubr.f32.mxu0 0.0
      %4760 = vmatmul.mubr.f32.gmra.mrb[0].mxu0 %v4624
      %v4761 = vpop.f32.mrb[0].mxu0
      %v4762 = vadd.f32 0.0, %v4761
      %v4763 = vpop.f32.mrb[0].mxu0
      %4764 = vmatprep.mubr.f32.mxu0 0.0
      %4765 = vmatmul.mubr.f32.gmra.mrb[0].mxu0 %v4627
      %v4766 = vpop.f32.mrb[0].mxu0
      %v4767 = vadd.f32 0.0, %v4766
      %v4768 = vpop.f32.mrb[0].mxu0
      %4769 = vmatprep.mubr.f32.mxu0 0.0
      %4770 = vmatmul.mubr.f32.gmra.mrb[0].mxu0 %v4630
      %v4771 = vpop.f32.mrb[0].mxu0
      %v4772 = vadd.f32 0.0, %v4771
      %v4773 = vpop.f32.mrb[0].mxu0
      %4774 = vmatprep.mubr.f32.mxu0 0.0
      %4775 = vmatmul.mubr.f32.gmra.mrb[0].mxu0 %v4633
      %v4776 = vpop.f32.mrb[0].mxu0
      %v4777 = vadd.f32 0.0, %v4776
      %v4778 = vpop.f32.mrb[0].mxu0
      %4779 = vdwg.mxu0
      %4796 = vrot.lane.b32.xlu0 %v4702, 8
      %v4797 = vpop.permute.xlu0 %4796
      %4798 = vrot.lane.b32.xlu0 %v4707, 8
      %v4799 = vpop.permute.xlu0 %4798
      %4800 = vrot.lane.b32.xlu0 %v4712, 8
      %v4801 = vpop.permute.xlu0 %4800
      %4802 = vrot.lane.b32.xlu0 %v4717, 8
      %v4803 = vpop.permute.xlu0 %4802
      %4804 = vrot.lane.b32.xlu0 %v4722, 8
      %v4805 = vpop.permute.xlu0 %4804
      %4806 = vrot.lane.b32.xlu0 %v4727, 8
      %v4807 = vpop.permute.xlu0 %4806
      %4808 = vrot.lane.b32.xlu0 %v4732, 8
      %v4809 = vpop.permute.xlu0 %4808
      %4810 = vrot.lane.b32.xlu0 %v4737, 8
      %v4811 = vpop.permute.xlu0 %4810
      %4812 = vrot.lane.b32.xlu0 %v4742, 8
      %v4813 = vpop.permute.xlu0 %4812
      %4814 = vrot.lane.b32.xlu0 %v4747, 8
      %v4815 = vpop.permute.xlu0 %4814
      %4816 = vrot.lane.b32.xlu0 %v4752, 8
      %v4817 = vpop.permute.xlu0 %4816
      %4818 = vrot.lane.b32.xlu0 %v4757, 8
      %v4819 = vpop.permute.xlu0 %4818
      %4820 = vrot.lane.b32.xlu0 %v4762, 8
      %v4821 = vpop.permute.xlu0 %4820
      %4822 = vrot.lane.b32.xlu0 %v4767, 8
      %v4823 = vpop.permute.xlu0 %4822
      %4824 = vrot.lane.b32.xlu0 %v4772, 8
      %v4825 = vpop.permute.xlu0 %4824
      %4826 = vrot.lane.b32.xlu0 %v4777, 8
      %v4827 = vpop.permute.xlu0 %4826
      %v4844 = vadd.f32 %v3121, %v4797
      %v4845 = vadd.f32 %v3126, %v4799
      %v4846 = vadd.f32 %v3131, %v4801
      %v4847 = vadd.f32 %v3136, %v4803
      %v4848 = vadd.f32 %v3141, %v4805
      %v4849 = vadd.f32 %v3146, %v4807
      %v4850 = vadd.f32 %v3151, %v4809
      %v4851 = vadd.f32 %v3156, %v4811
      %v4852 = vadd.f32 %v3161, %v4813
      %v4853 = vadd.f32 %v3166, %v4815
      %v4854 = vadd.f32 %v3171, %v4817
      %v4855 = vadd.f32 %v3176, %v4819
      %v4856 = vadd.f32 %v3181, %v4821
      %v4857 = vadd.f32 %v3186, %v4823
      %v4858 = vadd.f32 %v3191, %v4825
      %v4859 = vadd.f32 %v3196, %v4827
      %4860 = vrot.lane.b32.xlu0 %v3121, 112
      %v4861 = vpop.permute.xlu0 %4860
      %4862 = vrot.lane.b32.xlu0 %v3126, 112
      %v4863 = vpop.permute.xlu0 %4862
      %4864 = vrot.lane.b32.xlu0 %v3131, 112
      %v4865 = vpop.permute.xlu0 %4864
      %4866 = vrot.lane.b32.xlu0 %v3136, 112
      %v4867 = vpop.permute.xlu0 %4866
      %4868 = vrot.lane.b32.xlu0 %v3141, 112
      %v4869 = vpop.permute.xlu0 %4868
      %4870 = vrot.lane.b32.xlu0 %v3146, 112
      %v4871 = vpop.permute.xlu0 %4870
      %4872 = vrot.lane.b32.xlu0 %v3151, 112
      %v4873 = vpop.permute.xlu0 %4872
      %4874 = vrot.lane.b32.xlu0 %v3156, 112
      %v4875 = vpop.permute.xlu0 %4874
      %4876 = vrot.lane.b32.xlu0 %v3161, 112
      %v4877 = vpop.permute.xlu0 %4876
      %4878 = vrot.lane.b32.xlu0 %v3166, 112
      %v4879 = vpop.permute.xlu0 %4878
      %4880 = vrot.lane.b32.xlu0 %v3171, 112
      %v4881 = vpop.permute.xlu0 %4880
      %4882 = vrot.lane.b32.xlu0 %v3176, 112
      %v4883 = vpop.permute.xlu0 %4882
      %4884 = vrot.lane.b32.xlu0 %v3181, 112
      %v4885 = vpop.permute.xlu0 %4884
      %4886 = vrot.lane.b32.xlu0 %v3186, 112
      %v4887 = vpop.permute.xlu0 %4886
      %4888 = vrot.lane.b32.xlu0 %v3191, 112
      %v4889 = vpop.permute.xlu0 %4888
      %4890 = vrot.lane.b32.xlu0 %v3196, 112
      %v4891 = vpop.permute.xlu0 %4890
      %4892 = vrot.lane.b32.xlu0 %v3301, 112
      %v4893 = vpop.permute.xlu0 %4892
      %4894 = vrot.lane.b32.xlu0 %v3306, 112
      %v4895 = vpop.permute.xlu0 %4894
      %4896 = vrot.lane.b32.xlu0 %v3311, 112
      %v4897 = vpop.permute.xlu0 %4896
      %4898 = vrot.lane.b32.xlu0 %v3316, 112
      %v4899 = vpop.permute.xlu0 %4898
      %4900 = vrot.lane.b32.xlu0 %v3321, 112
      %v4901 = vpop.permute.xlu0 %4900
      %4902 = vrot.lane.b32.xlu0 %v3326, 112
      %v4903 = vpop.permute.xlu0 %4902
      %4904 = vrot.lane.b32.xlu0 %v3331, 112
      %v4905 = vpop.permute.xlu0 %4904
      %4906 = vrot.lane.b32.xlu0 %v3336, 112
      %v4907 = vpop.permute.xlu0 %4906
      %v4908 = vsel %vm1022, %v4861, 0
      %v4910 = vsel %vm1022, %v4863, 0
      %v4912 = vsel %vm1022, %v4865, 0
      %v4914 = vsel %vm1022, %v4867, 0
      %v4916 = vsel %vm1022, %v4869, 0
      %v4918 = vsel %vm1022, %v4871, 0
      %v4920 = vsel %vm1022, %v4873, 0
      %v4922 = vsel %vm1022, %v4875, 0
      %v4924 = vsel %vm1022, %v4877, 0
      %v4926 = vsel %vm1022, %v4879, 0
      %v4928 = vsel %vm1022, %v4881, 0
      %v4930 = vsel %vm1022, %v4883, 0
      %v4932 = vsel %vm1022, %v4885, 0
      %v4934 = vsel %vm1022, %v4887, 0
      %v4936 = vsel %vm1022, %v4889, 0
      %v4938 = vsel %vm1022, %v4891, 0
      %v4940 = vsel %vm1022, %v4893, 0
      %v4942 = vsel %vm1022, %v4895, 0
      %v4944 = vsel %vm1022, %v4897, 0
      %v4946 = vsel %vm1022, %v4899, 0
      %v4948 = vsel %vm1022, %v4901, 0
      %v4950 = vsel %vm1022, %v4903, 0
      %v4952 = vsel %vm1022, %v4905, 0
      %v4954 = vsel %vm1022, %v4907, 0
      %4956 = vmatprep.subr.mxu0 0.0
      %4957 = vmatpush1.xpose.msra.mxu0 %v4940
      %4958 = vmatprep.subr.mxu0 0.0
      %4959 = vmatpush1.xpose.msra.mxu0 %v4942
      %4960 = vmatprep.subr.mxu0 0.0
      %4961 = vmatpush1.xpose.msra.mxu0 %v4944
      %4962 = vmatprep.subr.mxu0 0.0
      %4963 = vmatpush1.xpose.msra.mxu0 %v4946
      %4964 = vmatprep.subr.mxu0 0.0
      %4965 = vmatpush1.xpose.msra.mxu0 %v4948
      %4966 = vmatprep.subr.mxu0 0.0
      %4967 = vmatpush1.xpose.msra.mxu0 %v4950
      %4968 = vmatprep.subr.mxu0 0.0
      %4969 = vmatpush1.xpose.msra.mxu0 %v4952
      %4970 = vmatprep.subr.mxu0 0.0
      %4971 = vmatpush1.xpose.msra.mxu0 %v4954
      %4972 = vmatprep.subr.mxu0 0.0
      %4973 = vmatpush1.xpose.msra.mxu0 0.0
      %4974 = vmatprep.subr.mxu0 0.0
      %4975 = vmatpush1.xpose.msra.mxu0 0.0
      %4976 = vmatprep.subr.mxu0 0.0
      %4977 = vmatpush1.xpose.msra.mxu0 0.0
      %4978 = vmatprep.subr.mxu0 0.0
      %4979 = vmatpush1.xpose.msra.mxu0 0.0
      %4980 = vmatprep.subr.mxu0 0.0
      %4981 = vmatpush1.xpose.msra.mxu0 0.0
      %4982 = vmatprep.subr.mxu0 0.0
      %4983 = vmatpush1.xpose.msra.mxu0 0.0
      %4984 = vmatprep.subr.mxu0 0.0
      %4985 = vmatpush1.xpose.msra.mxu0 0.0
      %4986 = vmatprep.subr.mxu0 0.0
      %4987 = vmatpush1.xpose.msra.mxu0 0.0
      %4988 = vmatprep.subr.mxu0 0.0
      %4989 = vmatpush1.xpose.msra.mxu0 0.0
      %4990 = vmatprep.subr.mxu0 0.0
      %4991 = vmatpush1.xpose.msra.mxu0 0.0
      %4992 = vmatprep.subr.mxu0 0.0
      %4993 = vmatpush1.xpose.msra.mxu0 0.0
      %4994 = vmatprep.subr.mxu0 0.0
      %4995 = vmatpush1.xpose.msra.mxu0 0.0
      %4996 = vmatprep.subr.mxu0 0.0
      %4997 = vmatpush1.xpose.msra.mxu0 0.0
      %4998 = vmatprep.subr.mxu0 0.0
      %4999 = vmatpush1.xpose.msra.mxu0 0.0
      %5000 = vmatprep.subr.mxu0 0.0
      %5001 = vmatpush1.xpose.msra.mxu0 0.0
      %5002 = vmatprep.subr.mxu0 0.0
      %5003 = vmatpush1.xpose.msra.mxu0 0.0
      %5004 = vmatprep.subr.mxu0 0.0
      %5005 = vmatpush1.xpose.msra.mxu0 0.0
      %5006 = vmatprep.subr.mxu0 0.0
      %5007 = vmatpush1.xpose.msra.mxu0 0.0
      %5008 = vmatprep.subr.mxu0 0.0
      %5009 = vmatpush1.xpose.msra.mxu0 0.0
      %5010 = vmatprep.subr.mxu0 0.0
      %5011 = vmatpush1.xpose.msra.mxu0 0.0
      %5012 = vmatprep.subr.mxu0 0.0
      %5013 = vmatpush1.xpose.msra.mxu0 0.0
      %5014 = vmatprep.subr.mxu0 0.0
      %5015 = vmatpush1.xpose.msra.mxu0 0.0
      %5016 = vmatprep.subr.mxu0 0.0
      %5017 = vmatpush1.xpose.msra.mxu0 0.0
      %5018 = vmatprep.subr.mxu0 0.0
      %5019 = vmatpush1.xpose.msra.mxu0 0.0
      %5020 = vmatprep.mubr.f32.mxu0 0.0
      %5021 = vmatmul.mubr.f32.gmra.mrb[0].mxu0 %v4908
      %v5022 = vpop.f32.mrb[0].mxu0
      %v5023 = vadd.f32 0.0, %v5022
      %v5024 = vpop.f32.mrb[0].mxu0
      %5025 = vmatprep.mubr.f32.mxu0 0.0
      %5026 = vmatmul.mubr.f32.gmra.mrb[0].mxu0 %v4910
      %v5027 = vpop.f32.mrb[0].mxu0
      %v5028 = vadd.f32 0.0, %v5027
      %v5029 = vpop.f32.mrb[0].mxu0
      %5030 = vmatprep.mubr.f32.mxu0 0.0
      %5031 = vmatmul.mubr.f32.gmra.mrb[0].mxu0 %v4912
      %v5032 = vpop.f32.mrb[0].mxu0
      %v5033 = vadd.f32 0.0, %v5032
      %v5034 = vpop.f32.mrb[0].mxu0
      %5035 = vmatprep.mubr.f32.mxu0 0.0
      %5036 = vmatmul.mubr.f32.gmra.mrb[0].mxu0 %v4914
      %v5037 = vpop.f32.mrb[0].mxu0
      %v5038 = vadd.f32 0.0, %v5037
      %v5039 = vpop.f32.mrb[0].mxu0
      %5040 = vmatprep.mubr.f32.mxu0 0.0
      %5041 = vmatmul.mubr.f32.gmra.mrb[0].mxu0 %v4916
      %v5042 = vpop.f32.mrb[0].mxu0
      %v5043 = vadd.f32 0.0, %v5042
      %v5044 = vpop.f32.mrb[0].mxu0
      %5045 = vmatprep.mubr.f32.mxu0 0.0
      %5046 = vmatmul.mubr.f32.gmra.mrb[0].mxu0 %v4918
      %v5047 = vpop.f32.mrb[0].mxu0
      %v5048 = vadd.f32 0.0, %v5047
      %v5049 = vpop.f32.mrb[0].mxu0
      %5050 = vmatprep.mubr.f32.mxu0 0.0
      %5051 = vmatmul.mubr.f32.gmra.mrb[0].mxu0 %v4920
      %v5052 = vpop.f32.mrb[0].mxu0
      %v5053 = vadd.f32 0.0, %v5052
      %v5054 = vpop.f32.mrb[0].mxu0
      %5055 = vmatprep.mubr.f32.mxu0 0.0
      %5056 = vmatmul.mubr.f32.gmra.mrb[0].mxu0 %v4922
      %v5057 = vpop.f32.mrb[0].mxu0
      %v5058 = vadd.f32 0.0, %v5057
      %v5059 = vpop.f32.mrb[0].mxu0
      %5060 = vmatprep.mubr.f32.mxu0 0.0
      %5061 = vmatmul.mubr.f32.gmra.mrb[0].mxu0 %v4924
      %v5062 = vpop.f32.mrb[0].mxu0
      %v5063 = vadd.f32 0.0, %v5062
      %v5064 = vpop.f32.mrb[0].mxu0
      %5065 = vmatprep.mubr.f32.mxu0 0.0
      %5066 = vmatmul.mubr.f32.gmra.mrb[0].mxu0 %v4926
      %v5067 = vpop.f32.mrb[0].mxu0
      %v5068 = vadd.f32 0.0, %v5067
      %v5069 = vpop.f32.mrb[0].mxu0
      %5070 = vmatprep.mubr.f32.mxu0 0.0
      %5071 = vmatmul.mubr.f32.gmra.mrb[0].mxu0 %v4928
      %v5072 = vpop.f32.mrb[0].mxu0
      %v5073 = vadd.f32 0.0, %v5072
      %v5074 = vpop.f32.mrb[0].mxu0
      %5075 = vmatprep.mubr.f32.mxu0 0.0
      %5076 = vmatmul.mubr.f32.gmra.mrb[0].mxu0 %v4930
      %v5077 = vpop.f32.mrb[0].mxu0
      %v5078 = vadd.f32 0.0, %v5077
      %v5079 = vpop.f32.mrb[0].mxu0
      %5080 = vmatprep.mubr.f32.mxu0 0.0
      %5081 = vmatmul.mubr.f32.gmra.mrb[0].mxu0 %v4932
      %v5082 = vpop.f32.mrb[0].mxu0
      %v5083 = vadd.f32 0.0, %v5082
      %v5084 = vpop.f32.mrb[0].mxu0
      %5085 = vmatprep.mubr.f32.mxu0 0.0
      %5086 = vmatmul.mubr.f32.gmra.mrb[0].mxu0 %v4934
      %v5087 = vpop.f32.mrb[0].mxu0
      %v5088 = vadd.f32 0.0, %v5087
      %v5089 = vpop.f32.mrb[0].mxu0
      %5090 = vmatprep.mubr.f32.mxu0 0.0
      %5091 = vmatmul.mubr.f32.gmra.mrb[0].mxu0 %v4936
      %v5092 = vpop.f32.mrb[0].mxu0
      %v5093 = vadd.f32 0.0, %v5092
      %v5094 = vpop.f32.mrb[0].mxu0
      %5095 = vmatprep.mubr.f32.mxu0 0.0
      %5096 = vmatmul.mubr.f32.gmra.mrb[0].mxu0 %v4938
      %v5097 = vpop.f32.mrb[0].mxu0
      %v5098 = vadd.f32 0.0, %v5097
      %v5099 = vpop.f32.mrb[0].mxu0
      %5100 = vdwg.mxu0
      %v5101 = vmul.f32 %v5023, 0.17677669
      %v5102 = vmul.f32 %v5028, 0.17677669
      %v5103 = vmul.f32 %v5033, 0.17677669
      %v5104 = vmul.f32 %v5038, 0.17677669
      %v5105 = vmul.f32 %v5043, 0.17677669
      %v5106 = vmul.f32 %v5048, 0.17677669
      %v5107 = vmul.f32 %v5053, 0.17677669
      %v5108 = vmul.f32 %v5058, 0.17677669
      %v5109 = vmul.f32 %v5063, 0.17677669
      %v5110 = vmul.f32 %v5068, 0.17677669
      %v5111 = vmul.f32 %v5073, 0.17677669
      %v5112 = vmul.f32 %v5078, 0.17677669
      %v5113 = vmul.f32 %v5083, 0.17677669
      %v5114 = vmul.f32 %v5088, 0.17677669
      %v5115 = vmul.f32 %v5093, 0.17677669
      %v5116 = vmul.f32 %v5098, 0.17677669
      %v5117 = vadd.f32 %v5101, %v3455
      %v5118 = vadd.f32 %v5102, %v3456
      %v5119 = vadd.f32 %v5103, %v3457
      %v5120 = vadd.f32 %v5104, %v3458
      %v5121 = vadd.f32 %v5105, %v3459
      %v5122 = vadd.f32 %v5106, %v3460
      %v5123 = vadd.f32 %v5107, %v3461
      %v5124 = vadd.f32 %v5108, %v3462
      %v5125 = vadd.f32 %v5109, %v3463
      %v5126 = vadd.f32 %v5110, %v3464
      %v5127 = vadd.f32 %v5111, %v3465
      %v5128 = vadd.f32 %v5112, %v3466
      %v5129 = vadd.f32 %v5113, %v3467
      %v5130 = vadd.f32 %v5114, %v3468
      %v5131 = vadd.f32 %v5115, %v3469
      %v5132 = vadd.f32 %v5116, %v3470
      %v5133 = vsel %vm3720, %v5117, -inf
      %5134 = vmax.xlane.f32.xlu0 %v5133
      %v5135 = vpop.xlane.xlu0 %5134
      %v5136 = vsel %vm3720, %v5118, -inf
      %5137 = vmax.xlane.f32.xlu0 %v5136
      %v5138 = vpop.xlane.xlu0 %5137
      %v5139 = vsel %vm3720, %v5119, -inf
      %5140 = vmax.xlane.f32.xlu0 %v5139
      %v5141 = vpop.xlane.xlu0 %5140
      %v5142 = vsel %vm3720, %v5120, -inf
      %5143 = vmax.xlane.f32.xlu0 %v5142
      %v5144 = vpop.xlane.xlu0 %5143
      %v5145 = vsel %vm3720, %v5121, -inf
      %5146 = vmax.xlane.f32.xlu0 %v5145
      %v5147 = vpop.xlane.xlu0 %5146
      %v5148 = vsel %vm3720, %v5122, -inf
      %5149 = vmax.xlane.f32.xlu0 %v5148
      %v5150 = vpop.xlane.xlu0 %5149
      %v5151 = vsel %vm3720, %v5123, -inf
      %5152 = vmax.xlane.f32.xlu0 %v5151
      %v5153 = vpop.xlane.xlu0 %5152
      %v5154 = vsel %vm3720, %v5124, -inf
      %5155 = vmax.xlane.f32.xlu0 %v5154
      %v5156 = vpop.xlane.xlu0 %5155
      %v5157 = vsel %vm3720, %v5125, -inf
      %5158 = vmax.xlane.f32.xlu0 %v5157
      %v5159 = vpop.xlane.xlu0 %5158
      %v5160 = vsel %vm3720, %v5126, -inf
      %5161 = vmax.xlane.f32.xlu0 %v5160
      %v5162 = vpop.xlane.xlu0 %5161
      %v5163 = vsel %vm3720, %v5127, -inf
      %5164 = vmax.xlane.f32.xlu0 %v5163
      %v5165 = vpop.xlane.xlu0 %5164
      %v5166 = vsel %vm3720, %v5128, -inf
      %5167 = vmax.xlane.f32.xlu0 %v5166
      %v5168 = vpop.xlane.xlu0 %5167
      %v5169 = vsel %vm3720, %v5129, -inf
      %5170 = vmax.xlane.f32.xlu0 %v5169
      %v5171 = vpop.xlane.xlu0 %5170
      %v5172 = vsel %vm3720, %v5130, -inf
      %5173 = vmax.xlane.f32.xlu0 %v5172
      %v5174 = vpop.xlane.xlu0 %5173
      %v5175 = vsel %vm3720, %v5131, -inf
      %5176 = vmax.xlane.f32.xlu0 %v5175
      %v5177 = vpop.xlane.xlu0 %5176
      %v5178 = vsel %vm3720, %v5132, -inf
      %5179 = vmax.xlane.f32.xlu0 %v5178
      %v5180 = vpop.xlane.xlu0 %5179
      %v5181 = vsub.f32 %v5117, %v5135
      %v5182 = vsub.f32 %v5118, %v5138
      %v5183 = vsub.f32 %v5119, %v5141
      %v5184 = vsub.f32 %v5120, %v5144
      %v5185 = vsub.f32 %v5121, %v5147
      %v5186 = vsub.f32 %v5122, %v5150
      %v5187 = vsub.f32 %v5123, %v5153
      %v5188 = vsub.f32 %v5124, %v5156
      %v5189 = vsub.f32 %v5125, %v5159
      %v5190 = vsub.f32 %v5126, %v5162
      %v5191 = vsub.f32 %v5127, %v5165
      %v5192 = vsub.f32 %v5128, %v5168
      %v5193 = vsub.f32 %v5129, %v5171
      %v5194 = vsub.f32 %v5130, %v5174
      %v5195 = vsub.f32 %v5131, %v5177
      %v5196 = vsub.f32 %v5132, %v5180
      %v5197 = vmul.f32 %v5181, 1.442695
      %v5198 = vpow.pop %v5197
      %v5199 = vmul.f32 %v5182, 1.442695
      %v5200 = vpow.pop %v5199
      %v5201 = vmul.f32 %v5183, 1.442695
      %v5202 = vpow.pop %v5201
      %v5203 = vmul.f32 %v5184, 1.442695
      %v5204 = vpow.pop %v5203
      %v5205 = vmul.f32 %v5185, 1.442695
      %v5206 = vpow.pop %v5205
      %v5207 = vmul.f32 %v5186, 1.442695
      %v5208 = vpow.pop %v5207
      %v5209 = vmul.f32 %v5187, 1.442695
      %v5210 = vpow.pop %v5209
      %v5211 = vmul.f32 %v5188, 1.442695
      %v5212 = vpow.pop %v5211
      %v5213 = vmul.f32 %v5189, 1.442695
      %v5214 = vpow.pop %v5213
      %v5215 = vmul.f32 %v5190, 1.442695
      %v5216 = vpow.pop %v5215
      %v5217 = vmul.f32 %v5191, 1.442695
      %v5218 = vpow.pop %v5217
      %v5219 = vmul.f32 %v5192, 1.442695
      %v5220 = vpow.pop %v5219
      %v5221 = vmul.f32 %v5193, 1.442695
      %v5222 = vpow.pop %v5221
      %v5223 = vmul.f32 %v5194, 1.442695
      %v5224 = vpow.pop %v5223
      %v5225 = vmul.f32 %v5195, 1.442695
      %v5226 = vpow.pop %v5225
      %v5227 = vmul.f32 %v5196, 1.442695
      %v5228 = vpow.pop %v5227
      %v5229 = vsel %vm3720, %v5198, 0.0
      %5230 = vadd.xlane.f32.xlu0 %v5229
      %v5231 = vpop.xlane.xlu0 %5230
      %v5232 = vsel %vm3720, %v5200, 0.0
      %5233 = vadd.xlane.f32.xlu0 %v5232
      %v5234 = vpop.xlane.xlu0 %5233
      %v5235 = vsel %vm3720, %v5202, 0.0
      %5236 = vadd.xlane.f32.xlu0 %v5235
      %v5237 = vpop.xlane.xlu0 %5236
      %v5238 = vsel %vm3720, %v5204, 0.0
      %5239 = vadd.xlane.f32.xlu0 %v5238
      %v5240 = vpop.xlane.xlu0 %5239
      %v5241 = vsel %vm3720, %v5206, 0.0
      %5242 = vadd.xlane.f32.xlu0 %v5241
      %v5243 = vpop.xlane.xlu0 %5242
      %v5244 = vsel %vm3720, %v5208, 0.0
      %5245 = vadd.xlane.f32.xlu0 %v5244
      %v5246 = vpop.xlane.xlu0 %5245
      %v5247 = vsel %vm3720, %v5210, 0.0
      %5248 = vadd.xlane.f32.xlu0 %v5247
      %v5249 = vpop.xlane.xlu0 %5248
      %v5250 = vsel %vm3720, %v5212, 0.0
      %5251 = vadd.xlane.f32.xlu0 %v5250
      %v5252 = vpop.xlane.xlu0 %5251
      %v5253 = vsel %vm3720, %v5214, 0.0
      %5254 = vadd.xlane.f32.xlu0 %v5253
      %v5255 = vpop.xlane.xlu0 %5254
      %v5256 = vsel %vm3720, %v5216, 0.0
      %5257 = vadd.xlane.f32.xlu0 %v5256
      %v5258 = vpop.xlane.xlu0 %5257
      %v5259 = vsel %vm3720, %v5218, 0.0
      %5260 = vadd.xlane.f32.xlu0 %v5259
      %v5261 = vpop.xlane.xlu0 %5260
      %v5262 = vsel %vm3720, %v5220, 0.0
      %5263 = vadd.xlane.f32.xlu0 %v5262
      %v5264 = vpop.xlane.xlu0 %5263
      %v5265 = vsel %vm3720, %v5222, 0.0
      %5266 = vadd.xlane.f32.xlu0 %v5265
      %v5267 = vpop.xlane.xlu0 %5266
      %v5268 = vsel %vm3720, %v5224, 0.0
      %5269 = vadd.xlane.f32.xlu0 %v5268
      %v5270 = vpop.xlane.xlu0 %5269
      %v5271 = vsel %vm3720, %v5226, 0.0
      %5272 = vadd.xlane.f32.xlu0 %v5271
      %v5273 = vpop.xlane.xlu0 %5272
      %v5274 = vsel %vm3720, %v5228, 0.0
      %5275 = vadd.xlane.f32.xlu0 %v5274
      %v5276 = vpop.xlane.xlu0 %5275
      %v5277 = vrcp.pop %v5231
      %v5278 = vrcp.pop %v5234
      %v5279 = vrcp.pop %v5237
      %v5280 = vrcp.pop %v5240
      %v5281 = vrcp.pop %v5243
      %v5282 = vrcp.pop %v5246
      %v5283 = vrcp.pop %v5249
      %v5284 = vrcp.pop %v5252
      %v5285 = vrcp.pop %v5255
      %v5286 = vrcp.pop %v5258
      %v5287 = vrcp.pop %v5261
      %v5288 = vrcp.pop %v5264
      %v5289 = vrcp.pop %v5267
      %v5290 = vrcp.pop %v5270
      %v5291 = vrcp.pop %v5273
      %v5292 = vrcp.pop %v5276
      %v5293 = vmul.f32 %v5198, %v5277
      %v5294 = vmul.f32 %v5200, %v5278
      %v5295 = vmul.f32 %v5202, %v5279
      %v5296 = vmul.f32 %v5204, %v5280
      %v5297 = vmul.f32 %v5206, %v5281
      %v5298 = vmul.f32 %v5208, %v5282
      %v5299 = vmul.f32 %v5210, %v5283
      %v5300 = vmul.f32 %v5212, %v5284
      %v5301 = vmul.f32 %v5214, %v5285
      %v5302 = vmul.f32 %v5216, %v5286
      %v5303 = vmul.f32 %v5218, %v5287
      %v5304 = vmul.f32 %v5220, %v5288
      %v5305 = vmul.f32 %v5222, %v5289
      %v5306 = vmul.f32 %v5224, %v5290
      %v5307 = vmul.f32 %v5226, %v5291
      %v5308 = vmul.f32 %v5228, %v5292
      %5309 = vrot.lane.b32.xlu0 %v3417, 112
      %v5310 = vpop.permute.xlu0 %5309
      %5311 = vrot.lane.b32.xlu0 %v3422, 112
      %v5312 = vpop.permute.xlu0 %5311
      %5313 = vrot.lane.b32.xlu0 %v3427, 112
      %v5314 = vpop.permute.xlu0 %5313
      %5315 = vrot.lane.b32.xlu0 %v3432, 112
      %v5316 = vpop.permute.xlu0 %5315
      %5317 = vrot.lane.b32.xlu0 %v3437, 112
      %v5318 = vpop.permute.xlu0 %5317
      %5319 = vrot.lane.b32.xlu0 %v3442, 112
      %v5320 = vpop.permute.xlu0 %5319
      %5321 = vrot.lane.b32.xlu0 %v3447, 112
      %v5322 = vpop.permute.xlu0 %5321
      %5323 = vrot.lane.b32.xlu0 %v3452, 112
      %v5324 = vpop.permute.xlu0 %5323
      %v5334 = vsel %vm3720, %v5293, 0
      %v5337 = vsel %vm3720, %v5294, 0
      %v5340 = vsel %vm3720, %v5295, 0
      %v5343 = vsel %vm3720, %v5296, 0
      %v5346 = vsel %vm3720, %v5297, 0
      %v5349 = vsel %vm3720, %v5298, 0
      %v5352 = vsel %vm3720, %v5299, 0
      %v5355 = vsel %vm3720, %v5300, 0
      %v5358 = vsel %vm3720, %v5301, 0
      %v5361 = vsel %vm3720, %v5302, 0
      %v5364 = vsel %vm3720, %v5303, 0
      %v5367 = vsel %vm3720, %v5304, 0
      %v5370 = vsel %vm3720, %v5305, 0
      %v5373 = vsel %vm3720, %v5306, 0
      %v5376 = vsel %vm3720, %v5307, 0
      %v5379 = vsel %vm3720, %v5308, 0
      %5381 = vmatprep.subr.mxu0 0.0
      %5382 = vmatpush1.msra.mxu0 %v5310
      %5383 = vmatprep.subr.mxu0 0.0
      %5384 = vmatpush1.msra.mxu0 %v5312
      %5385 = vmatprep.subr.mxu0 0.0
      %5386 = vmatpush1.msra.mxu0 %v5314
      %5387 = vmatprep.subr.mxu0 0.0
      %5388 = vmatpush1.msra.mxu0 %v5316
      %5389 = vmatprep.subr.mxu0 0.0
      %5390 = vmatpush1.msra.mxu0 %v5318
      %5391 = vmatprep.subr.mxu0 0.0
      %5392 = vmatpush1.msra.mxu0 %v5320
      %5393 = vmatprep.subr.mxu0 0.0
      %5394 = vmatpush1.msra.mxu0 %v5322
      %5395 = vmatprep.subr.mxu0 0.0
      %5396 = vmatpush1.msra.mxu0 %v5324
      %5397 = vmatprep.subr.mxu0 0.0
      %5398 = vmatpush1.msra.mxu0 0.0
      %5399 = vmatprep.subr.mxu0 0.0
      %5400 = vmatpush1.msra.mxu0 0.0
      %5401 = vmatprep.subr.mxu0 0.0
      %5402 = vmatpush1.msra.mxu0 0.0
      %5403 = vmatprep.subr.mxu0 0.0
      %5404 = vmatpush1.msra.mxu0 0.0
      %5405 = vmatprep.subr.mxu0 0.0
      %5406 = vmatpush1.msra.mxu0 0.0
      %5407 = vmatprep.subr.mxu0 0.0
      %5408 = vmatpush1.msra.mxu0 0.0
      %5409 = vmatprep.subr.mxu0 0.0
      %5410 = vmatpush1.msra.mxu0 0.0
      %5411 = vmatprep.subr.mxu0 0.0
      %5412 = vmatpush1.msra.mxu0 0.0
      %5413 = vmatprep.subr.mxu0 0.0
      %5414 = vmatpush1.msra.mxu0 0.0
      %5415 = vmatprep.subr.mxu0 0.0
      %5416 = vmatpush1.msra.mxu0 0.0
      %5417 = vmatprep.subr.mxu0 0.0
      %5418 = vmatpush1.msra.mxu0 0.0
      %5419 = vmatprep.subr.mxu0 0.0
      %5420 = vmatpush1.msra.mxu0 0.0
      %5421 = vmatprep.subr.mxu0 0.0
      %5422 = vmatpush1.msra.mxu0 0.0
      %5423 = vmatprep.subr.mxu0 0.0
      %5424 = vmatpush1.msra.mxu0 0.0
      %5425 = vmatprep.subr.mxu0 0.0
      %5426 = vmatpush1.msra.mxu0 0.0
      %5427 = vmatprep.subr.mxu0 0.0
      %5428 = vmatpush1.msra.mxu0 0.0
      %5429 = vmatprep.subr.mxu0 0.0
      %5430 = vmatpush1.msra.mxu0 0.0
      %5431 = vmatprep.subr.mxu0 0.0
      %5432 = vmatpush1.msra.mxu0 0.0
      %5433 = vmatprep.subr.mxu0 0.0
      %5434 = vmatpush1.msra.mxu0 0.0
      %5435 = vmatprep.subr.mxu0 0.0
      %5436 = vmatpush1.msra.mxu0 0.0
      %5437 = vmatprep.subr.mxu0 0.0
      %5438 = vmatpush1.msra.mxu0 0.0
      %5439 = vmatprep.subr.mxu0 0.0
      %5440 = vmatpush1.msra.mxu0 0.0
      %5441 = vmatprep.subr.mxu0 0.0
      %5442 = vmatpush1.msra.mxu0 0.0
      %5443 = vmatprep.subr.mxu0 0.0
      %5444 = vmatpush1.msra.mxu0 0.0
      %5445 = vmatprep.mubr.f32.mxu0 0.0
      %5446 = vmatmul.mubr.f32.gmra.mrb[0].mxu0 %v5334
      %v5447 = vpop.f32.mrb[0].mxu0
      %v5448 = vadd.f32 0.0, %v5447
      %v5449 = vpop.f32.mrb[0].mxu0
      %5450 = vmatprep.mubr.f32.mxu0 0.0
      %5451 = vmatmul.mubr.f32.gmra.mrb[0].mxu0 %v5337
      %v5452 = vpop.f32.mrb[0].mxu0
      %v5453 = vadd.f32 0.0, %v5452
      %v5454 = vpop.f32.mrb[0].mxu0
      %5455 = vmatprep.mubr.f32.mxu0 0.0
      %5456 = vmatmul.mubr.f32.gmra.mrb[0].mxu0 %v5340
      %v5457 = vpop.f32.mrb[0].mxu0
      %v5458 = vadd.f32 0.0, %v5457
      %v5459 = vpop.f32.mrb[0].mxu0
      %5460 = vmatprep.mubr.f32.mxu0 0.0
      %5461 = vmatmul.mubr.f32.gmra.mrb[0].mxu0 %v5343
      %v5462 = vpop.f32.mrb[0].mxu0
      %v5463 = vadd.f32 0.0, %v5462
      %v5464 = vpop.f32.mrb[0].mxu0
      %5465 = vmatprep.mubr.f32.mxu0 0.0
      %5466 = vmatmul.mubr.f32.gmra.mrb[0].mxu0 %v5346
      %v5467 = vpop.f32.mrb[0].mxu0
      %v5468 = vadd.f32 0.0, %v5467
      %v5469 = vpop.f32.mrb[0].mxu0
      %5470 = vmatprep.mubr.f32.mxu0 0.0
      %5471 = vmatmul.mubr.f32.gmra.mrb[0].mxu0 %v5349
      %v5472 = vpop.f32.mrb[0].mxu0
      %v5473 = vadd.f32 0.0, %v5472
      %v5474 = vpop.f32.mrb[0].mxu0
      %5475 = vmatprep.mubr.f32.mxu0 0.0
      %5476 = vmatmul.mubr.f32.gmra.mrb[0].mxu0 %v5352
      %v5477 = vpop.f32.mrb[0].mxu0
      %v5478 = vadd.f32 0.0, %v5477
      %v5479 = vpop.f32.mrb[0].mxu0
      %5480 = vmatprep.mubr.f32.mxu0 0.0
      %5481 = vmatmul.mubr.f32.gmra.mrb[0].mxu0 %v5355
      %v5482 = vpop.f32.mrb[0].mxu0
      %v5483 = vadd.f32 0.0, %v5482
      %v5484 = vpop.f32.mrb[0].mxu0
      %5485 = vmatprep.mubr.f32.mxu0 0.0
      %5486 = vmatmul.mubr.f32.gmra.mrb[0].mxu0 %v5358
      %v5487 = vpop.f32.mrb[0].mxu0
      %v5488 = vadd.f32 0.0, %v5487
      %v5489 = vpop.f32.mrb[0].mxu0
      %5490 = vmatprep.mubr.f32.mxu0 0.0
      %5491 = vmatmul.mubr.f32.gmra.mrb[0].mxu0 %v5361
      %v5492 = vpop.f32.mrb[0].mxu0
      %v5493 = vadd.f32 0.0, %v5492
      %v5494 = vpop.f32.mrb[0].mxu0
      %5495 = vmatprep.mubr.f32.mxu0 0.0
      %5496 = vmatmul.mubr.f32.gmra.mrb[0].mxu0 %v5364
      %v5497 = vpop.f32.mrb[0].mxu0
      %v5498 = vadd.f32 0.0, %v5497
      %v5499 = vpop.f32.mrb[0].mxu0
      %5500 = vmatprep.mubr.f32.mxu0 0.0
      %5501 = vmatmul.mubr.f32.gmra.mrb[0].mxu0 %v5367
      %v5502 = vpop.f32.mrb[0].mxu0
      %v5503 = vadd.f32 0.0, %v5502
      %v5504 = vpop.f32.mrb[0].mxu0
      %5505 = vmatprep.mubr.f32.mxu0 0.0
      %5506 = vmatmul.mubr.f32.gmra.mrb[0].mxu0 %v5370
      %v5507 = vpop.f32.mrb[0].mxu0
      %v5508 = vadd.f32 0.0, %v5507
      %v5509 = vpop.f32.mrb[0].mxu0
      %5510 = vmatprep.mubr.f32.mxu0 0.0
      %5511 = vmatmul.mubr.f32.gmra.mrb[0].mxu0 %v5373
      %v5512 = vpop.f32.mrb[0].mxu0
      %v5513 = vadd.f32 0.0, %v5512
      %v5514 = vpop.f32.mrb[0].mxu0
      %5515 = vmatprep.mubr.f32.mxu0 0.0
      %5516 = vmatmul.mubr.f32.gmra.mrb[0].mxu0 %v5376
      %v5517 = vpop.f32.mrb[0].mxu0
      %v5518 = vadd.f32 0.0, %v5517
      %v5519 = vpop.f32.mrb[0].mxu0
      %5520 = vmatprep.mubr.f32.mxu0 0.0
      %5521 = vmatmul.mubr.f32.gmra.mrb[0].mxu0 %v5379
      %v5522 = vpop.f32.mrb[0].mxu0
      %v5523 = vadd.f32 0.0, %v5522
      %v5524 = vpop.f32.mrb[0].mxu0
      %5525 = vdwg.mxu0
      %5542 = vrot.lane.b32.xlu0 %v5448, 16
      %v5543 = vpop.permute.xlu0 %5542
      %5544 = vrot.lane.b32.xlu0 %v5453, 16
      %v5545 = vpop.permute.xlu0 %5544
      %5546 = vrot.lane.b32.xlu0 %v5458, 16
      %v5547 = vpop.permute.xlu0 %5546
      %5548 = vrot.lane.b32.xlu0 %v5463, 16
      %v5549 = vpop.permute.xlu0 %5548
      %5550 = vrot.lane.b32.xlu0 %v5468, 16
      %v5551 = vpop.permute.xlu0 %5550
      %5552 = vrot.lane.b32.xlu0 %v5473, 16
      %v5553 = vpop.permute.xlu0 %5552
      %5554 = vrot.lane.b32.xlu0 %v5478, 16
      %v5555 = vpop.permute.xlu0 %5554
      %5556 = vrot.lane.b32.xlu0 %v5483, 16
      %v5557 = vpop.permute.xlu0 %5556
      %5558 = vrot.lane.b32.xlu0 %v5488, 16
      %v5559 = vpop.permute.xlu0 %5558
      %5560 = vrot.lane.b32.xlu0 %v5493, 16
      %v5561 = vpop.permute.xlu0 %5560
      %5562 = vrot.lane.b32.xlu0 %v5498, 16
      %v5563 = vpop.permute.xlu0 %5562
      %5564 = vrot.lane.b32.xlu0 %v5503, 16
      %v5565 = vpop.permute.xlu0 %5564
      %5566 = vrot.lane.b32.xlu0 %v5508, 16
      %v5567 = vpop.permute.xlu0 %5566
      %5568 = vrot.lane.b32.xlu0 %v5513, 16
      %v5569 = vpop.permute.xlu0 %5568
      %5570 = vrot.lane.b32.xlu0 %v5518, 16
      %v5571 = vpop.permute.xlu0 %5570
      %5572 = vrot.lane.b32.xlu0 %v5523, 16
      %v5573 = vpop.permute.xlu0 %5572
      %v5590 = vadd.f32 %v3121, %v5543
      %v5591 = vadd.f32 %v3126, %v5545
      %v5592 = vadd.f32 %v3131, %v5547
      %v5593 = vadd.f32 %v3136, %v5549
      %v5594 = vadd.f32 %v3141, %v5551
      %v5595 = vadd.f32 %v3146, %v5553
      %v5596 = vadd.f32 %v3151, %v5555
      %v5597 = vadd.f32 %v3156, %v5557
      %v5598 = vadd.f32 %v3161, %v5559
      %v5599 = vadd.f32 %v3166, %v5561
      %v5600 = vadd.f32 %v3171, %v5563
      %v5601 = vadd.f32 %v3176, %v5565
      %v5602 = vadd.f32 %v3181, %v5567
      %v5603 = vadd.f32 %v3186, %v5569
      %v5604 = vadd.f32 %v3191, %v5571
      %v5605 = vadd.f32 %v3196, %v5573
      %5606 = vrot.lane.b32.xlu0 %v3121, 104
      %v5607 = vpop.permute.xlu0 %5606
      %5608 = vrot.lane.b32.xlu0 %v3126, 104
      %v5609 = vpop.permute.xlu0 %5608
      %5610 = vrot.lane.b32.xlu0 %v3131, 104
      %v5611 = vpop.permute.xlu0 %5610
      %5612 = vrot.lane.b32.xlu0 %v3136, 104
      %v5613 = vpop.permute.xlu0 %5612
      %5614 = vrot.lane.b32.xlu0 %v3141, 104
      %v5615 = vpop.permute.xlu0 %5614
      %5616 = vrot.lane.b32.xlu0 %v3146, 104
      %v5617 = vpop.permute.xlu0 %5616
      %5618 = vrot.lane.b32.xlu0 %v3151, 104
      %v5619 = vpop.permute.xlu0 %5618
      %5620 = vrot.lane.b32.xlu0 %v3156, 104
      %v5621 = vpop.permute.xlu0 %5620
      %5622 = vrot.lane.b32.xlu0 %v3161, 104
      %v5623 = vpop.permute.xlu0 %5622
      %5624 = vrot.lane.b32.xlu0 %v3166, 104
      %v5625 = vpop.permute.xlu0 %5624
      %5626 = vrot.lane.b32.xlu0 %v3171, 104
      %v5627 = vpop.permute.xlu0 %5626
      %5628 = vrot.lane.b32.xlu0 %v3176, 104
      %v5629 = vpop.permute.xlu0 %5628
      %5630 = vrot.lane.b32.xlu0 %v3181, 104
      %v5631 = vpop.permute.xlu0 %5630
      %5632 = vrot.lane.b32.xlu0 %v3186, 104
      %v5633 = vpop.permute.xlu0 %5632
      %5634 = vrot.lane.b32.xlu0 %v3191, 104
      %v5635 = vpop.permute.xlu0 %5634
      %5636 = vrot.lane.b32.xlu0 %v3196, 104
      %v5637 = vpop.permute.xlu0 %5636
      %5638 = vrot.lane.b32.xlu0 %v3301, 104
      %v5639 = vpop.permute.xlu0 %5638
      %5640 = vrot.lane.b32.xlu0 %v3306, 104
      %v5641 = vpop.permute.xlu0 %5640
      %5642 = vrot.lane.b32.xlu0 %v3311, 104
      %v5643 = vpop.permute.xlu0 %5642
      %5644 = vrot.lane.b32.xlu0 %v3316, 104
      %v5645 = vpop.permute.xlu0 %5644
      %5646 = vrot.lane.b32.xlu0 %v3321, 104
      %v5647 = vpop.permute.xlu0 %5646
      %5648 = vrot.lane.b32.xlu0 %v3326, 104
      %v5649 = vpop.permute.xlu0 %5648
      %5650 = vrot.lane.b32.xlu0 %v3331, 104
      %v5651 = vpop.permute.xlu0 %5650
      %5652 = vrot.lane.b32.xlu0 %v3336, 104
      %v5653 = vpop.permute.xlu0 %5652
      %v5654 = vsel %vm1022, %v5607, 0
      %v5656 = vsel %vm1022, %v5609, 0
      %v5658 = vsel %vm1022, %v5611, 0
      %v5660 = vsel %vm1022, %v5613, 0
      %v5662 = vsel %vm1022, %v5615, 0
      %v5664 = vsel %vm1022, %v5617, 0
      %v5666 = vsel %vm1022, %v5619, 0
      %v5668 = vsel %vm1022, %v5621, 0
      %v5670 = vsel %vm1022, %v5623, 0
      %v5672 = vsel %vm1022, %v5625, 0
      %v5674 = vsel %vm1022, %v5627, 0
      %v5676 = vsel %vm1022, %v5629, 0
      %v5678 = vsel %vm1022, %v5631, 0
      %v5680 = vsel %vm1022, %v5633, 0
      %v5682 = vsel %vm1022, %v5635, 0
      %v5684 = vsel %vm1022, %v5637, 0
      %v5686 = vsel %vm1022, %v5639, 0
      %v5688 = vsel %vm1022, %v5641, 0
      %v5690 = vsel %vm1022, %v5643, 0
      %v5692 = vsel %vm1022, %v5645, 0
      %v5694 = vsel %vm1022, %v5647, 0
      %v5696 = vsel %vm1022, %v5649, 0
      %v5698 = vsel %vm1022, %v5651, 0
      %v5700 = vsel %vm1022, %v5653, 0
      %5702 = vmatprep.subr.mxu0 0.0
      %5703 = vmatpush1.xpose.msra.mxu0 %v5686
      %5704 = vmatprep.subr.mxu0 0.0
      %5705 = vmatpush1.xpose.msra.mxu0 %v5688
      %5706 = vmatprep.subr.mxu0 0.0
      %5707 = vmatpush1.xpose.msra.mxu0 %v5690
      %5708 = vmatprep.subr.mxu0 0.0
      %5709 = vmatpush1.xpose.msra.mxu0 %v5692
      %5710 = vmatprep.subr.mxu0 0.0
      %5711 = vmatpush1.xpose.msra.mxu0 %v5694
      %5712 = vmatprep.subr.mxu0 0.0
      %5713 = vmatpush1.xpose.msra.mxu0 %v5696
      %5714 = vmatprep.subr.mxu0 0.0
      %5715 = vmatpush1.xpose.msra.mxu0 %v5698
      %5716 = vmatprep.subr.mxu0 0.0
      %5717 = vmatpush1.xpose.msra.mxu0 %v5700
      %5718 = vmatprep.subr.mxu0 0.0
      %5719 = vmatpush1.xpose.msra.mxu0 0.0
      %5720 = vmatprep.subr.mxu0 0.0
      %5721 = vmatpush1.xpose.msra.mxu0 0.0
      %5722 = vmatprep.subr.mxu0 0.0
      %5723 = vmatpush1.xpose.msra.mxu0 0.0
      %5724 = vmatprep.subr.mxu0 0.0
      %5725 = vmatpush1.xpose.msra.mxu0 0.0
      %5726 = vmatprep.subr.mxu0 0.0
      %5727 = vmatpush1.xpose.msra.mxu0 0.0
      %5728 = vmatprep.subr.mxu0 0.0
      %5729 = vmatpush1.xpose.msra.mxu0 0.0
      %5730 = vmatprep.subr.mxu0 0.0
      %5731 = vmatpush1.xpose.msra.mxu0 0.0
      %5732 = vmatprep.subr.mxu0 0.0
      %5733 = vmatpush1.xpose.msra.mxu0 0.0
      %5734 = vmatprep.subr.mxu0 0.0
      %5735 = vmatpush1.xpose.msra.mxu0 0.0
      %5736 = vmatprep.subr.mxu0 0.0
      %5737 = vmatpush1.xpose.msra.mxu0 0.0
      %5738 = vmatprep.subr.mxu0 0.0
      %5739 = vmatpush1.xpose.msra.mxu0 0.0
      %5740 = vmatprep.subr.mxu0 0.0
      %5741 = vmatpush1.xpose.msra.mxu0 0.0
      %5742 = vmatprep.subr.mxu0 0.0
      %5743 = vmatpush1.xpose.msra.mxu0 0.0
      %5744 = vmatprep.subr.mxu0 0.0
      %5745 = vmatpush1.xpose.msra.mxu0 0.0
      %5746 = vmatprep.subr.mxu0 0.0
      %5747 = vmatpush1.xpose.msra.mxu0 0.0
      %5748 = vmatprep.subr.mxu0 0.0
      %5749 = vmatpush1.xpose.msra.mxu0 0.0
      %5750 = vmatprep.subr.mxu0 0.0
      %5751 = vmatpush1.xpose.msra.mxu0 0.0
      %5752 = vmatprep.subr.mxu0 0.0
      %5753 = vmatpush1.xpose.msra.mxu0 0.0
      %5754 = vmatprep.subr.mxu0 0.0
      %5755 = vmatpush1.xpose.msra.mxu0 0.0
      %5756 = vmatprep.subr.mxu0 0.0
      %5757 = vmatpush1.xpose.msra.mxu0 0.0
      %5758 = vmatprep.subr.mxu0 0.0
      %5759 = vmatpush1.xpose.msra.mxu0 0.0
      %5760 = vmatprep.subr.mxu0 0.0
      %5761 = vmatpush1.xpose.msra.mxu0 0.0
      %5762 = vmatprep.subr.mxu0 0.0
      %5763 = vmatpush1.xpose.msra.mxu0 0.0
      %5764 = vmatprep.subr.mxu0 0.0
      %5765 = vmatpush1.xpose.msra.mxu0 0.0
      %5766 = vmatprep.mubr.f32.mxu0 0.0
      %5767 = vmatmul.mubr.f32.gmra.mrb[0].mxu0 %v5654
      %v5768 = vpop.f32.mrb[0].mxu0
      %v5769 = vadd.f32 0.0, %v5768
      %v5770 = vpop.f32.mrb[0].mxu0
      %5771 = vmatprep.mubr.f32.mxu0 0.0
      %5772 = vmatmul.mubr.f32.gmra.mrb[0].mxu0 %v5656
      %v5773 = vpop.f32.mrb[0].mxu0
      %v5774 = vadd.f32 0.0, %v5773
      %v5775 = vpop.f32.mrb[0].mxu0
      %5776 = vmatprep.mubr.f32.mxu0 0.0
      %5777 = vmatmul.mubr.f32.gmra.mrb[0].mxu0 %v5658
      %v5778 = vpop.f32.mrb[0].mxu0
      %v5779 = vadd.f32 0.0, %v5778
      %v5780 = vpop.f32.mrb[0].mxu0
      %5781 = vmatprep.mubr.f32.mxu0 0.0
      %5782 = vmatmul.mubr.f32.gmra.mrb[0].mxu0 %v5660
      %v5783 = vpop.f32.mrb[0].mxu0
      %v5784 = vadd.f32 0.0, %v5783
      %v5785 = vpop.f32.mrb[0].mxu0
      %5786 = vmatprep.mubr.f32.mxu0 0.0
      %5787 = vmatmul.mubr.f32.gmra.mrb[0].mxu0 %v5662
      %v5788 = vpop.f32.mrb[0].mxu0
      %v5789 = vadd.f32 0.0, %v5788
      %v5790 = vpop.f32.mrb[0].mxu0
      %5791 = vmatprep.mubr.f32.mxu0 0.0
      %5792 = vmatmul.mubr.f32.gmra.mrb[0].mxu0 %v5664
      %v5793 = vpop.f32.mrb[0].mxu0
      %v5794 = vadd.f32 0.0, %v5793
      %v5795 = vpop.f32.mrb[0].mxu0
      %5796 = vmatprep.mubr.f32.mxu0 0.0
      %5797 = vmatmul.mubr.f32.gmra.mrb[0].mxu0 %v5666
      %v5798 = vpop.f32.mrb[0].mxu0
      %v5799 = vadd.f32 0.0, %v5798
      %v5800 = vpop.f32.mrb[0].mxu0
      %5801 = vmatprep.mubr.f32.mxu0 0.0
      %5802 = vmatmul.mubr.f32.gmra.mrb[0].mxu0 %v5668
      %v5803 = vpop.f32.mrb[0].mxu0
      %v5804 = vadd.f32 0.0, %v5803
      %v5805 = vpop.f32.mrb[0].mxu0
      %5806 = vmatprep.mubr.f32.mxu0 0.0
      %5807 = vmatmul.mubr.f32.gmra.mrb[0].mxu0 %v5670
      %v5808 = vpop.f32.mrb[0].mxu0
      %v5809 = vadd.f32 0.0, %v5808
      %v5810 = vpop.f32.mrb[0].mxu0
      %5811 = vmatprep.mubr.f32.mxu0 0.0
      %5812 = vmatmul.mubr.f32.gmra.mrb[0].mxu0 %v5672
      %v5813 = vpop.f32.mrb[0].mxu0
      %v5814 = vadd.f32 0.0, %v5813
      %v5815 = vpop.f32.mrb[0].mxu0
      %5816 = vmatprep.mubr.f32.mxu0 0.0
      %5817 = vmatmul.mubr.f32.gmra.mrb[0].mxu0 %v5674
      %v5818 = vpop.f32.mrb[0].mxu0
      %v5819 = vadd.f32 0.0, %v5818
      %v5820 = vpop.f32.mrb[0].mxu0
      %5821 = vmatprep.mubr.f32.mxu0 0.0
      %5822 = vmatmul.mubr.f32.gmra.mrb[0].mxu0 %v5676
      %v5823 = vpop.f32.mrb[0].mxu0
      %v5824 = vadd.f32 0.0, %v5823
      %v5825 = vpop.f32.mrb[0].mxu0
      %5826 = vmatprep.mubr.f32.mxu0 0.0
      %5827 = vmatmul.mubr.f32.gmra.mrb[0].mxu0 %v5678
      %v5828 = vpop.f32.mrb[0].mxu0
      %v5829 = vadd.f32 0.0, %v5828
      %v5830 = vpop.f32.mrb[0].mxu0
      %5831 = vmatprep.mubr.f32.mxu0 0.0
      %5832 = vmatmul.mubr.f32.gmra.mrb[0].mxu0 %v5680
      %v5833 = vpop.f32.mrb[0].mxu0
      %v5834 = vadd.f32 0.0, %v5833
      %v5835 = vpop.f32.mrb[0].mxu0
      %5836 = vmatprep.mubr.f32.mxu0 0.0
      %5837 = vmatmul.mubr.f32.gmra.mrb[0].mxu0 %v5682
      %v5838 = vpop.f32.mrb[0].mxu0
      %v5839 = vadd.f32 0.0, %v5838
      %v5840 = vpop.f32.mrb[0].mxu0
      %5841 = vmatprep.mubr.f32.mxu0 0.0
      %5842 = vmatmul.mubr.f32.gmra.mrb[0].mxu0 %v5684
      %v5843 = vpop.f32.mrb[0].mxu0
      %v5844 = vadd.f32 0.0, %v5843
      %v5845 = vpop.f32.mrb[0].mxu0
      %5846 = vdwg.mxu0
      %v5847 = vmul.f32 %v5769, 0.17677669
      %v5848 = vmul.f32 %v5774, 0.17677669
      %v5849 = vmul.f32 %v5779, 0.17677669
      %v5850 = vmul.f32 %v5784, 0.17677669
      %v5851 = vmul.f32 %v5789, 0.17677669
      %v5852 = vmul.f32 %v5794, 0.17677669
      %v5853 = vmul.f32 %v5799, 0.17677669
      %v5854 = vmul.f32 %v5804, 0.17677669
      %v5855 = vmul.f32 %v5809, 0.17677669
      %v5856 = vmul.f32 %v5814, 0.17677669
      %v5857 = vmul.f32 %v5819, 0.17677669
      %v5858 = vmul.f32 %v5824, 0.17677669
      %v5859 = vmul.f32 %v5829, 0.17677669
      %v5860 = vmul.f32 %v5834, 0.17677669
      %v5861 = vmul.f32 %v5839, 0.17677669
      %v5862 = vmul.f32 %v5844, 0.17677669
      %v5863 = vadd.f32 %v5847, %v3455
      %v5864 = vadd.f32 %v5848, %v3456
      %v5865 = vadd.f32 %v5849, %v3457
      %v5866 = vadd.f32 %v5850, %v3458
      %v5867 = vadd.f32 %v5851, %v3459
      %v5868 = vadd.f32 %v5852, %v3460
      %v5869 = vadd.f32 %v5853, %v3461
      %v5870 = vadd.f32 %v5854, %v3462
      %v5871 = vadd.f32 %v5855, %v3463
      %v5872 = vadd.f32 %v5856, %v3464
      %v5873 = vadd.f32 %v5857, %v3465
      %v5874 = vadd.f32 %v5858, %v3466
      %v5875 = vadd.f32 %v5859, %v3467
      %v5876 = vadd.f32 %v5860, %v3468
      %v5877 = vadd.f32 %v5861, %v3469
      %v5878 = vadd.f32 %v5862, %v3470
      %v5879 = vsel %vm3720, %v5863, -inf
      %5880 = vmax.xlane.f32.xlu0 %v5879
      %v5881 = vpop.xlane.xlu0 %5880
      %v5882 = vsel %vm3720, %v5864, -inf
      %5883 = vmax.xlane.f32.xlu0 %v5882
      %v5884 = vpop.xlane.xlu0 %5883
      %v5885 = vsel %vm3720, %v5865, -inf
      %5886 = vmax.xlane.f32.xlu0 %v5885
      %v5887 = vpop.xlane.xlu0 %5886
      %v5888 = vsel %vm3720, %v5866, -inf
      %5889 = vmax.xlane.f32.xlu0 %v5888
      %v5890 = vpop.xlane.xlu0 %5889
      %v5891 = vsel %vm3720, %v5867, -inf
      %5892 = vmax.xlane.f32.xlu0 %v5891
      %v5893 = vpop.xlane.xlu0 %5892
      %v5894 = vsel %vm3720, %v5868, -inf
      %5895 = vmax.xlane.f32.xlu0 %v5894
      %v5896 = vpop.xlane.xlu0 %5895
      %v5897 = vsel %vm3720, %v5869, -inf
      %5898 = vmax.xlane.f32.xlu0 %v5897
      %v5899 = vpop.xlane.xlu0 %5898
      %v5900 = vsel %vm3720, %v5870, -inf
      %5901 = vmax.xlane.f32.xlu0 %v5900
      %v5902 = vpop.xlane.xlu0 %5901
      %v5903 = vsel %vm3720, %v5871, -inf
      %5904 = vmax.xlane.f32.xlu0 %v5903
      %v5905 = vpop.xlane.xlu0 %5904
      %v5906 = vsel %vm3720, %v5872, -inf
      %5907 = vmax.xlane.f32.xlu0 %v5906
      %v5908 = vpop.xlane.xlu0 %5907
      %v5909 = vsel %vm3720, %v5873, -inf
      %5910 = vmax.xlane.f32.xlu0 %v5909
      %v5911 = vpop.xlane.xlu0 %5910
      %v5912 = vsel %vm3720, %v5874, -inf
      %5913 = vmax.xlane.f32.xlu0 %v5912
      %v5914 = vpop.xlane.xlu0 %5913
      %v5915 = vsel %vm3720, %v5875, -inf
      %5916 = vmax.xlane.f32.xlu0 %v5915
      %v5917 = vpop.xlane.xlu0 %5916
      %v5918 = vsel %vm3720, %v5876, -inf
      %5919 = vmax.xlane.f32.xlu0 %v5918
      %v5920 = vpop.xlane.xlu0 %5919
      %v5921 = vsel %vm3720, %v5877, -inf
      %5922 = vmax.xlane.f32.xlu0 %v5921
      %v5923 = vpop.xlane.xlu0 %5922
      %v5924 = vsel %vm3720, %v5878, -inf
      %5925 = vmax.xlane.f32.xlu0 %v5924
      %v5926 = vpop.xlane.xlu0 %5925
      %v5927 = vsub.f32 %v5863, %v5881
      %v5928 = vsub.f32 %v5864, %v5884
      %v5929 = vsub.f32 %v5865, %v5887
      %v5930 = vsub.f32 %v5866, %v5890
      %v5931 = vsub.f32 %v5867, %v5893
      %v5932 = vsub.f32 %v5868, %v5896
      %v5933 = vsub.f32 %v5869, %v5899
      %v5934 = vsub.f32 %v5870, %v5902
      %v5935 = vsub.f32 %v5871, %v5905
      %v5936 = vsub.f32 %v5872, %v5908
      %v5937 = vsub.f32 %v5873, %v5911
      %v5938 = vsub.f32 %v5874, %v5914
      %v5939 = vsub.f32 %v5875, %v5917
      %v5940 = vsub.f32 %v5876, %v5920
      %v5941 = vsub.f32 %v5877, %v5923
      %v5942 = vsub.f32 %v5878, %v5926
      %v5943 = vmul.f32 %v5927, 1.442695
      %v5944 = vpow.pop %v5943
      %v5945 = vmul.f32 %v5928, 1.442695
      %v5946 = vpow.pop %v5945
      %v5947 = vmul.f32 %v5929, 1.442695
      %v5948 = vpow.pop %v5947
      %v5949 = vmul.f32 %v5930, 1.442695
      %v5950 = vpow.pop %v5949
      %v5951 = vmul.f32 %v5931, 1.442695
      %v5952 = vpow.pop %v5951
      %v5953 = vmul.f32 %v5932, 1.442695
      %v5954 = vpow.pop %v5953
      %v5955 = vmul.f32 %v5933, 1.442695
      %v5956 = vpow.pop %v5955
      %v5957 = vmul.f32 %v5934, 1.442695
      %v5958 = vpow.pop %v5957
      %v5959 = vmul.f32 %v5935, 1.442695
      %v5960 = vpow.pop %v5959
      %v5961 = vmul.f32 %v5936, 1.442695
      %v5962 = vpow.pop %v5961
      %v5963 = vmul.f32 %v5937, 1.442695
      %v5964 = vpow.pop %v5963
      %v5965 = vmul.f32 %v5938, 1.442695
      %v5966 = vpow.pop %v5965
      %v5967 = vmul.f32 %v5939, 1.442695
      %v5968 = vpow.pop %v5967
      %v5969 = vmul.f32 %v5940, 1.442695
      %v5970 = vpow.pop %v5969
      %v5971 = vmul.f32 %v5941, 1.442695
      %v5972 = vpow.pop %v5971
      %v5973 = vmul.f32 %v5942, 1.442695
      %v5974 = vpow.pop %v5973
      %v5975 = vsel %vm3720, %v5944, 0.0
      %5976 = vadd.xlane.f32.xlu0 %v5975
      %v5977 = vpop.xlane.xlu0 %5976
      %v5978 = vsel %vm3720, %v5946, 0.0
      %5979 = vadd.xlane.f32.xlu0 %v5978
      %v5980 = vpop.xlane.xlu0 %5979
      %v5981 = vsel %vm3720, %v5948, 0.0
      %5982 = vadd.xlane.f32.xlu0 %v5981
      %v5983 = vpop.xlane.xlu0 %5982
      %v5984 = vsel %vm3720, %v5950, 0.0
      %5985 = vadd.xlane.f32.xlu0 %v5984
      %v5986 = vpop.xlane.xlu0 %5985
      %v5987 = vsel %vm3720, %v5952, 0.0
      %5988 = vadd.xlane.f32.xlu0 %v5987
      %v5989 = vpop.xlane.xlu0 %5988
      %v5990 = vsel %vm3720, %v5954, 0.0
      %5991 = vadd.xlane.f32.xlu0 %v5990
      %v5992 = vpop.xlane.xlu0 %5991
      %v5993 = vsel %vm3720, %v5956, 0.0
      %5994 = vadd.xlane.f32.xlu0 %v5993
      %v5995 = vpop.xlane.xlu0 %5994
      %v5996 = vsel %vm3720, %v5958, 0.0
      %5997 = vadd.xlane.f32.xlu0 %v5996
      %v5998 = vpop.xlane.xlu0 %5997
      %v5999 = vsel %vm3720, %v5960, 0.0
      %6000 = vadd.xlane.f32.xlu0 %v5999
      %v6001 = vpop.xlane.xlu0 %6000
      %v6002 = vsel %vm3720, %v5962, 0.0
      %6003 = vadd.xlane.f32.xlu0 %v6002
      %v6004 = vpop.xlane.xlu0 %6003
      %v6005 = vsel %vm3720, %v5964, 0.0
      %6006 = vadd.xlane.f32.xlu0 %v6005
      %v6007 = vpop.xlane.xlu0 %6006
      %v6008 = vsel %vm3720, %v5966, 0.0
      %6009 = vadd.xlane.f32.xlu0 %v6008
      %v6010 = vpop.xlane.xlu0 %6009
      %v6011 = vsel %vm3720, %v5968, 0.0
      %6012 = vadd.xlane.f32.xlu0 %v6011
      %v6013 = vpop.xlane.xlu0 %6012
      %v6014 = vsel %vm3720, %v5970, 0.0
      %6015 = vadd.xlane.f32.xlu0 %v6014
      %v6016 = vpop.xlane.xlu0 %6015
      %v6017 = vsel %vm3720, %v5972, 0.0
      %6018 = vadd.xlane.f32.xlu0 %v6017
      %v6019 = vpop.xlane.xlu0 %6018
      %v6020 = vsel %vm3720, %v5974, 0.0
      %6021 = vadd.xlane.f32.xlu0 %v6020
      %v6022 = vpop.xlane.xlu0 %6021
      %v6023 = vrcp.pop %v5977
      %v6024 = vrcp.pop %v5980
      %v6025 = vrcp.pop %v5983
      %v6026 = vrcp.pop %v5986
      %v6027 = vrcp.pop %v5989
      %v6028 = vrcp.pop %v5992
      %v6029 = vrcp.pop %v5995
      %v6030 = vrcp.pop %v5998
      %v6031 = vrcp.pop %v6001
      %v6032 = vrcp.pop %v6004
      %v6033 = vrcp.pop %v6007
      %v6034 = vrcp.pop %v6010
      %v6035 = vrcp.pop %v6013
      %v6036 = vrcp.pop %v6016
      %v6037 = vrcp.pop %v6019
      %v6038 = vrcp.pop %v6022
      %v6039 = vmul.f32 %v5944, %v6023
      %v6040 = vmul.f32 %v5946, %v6024
      %v6041 = vmul.f32 %v5948, %v6025
      %v6042 = vmul.f32 %v5950, %v6026
      %v6043 = vmul.f32 %v5952, %v6027
      %v6044 = vmul.f32 %v5954, %v6028
      %v6045 = vmul.f32 %v5956, %v6029
      %v6046 = vmul.f32 %v5958, %v6030
      %v6047 = vmul.f32 %v5960, %v6031
      %v6048 = vmul.f32 %v5962, %v6032
      %v6049 = vmul.f32 %v5964, %v6033
      %v6050 = vmul.f32 %v5966, %v6034
      %v6051 = vmul.f32 %v5968, %v6035
      %v6052 = vmul.f32 %v5970, %v6036
      %v6053 = vmul.f32 %v5972, %v6037
      %v6054 = vmul.f32 %v5974, %v6038
      %6055 = vrot.lane.b32.xlu0 %v3417, 104
      %v6056 = vpop.permute.xlu0 %6055
      %6057 = vrot.lane.b32.xlu0 %v3422, 104
      %v6058 = vpop.permute.xlu0 %6057
      %6059 = vrot.lane.b32.xlu0 %v3427, 104
      %v6060 = vpop.permute.xlu0 %6059
      %6061 = vrot.lane.b32.xlu0 %v3432, 104
      %v6062 = vpop.permute.xlu0 %6061
      %6063 = vrot.lane.b32.xlu0 %v3437, 104
      %v6064 = vpop.permute.xlu0 %6063
      %6065 = vrot.lane.b32.xlu0 %v3442, 104
      %v6066 = vpop.permute.xlu0 %6065
      %6067 = vrot.lane.b32.xlu0 %v3447, 104
      %v6068 = vpop.permute.xlu0 %6067
      %6069 = vrot.lane.b32.xlu0 %v3452, 104
      %v6070 = vpop.permute.xlu0 %6069
      %v6080 = vsel %vm3720, %v6039, 0
      %v6083 = vsel %vm3720, %v6040, 0
      %v6086 = vsel %vm3720, %v6041, 0
      %v6089 = vsel %vm3720, %v6042, 0
      %v6092 = vsel %vm3720, %v6043, 0
      %v6095 = vsel %vm3720, %v6044, 0
      %v6098 = vsel %vm3720, %v6045, 0
      %v6101 = vsel %vm3720, %v6046, 0
      %v6104 = vsel %vm3720, %v6047, 0
      %v6107 = vsel %vm3720, %v6048, 0
      %v6110 = vsel %vm3720, %v6049, 0
      %v6113 = vsel %vm3720, %v6050, 0
      %v6116 = vsel %vm3720, %v6051, 0
      %v6119 = vsel %vm3720, %v6052, 0
      %v6122 = vsel %vm3720, %v6053, 0
      %v6125 = vsel %vm3720, %v6054, 0
      %6127 = vmatprep.subr.mxu0 0.0
      %6128 = vmatpush1.msra.mxu0 %v6056
      %6129 = vmatprep.subr.mxu0 0.0
      %6130 = vmatpush1.msra.mxu0 %v6058
      %6131 = vmatprep.subr.mxu0 0.0
      %6132 = vmatpush1.msra.mxu0 %v6060
      %6133 = vmatprep.subr.mxu0 0.0
      %6134 = vmatpush1.msra.mxu0 %v6062
      %6135 = vmatprep.subr.mxu0 0.0
      %6136 = vmatpush1.msra.mxu0 %v6064
      %6137 = vmatprep.subr.mxu0 0.0
      %6138 = vmatpush1.msra.mxu0 %v6066
      %6139 = vmatprep.subr.mxu0 0.0
      %6140 = vmatpush1.msra.mxu0 %v6068
      %6141 = vmatprep.subr.mxu0 0.0
      %6142 = vmatpush1.msra.mxu0 %v6070
      %6143 = vmatprep.subr.mxu0 0.0
      %6144 = vmatpush1.msra.mxu0 0.0
      %6145 = vmatprep.subr.mxu0 0.0
      %6146 = vmatpush1.msra.mxu0 0.0
      %6147 = vmatprep.subr.mxu0 0.0
      %6148 = vmatpush1.msra.mxu0 0.0
      %6149 = vmatprep.subr.mxu0 0.0
      %6150 = vmatpush1.msra.mxu0 0.0
      %6151 = vmatprep.subr.mxu0 0.0
      %6152 = vmatpush1.msra.mxu0 0.0
      %6153 = vmatprep.subr.mxu0 0.0
      %6154 = vmatpush1.msra.mxu0 0.0
      %6155 = vmatprep.subr.mxu0 0.0
      %6156 = vmatpush1.msra.mxu0 0.0
      %6157 = vmatprep.subr.mxu0 0.0
      %6158 = vmatpush1.msra.mxu0 0.0
      %6159 = vmatprep.subr.mxu0 0.0
      %6160 = vmatpush1.msra.mxu0 0.0
      %6161 = vmatprep.subr.mxu0 0.0
      %6162 = vmatpush1.msra.mxu0 0.0
      %6163 = vmatprep.subr.mxu0 0.0
      %6164 = vmatpush1.msra.mxu0 0.0
      %6165 = vmatprep.subr.mxu0 0.0
      %6166 = vmatpush1.msra.mxu0 0.0
      %6167 = vmatprep.subr.mxu0 0.0
      %6168 = vmatpush1.msra.mxu0 0.0
      %6169 = vmatprep.subr.mxu0 0.0
      %6170 = vmatpush1.msra.mxu0 0.0
      %6171 = vmatprep.subr.mxu0 0.0
      %6172 = vmatpush1.msra.mxu0 0.0
      %6173 = vmatprep.subr.mxu0 0.0
      %6174 = vmatpush1.msra.mxu0 0.0
      %6175 = vmatprep.subr.mxu0 0.0
      %6176 = vmatpush1.msra.mxu0 0.0
      %6177 = vmatprep.subr.mxu0 0.0
      %6178 = vmatpush1.msra.mxu0 0.0
      %6179 = vmatprep.subr.mxu0 0.0
      %6180 = vmatpush1.msra.mxu0 0.0
      %6181 = vmatprep.subr.mxu0 0.0
      %6182 = vmatpush1.msra.mxu0 0.0
      %6183 = vmatprep.subr.mxu0 0.0
      %6184 = vmatpush1.msra.mxu0 0.0
      %6185 = vmatprep.subr.mxu0 0.0
      %6186 = vmatpush1.msra.mxu0 0.0
      %6187 = vmatprep.subr.mxu0 0.0
      %6188 = vmatpush1.msra.mxu0 0.0
      %6189 = vmatprep.subr.mxu0 0.0
      %6190 = vmatpush1.msra.mxu0 0.0
      %6191 = vmatprep.mubr.f32.mxu0 0.0
      %6192 = vmatmul.mubr.f32.gmra.mrb[0].mxu0 %v6080
      %v6193 = vpop.f32.mrb[0].mxu0
      %v6194 = vadd.f32 0.0, %v6193
      %v6195 = vpop.f32.mrb[0].mxu0
      %6196 = vmatprep.mubr.f32.mxu0 0.0
      %6197 = vmatmul.mubr.f32.gmra.mrb[0].mxu0 %v6083
      %v6198 = vpop.f32.mrb[0].mxu0
      %v6199 = vadd.f32 0.0, %v6198
      %v6200 = vpop.f32.mrb[0].mxu0
      %6201 = vmatprep.mubr.f32.mxu0 0.0
      %6202 = vmatmul.mubr.f32.gmra.mrb[0].mxu0 %v6086
      %v6203 = vpop.f32.mrb[0].mxu0
      %v6204 = vadd.f32 0.0, %v6203
      %v6205 = vpop.f32.mrb[0].mxu0
      %6206 = vmatprep.mubr.f32.mxu0 0.0
      %6207 = vmatmul.mubr.f32.gmra.mrb[0].mxu0 %v6089
      %v6208 = vpop.f32.mrb[0].mxu0
      %v6209 = vadd.f32 0.0, %v6208
      %v6210 = vpop.f32.mrb[0].mxu0
      %6211 = vmatprep.mubr.f32.mxu0 0.0
      %6212 = vmatmul.mubr.f32.gmra.mrb[0].mxu0 %v6092
      %v6213 = vpop.f32.mrb[0].mxu0
      %v6214 = vadd.f32 0.0, %v6213
      %v6215 = vpop.f32.mrb[0].mxu0
      %6216 = vmatprep.mubr.f32.mxu0 0.0
      %6217 = vmatmul.mubr.f32.gmra.mrb[0].mxu0 %v6095
      %v6218 = vpop.f32.mrb[0].mxu0
      %v6219 = vadd.f32 0.0, %v6218
      %v6220 = vpop.f32.mrb[0].mxu0
      %6221 = vmatprep.mubr.f32.mxu0 0.0
      %6222 = vmatmul.mubr.f32.gmra.mrb[0].mxu0 %v6098
      %v6223 = vpop.f32.mrb[0].mxu0
      %v6224 = vadd.f32 0.0, %v6223
      %v6225 = vpop.f32.mrb[0].mxu0
      %6226 = vmatprep.mubr.f32.mxu0 0.0
      %6227 = vmatmul.mubr.f32.gmra.mrb[0].mxu0 %v6101
      %v6228 = vpop.f32.mrb[0].mxu0
      %v6229 = vadd.f32 0.0, %v6228
      %v6230 = vpop.f32.mrb[0].mxu0
      %6231 = vmatprep.mubr.f32.mxu0 0.0
      %6232 = vmatmul.mubr.f32.gmra.mrb[0].mxu0 %v6104
      %v6233 = vpop.f32.mrb[0].mxu0
      %v6234 = vadd.f32 0.0, %v6233
      %v6235 = vpop.f32.mrb[0].mxu0
      %6236 = vmatprep.mubr.f32.mxu0 0.0
      %6237 = vmatmul.mubr.f32.gmra.mrb[0].mxu0 %v6107
      %v6238 = vpop.f32.mrb[0].mxu0
      %v6239 = vadd.f32 0.0, %v6238
      %v6240 = vpop.f32.mrb[0].mxu0
      %6241 = vmatprep.mubr.f32.mxu0 0.0
      %6242 = vmatmul.mubr.f32.gmra.mrb[0].mxu0 %v6110
      %v6243 = vpop.f32.mrb[0].mxu0
      %v6244 = vadd.f32 0.0, %v6243
      %v6245 = vpop.f32.mrb[0].mxu0
      %6246 = vmatprep.mubr.f32.mxu0 0.0
      %6247 = vmatmul.mubr.f32.gmra.mrb[0].mxu0 %v6113
      %v6248 = vpop.f32.mrb[0].mxu0
      %v6249 = vadd.f32 0.0, %v6248
      %v6250 = vpop.f32.mrb[0].mxu0
      %6251 = vmatprep.mubr.f32.mxu0 0.0
      %6252 = vmatmul.mubr.f32.gmra.mrb[0].mxu0 %v6116
      %v6253 = vpop.f32.mrb[0].mxu0
      %v6254 = vadd.f32 0.0, %v6253
      %v6255 = vpop.f32.mrb[0].mxu0
      %6256 = vmatprep.mubr.f32.mxu0 0.0
      %6257 = vmatmul.mubr.f32.gmra.mrb[0].mxu0 %v6119
      %v6258 = vpop.f32.mrb[0].mxu0
      %v6259 = vadd.f32 0.0, %v6258
      %v6260 = vpop.f32.mrb[0].mxu0
      %6261 = vmatprep.mubr.f32.mxu0 0.0
      %6262 = vmatmul.mubr.f32.gmra.mrb[0].mxu0 %v6122
      %v6263 = vpop.f32.mrb[0].mxu0
      %v6264 = vadd.f32 0.0, %v6263
      %v6265 = vpop.f32.mrb[0].mxu0
      %6266 = vmatprep.mubr.f32.mxu0 0.0
      %6267 = vmatmul.mubr.f32.gmra.mrb[0].mxu0 %v6125
      %v6268 = vpop.f32.mrb[0].mxu0
      %v6269 = vadd.f32 0.0, %v6268
      %v6270 = vpop.f32.mrb[0].mxu0
      %6271 = vdwg.mxu0
      %6288 = vrot.lane.b32.xlu0 %v6194, 24
      %v6289 = vpop.permute.xlu0 %6288
      %6290 = vrot.lane.b32.xlu0 %v6199, 24
      %v6291 = vpop.permute.xlu0 %6290
      %6292 = vrot.lane.b32.xlu0 %v6204, 24
      %v6293 = vpop.permute.xlu0 %6292
      %6294 = vrot.lane.b32.xlu0 %v6209, 24
      %v6295 = vpop.permute.xlu0 %6294
      %6296 = vrot.lane.b32.xlu0 %v6214, 24
      %v6297 = vpop.permute.xlu0 %6296
      %6298 = vrot.lane.b32.xlu0 %v6219, 24
      %v6299 = vpop.permute.xlu0 %6298
      %6300 = vrot.lane.b32.xlu0 %v6224, 24
      %v6301 = vpop.permute.xlu0 %6300
      %6302 = vrot.lane.b32.xlu0 %v6229, 24
      %v6303 = vpop.permute.xlu0 %6302
      %6304 = vrot.lane.b32.xlu0 %v6234, 24
      %v6305 = vpop.permute.xlu0 %6304
      %6306 = vrot.lane.b32.xlu0 %v6239, 24
      %v6307 = vpop.permute.xlu0 %6306
      %6308 = vrot.lane.b32.xlu0 %v6244, 24
      %v6309 = vpop.permute.xlu0 %6308
      %6310 = vrot.lane.b32.xlu0 %v6249, 24
      %v6311 = vpop.permute.xlu0 %6310
      %6312 = vrot.lane.b32.xlu0 %v6254, 24
      %v6313 = vpop.permute.xlu0 %6312
      %6314 = vrot.lane.b32.xlu0 %v6259, 24
      %v6315 = vpop.permute.xlu0 %6314
      %6316 = vrot.lane.b32.xlu0 %v6264, 24
      %v6317 = vpop.permute.xlu0 %6316
      %6318 = vrot.lane.b32.xlu0 %v6269, 24
      %v6319 = vpop.permute.xlu0 %6318
      %v6336 = vadd.f32 %v3121, %v6289
      %v6337 = vadd.f32 %v3126, %v6291
      %v6338 = vadd.f32 %v3131, %v6293
      %v6339 = vadd.f32 %v3136, %v6295
      %v6340 = vadd.f32 %v3141, %v6297
      %v6341 = vadd.f32 %v3146, %v6299
      %v6342 = vadd.f32 %v3151, %v6301
      %v6343 = vadd.f32 %v3156, %v6303
      %v6344 = vadd.f32 %v3161, %v6305
      %v6345 = vadd.f32 %v3166, %v6307
      %v6346 = vadd.f32 %v3171, %v6309
      %v6347 = vadd.f32 %v3176, %v6311
      %v6348 = vadd.f32 %v3181, %v6313
      %v6349 = vadd.f32 %v3186, %v6315
      %v6350 = vadd.f32 %v3191, %v6317
      %v6351 = vadd.f32 %v3196, %v6319
      %v6352 = vsel %vm1022, %v4090, %v4844
      %v6353 = vsel %vm1022, %v4091, %v4845
      %v6354 = vsel %vm1022, %v4092, %v4846
      %v6355 = vsel %vm1022, %v4093, %v4847
      %v6356 = vsel %vm1022, %v4094, %v4848
      %v6357 = vsel %vm1022, %v4095, %v4849
      %v6358 = vsel %vm1022, %v4096, %v4850
      %v6359 = vsel %vm1022, %v4097, %v4851
      %v6360 = vsel %vm1022, %v4098, %v4852
      %v6361 = vsel %vm1022, %v4099, %v4853
      %v6362 = vsel %vm1022, %v4100, %v4854
      %v6363 = vsel %vm1022, %v4101, %v4855
      %v6364 = vsel %vm1022, %v4102, %v4856
      %v6365 = vsel %vm1022, %v4103, %v4857
      %v6366 = vsel %vm1022, %v4104, %v4858
      %v6367 = vsel %vm1022, %v4105, %v4859
      %v6368 = vsel %vm666, %v6352, %v5590
      %v6369 = vsel %vm666, %v6353, %v5591
      %v6370 = vsel %vm666, %v6354, %v5592
      %v6371 = vsel %vm666, %v6355, %v5593
      %v6372 = vsel %vm666, %v6356, %v5594
      %v6373 = vsel %vm666, %v6357, %v5595
      %v6374 = vsel %vm666, %v6358, %v5596
      %v6375 = vsel %vm666, %v6359, %v5597
      %v6376 = vsel %vm666, %v6360, %v5598
      %v6377 = vsel %vm666, %v6361, %v5599
      %v6378 = vsel %vm666, %v6362, %v5600
      %v6379 = vsel %vm666, %v6363, %v5601
      %v6380 = vsel %vm666, %v6364, %v5602
      %v6381 = vsel %vm666, %v6365, %v5603
      %v6382 = vsel %vm666, %v6366, %v5604
      %v6383 = vsel %vm666, %v6367, %v5605
      %v6384 = vsel %vm2879, %v6368, %v6336
      %v6385 = vsel %vm2879, %v6369, %v6337
      %v6386 = vsel %vm2879, %v6370, %v6338
      %v6387 = vsel %vm2879, %v6371, %v6339
      %v6388 = vsel %vm2879, %v6372, %v6340
      %v6389 = vsel %vm2879, %v6373, %v6341
      %v6390 = vsel %vm2879, %v6374, %v6342
      %v6391 = vsel %vm2879, %v6375, %v6343
      %v6392 = vsel %vm2879, %v6376, %v6344
      %v6393 = vsel %vm2879, %v6377, %v6345
      %v6394 = vsel %vm2879, %v6378, %v6346
      %v6395 = vsel %vm2879, %v6379, %v6347
      %v6396 = vsel %vm2879, %v6380, %v6348
      %v6397 = vsel %vm2879, %v6381, %v6349
      %v6398 = vsel %vm2879, %v6382, %v6350
      %v6399 = vsel %vm2879, %v6383, %v6351
      %v6400 = vld [vmem:[%s16] sm:$0xff]
      %v6401 = vld [vmem:[%s16 + $0x8] sm:$0xff]
      %v6402 = vld [vmem:[%s16 + $0x10] sm:$0xff]
      %v6403 = vld [vmem:[%s16 + $0x18] sm:$0xff]
      %v6404 = vld [vmem:[%s17] sm:$0x1]
      %v6406 = vlaneseq
      %v6407 = vshrl.u32 %v6406, 7
      %v6408 = vsub.s32 0, %v6407
      %v6409 = vrot.slane %v6404, %v6408
      %v6412 = vsel %vm2899, %v6384, 0
      %v6415 = vsel %vm2899, %v6385, 0
      %v6418 = vsel %vm2899, %v6386, 0
      %v6421 = vsel %vm2899, %v6387, 0
      %v6424 = vsel %vm2899, %v6388, 0
      %v6427 = vsel %vm2899, %v6389, 0
      %v6430 = vsel %vm2899, %v6390, 0
      %v6433 = vsel %vm2899, %v6391, 0
      %v6436 = vsel %vm2899, %v6392, 0
      %v6439 = vsel %vm2899, %v6393, 0
      %v6442 = vsel %vm2899, %v6394, 0
      %v6445 = vsel %vm2899, %v6395, 0
      %v6448 = vsel %vm2899, %v6396, 0
      %v6451 = vsel %vm2899, %v6397, 0
      %v6454 = vsel %vm2899, %v6398, 0
      %v6457 = vsel %vm2899, %v6399, 0
      %6459 = vmatprep.subr.mxu0 0.0
      %6460 = vmatpush1.msra.mxu0 %v6400
      %6461 = vmatprep.subr.mxu0 0.0
      %6462 = vmatpush1.msra.mxu0 %v6401
      %6463 = vmatprep.subr.mxu0 0.0
      %6464 = vmatpush1.msra.mxu0 %v6402
      %6465 = vmatprep.subr.mxu0 0.0
      %6466 = vmatpush1.msra.mxu0 %v6403
      %6467 = vmatprep.subr.mxu0 0.0
      %6468 = vmatpush1.msra.mxu0 0.0
      %6469 = vmatprep.subr.mxu0 0.0
      %6470 = vmatpush1.msra.mxu0 0.0
      %6471 = vmatprep.subr.mxu0 0.0
      %6472 = vmatpush1.msra.mxu0 0.0
      %6473 = vmatprep.subr.mxu0 0.0
      %6474 = vmatpush1.msra.mxu0 0.0
      %6475 = vmatprep.subr.mxu0 0.0
      %6476 = vmatpush1.msra.mxu0 0.0
      %6477 = vmatprep.subr.mxu0 0.0
      %6478 = vmatpush1.msra.mxu0 0.0
      %6479 = vmatprep.subr.mxu0 0.0
      %6480 = vmatpush1.msra.mxu0 0.0
      %6481 = vmatprep.subr.mxu0 0.0
      %6482 = vmatpush1.msra.mxu0 0.0
      %6483 = vmatprep.subr.mxu0 0.0
      %6484 = vmatpush1.msra.mxu0 0.0
      %6485 = vmatprep.subr.mxu0 0.0
      %6486 = vmatpush1.msra.mxu0 0.0
      %6487 = vmatprep.subr.mxu0 0.0
      %6488 = vmatpush1.msra.mxu0 0.0
      %6489 = vmatprep.subr.mxu0 0.0
      %6490 = vmatpush1.msra.mxu0 0.0
      %6491 = vmatprep.subr.mxu0 0.0
      %6492 = vmatpush1.msra.mxu0 0.0
      %6493 = vmatprep.subr.mxu0 0.0
      %6494 = vmatpush1.msra.mxu0 0.0
      %6495 = vmatprep.subr.mxu0 0.0
      %6496 = vmatpush1.msra.mxu0 0.0
      %6497 = vmatprep.subr.mxu0 0.0
      %6498 = vmatpush1.msra.mxu0 0.0
      %6499 = vmatprep.subr.mxu0 0.0
      %6500 = vmatpush1.msra.mxu0 0.0
      %6501 = vmatprep.subr.mxu0 0.0
      %6502 = vmatpush1.msra.mxu0 0.0
      %6503 = vmatprep.subr.mxu0 0.0
      %6504 = vmatpush1.msra.mxu0 0.0
      %6505 = vmatprep.subr.mxu0 0.0
      %6506 = vmatpush1.msra.mxu0 0.0
      %6507 = vmatprep.subr.mxu0 0.0
      %6508 = vmatpush1.msra.mxu0 0.0
      %6509 = vmatprep.subr.mxu0 0.0
      %6510 = vmatpush1.msra.mxu0 0.0
      %6511 = vmatprep.subr.mxu0 0.0
      %6512 = vmatpush1.msra.mxu0 0.0
      %6513 = vmatprep.subr.mxu0 0.0
      %6514 = vmatpush1.msra.mxu0 0.0
      %6515 = vmatprep.subr.mxu0 0.0
      %6516 = vmatpush1.msra.mxu0 0.0
      %6517 = vmatprep.subr.mxu0 0.0
      %6518 = vmatpush1.msra.mxu0 0.0
      %6519 = vmatprep.subr.mxu0 0.0
      %6520 = vmatpush1.msra.mxu0 0.0
      %6521 = vmatprep.subr.mxu0 0.0
      %6522 = vmatpush1.msra.mxu0 0.0
      %6523 = vmatprep.mubr.f32.mxu0 0.0
      %6524 = vmatmul.mubr.f32.gmra.mrb[0].mxu0 %v6412
      %v6525 = vpop.f32.mrb[0].mxu0
      %v6526 = vadd.f32 %v6409, %v6525
      %v6527 = vpop.f32.mrb[0].mxu0
      %6528 = vmatprep.mubr.f32.mxu0 0.0
      %6529 = vmatmul.mubr.f32.gmra.mrb[0].mxu0 %v6415
      %v6530 = vpop.f32.mrb[0].mxu0
      %v6531 = vadd.f32 %v6409, %v6530
      %v6532 = vpop.f32.mrb[0].mxu0
      %6533 = vmatprep.mubr.f32.mxu0 0.0
      %6534 = vmatmul.mubr.f32.gmra.mrb[0].mxu0 %v6418
      %v6535 = vpop.f32.mrb[0].mxu0
      %v6536 = vadd.f32 %v6409, %v6535
      %v6537 = vpop.f32.mrb[0].mxu0
      %6538 = vmatprep.mubr.f32.mxu0 0.0
      %6539 = vmatmul.mubr.f32.gmra.mrb[0].mxu0 %v6421
      %v6540 = vpop.f32.mrb[0].mxu0
      %v6541 = vadd.f32 %v6409, %v6540
      %v6542 = vpop.f32.mrb[0].mxu0
      %6543 = vmatprep.mubr.f32.mxu0 0.0
      %6544 = vmatmul.mubr.f32.gmra.mrb[0].mxu0 %v6424
      %v6545 = vpop.f32.mrb[0].mxu0
      %v6546 = vadd.f32 %v6409, %v6545
      %v6547 = vpop.f32.mrb[0].mxu0
      %6548 = vmatprep.mubr.f32.mxu0 0.0
      %6549 = vmatmul.mubr.f32.gmra.mrb[0].mxu0 %v6427
      %v6550 = vpop.f32.mrb[0].mxu0
      %v6551 = vadd.f32 %v6409, %v6550
      %v6552 = vpop.f32.mrb[0].mxu0
      %6553 = vmatprep.mubr.f32.mxu0 0.0
      %6554 = vmatmul.mubr.f32.gmra.mrb[0].mxu0 %v6430
      %v6555 = vpop.f32.mrb[0].mxu0
      %v6556 = vadd.f32 %v6409, %v6555
      %v6557 = vpop.f32.mrb[0].mxu0
      %6558 = vmatprep.mubr.f32.mxu0 0.0
      %6559 = vmatmul.mubr.f32.gmra.mrb[0].mxu0 %v6433
      %v6560 = vpop.f32.mrb[0].mxu0
      %v6561 = vadd.f32 %v6409, %v6560
      %v6562 = vpop.f32.mrb[0].mxu0
      %6563 = vmatprep.mubr.f32.mxu0 0.0
      %6564 = vmatmul.mubr.f32.gmra.mrb[0].mxu0 %v6436
      %v6565 = vpop.f32.mrb[0].mxu0
      %v6566 = vadd.f32 %v6409, %v6565
      %v6567 = vpop.f32.mrb[0].mxu0
      %6568 = vmatprep.mubr.f32.mxu0 0.0
      %6569 = vmatmul.mubr.f32.gmra.mrb[0].mxu0 %v6439
      %v6570 = vpop.f32.mrb[0].mxu0
      %v6571 = vadd.f32 %v6409, %v6570
      %v6572 = vpop.f32.mrb[0].mxu0
      %6573 = vmatprep.mubr.f32.mxu0 0.0
      %6574 = vmatmul.mubr.f32.gmra.mrb[0].mxu0 %v6442
      %v6575 = vpop.f32.mrb[0].mxu0
      %v6576 = vadd.f32 %v6409, %v6575
      %v6577 = vpop.f32.mrb[0].mxu0
      %6578 = vmatprep.mubr.f32.mxu0 0.0
      %6579 = vmatmul.mubr.f32.gmra.mrb[0].mxu0 %v6445
      %v6580 = vpop.f32.mrb[0].mxu0
      %v6581 = vadd.f32 %v6409, %v6580
      %v6582 = vpop.f32.mrb[0].mxu0
      %6583 = vmatprep.mubr.f32.mxu0 0.0
      %6584 = vmatmul.mubr.f32.gmra.mrb[0].mxu0 %v6448
      %v6585 = vpop.f32.mrb[0].mxu0
      %v6586 = vadd.f32 %v6409, %v6585
      %v6587 = vpop.f32.mrb[0].mxu0
      %6588 = vmatprep.mubr.f32.mxu0 0.0
      %6589 = vmatmul.mubr.f32.gmra.mrb[0].mxu0 %v6451
      %v6590 = vpop.f32.mrb[0].mxu0
      %v6591 = vadd.f32 %v6409, %v6590
      %v6592 = vpop.f32.mrb[0].mxu0
      %6593 = vmatprep.mubr.f32.mxu0 0.0
      %6594 = vmatmul.mubr.f32.gmra.mrb[0].mxu0 %v6454
      %v6595 = vpop.f32.mrb[0].mxu0
      %v6596 = vadd.f32 %v6409, %v6595
      %v6597 = vpop.f32.mrb[0].mxu0
      %6598 = vmatprep.mubr.f32.mxu0 0.0
      %6599 = vmatmul.mubr.f32.gmra.mrb[0].mxu0 %v6457
      %v6600 = vpop.f32.mrb[0].mxu0
      %v6601 = vadd.f32 %v6409, %v6600
      %v6602 = vpop.f32.mrb[0].mxu0
      %6603 = vdwg.mxu0
      %v6604 = vmax.f32 %v6526, 0.0
      %v6605 = vmax.f32 %v6531, 0.0
      %v6606 = vmax.f32 %v6536, 0.0
      %v6607 = vmax.f32 %v6541, 0.0
      %v6608 = vmax.f32 %v6546, 0.0
      %v6609 = vmax.f32 %v6551, 0.0
      %v6610 = vmax.f32 %v6556, 0.0
      %v6611 = vmax.f32 %v6561, 0.0
      %v6612 = vmax.f32 %v6566, 0.0
      %v6613 = vmax.f32 %v6571, 0.0
      %v6614 = vmax.f32 %v6576, 0.0
      %v6615 = vmax.f32 %v6581, 0.0
      %v6616 = vmax.f32 %v6586, 0.0
      %v6617 = vmax.f32 %v6591, 0.0
      %v6618 = vmax.f32 %v6596, 0.0
      %v6619 = vmax.f32 %v6601, 0.0
      %v6620 = vadd.f32 %v6384, %v6604
      %v6621 = vadd.f32 %v6385, %v6605
      %v6622 = vadd.f32 %v6386, %v6606
      %v6623 = vadd.f32 %v6387, %v6607
      %v6624 = vadd.f32 %v6388, %v6608
      %v6625 = vadd.f32 %v6389, %v6609
      %v6626 = vadd.f32 %v6390, %v6610
      %v6627 = vadd.f32 %v6391, %v6611
      %v6628 = vadd.f32 %v6392, %v6612
      %v6629 = vadd.f32 %v6393, %v6613
      %v6630 = vadd.f32 %v6394, %v6614
      %v6631 = vadd.f32 %v6395, %v6615
      %v6632 = vadd.f32 %v6396, %v6616
      %v6633 = vadd.f32 %v6397, %v6617
      %v6634 = vadd.f32 %v6398, %v6618
      %v6635 = vadd.f32 %v6399, %v6619
      %v6636 = vld [vmem:[%s18] sm:$0xff]
      %v6637 = vld [vmem:[%s18 + $0x8] sm:$0xff]
      %v6638 = vld [vmem:[%s18 + $0x10] sm:$0xff]
      %v6639 = vld [vmem:[%s18 + $0x18] sm:$0xff]
      %v6640 = vld [vmem:[%s19] sm:$0x1]
      %v6642 = vlaneseq
      %v6643 = vshrl.u32 %v6642, 7
      %v6644 = vsub.s32 0, %v6643
      %v6645 = vrot.slane %v6640, %v6644
      %v6648 = vsel %vm2899, %v6620, 0
      %v6651 = vsel %vm2899, %v6621, 0
      %v6654 = vsel %vm2899, %v6622, 0
      %v6657 = vsel %vm2899, %v6623, 0
      %v6660 = vsel %vm2899, %v6624, 0
      %v6663 = vsel %vm2899, %v6625, 0
      %v6666 = vsel %vm2899, %v6626, 0
      %v6669 = vsel %vm2899, %v6627, 0
      %v6672 = vsel %vm2899, %v6628, 0
      %v6675 = vsel %vm2899, %v6629, 0
      %v6678 = vsel %vm2899, %v6630, 0
      %v6681 = vsel %vm2899, %v6631, 0
      %v6684 = vsel %vm2899, %v6632, 0
      %v6687 = vsel %vm2899, %v6633, 0
      %v6690 = vsel %vm2899, %v6634, 0
      %v6693 = vsel %vm2899, %v6635, 0
      %6695 = vmatprep.subr.mxu0 0.0
      %6696 = vmatpush1.msra.mxu0 %v6636
      %6697 = vmatprep.subr.mxu0 0.0
      %6698 = vmatpush1.msra.mxu0 %v6637
      %6699 = vmatprep.subr.mxu0 0.0
      %6700 = vmatpush1.msra.mxu0 %v6638
      %6701 = vmatprep.subr.mxu0 0.0
      %6702 = vmatpush1.msra.mxu0 %v6639
      %6703 = vmatprep.subr.mxu0 0.0
      %6704 = vmatpush1.msra.mxu0 0.0
      %6705 = vmatprep.subr.mxu0 0.0
      %6706 = vmatpush1.msra.mxu0 0.0
      %6707 = vmatprep.subr.mxu0 0.0
      %6708 = vmatpush1.msra.mxu0 0.0
      %6709 = vmatprep.subr.mxu0 0.0
      %6710 = vmatpush1.msra.mxu0 0.0
      %6711 = vmatprep.subr.mxu0 0.0
      %6712 = vmatpush1.msra.mxu0 0.0
      %6713 = vmatprep.subr.mxu0 0.0
      %6714 = vmatpush1.msra.mxu0 0.0
      %6715 = vmatprep.subr.mxu0 0.0
      %6716 = vmatpush1.msra.mxu0 0.0
      %6717 = vmatprep.subr.mxu0 0.0
      %6718 = vmatpush1.msra.mxu0 0.0
      %6719 = vmatprep.subr.mxu0 0.0
      %6720 = vmatpush1.msra.mxu0 0.0
      %6721 = vmatprep.subr.mxu0 0.0
      %6722 = vmatpush1.msra.mxu0 0.0
      %6723 = vmatprep.subr.mxu0 0.0
      %6724 = vmatpush1.msra.mxu0 0.0
      %6725 = vmatprep.subr.mxu0 0.0
      %6726 = vmatpush1.msra.mxu0 0.0
      %6727 = vmatprep.subr.mxu0 0.0
      %6728 = vmatpush1.msra.mxu0 0.0
      %6729 = vmatprep.subr.mxu0 0.0
      %6730 = vmatpush1.msra.mxu0 0.0
      %6731 = vmatprep.subr.mxu0 0.0
      %6732 = vmatpush1.msra.mxu0 0.0
      %6733 = vmatprep.subr.mxu0 0.0
      %6734 = vmatpush1.msra.mxu0 0.0
      %6735 = vmatprep.subr.mxu0 0.0
      %6736 = vmatpush1.msra.mxu0 0.0
      %6737 = vmatprep.subr.mxu0 0.0
      %6738 = vmatpush1.msra.mxu0 0.0
      %6739 = vmatprep.subr.mxu0 0.0
      %6740 = vmatpush1.msra.mxu0 0.0
      %6741 = vmatprep.subr.mxu0 0.0
      %6742 = vmatpush1.msra.mxu0 0.0
      %6743 = vmatprep.subr.mxu0 0.0
      %6744 = vmatpush1.msra.mxu0 0.0
      %6745 = vmatprep.subr.mxu0 0.0
      %6746 = vmatpush1.msra.mxu0 0.0
      %6747 = vmatprep.subr.mxu0 0.0
      %6748 = vmatpush1.msra.mxu0 0.0
      %6749 = vmatprep.subr.mxu0 0.0
      %6750 = vmatpush1.msra.mxu0 0.0
      %6751 = vmatprep.subr.mxu0 0.0
      %6752 = vmatpush1.msra.mxu0 0.0
      %6753 = vmatprep.subr.mxu0 0.0
      %6754 = vmatpush1.msra.mxu0 0.0
      %6755 = vmatprep.subr.mxu0 0.0
      %6756 = vmatpush1.msra.mxu0 0.0
      %6757 = vmatprep.subr.mxu0 0.0
      %6758 = vmatpush1.msra.mxu0 0.0
      %6759 = vmatprep.mubr.f32.mxu0 0.0
      %6760 = vmatmul.mubr.f32.gmra.mrb[0].mxu0 %v6648
      %v6761 = vpop.f32.mrb[0].mxu0
      %v6762 = vadd.f32 %v6645, %v6761
      %v6763 = vpop.f32.mrb[0].mxu0
      %6764 = vmatprep.mubr.f32.mxu0 0.0
      %6765 = vmatmul.mubr.f32.gmra.mrb[0].mxu0 %v6651
      %v6766 = vpop.f32.mrb[0].mxu0
      %v6767 = vadd.f32 %v6645, %v6766
      %v6768 = vpop.f32.mrb[0].mxu0
      %6769 = vmatprep.mubr.f32.mxu0 0.0
      %6770 = vmatmul.mubr.f32.gmra.mrb[0].mxu0 %v6654
      %v6771 = vpop.f32.mrb[0].mxu0
      %v6772 = vadd.f32 %v6645, %v6771
      %v6773 = vpop.f32.mrb[0].mxu0
      %6774 = vmatprep.mubr.f32.mxu0 0.0
      %6775 = vmatmul.mubr.f32.gmra.mrb[0].mxu0 %v6657
      %v6776 = vpop.f32.mrb[0].mxu0
      %v6777 = vadd.f32 %v6645, %v6776
      %v6778 = vpop.f32.mrb[0].mxu0
      %6779 = vmatprep.mubr.f32.mxu0 0.0
      %6780 = vmatmul.mubr.f32.gmra.mrb[0].mxu0 %v6660
      %v6781 = vpop.f32.mrb[0].mxu0
      %v6782 = vadd.f32 %v6645, %v6781
      %v6783 = vpop.f32.mrb[0].mxu0
      %6784 = vmatprep.mubr.f32.mxu0 0.0
      %6785 = vmatmul.mubr.f32.gmra.mrb[0].mxu0 %v6663
      %v6786 = vpop.f32.mrb[0].mxu0
      %v6787 = vadd.f32 %v6645, %v6786
      %v6788 = vpop.f32.mrb[0].mxu0
      %6789 = vmatprep.mubr.f32.mxu0 0.0
      %6790 = vmatmul.mubr.f32.gmra.mrb[0].mxu0 %v6666
      %v6791 = vpop.f32.mrb[0].mxu0
      %v6792 = vadd.f32 %v6645, %v6791
      %v6793 = vpop.f32.mrb[0].mxu0
      %6794 = vmatprep.mubr.f32.mxu0 0.0
      %6795 = vmatmul.mubr.f32.gmra.mrb[0].mxu0 %v6669
      %v6796 = vpop.f32.mrb[0].mxu0
      %v6797 = vadd.f32 %v6645, %v6796
      %v6798 = vpop.f32.mrb[0].mxu0
      %6799 = vmatprep.mubr.f32.mxu0 0.0
      %6800 = vmatmul.mubr.f32.gmra.mrb[0].mxu0 %v6672
      %v6801 = vpop.f32.mrb[0].mxu0
      %v6802 = vadd.f32 %v6645, %v6801
      %v6803 = vpop.f32.mrb[0].mxu0
      %6804 = vmatprep.mubr.f32.mxu0 0.0
      %6805 = vmatmul.mubr.f32.gmra.mrb[0].mxu0 %v6675
      %v6806 = vpop.f32.mrb[0].mxu0
      %v6807 = vadd.f32 %v6645, %v6806
      %v6808 = vpop.f32.mrb[0].mxu0
      %6809 = vmatprep.mubr.f32.mxu0 0.0
      %6810 = vmatmul.mubr.f32.gmra.mrb[0].mxu0 %v6678
      %v6811 = vpop.f32.mrb[0].mxu0
      %v6812 = vadd.f32 %v6645, %v6811
      %v6813 = vpop.f32.mrb[0].mxu0
      %6814 = vmatprep.mubr.f32.mxu0 0.0
      %6815 = vmatmul.mubr.f32.gmra.mrb[0].mxu0 %v6681
      %v6816 = vpop.f32.mrb[0].mxu0
      %v6817 = vadd.f32 %v6645, %v6816
      %v6818 = vpop.f32.mrb[0].mxu0
      %6819 = vmatprep.mubr.f32.mxu0 0.0
      %6820 = vmatmul.mubr.f32.gmra.mrb[0].mxu0 %v6684
      %v6821 = vpop.f32.mrb[0].mxu0
      %v6822 = vadd.f32 %v6645, %v6821
      %v6823 = vpop.f32.mrb[0].mxu0
      %6824 = vmatprep.mubr.f32.mxu0 0.0
      %6825 = vmatmul.mubr.f32.gmra.mrb[0].mxu0 %v6687
      %v6826 = vpop.f32.mrb[0].mxu0
      %v6827 = vadd.f32 %v6645, %v6826
      %v6828 = vpop.f32.mrb[0].mxu0
      %6829 = vmatprep.mubr.f32.mxu0 0.0
      %6830 = vmatmul.mubr.f32.gmra.mrb[0].mxu0 %v6690
      %v6831 = vpop.f32.mrb[0].mxu0
      %v6832 = vadd.f32 %v6645, %v6831
      %v6833 = vpop.f32.mrb[0].mxu0
      %6834 = vmatprep.mubr.f32.mxu0 0.0
      %6835 = vmatmul.mubr.f32.gmra.mrb[0].mxu0 %v6693
      %v6836 = vpop.f32.mrb[0].mxu0
      %v6837 = vadd.f32 %v6645, %v6836
      %v6838 = vpop.f32.mrb[0].mxu0
      %6839 = vdwg.mxu0
      %6840 = vst [vmem:[%s631] sm:$0xff] %v6762
      %6841 = vst [vmem:[%s631 + $0x8] sm:$0xff] %v6767
      %6842 = vst [vmem:[%s631 + $0x10] sm:$0xff] %v6772
      %6843 = vst [vmem:[%s631 + $0x18] sm:$0xff] %v6777
      %6844 = vst [vmem:[%s631 + $0x20] sm:$0xff] %v6782
      %6845 = vst [vmem:[%s631 + $0x28] sm:$0xff] %v6787
      %6846 = vst [vmem:[%s631 + $0x30] sm:$0xff] %v6792
      %6847 = vst [vmem:[%s631 + $0x38] sm:$0xff] %v6797
      %6848 = vst [vmem:[%s631 + $0x40] sm:$0xff] %v6802
      %6849 = vst [vmem:[%s631 + $0x48] sm:$0xff] %v6807
      %6850 = vst [vmem:[%s631 + $0x50] sm:$0xff] %v6812
      %6851 = vst [vmem:[%s631 + $0x58] sm:$0xff] %v6817
      %6852 = vst [vmem:[%s631 + $0x60] sm:$0xff] %v6822
      %6853 = vst [vmem:[%s631 + $0x68] sm:$0xff] %v6827
      %6854 = vst [vmem:[%s631 + $0x70] sm:$0xff] %v6832
      %6855 = vst [vmem:[%s631 + $0x78] sm:$0xff] %v6837
      %s6856 = smul.u32 16, %s31
      %p6857 = scmp.lt.s32.totalorder %s6856, 63
      %s6858 = scalar_select %p6857, %s6856, 63
      %s6859 = smul.addr %s6858, 8
      %s6860 = scalar_lea.vmem %s20, %s6859
      // Predicated region
      $region101: #{whatsnet_im_forward.1} parent=99 // pred_check
        %p6861 = pneg %p474
      $region102: #{whatsnet_im_forward.1} parent=99 // pred_check_branch
        %6863 = sbr.rel (%p6861) target = $region104
      $region103: #{whatsnet_im_forward.1} parent=99 // pred_region
        %s6864 = smul.u32 16, %s31
      $region104: #{whatsnet_im_forward.1} parent=99 // pred_fallthru
        _
    $region100: #{whatsnet_im_forward.1} parent=5 // pred_fallthru
      _
    %p6865 = scmp.le.s32.totalorder 2, %s26
    // Predicated region
    $region105: #{whatsnet_im_forward.1} parent=5 // pred_check
      %p6866 = pneg %p6865
    $region106: #{whatsnet_im_forward.1} parent=5 // pred_check_branch
      %6868 = sbr.rel (%p6866) target = $region108
    $region107: #{whatsnet_im_forward.1} parent=5 // pred_region
      %s6869 = ssub.s32 %s26, 2
      // Predicated region
      $region109: #{whatsnet_im_forward.1} parent=107 // pred_check
        %p6870 = pneg %p480
      $region110: #{whatsnet_im_forward.1} parent=107 // pred_check_branch
        %6872 = sbr.rel (%p6870) target = $region112
      $region111: #{whatsnet_im_forward.1} parent=107 // pred_region
        %s6873 = smul.u32 16, %s32
        %p6874 = scmp.lt.s32.totalorder %s6873, 63
        %s6875 = scalar_select %p6874, %s6873, 63
        %s6876 = smul.addr %s6875, 8
        %s6877 = scalar_lea.vmem %s20, %s6876
      $region112: #{whatsnet_im_forward.1} parent=107 // pred_fallthru
        _
    $region108: #{whatsnet_im_forward.1} parent=5 // pred_fallthru
      _
  $region6: #{whatsnet_im_forward.1} parent=0 // loop_footer
    %s30 = sadd.s32 1, %s26
  $region7: #{whatsnet_im_forward.1} parent=0 // loop_footer_branch
    %25 = sbr.rel target = $region3
  $region8: #{whatsnet_im_forward.1} parent=0 // loop_exit
    _

</llo_original>
